<compile_context>
chip_gen: v7x
topology: tpu7x:2x2x1
jax: 0.10.0
libtpu: 0.0.40
codegen_flags: <defaults>
</compile_context>

<pallas_src>
import functools

import jax
import jax.numpy as jnp
from jax import lax
from jax.experimental import pallas as pl
from jax.experimental.pallas import tpu as pltpu

D = 128          # model width
H = 4            # attention heads
HD = D // H      # head dim = 32
L = 4            # transformer layers
FF = 128         # feed-forward width
LN_EPS = 1e-5
NEG_SLOPE = 0.01  # LeakyReLU default
NEG_BIG = -1e9    # additive key-padding / cross-batch bias


def _leaky_relu(x):
    return jnp.where(x > 0, x, NEG_SLOPE * x)


def _layer_norm(x, g, b):
    mu = jnp.mean(x, axis=-1, keepdims=True)
    var = jnp.mean((x - mu) ** 2, axis=-1, keepdims=True)
    return (x - mu) * lax.rsqrt(var + LN_EPS) * g + b


def ebm_kernel(x_ref, kbias_ref, cmat_ref, pmat_ref, hmask_ref,
               wf_ref, bf_ref,
               wqkv_ref, bqkv_ref, wo_ref, bo_ref,
               ln1g_ref, ln1b_ref,
               w1_ref, b1_ref, w2_ref, b2_ref,
               ln2g_ref, ln2b_ref,
               wg1_ref, bg1_ref, wg2_ref, bg2_ref, wg3_ref, bg3_ref,
               out_ref):
    x = x_ref[0]                                   # (TBN, 2)
    kbias = kbias_ref[0]                           # (TBN, TBN) block-diag + key-padding bias

    # per-batch mean centering of coordinates via a constant block-averaging matmul
    # (includes padded rows, exactly as in the torch reference)
    x = x - jnp.dot(cmat_ref[...], x, preferred_element_type=jnp.float32)

    # ---- f_net: Linear(2,128) + LeakyReLU as two rank-1 VPU FMAs ----
    h = (x[:, 0:1] * wf_ref[0:1, :] + x[:, 1:2] * wf_ref[1:2, :]) + bf_ref[...]
    h = _leaky_relu(h)                             # (TBN, D)

    # ---- 4 post-norm TransformerEncoderLayers, batched over TBN rows ----
    for l in range(L):
        qkv = jnp.dot(h, wqkv_ref[l], preferred_element_type=jnp.float32) + bqkv_ref[l]
        q = qkv[:, 0:D]          # 1/sqrt(HD) already folded into these columns
        k = qkv[:, D:2 * D]
        v = qkv[:, 2 * D:3 * D]

        attn = jnp.zeros_like(h)                   # (TBN, D) f32 accumulator
        for hh in range(H):
            hm = hmask_ref[hh:hh + 1, :]           # (1, D) lane mask for head hh
            # (Q ⊙ m_h) · Kᵀ == Q_h @ K_hᵀ : full 128-lane contraction, no slicing
            s = lax.dot_general(q * hm, k, (((1,), (1,)), ((), ())),
                                preferred_element_type=jnp.float32) + kbias
            s = s - jnp.max(s, axis=-1, keepdims=True)
            p = jnp.exp(s)
            p = p * pl.reciprocal(jnp.sum(p, axis=-1, keepdims=True), approx=True)
            # P_h @ (V ⊙ m_h) lands in head hh's 32 lanes -> accumulate, no concat
            attn = attn + jnp.dot(p, v * hm, preferred_element_type=jnp.float32)

        attn = jnp.dot(attn, wo_ref[l], preferred_element_type=jnp.float32) + bo_ref[l]

        # residual + LayerNorm 1
        h1 = _layer_norm(h + attn, ln1g_ref[l], ln1b_ref[l])

        # feed-forward (relu)
        f = jnp.dot(h1, w1_ref[l], preferred_element_type=jnp.float32) + b1_ref[l]
        f = jnp.maximum(f, 0.0)
        f = jnp.dot(f, w2_ref[l], preferred_element_type=jnp.float32) + b2_ref[l]

        # residual + LayerNorm 2
        h = _layer_norm(h1 + f, ln2g_ref[l], ln2b_ref[l])

    # ---- mean-pool over N per batch element (constant pooling matmul) ----
    pooled = jnp.dot(pmat_ref[...], h, preferred_element_type=jnp.float32)   # (TB, D)

    # ---- g_net ----
    g = _leaky_relu(jnp.dot(pooled, wg1_ref[...], preferred_element_type=jnp.float32)
                    + bg1_ref[...])
    g = _leaky_relu(jnp.dot(g, wg2_ref[...], preferred_element_type=jnp.float32)
                    + bg2_ref[...])
    g = jnp.dot(g, wg3_ref[...], preferred_element_type=jnp.float32) + bg3_ref[...]  # (TB, 1)

    out_ref[0] = g


# Parameter order must match the kernel signature (after the 5 data/constant inputs).
PARAM_ORDER = ("wf", "bf",
               "wqkv", "bqkv", "wo", "bo",
               "ln1g", "ln1b",
               "w1", "b1", "w2", "b2",
               "ln2g", "ln2b",
               "wg1", "bg1", "wg2", "bg2", "wg3", "bg3")


def init_params(key):
    """Deterministic synthetic parameters (shapes match the torch module)."""
    def nrm(k, shape, s=0.05):
        return s * jax.random.normal(k, shape, dtype=jnp.float32)

    ks = jax.random.split(key, 16)
    p = {
        # f_net: Linear(2, 128), stored (in, out)
        "wf": nrm(ks[0], (2, D)),
        "bf": jnp.zeros((1, D), jnp.float32),
        # transformer layers (stacked over L)
        "wqkv": nrm(ks[1], (L, D, 3 * D)),
        "bqkv": jnp.zeros((L, 1, 3 * D), jnp.float32),
        "wo": nrm(ks[2], (L, D, D)),
        "bo": jnp.zeros((L, 1, D), jnp.float32),
        "ln1g": jnp.ones((L, 1, D), jnp.float32),
        "ln1b": jnp.zeros((L, 1, D), jnp.float32),
        "w1": nrm(ks[3], (L, D, FF)),
        "b1": jnp.zeros((L, 1, FF), jnp.float32),
        "w2": nrm(ks[4], (L, FF, D)),
        "b2": jnp.zeros((L, 1, D), jnp.float32),
        "ln2g": jnp.ones((L, 1, D), jnp.float32),
        "ln2b": jnp.zeros((L, 1, D), jnp.float32),
        # g_net
        "wg1": nrm(ks[5], (D, D)),
        "bg1": jnp.zeros((1, D), jnp.float32),
        "wg2": nrm(ks[6], (D, D)),
        "bg2": jnp.zeros((1, D), jnp.float32),
        "wg3": nrm(ks[7], (D, 1)),
        "bg3": jnp.zeros((1, 1), jnp.float32),
    }
    return p


@functools.partial(jax.jit, static_argnames=("batch_tile",))
def shape_ebm_forward(sbox_centers, mask, params, batch_tile=None):
    """sbox_centers: (B, N, 2) float32, mask: (B, N) {0,1} (1 = real object).

    batch_tile: batch elements processed per grid step.  Default = B (one grid
    step, all dense ops batched over B*N rows).  On v7x with larger B, set it to
    B // 2 (or smaller) so the parallel grid axis spans both TensorCores.
    """
    B, N, _ = sbox_centers.shape
    TB = B if batch_tile is None else batch_tile
    assert B % TB == 0, "batch_tile must divide B"
    nt = B // TB
    TBN = TB * N

    # --- data prep (tiny, outside the kernel) ---
    x3 = sbox_centers.astype(jnp.float32).reshape(nt, TBN, 2)

    # block-diagonal key bias: query (bq,iq) may attend key (bk,ik) iff same batch
    # element and the key is a real object; otherwise add -1e9.
    maskb = mask.astype(bool).reshape(nt, TB, N)
    same = jnp.eye(TB, dtype=bool)                                  # (TB, TB)
    allowed = jnp.broadcast_to(
        same[None, :, None, :, None] & maskb[:, None, None, :, :],
        (nt, TB, N, TB, N))
    kbias3 = jnp.where(allowed, 0.0, NEG_BIG).astype(jnp.float32).reshape(nt, TBN, TBN)

    # constant block-averaging matrices: per-batch mean-centering and mean-pooling
    cmat = jnp.kron(jnp.eye(TB, dtype=jnp.float32),
                    jnp.full((N, N), 1.0 / N, jnp.float32))         # (TBN, TBN)
    pmat = jnp.kron(jnp.eye(TB, dtype=jnp.float32),
                    jnp.full((1, N), 1.0 / N, jnp.float32))         # (TB, TBN)
    # per-head lane masks
    hmask = (jnp.arange(D)[None, :] // HD == jnp.arange(H)[:, None]).astype(jnp.float32)

    # fold attention scale 1/sqrt(HD) into the Q columns of wqkv / bqkv
    scale = 1.0 / (float(HD) ** 0.5)
    p = dict(params)
    p["wqkv"] = p["wqkv"].at[:, :, :D].multiply(scale)
    p["bqkv"] = p["bqkv"].at[:, :, :D].multiply(scale)

    args = [x3, kbias3, cmat, pmat, hmask] + [p[k] for k in PARAM_ORDER]

    def _tiled(shape):
        nd = len(shape)
        return pl.BlockSpec((1,) + tuple(shape[1:]),
                            lambda i, _nd=nd: (i,) + (0,) * (_nd - 1))

    def _full(shape):
        nd = len(shape)
        return pl.BlockSpec(tuple(shape), lambda i, _nd=nd: (0,) * _nd)

    in_specs = ([_tiled(x3.shape), _tiled(kbias3.shape)]
                + [_full(a.shape) for a in args[2:]])

    out = pl.pallas_call(
        ebm_kernel,
        grid=(nt,),
        in_specs=in_specs,
        out_specs=_tiled((nt, TB, 1)),
        out_shape=jax.ShapeDtypeStruct((nt, TB, 1), jnp.float32),
        compiler_params=pltpu.CompilerParams(
            dimension_semantics=("parallel",),
        ),
    )(*args)
    return out.reshape(B, 1)


if __name__ == "__main__":
    B, N = 2, 8
    key = jax.random.PRNGKey(0)
    k_x, k_p = jax.random.split(key, 2)

    sbox_centers = jax.random.normal(k_x, (B, N, 2), dtype=jnp.float32)
    mask = jnp.ones((B, N), dtype=jnp.int32)
    mask = mask.at[1, 6:].set(0)          # two padded objects in batch element 1

    params = init_params(k_p)

    out = shape_ebm_forward(sbox_centers, mask, params)
    out = jax.block_until_ready(out)
    assert out.shape == (B, 1) and out.dtype == jnp.float32
    assert bool(jnp.all(jnp.isfinite(out)))
    print("KERNEL_OK")
</pallas_src>

<mosaic_0001>
module attributes {stable_mosaic.version = 11 : i64} {
  func.func @ebm_kernel(%arg0: i32, %arg1: memref<1x16x2xf32, #tpu.memory_space<vmem>>, %arg2: memref<1x16x16xf32, #tpu.memory_space<vmem>>, %arg3: memref<16x16xf32, #tpu.memory_space<vmem>>, %arg4: memref<2x16xf32, #tpu.memory_space<vmem>>, %arg5: memref<4x128xf32, #tpu.memory_space<vmem>>, %arg6: memref<2x128xf32, #tpu.memory_space<vmem>>, %arg7: memref<1x128xf32, #tpu.memory_space<vmem>>, %arg8: memref<4x128x384xf32, #tpu.memory_space<vmem>>, %arg9: memref<4x1x384xf32, #tpu.memory_space<vmem>>, %arg10: memref<4x128x128xf32, #tpu.memory_space<vmem>>, %arg11: memref<4x1x128xf32, #tpu.memory_space<vmem>>, %arg12: memref<4x1x128xf32, #tpu.memory_space<vmem>>, %arg13: memref<4x1x128xf32, #tpu.memory_space<vmem>>, %arg14: memref<4x128x128xf32, #tpu.memory_space<vmem>>, %arg15: memref<4x1x128xf32, #tpu.memory_space<vmem>>, %arg16: memref<4x128x128xf32, #tpu.memory_space<vmem>>, %arg17: memref<4x1x128xf32, #tpu.memory_space<vmem>>, %arg18: memref<4x1x128xf32, #tpu.memory_space<vmem>>, %arg19: memref<4x1x128xf32, #tpu.memory_space<vmem>>, %arg20: memref<128x128xf32, #tpu.memory_space<vmem>>, %arg21: memref<1x128xf32, #tpu.memory_space<vmem>>, %arg22: memref<128x128xf32, #tpu.memory_space<vmem>>, %arg23: memref<1x128xf32, #tpu.memory_space<vmem>>, %arg24: memref<128x1xf32, #tpu.memory_space<vmem>>, %arg25: memref<1x1xf32, #tpu.memory_space<vmem>>, %arg26: memref<1x2x1xf32, #tpu.memory_space<vmem>>) attributes {dimension_semantics = [#tpu.dimension_semantics<parallel>], iteration_bounds = array<i64: 1>, scalar_prefetch = 0 : i64, scratch_operands = 0 : i64, tpu.core_type = #tpu.core_type<tc>, window_params = [{transform_indices = @transform_0, window_bounds = array<i64: 1, 16, 2>}, {transform_indices = @transform_1, window_bounds = array<i64: 1, 16, 16>}, {pipeline_mode = #tpu.pipeline_mode<synchronous>, transform_indices = @transform_2, window_bounds = array<i64: 16, 16>}, {pipeline_mode = #tpu.pipeline_mode<synchronous>, transform_indices = @transform_3, window_bounds = array<i64: 2, 16>}, {pipeline_mode = #tpu.pipeline_mode<synchronous>, transform_indices = @transform_4, window_bounds = array<i64: 4, 128>}, {pipeline_mode = #tpu.pipeline_mode<synchronous>, transform_indices = @transform_5, window_bounds = array<i64: 2, 128>}, {pipeline_mode = #tpu.pipeline_mode<synchronous>, transform_indices = @transform_6, window_bounds = array<i64: 1, 128>}, {pipeline_mode = #tpu.pipeline_mode<synchronous>, transform_indices = @transform_7, window_bounds = array<i64: 4, 128, 384>}, {pipeline_mode = #tpu.pipeline_mode<synchronous>, transform_indices = @transform_8, window_bounds = array<i64: 4, 1, 384>}, {pipeline_mode = #tpu.pipeline_mode<synchronous>, transform_indices = @transform_9, window_bounds = array<i64: 4, 128, 128>}, {pipeline_mode = #tpu.pipeline_mode<synchronous>, transform_indices = @transform_10, window_bounds = array<i64: 4, 1, 128>}, {pipeline_mode = #tpu.pipeline_mode<synchronous>, transform_indices = @transform_11, window_bounds = array<i64: 4, 1, 128>}, {pipeline_mode = #tpu.pipeline_mode<synchronous>, transform_indices = @transform_12, window_bounds = array<i64: 4, 1, 128>}, {pipeline_mode = #tpu.pipeline_mode<synchronous>, transform_indices = @transform_13, window_bounds = array<i64: 4, 128, 128>}, {pipeline_mode = #tpu.pipeline_mode<synchronous>, transform_indices = @transform_14, window_bounds = array<i64: 4, 1, 128>}, {pipeline_mode = #tpu.pipeline_mode<synchronous>, transform_indices = @transform_15, window_bounds = array<i64: 4, 128, 128>}, {pipeline_mode = #tpu.pipeline_mode<synchronous>, transform_indices = @transform_16, window_bounds = array<i64: 4, 1, 128>}, {pipeline_mode = #tpu.pipeline_mode<synchronous>, transform_indices = @transform_17, window_bounds = array<i64: 4, 1, 128>}, {pipeline_mode = #tpu.pipeline_mode<synchronous>, transform_indices = @transform_18, window_bounds = array<i64: 4, 1, 128>}, {pipeline_mode = #tpu.pipeline_mode<synchronous>, transform_indices = @transform_19, window_bounds = array<i64: 128, 128>}, {pipeline_mode = #tpu.pipeline_mode<synchronous>, transform_indices = @transform_20, window_bounds = array<i64: 1, 128>}, {pipeline_mode = #tpu.pipeline_mode<synchronous>, transform_indices = @transform_21, window_bounds = array<i64: 128, 128>}, {pipeline_mode = #tpu.pipeline_mode<synchronous>, transform_indices = @transform_22, window_bounds = array<i64: 1, 128>}, {pipeline_mode = #tpu.pipeline_mode<synchronous>, transform_indices = @transform_23, window_bounds = array<i64: 128, 1>}, {pipeline_mode = #tpu.pipeline_mode<synchronous>, transform_indices = @transform_24, window_bounds = array<i64: 1, 1>}, {transform_indices = @transform_25, window_bounds = array<i64: 1, 2, 1>}]} {
    %c0 = arith.constant 0 : index
    %c0_0 = arith.constant 0 : index
    %c0_1 = arith.constant 0 : index
    %0 = vector.load %arg1[%c0, %c0_0, %c0_1] : memref<1x16x2xf32, #tpu.memory_space<vmem>>, vector<1x16x2xf32>
    %1 = vector.shape_cast %0 : vector<1x16x2xf32> to vector<16x2xf32>
    %c0_2 = arith.constant 0 : index
    %c0_3 = arith.constant 0 : index
    %c0_4 = arith.constant 0 : index
    %2 = vector.load %arg2[%c0_2, %c0_3, %c0_4] : memref<1x16x16xf32, #tpu.memory_space<vmem>>, vector<1x16x16xf32>
    %3 = vector.shape_cast %2 : vector<1x16x16xf32> to vector<16x16xf32>
    %c0_5 = arith.constant 0 : index
    %c0_6 = arith.constant 0 : index
    %4 = vector.load %arg3[%c0_5, %c0_6] : memref<16x16xf32, #tpu.memory_space<vmem>>, vector<16x16xf32>
    %cst = arith.constant dense<0.000000e+00> : vector<16x2xf32>
    %5 = tpu.matmul %4, %1, %cst {dimension_numbers = #tpu.dot_dimension_numbers<[1], [0], [0], [1], [0, 0, 1, 1], [], []>} : vector<16x16xf32>, vector<16x2xf32>, vector<16x2xf32> -> vector<16x2xf32>
    %6 = arith.subf %1, %5 : vector<16x2xf32>
    %7 = vector.extract_strided_slice %6 {offsets = [0, 0], sizes = [16, 1], strides = [1, 1]} : vector<16x2xf32> to vector<16x1xf32>
    %c0_7 = arith.constant 0 : index
    %c0_8 = arith.constant 0 : index
    %8 = vector.load %arg6[%c0_7, %c0_8] : memref<2x128xf32, #tpu.memory_space<vmem>>, vector<1x128xf32>
    %9 = vector.broadcast %7 : vector<16x1xf32> to vector<16x128xf32>
    %10 = vector.broadcast %8 : vector<1x128xf32> to vector<16x128xf32>
    %11 = arith.mulf %9, %10 : vector<16x128xf32>
    %12 = vector.extract_strided_slice %6 {offsets = [0, 1], sizes = [16, 1], strides = [1, 1]} : vector<16x2xf32> to vector<16x1xf32>
    %c1 = arith.constant 1 : index
    %c0_9 = arith.constant 0 : index
    %13 = vector.load %arg6[%c1, %c0_9] : memref<2x128xf32, #tpu.memory_space<vmem>>, vector<1x128xf32>
    %14 = vector.broadcast %12 : vector<16x1xf32> to vector<16x128xf32>
    %15 = vector.broadcast %13 : vector<1x128xf32> to vector<16x128xf32>
    %16 = arith.mulf %14, %15 : vector<16x128xf32>
    %17 = arith.addf %11, %16 : vector<16x128xf32>
    %c0_10 = arith.constant 0 : index
    %c0_11 = arith.constant 0 : index
    %18 = vector.load %arg7[%c0_10, %c0_11] : memref<1x128xf32, #tpu.memory_space<vmem>>, vector<1x128xf32>
    %19 = vector.broadcast %18 : vector<1x128xf32> to vector<16x128xf32>
    %20 = arith.addf %17, %19 : vector<16x128xf32>
    %cst_12 = arith.constant 0.000000e+00 : f32
    %21 = vector.broadcast %cst_12 : f32 to vector<16x128xf32>
    %22 = arith.cmpf ogt, %20, %21 : vector<16x128xf32>
    %cst_13 = arith.constant 0.00999999977 : f32
    %23 = vector.broadcast %cst_13 : f32 to vector<16x128xf32>
    %24 = arith.mulf %23, %20 : vector<16x128xf32>
    %25 = arith.select %22, %20, %24 : vector<16x128xi1>, vector<16x128xf32>
    %c0_14 = arith.constant 0 : index
    %c0_15 = arith.constant 0 : index
    %c0_16 = arith.constant 0 : index
    %26 = vector.load %arg8[%c0_14, %c0_15, %c0_16] : memref<4x128x384xf32, #tpu.memory_space<vmem>>, vector<1x128x384xf32>
    %27 = vector.shape_cast %26 : vector<1x128x384xf32> to vector<128x384xf32>
    %cst_17 = arith.constant dense<0.000000e+00> : vector<16x384xf32>
    %28 = tpu.matmul %25, %27, %cst_17 {dimension_numbers = #tpu.dot_dimension_numbers<[1], [0], [0], [1], [0, 0, 1, 1], [], []>} : vector<16x128xf32>, vector<128x384xf32>, vector<16x384xf32> -> vector<16x384xf32>
    %c0_18 = arith.constant 0 : index
    %c0_19 = arith.constant 0 : index
    %c0_20 = arith.constant 0 : index
    %29 = vector.load %arg9[%c0_18, %c0_19, %c0_20] : memref<4x1x384xf32, #tpu.memory_space<vmem>>, vector<1x1x384xf32>
    %30 = vector.shape_cast %29 : vector<1x1x384xf32> to vector<1x384xf32>
    %31 = vector.broadcast %30 : vector<1x384xf32> to vector<16x384xf32>
    %32 = arith.addf %28, %31 : vector<16x384xf32>
    %33 = vector.extract_strided_slice %32 {offsets = [0, 0], sizes = [16, 128], strides = [1, 1]} : vector<16x384xf32> to vector<16x128xf32>
    %34 = vector.extract_strided_slice %32 {offsets = [0, 128], sizes = [16, 128], strides = [1, 1]} : vector<16x384xf32> to vector<16x128xf32>
    %35 = vector.extract_strided_slice %32 {offsets = [0, 256], sizes = [16, 128], strides = [1, 1]} : vector<16x384xf32> to vector<16x128xf32>
    %cst_21 = arith.constant 0.000000e+00 : f32
    %36 = vector.broadcast %cst_21 : f32 to vector<16x128xf32>
    %c0_22 = arith.constant 0 : index
    %c0_23 = arith.constant 0 : index
    %37 = vector.load %arg5[%c0_22, %c0_23] : memref<4x128xf32, #tpu.memory_space<vmem>>, vector<1x128xf32>
    %38 = vector.broadcast %37 : vector<1x128xf32> to vector<16x128xf32>
    %39 = arith.mulf %33, %38 : vector<16x128xf32>
    %cst_24 = arith.constant dense<0.000000e+00> : vector<16x16xf32>
    %40 = tpu.matmul %39, %34, %cst_24 {dimension_numbers = #tpu.dot_dimension_numbers<[1], [1], [0], [0], [0, 0, 1, 0], [], []>} : vector<16x128xf32>, vector<16x128xf32>, vector<16x16xf32> -> vector<16x16xf32>
    %41 = arith.addf %40, %3 : vector<16x16xf32>
    %cst_25 = arith.constant dense<0xFF800000> : vector<16xf32>
    %42 = vector.multi_reduction <maximumf>, %41, %cst_25 [1] : vector<16x16xf32> to vector<16xf32>
    %43 = vector.shape_cast %42 : vector<16xf32> to vector<16x1xf32>
    %44 = vector.broadcast %43 : vector<16x1xf32> to vector<16x16xf32>
    %45 = arith.subf %41, %44 : vector<16x16xf32>
    %46 = math.exp %45 : vector<16x16xf32>
    %cst_26 = arith.constant dense<0.000000e+00> : vector<16xf32>
    %47 = vector.multi_reduction <add>, %46, %cst_26 [1] : vector<16x16xf32> to vector<16xf32>
    %48 = vector.shape_cast %47 : vector<16xf32> to vector<16x1xf32>
    %49 = tpu.reciprocal %48 {approx = true} : vector<16x1xf32> -> vector<16x1xf32>
    %50 = vector.broadcast %49 : vector<16x1xf32> to vector<16x16xf32>
    %51 = arith.mulf %46, %50 : vector<16x16xf32>
    %52 = vector.broadcast %37 : vector<1x128xf32> to vector<16x128xf32>
    %53 = arith.mulf %35, %52 : vector<16x128xf32>
    %cst_27 = arith.constant dense<0.000000e+00> : vector<16x128xf32>
    %54 = tpu.matmul %51, %53, %cst_27 {dimension_numbers = #tpu.dot_dimension_numbers<[1], [0], [0], [1], [0, 0, 1, 1], [], []>} : vector<16x16xf32>, vector<16x128xf32>, vector<16x128xf32> -> vector<16x128xf32>
    %55 = arith.addf %36, %54 : vector<16x128xf32>
    %c1_28 = arith.constant 1 : index
    %c0_29 = arith.constant 0 : index
    %56 = vector.load %arg5[%c1_28, %c0_29] : memref<4x128xf32, #tpu.memory_space<vmem>>, vector<1x128xf32>
    %57 = vector.broadcast %56 : vector<1x128xf32> to vector<16x128xf32>
    %58 = arith.mulf %33, %57 : vector<16x128xf32>
    %cst_30 = arith.constant dense<0.000000e+00> : vector<16x16xf32>
    %59 = tpu.matmul %58, %34, %cst_30 {dimension_numbers = #tpu.dot_dimension_numbers<[1], [1], [0], [0], [0, 0, 1, 0], [], []>} : vector<16x128xf32>, vector<16x128xf32>, vector<16x16xf32> -> vector<16x16xf32>
    %60 = arith.addf %59, %3 : vector<16x16xf32>
    %cst_31 = arith.constant dense<0xFF800000> : vector<16xf32>
    %61 = vector.multi_reduction <maximumf>, %60, %cst_31 [1] : vector<16x16xf32> to vector<16xf32>
    %62 = vector.shape_cast %61 : vector<16xf32> to vector<16x1xf32>
    %63 = vector.broadcast %62 : vector<16x1xf32> to vector<16x16xf32>
    %64 = arith.subf %60, %63 : vector<16x16xf32>
    %65 = math.exp %64 : vector<16x16xf32>
    %cst_32 = arith.constant dense<0.000000e+00> : vector<16xf32>
    %66 = vector.multi_reduction <add>, %65, %cst_32 [1] : vector<16x16xf32> to vector<16xf32>
    %67 = vector.shape_cast %66 : vector<16xf32> to vector<16x1xf32>
    %68 = tpu.reciprocal %67 {approx = true} : vector<16x1xf32> -> vector<16x1xf32>
    %69 = vector.broadcast %68 : vector<16x1xf32> to vector<16x16xf32>
    %70 = arith.mulf %65, %69 : vector<16x16xf32>
    %71 = vector.broadcast %56 : vector<1x128xf32> to vector<16x128xf32>
    %72 = arith.mulf %35, %71 : vector<16x128xf32>
    %cst_33 = arith.constant dense<0.000000e+00> : vector<16x128xf32>
    %73 = tpu.matmul %70, %72, %cst_33 {dimension_numbers = #tpu.dot_dimension_numbers<[1], [0], [0], [1], [0, 0, 1, 1], [], []>} : vector<16x16xf32>, vector<16x128xf32>, vector<16x128xf32> -> vector<16x128xf32>
    %74 = arith.addf %55, %73 : vector<16x128xf32>
    %c2 = arith.constant 2 : index
    %c0_34 = arith.constant 0 : index
    %75 = vector.load %arg5[%c2, %c0_34] : memref<4x128xf32, #tpu.memory_space<vmem>>, vector<1x128xf32>
    %76 = vector.broadcast %75 : vector<1x128xf32> to vector<16x128xf32>
    %77 = arith.mulf %33, %76 : vector<16x128xf32>
    %cst_35 = arith.constant dense<0.000000e+00> : vector<16x16xf32>
    %78 = tpu.matmul %77, %34, %cst_35 {dimension_numbers = #tpu.dot_dimension_numbers<[1], [1], [0], [0], [0, 0, 1, 0], [], []>} : vector<16x128xf32>, vector<16x128xf32>, vector<16x16xf32> -> vector<16x16xf32>
    %79 = arith.addf %78, %3 : vector<16x16xf32>
    %cst_36 = arith.constant dense<0xFF800000> : vector<16xf32>
    %80 = vector.multi_reduction <maximumf>, %79, %cst_36 [1] : vector<16x16xf32> to vector<16xf32>
    %81 = vector.shape_cast %80 : vector<16xf32> to vector<16x1xf32>
    %82 = vector.broadcast %81 : vector<16x1xf32> to vector<16x16xf32>
    %83 = arith.subf %79, %82 : vector<16x16xf32>
    %84 = math.exp %83 : vector<16x16xf32>
    %cst_37 = arith.constant dense<0.000000e+00> : vector<16xf32>
    %85 = vector.multi_reduction <add>, %84, %cst_37 [1] : vector<16x16xf32> to vector<16xf32>
    %86 = vector.shape_cast %85 : vector<16xf32> to vector<16x1xf32>
    %87 = tpu.reciprocal %86 {approx = true} : vector<16x1xf32> -> vector<16x1xf32>
    %88 = vector.broadcast %87 : vector<16x1xf32> to vector<16x16xf32>
    %89 = arith.mulf %84, %88 : vector<16x16xf32>
    %90 = vector.broadcast %75 : vector<1x128xf32> to vector<16x128xf32>
    %91 = arith.mulf %35, %90 : vector<16x128xf32>
    %cst_38 = arith.constant dense<0.000000e+00> : vector<16x128xf32>
    %92 = tpu.matmul %89, %91, %cst_38 {dimension_numbers = #tpu.dot_dimension_numbers<[1], [0], [0], [1], [0, 0, 1, 1], [], []>} : vector<16x16xf32>, vector<16x128xf32>, vector<16x128xf32> -> vector<16x128xf32>
    %93 = arith.addf %74, %92 : vector<16x128xf32>
    %c3 = arith.constant 3 : index
    %c0_39 = arith.constant 0 : index
    %94 = vector.load %arg5[%c3, %c0_39] : memref<4x128xf32, #tpu.memory_space<vmem>>, vector<1x128xf32>
    %95 = vector.broadcast %94 : vector<1x128xf32> to vector<16x128xf32>
    %96 = arith.mulf %33, %95 : vector<16x128xf32>
    %cst_40 = arith.constant dense<0.000000e+00> : vector<16x16xf32>
    %97 = tpu.matmul %96, %34, %cst_40 {dimension_numbers = #tpu.dot_dimension_numbers<[1], [1], [0], [0], [0, 0, 1, 0], [], []>} : vector<16x128xf32>, vector<16x128xf32>, vector<16x16xf32> -> vector<16x16xf32>
    %98 = arith.addf %97, %3 : vector<16x16xf32>
    %cst_41 = arith.constant dense<0xFF800000> : vector<16xf32>
    %99 = vector.multi_reduction <maximumf>, %98, %cst_41 [1] : vector<16x16xf32> to vector<16xf32>
    %100 = vector.shape_cast %99 : vector<16xf32> to vector<16x1xf32>
    %101 = vector.broadcast %100 : vector<16x1xf32> to vector<16x16xf32>
    %102 = arith.subf %98, %101 : vector<16x16xf32>
    %103 = math.exp %102 : vector<16x16xf32>
    %cst_42 = arith.constant dense<0.000000e+00> : vector<16xf32>
    %104 = vector.multi_reduction <add>, %103, %cst_42 [1] : vector<16x16xf32> to vector<16xf32>
    %105 = vector.shape_cast %104 : vector<16xf32> to vector<16x1xf32>
    %106 = tpu.reciprocal %105 {approx = true} : vector<16x1xf32> -> vector<16x1xf32>
    %107 = vector.broadcast %106 : vector<16x1xf32> to vector<16x16xf32>
    %108 = arith.mulf %103, %107 : vector<16x16xf32>
    %109 = vector.broadcast %94 : vector<1x128xf32> to vector<16x128xf32>
    %110 = arith.mulf %35, %109 : vector<16x128xf32>
    %cst_43 = arith.constant dense<0.000000e+00> : vector<16x128xf32>
    %111 = tpu.matmul %108, %110, %cst_43 {dimension_numbers = #tpu.dot_dimension_numbers<[1], [0], [0], [1], [0, 0, 1, 1], [], []>} : vector<16x16xf32>, vector<16x128xf32>, vector<16x128xf32> -> vector<16x128xf32>
    %112 = arith.addf %93, %111 : vector<16x128xf32>
    %c0_44 = arith.constant 0 : index
    %c0_45 = arith.constant 0 : index
    %c0_46 = arith.constant 0 : index
    %113 = vector.load %arg10[%c0_44, %c0_45, %c0_46] : memref<4x128x128xf32, #tpu.memory_space<vmem>>, vector<1x128x128xf32>
    %114 = vector.shape_cast %113 : vector<1x128x128xf32> to vector<128x128xf32>
    %cst_47 = arith.constant dense<0.000000e+00> : vector<16x128xf32>
    %115 = tpu.matmul %112, %114, %cst_47 {dimension_numbers = #tpu.dot_dimension_numbers<[1], [0], [0], [1], [0, 0, 1, 1], [], []>} : vector<16x128xf32>, vector<128x128xf32>, vector<16x128xf32> -> vector<16x128xf32>
    %c0_48 = arith.constant 0 : index
    %c0_49 = arith.constant 0 : index
    %c0_50 = arith.constant 0 : index
    %116 = vector.load %arg11[%c0_48, %c0_49, %c0_50] : memref<4x1x128xf32, #tpu.memory_space<vmem>>, vector<1x1x128xf32>
    %117 = vector.shape_cast %116 : vector<1x1x128xf32> to vector<1x128xf32>
    %118 = vector.broadcast %117 : vector<1x128xf32> to vector<16x128xf32>
    %119 = arith.addf %115, %118 : vector<16x128xf32>
    %120 = arith.addf %25, %119 : vector<16x128xf32>
    %c0_51 = arith.constant 0 : index
    %c0_52 = arith.constant 0 : index
    %c0_53 = arith.constant 0 : index
    %121 = vector.load %arg12[%c0_51, %c0_52, %c0_53] : memref<4x1x128xf32, #tpu.memory_space<vmem>>, vector<1x1x128xf32>
    %122 = vector.shape_cast %121 : vector<1x1x128xf32> to vector<1x128xf32>
    %c0_54 = arith.constant 0 : index
    %c0_55 = arith.constant 0 : index
    %c0_56 = arith.constant 0 : index
    %123 = vector.load %arg13[%c0_54, %c0_55, %c0_56] : memref<4x1x128xf32, #tpu.memory_space<vmem>>, vector<1x1x128xf32>
    %124 = vector.shape_cast %123 : vector<1x1x128xf32> to vector<1x128xf32>
    %cst_57 = arith.constant dense<0.000000e+00> : vector<16xf32>
    %125 = vector.multi_reduction <add>, %120, %cst_57 [1] : vector<16x128xf32> to vector<16xf32>
    %126 = vector.shape_cast %125 : vector<16xf32> to vector<16x1xf32>
    %cst_58 = arith.constant 1.280000e+02 : f32
    %127 = vector.broadcast %cst_58 : f32 to vector<16x1xf32>
    %128 = arith.divf %126, %127 : vector<16x1xf32>
    %129 = vector.broadcast %128 : vector<16x1xf32> to vector<16x128xf32>
    %130 = arith.subf %120, %129 : vector<16x128xf32>
    %131 = arith.mulf %130, %130 : vector<16x128xf32>
    %cst_59 = arith.constant dense<0.000000e+00> : vector<16xf32>
    %132 = vector.multi_reduction <add>, %131, %cst_59 [1] : vector<16x128xf32> to vector<16xf32>
    %133 = vector.shape_cast %132 : vector<16xf32> to vector<16x1xf32>
    %cst_60 = arith.constant 1.280000e+02 : f32
    %134 = vector.broadcast %cst_60 : f32 to vector<16x1xf32>
    %135 = arith.divf %133, %134 : vector<16x1xf32>
    %136 = vector.broadcast %128 : vector<16x1xf32> to vector<16x128xf32>
    %137 = arith.subf %120, %136 : vector<16x128xf32>
    %cst_61 = arith.constant 9.99999974E-6 : f32
    %138 = vector.broadcast %cst_61 : f32 to vector<16x1xf32>
    %139 = arith.addf %135, %138 : vector<16x1xf32>
    %140 = math.rsqrt %139 : vector<16x1xf32>
    %141 = vector.broadcast %140 : vector<16x1xf32> to vector<16x128xf32>
    %142 = arith.mulf %137, %141 : vector<16x128xf32>
    %143 = vector.broadcast %122 : vector<1x128xf32> to vector<16x128xf32>
    %144 = arith.mulf %142, %143 : vector<16x128xf32>
    %145 = vector.broadcast %124 : vector<1x128xf32> to vector<16x128xf32>
    %146 = arith.addf %144, %145 : vector<16x128xf32>
    %c0_62 = arith.constant 0 : index
    %c0_63 = arith.constant 0 : index
    %c0_64 = arith.constant 0 : index
    %147 = vector.load %arg14[%c0_62, %c0_63, %c0_64] : memref<4x128x128xf32, #tpu.memory_space<vmem>>, vector<1x128x128xf32>
    %148 = vector.shape_cast %147 : vector<1x128x128xf32> to vector<128x128xf32>
    %cst_65 = arith.constant dense<0.000000e+00> : vector<16x128xf32>
    %149 = tpu.matmul %146, %148, %cst_65 {dimension_numbers = #tpu.dot_dimension_numbers<[1], [0], [0], [1], [0, 0, 1, 1], [], []>} : vector<16x128xf32>, vector<128x128xf32>, vector<16x128xf32> -> vector<16x128xf32>
    %c0_66 = arith.constant 0 : index
    %c0_67 = arith.constant 0 : index
    %c0_68 = arith.constant 0 : index
    %150 = vector.load %arg15[%c0_66, %c0_67, %c0_68] : memref<4x1x128xf32, #tpu.memory_space<vmem>>, vector<1x1x128xf32>
    %151 = vector.shape_cast %150 : vector<1x1x128xf32> to vector<1x128xf32>
    %152 = vector.broadcast %151 : vector<1x128xf32> to vector<16x128xf32>
    %153 = arith.addf %149, %152 : vector<16x128xf32>
    %cst_69 = arith.constant 0.000000e+00 : f32
    %154 = vector.broadcast %cst_69 : f32 to vector<16x128xf32>
    %155 = arith.maximumf %153, %154 : vector<16x128xf32>
    %c0_70 = arith.constant 0 : index
    %c0_71 = arith.constant 0 : index
    %c0_72 = arith.constant 0 : index
    %156 = vector.load %arg16[%c0_70, %c0_71, %c0_72] : memref<4x128x128xf32, #tpu.memory_space<vmem>>, vector<1x128x128xf32>
    %157 = vector.shape_cast %156 : vector<1x128x128xf32> to vector<128x128xf32>
    %cst_73 = arith.constant dense<0.000000e+00> : vector<16x128xf32>
    %158 = tpu.matmul %155, %157, %cst_73 {dimension_numbers = #tpu.dot_dimension_numbers<[1], [0], [0], [1], [0, 0, 1, 1], [], []>} : vector<16x128xf32>, vector<128x128xf32>, vector<16x128xf32> -> vector<16x128xf32>
    %c0_74 = arith.constant 0 : index
    %c0_75 = arith.constant 0 : index
    %c0_76 = arith.constant 0 : index
    %159 = vector.load %arg17[%c0_74, %c0_75, %c0_76] : memref<4x1x128xf32, #tpu.memory_space<vmem>>, vector<1x1x128xf32>
    %160 = vector.shape_cast %159 : vector<1x1x128xf32> to vector<1x128xf32>
    %161 = vector.broadcast %160 : vector<1x128xf32> to vector<16x128xf32>
    %162 = arith.addf %158, %161 : vector<16x128xf32>
    %163 = arith.addf %146, %162 : vector<16x128xf32>
    %c0_77 = arith.constant 0 : index
    %c0_78 = arith.constant 0 : index
    %c0_79 = arith.constant 0 : index
    %164 = vector.load %arg18[%c0_77, %c0_78, %c0_79] : memref<4x1x128xf32, #tpu.memory_space<vmem>>, vector<1x1x128xf32>
    %165 = vector.shape_cast %164 : vector<1x1x128xf32> to vector<1x128xf32>
    %c0_80 = arith.constant 0 : index
    %c0_81 = arith.constant 0 : index
    %c0_82 = arith.constant 0 : index
    %166 = vector.load %arg19[%c0_80, %c0_81, %c0_82] : memref<4x1x128xf32, #tpu.memory_space<vmem>>, vector<1x1x128xf32>
    %167 = vector.shape_cast %166 : vector<1x1x128xf32> to vector<1x128xf32>
    %cst_83 = arith.constant dense<0.000000e+00> : vector<16xf32>
    %168 = vector.multi_reduction <add>, %163, %cst_83 [1] : vector<16x128xf32> to vector<16xf32>
    %169 = vector.shape_cast %168 : vector<16xf32> to vector<16x1xf32>
    %cst_84 = arith.constant 1.280000e+02 : f32
    %170 = vector.broadcast %cst_84 : f32 to vector<16x1xf32>
    %171 = arith.divf %169, %170 : vector<16x1xf32>
    %172 = vector.broadcast %171 : vector<16x1xf32> to vector<16x128xf32>
    %173 = arith.subf %163, %172 : vector<16x128xf32>
    %174 = arith.mulf %173, %173 : vector<16x128xf32>
    %cst_85 = arith.constant dense<0.000000e+00> : vector<16xf32>
    %175 = vector.multi_reduction <add>, %174, %cst_85 [1] : vector<16x128xf32> to vector<16xf32>
    %176 = vector.shape_cast %175 : vector<16xf32> to vector<16x1xf32>
    %cst_86 = arith.constant 1.280000e+02 : f32
    %177 = vector.broadcast %cst_86 : f32 to vector<16x1xf32>
    %178 = arith.divf %176, %177 : vector<16x1xf32>
    %179 = vector.broadcast %171 : vector<16x1xf32> to vector<16x128xf32>
    %180 = arith.subf %163, %179 : vector<16x128xf32>
    %cst_87 = arith.constant 9.99999974E-6 : f32
    %181 = vector.broadcast %cst_87 : f32 to vector<16x1xf32>
    %182 = arith.addf %178, %181 : vector<16x1xf32>
    %183 = math.rsqrt %182 : vector<16x1xf32>
    %184 = vector.broadcast %183 : vector<16x1xf32> to vector<16x128xf32>
    %185 = arith.mulf %180, %184 : vector<16x128xf32>
    %186 = vector.broadcast %165 : vector<1x128xf32> to vector<16x128xf32>
    %187 = arith.mulf %185, %186 : vector<16x128xf32>
    %188 = vector.broadcast %167 : vector<1x128xf32> to vector<16x128xf32>
    %189 = arith.addf %187, %188 : vector<16x128xf32>
    %c1_88 = arith.constant 1 : index
    %c0_89 = arith.constant 0 : index
    %c0_90 = arith.constant 0 : index
    %190 = vector.load %arg8[%c1_88, %c0_89, %c0_90] : memref<4x128x384xf32, #tpu.memory_space<vmem>>, vector<1x128x384xf32>
    %191 = vector.shape_cast %190 : vector<1x128x384xf32> to vector<128x384xf32>
    %cst_91 = arith.constant dense<0.000000e+00> : vector<16x384xf32>
    %192 = tpu.matmul %189, %191, %cst_91 {dimension_numbers = #tpu.dot_dimension_numbers<[1], [0], [0], [1], [0, 0, 1, 1], [], []>} : vector<16x128xf32>, vector<128x384xf32>, vector<16x384xf32> -> vector<16x384xf32>
    %c1_92 = arith.constant 1 : index
    %c0_93 = arith.constant 0 : index
    %c0_94 = arith.constant 0 : index
    %193 = vector.load %arg9[%c1_92, %c0_93, %c0_94] : memref<4x1x384xf32, #tpu.memory_space<vmem>>, vector<1x1x384xf32>
    %194 = vector.shape_cast %193 : vector<1x1x384xf32> to vector<1x384xf32>
    %195 = vector.broadcast %194 : vector<1x384xf32> to vector<16x384xf32>
    %196 = arith.addf %192, %195 : vector<16x384xf32>
    %197 = vector.extract_strided_slice %196 {offsets = [0, 0], sizes = [16, 128], strides = [1, 1]} : vector<16x384xf32> to vector<16x128xf32>
    %198 = vector.extract_strided_slice %196 {offsets = [0, 128], sizes = [16, 128], strides = [1, 1]} : vector<16x384xf32> to vector<16x128xf32>
    %199 = vector.extract_strided_slice %196 {offsets = [0, 256], sizes = [16, 128], strides = [1, 1]} : vector<16x384xf32> to vector<16x128xf32>
    %cst_95 = arith.constant 0.000000e+00 : f32
    %200 = vector.broadcast %cst_95 : f32 to vector<16x128xf32>
    %c0_96 = arith.constant 0 : index
    %c0_97 = arith.constant 0 : index
    %201 = vector.load %arg5[%c0_96, %c0_97] : memref<4x128xf32, #tpu.memory_space<vmem>>, vector<1x128xf32>
    %202 = vector.broadcast %201 : vector<1x128xf32> to vector<16x128xf32>
    %203 = arith.mulf %197, %202 : vector<16x128xf32>
    %cst_98 = arith.constant dense<0.000000e+00> : vector<16x16xf32>
    %204 = tpu.matmul %203, %198, %cst_98 {dimension_numbers = #tpu.dot_dimension_numbers<[1], [1], [0], [0], [0, 0, 1, 0], [], []>} : vector<16x128xf32>, vector<16x128xf32>, vector<16x16xf32> -> vector<16x16xf32>
    %205 = arith.addf %204, %3 : vector<16x16xf32>
    %cst_99 = arith.constant dense<0xFF800000> : vector<16xf32>
    %206 = vector.multi_reduction <maximumf>, %205, %cst_99 [1] : vector<16x16xf32> to vector<16xf32>
    %207 = vector.shape_cast %206 : vector<16xf32> to vector<16x1xf32>
    %208 = vector.broadcast %207 : vector<16x1xf32> to vector<16x16xf32>
    %209 = arith.subf %205, %208 : vector<16x16xf32>
    %210 = math.exp %209 : vector<16x16xf32>
    %cst_100 = arith.constant dense<0.000000e+00> : vector<16xf32>
    %211 = vector.multi_reduction <add>, %210, %cst_100 [1] : vector<16x16xf32> to vector<16xf32>
    %212 = vector.shape_cast %211 : vector<16xf32> to vector<16x1xf32>
    %213 = tpu.reciprocal %212 {approx = true} : vector<16x1xf32> -> vector<16x1xf32>
    %214 = vector.broadcast %213 : vector<16x1xf32> to vector<16x16xf32>
    %215 = arith.mulf %210, %214 : vector<16x16xf32>
    %216 = vector.broadcast %201 : vector<1x128xf32> to vector<16x128xf32>
    %217 = arith.mulf %199, %216 : vector<16x128xf32>
    %cst_101 = arith.constant dense<0.000000e+00> : vector<16x128xf32>
    %218 = tpu.matmul %215, %217, %cst_101 {dimension_numbers = #tpu.dot_dimension_numbers<[1], [0], [0], [1], [0, 0, 1, 1], [], []>} : vector<16x16xf32>, vector<16x128xf32>, vector<16x128xf32> -> vector<16x128xf32>
    %219 = arith.addf %200, %218 : vector<16x128xf32>
    %c1_102 = arith.constant 1 : index
    %c0_103 = arith.constant 0 : index
    %220 = vector.load %arg5[%c1_102, %c0_103] : memref<4x128xf32, #tpu.memory_space<vmem>>, vector<1x128xf32>
    %221 = vector.broadcast %220 : vector<1x128xf32> to vector<16x128xf32>
    %222 = arith.mulf %197, %221 : vector<16x128xf32>
    %cst_104 = arith.constant dense<0.000000e+00> : vector<16x16xf32>
    %223 = tpu.matmul %222, %198, %cst_104 {dimension_numbers = #tpu.dot_dimension_numbers<[1], [1], [0], [0], [0, 0, 1, 0], [], []>} : vector<16x128xf32>, vector<16x128xf32>, vector<16x16xf32> -> vector<16x16xf32>
    %224 = arith.addf %223, %3 : vector<16x16xf32>
    %cst_105 = arith.constant dense<0xFF800000> : vector<16xf32>
    %225 = vector.multi_reduction <maximumf>, %224, %cst_105 [1] : vector<16x16xf32> to vector<16xf32>
    %226 = vector.shape_cast %225 : vector<16xf32> to vector<16x1xf32>
    %227 = vector.broadcast %226 : vector<16x1xf32> to vector<16x16xf32>
    %228 = arith.subf %224, %227 : vector<16x16xf32>
    %229 = math.exp %228 : vector<16x16xf32>
    %cst_106 = arith.constant dense<0.000000e+00> : vector<16xf32>
    %230 = vector.multi_reduction <add>, %229, %cst_106 [1] : vector<16x16xf32> to vector<16xf32>
    %231 = vector.shape_cast %230 : vector<16xf32> to vector<16x1xf32>
    %232 = tpu.reciprocal %231 {approx = true} : vector<16x1xf32> -> vector<16x1xf32>
    %233 = vector.broadcast %232 : vector<16x1xf32> to vector<16x16xf32>
    %234 = arith.mulf %229, %233 : vector<16x16xf32>
    %235 = vector.broadcast %220 : vector<1x128xf32> to vector<16x128xf32>
    %236 = arith.mulf %199, %235 : vector<16x128xf32>
    %cst_107 = arith.constant dense<0.000000e+00> : vector<16x128xf32>
    %237 = tpu.matmul %234, %236, %cst_107 {dimension_numbers = #tpu.dot_dimension_numbers<[1], [0], [0], [1], [0, 0, 1, 1], [], []>} : vector<16x16xf32>, vector<16x128xf32>, vector<16x128xf32> -> vector<16x128xf32>
    %238 = arith.addf %219, %237 : vector<16x128xf32>
    %c2_108 = arith.constant 2 : index
    %c0_109 = arith.constant 0 : index
    %239 = vector.load %arg5[%c2_108, %c0_109] : memref<4x128xf32, #tpu.memory_space<vmem>>, vector<1x128xf32>
    %240 = vector.broadcast %239 : vector<1x128xf32> to vector<16x128xf32>
    %241 = arith.mulf %197, %240 : vector<16x128xf32>
    %cst_110 = arith.constant dense<0.000000e+00> : vector<16x16xf32>
    %242 = tpu.matmul %241, %198, %cst_110 {dimension_numbers = #tpu.dot_dimension_numbers<[1], [1], [0], [0], [0, 0, 1, 0], [], []>} : vector<16x128xf32>, vector<16x128xf32>, vector<16x16xf32> -> vector<16x16xf32>
    %243 = arith.addf %242, %3 : vector<16x16xf32>
    %cst_111 = arith.constant dense<0xFF800000> : vector<16xf32>
    %244 = vector.multi_reduction <maximumf>, %243, %cst_111 [1] : vector<16x16xf32> to vector<16xf32>
    %245 = vector.shape_cast %244 : vector<16xf32> to vector<16x1xf32>
    %246 = vector.broadcast %245 : vector<16x1xf32> to vector<16x16xf32>
    %247 = arith.subf %243, %246 : vector<16x16xf32>
    %248 = math.exp %247 : vector<16x16xf32>
    %cst_112 = arith.constant dense<0.000000e+00> : vector<16xf32>
    %249 = vector.multi_reduction <add>, %248, %cst_112 [1] : vector<16x16xf32> to vector<16xf32>
    %250 = vector.shape_cast %249 : vector<16xf32> to vector<16x1xf32>
    %251 = tpu.reciprocal %250 {approx = true} : vector<16x1xf32> -> vector<16x1xf32>
    %252 = vector.broadcast %251 : vector<16x1xf32> to vector<16x16xf32>
    %253 = arith.mulf %248, %252 : vector<16x16xf32>
    %254 = vector.broadcast %239 : vector<1x128xf32> to vector<16x128xf32>
    %255 = arith.mulf %199, %254 : vector<16x128xf32>
    %cst_113 = arith.constant dense<0.000000e+00> : vector<16x128xf32>
    %256 = tpu.matmul %253, %255, %cst_113 {dimension_numbers = #tpu.dot_dimension_numbers<[1], [0], [0], [1], [0, 0, 1, 1], [], []>} : vector<16x16xf32>, vector<16x128xf32>, vector<16x128xf32> -> vector<16x128xf32>
    %257 = arith.addf %238, %256 : vector<16x128xf32>
    %c3_114 = arith.constant 3 : index
    %c0_115 = arith.constant 0 : index
    %258 = vector.load %arg5[%c3_114, %c0_115] : memref<4x128xf32, #tpu.memory_space<vmem>>, vector<1x128xf32>
    %259 = vector.broadcast %258 : vector<1x128xf32> to vector<16x128xf32>
    %260 = arith.mulf %197, %259 : vector<16x128xf32>
    %cst_116 = arith.constant dense<0.000000e+00> : vector<16x16xf32>
    %261 = tpu.matmul %260, %198, %cst_116 {dimension_numbers = #tpu.dot_dimension_numbers<[1], [1], [0], [0], [0, 0, 1, 0], [], []>} : vector<16x128xf32>, vector<16x128xf32>, vector<16x16xf32> -> vector<16x16xf32>
    %262 = arith.addf %261, %3 : vector<16x16xf32>
    %cst_117 = arith.constant dense<0xFF800000> : vector<16xf32>
    %263 = vector.multi_reduction <maximumf>, %262, %cst_117 [1] : vector<16x16xf32> to vector<16xf32>
    %264 = vector.shape_cast %263 : vector<16xf32> to vector<16x1xf32>
    %265 = vector.broadcast %264 : vector<16x1xf32> to vector<16x16xf32>
    %266 = arith.subf %262, %265 : vector<16x16xf32>
    %267 = math.exp %266 : vector<16x16xf32>
    %cst_118 = arith.constant dense<0.000000e+00> : vector<16xf32>
    %268 = vector.multi_reduction <add>, %267, %cst_118 [1] : vector<16x16xf32> to vector<16xf32>
    %269 = vector.shape_cast %268 : vector<16xf32> to vector<16x1xf32>
    %270 = tpu.reciprocal %269 {approx = true} : vector<16x1xf32> -> vector<16x1xf32>
    %271 = vector.broadcast %270 : vector<16x1xf32> to vector<16x16xf32>
    %272 = arith.mulf %267, %271 : vector<16x16xf32>
    %273 = vector.broadcast %258 : vector<1x128xf32> to vector<16x128xf32>
    %274 = arith.mulf %199, %273 : vector<16x128xf32>
    %cst_119 = arith.constant dense<0.000000e+00> : vector<16x128xf32>
    %275 = tpu.matmul %272, %274, %cst_119 {dimension_numbers = #tpu.dot_dimension_numbers<[1], [0], [0], [1], [0, 0, 1, 1], [], []>} : vector<16x16xf32>, vector<16x128xf32>, vector<16x128xf32> -> vector<16x128xf32>
    %276 = arith.addf %257, %275 : vector<16x128xf32>
    %c1_120 = arith.constant 1 : index
    %c0_121 = arith.constant 0 : index
    %c0_122 = arith.constant 0 : index
    %277 = vector.load %arg10[%c1_120, %c0_121, %c0_122] : memref<4x128x128xf32, #tpu.memory_space<vmem>>, vector<1x128x128xf32>
    %278 = vector.shape_cast %277 : vector<1x128x128xf32> to vector<128x128xf32>
    %cst_123 = arith.constant dense<0.000000e+00> : vector<16x128xf32>
    %279 = tpu.matmul %276, %278, %cst_123 {dimension_numbers = #tpu.dot_dimension_numbers<[1], [0], [0], [1], [0, 0, 1, 1], [], []>} : vector<16x128xf32>, vector<128x128xf32>, vector<16x128xf32> -> vector<16x128xf32>
    %c1_124 = arith.constant 1 : index
    %c0_125 = arith.constant 0 : index
    %c0_126 = arith.constant 0 : index
    %280 = vector.load %arg11[%c1_124, %c0_125, %c0_126] : memref<4x1x128xf32, #tpu.memory_space<vmem>>, vector<1x1x128xf32>
    %281 = vector.shape_cast %280 : vector<1x1x128xf32> to vector<1x128xf32>
    %282 = vector.broadcast %281 : vector<1x128xf32> to vector<16x128xf32>
    %283 = arith.addf %279, %282 : vector<16x128xf32>
    %284 = arith.addf %189, %283 : vector<16x128xf32>
    %c1_127 = arith.constant 1 : index
    %c0_128 = arith.constant 0 : index
    %c0_129 = arith.constant 0 : index
    %285 = vector.load %arg12[%c1_127, %c0_128, %c0_129] : memref<4x1x128xf32, #tpu.memory_space<vmem>>, vector<1x1x128xf32>
    %286 = vector.shape_cast %285 : vector<1x1x128xf32> to vector<1x128xf32>
    %c1_130 = arith.constant 1 : index
    %c0_131 = arith.constant 0 : index
    %c0_132 = arith.constant 0 : index
    %287 = vector.load %arg13[%c1_130, %c0_131, %c0_132] : memref<4x1x128xf32, #tpu.memory_space<vmem>>, vector<1x1x128xf32>
    %288 = vector.shape_cast %287 : vector<1x1x128xf32> to vector<1x128xf32>
    %cst_133 = arith.constant dense<0.000000e+00> : vector<16xf32>
    %289 = vector.multi_reduction <add>, %284, %cst_133 [1] : vector<16x128xf32> to vector<16xf32>
    %290 = vector.shape_cast %289 : vector<16xf32> to vector<16x1xf32>
    %cst_134 = arith.constant 1.280000e+02 : f32
    %291 = vector.broadcast %cst_134 : f32 to vector<16x1xf32>
    %292 = arith.divf %290, %291 : vector<16x1xf32>
    %293 = vector.broadcast %292 : vector<16x1xf32> to vector<16x128xf32>
    %294 = arith.subf %284, %293 : vector<16x128xf32>
    %295 = arith.mulf %294, %294 : vector<16x128xf32>
    %cst_135 = arith.constant dense<0.000000e+00> : vector<16xf32>
    %296 = vector.multi_reduction <add>, %295, %cst_135 [1] : vector<16x128xf32> to vector<16xf32>
    %297 = vector.shape_cast %296 : vector<16xf32> to vector<16x1xf32>
    %cst_136 = arith.constant 1.280000e+02 : f32
    %298 = vector.broadcast %cst_136 : f32 to vector<16x1xf32>
    %299 = arith.divf %297, %298 : vector<16x1xf32>
    %300 = vector.broadcast %292 : vector<16x1xf32> to vector<16x128xf32>
    %301 = arith.subf %284, %300 : vector<16x128xf32>
    %cst_137 = arith.constant 9.99999974E-6 : f32
    %302 = vector.broadcast %cst_137 : f32 to vector<16x1xf32>
    %303 = arith.addf %299, %302 : vector<16x1xf32>
    %304 = math.rsqrt %303 : vector<16x1xf32>
    %305 = vector.broadcast %304 : vector<16x1xf32> to vector<16x128xf32>
    %306 = arith.mulf %301, %305 : vector<16x128xf32>
    %307 = vector.broadcast %286 : vector<1x128xf32> to vector<16x128xf32>
    %308 = arith.mulf %306, %307 : vector<16x128xf32>
    %309 = vector.broadcast %288 : vector<1x128xf32> to vector<16x128xf32>
    %310 = arith.addf %308, %309 : vector<16x128xf32>
    %c1_138 = arith.constant 1 : index
    %c0_139 = arith.constant 0 : index
    %c0_140 = arith.constant 0 : index
    %311 = vector.load %arg14[%c1_138, %c0_139, %c0_140] : memref<4x128x128xf32, #tpu.memory_space<vmem>>, vector<1x128x128xf32>
    %312 = vector.shape_cast %311 : vector<1x128x128xf32> to vector<128x128xf32>
    %cst_141 = arith.constant dense<0.000000e+00> : vector<16x128xf32>
    %313 = tpu.matmul %310, %312, %cst_141 {dimension_numbers = #tpu.dot_dimension_numbers<[1], [0], [0], [1], [0, 0, 1, 1], [], []>} : vector<16x128xf32>, vector<128x128xf32>, vector<16x128xf32> -> vector<16x128xf32>
    %c1_142 = arith.constant 1 : index
    %c0_143 = arith.constant 0 : index
    %c0_144 = arith.constant 0 : index
    %314 = vector.load %arg15[%c1_142, %c0_143, %c0_144] : memref<4x1x128xf32, #tpu.memory_space<vmem>>, vector<1x1x128xf32>
    %315 = vector.shape_cast %314 : vector<1x1x128xf32> to vector<1x128xf32>
    %316 = vector.broadcast %315 : vector<1x128xf32> to vector<16x128xf32>
    %317 = arith.addf %313, %316 : vector<16x128xf32>
    %cst_145 = arith.constant 0.000000e+00 : f32
    %318 = vector.broadcast %cst_145 : f32 to vector<16x128xf32>
    %319 = arith.maximumf %317, %318 : vector<16x128xf32>
    %c1_146 = arith.constant 1 : index
    %c0_147 = arith.constant 0 : index
    %c0_148 = arith.constant 0 : index
    %320 = vector.load %arg16[%c1_146, %c0_147, %c0_148] : memref<4x128x128xf32, #tpu.memory_space<vmem>>, vector<1x128x128xf32>
    %321 = vector.shape_cast %320 : vector<1x128x128xf32> to vector<128x128xf32>
    %cst_149 = arith.constant dense<0.000000e+00> : vector<16x128xf32>
    %322 = tpu.matmul %319, %321, %cst_149 {dimension_numbers = #tpu.dot_dimension_numbers<[1], [0], [0], [1], [0, 0, 1, 1], [], []>} : vector<16x128xf32>, vector<128x128xf32>, vector<16x128xf32> -> vector<16x128xf32>
    %c1_150 = arith.constant 1 : index
    %c0_151 = arith.constant 0 : index
    %c0_152 = arith.constant 0 : index
    %323 = vector.load %arg17[%c1_150, %c0_151, %c0_152] : memref<4x1x128xf32, #tpu.memory_space<vmem>>, vector<1x1x128xf32>
    %324 = vector.shape_cast %323 : vector<1x1x128xf32> to vector<1x128xf32>
    %325 = vector.broadcast %324 : vector<1x128xf32> to vector<16x128xf32>
    %326 = arith.addf %322, %325 : vector<16x128xf32>
    %327 = arith.addf %310, %326 : vector<16x128xf32>
    %c1_153 = arith.constant 1 : index
    %c0_154 = arith.constant 0 : index
    %c0_155 = arith.constant 0 : index
    %328 = vector.load %arg18[%c1_153, %c0_154, %c0_155] : memref<4x1x128xf32, #tpu.memory_space<vmem>>, vector<1x1x128xf32>
    %329 = vector.shape_cast %328 : vector<1x1x128xf32> to vector<1x128xf32>
    %c1_156 = arith.constant 1 : index
    %c0_157 = arith.constant 0 : index
    %c0_158 = arith.constant 0 : index
    %330 = vector.load %arg19[%c1_156, %c0_157, %c0_158] : memref<4x1x128xf32, #tpu.memory_space<vmem>>, vector<1x1x128xf32>
    %331 = vector.shape_cast %330 : vector<1x1x128xf32> to vector<1x128xf32>
    %cst_159 = arith.constant dense<0.000000e+00> : vector<16xf32>
    %332 = vector.multi_reduction <add>, %327, %cst_159 [1] : vector<16x128xf32> to vector<16xf32>
    %333 = vector.shape_cast %332 : vector<16xf32> to vector<16x1xf32>
    %cst_160 = arith.constant 1.280000e+02 : f32
    %334 = vector.broadcast %cst_160 : f32 to vector<16x1xf32>
    %335 = arith.divf %333, %334 : vector<16x1xf32>
    %336 = vector.broadcast %335 : vector<16x1xf32> to vector<16x128xf32>
    %337 = arith.subf %327, %336 : vector<16x128xf32>
    %338 = arith.mulf %337, %337 : vector<16x128xf32>
    %cst_161 = arith.constant dense<0.000000e+00> : vector<16xf32>
    %339 = vector.multi_reduction <add>, %338, %cst_161 [1] : vector<16x128xf32> to vector<16xf32>
    %340 = vector.shape_cast %339 : vector<16xf32> to vector<16x1xf32>
    %cst_162 = arith.constant 1.280000e+02 : f32
    %341 = vector.broadcast %cst_162 : f32 to vector<16x1xf32>
    %342 = arith.divf %340, %341 : vector<16x1xf32>
    %343 = vector.broadcast %335 : vector<16x1xf32> to vector<16x128xf32>
    %344 = arith.subf %327, %343 : vector<16x128xf32>
    %cst_163 = arith.constant 9.99999974E-6 : f32
    %345 = vector.broadcast %cst_163 : f32 to vector<16x1xf32>
    %346 = arith.addf %342, %345 : vector<16x1xf32>
    %347 = math.rsqrt %346 : vector<16x1xf32>
    %348 = vector.broadcast %347 : vector<16x1xf32> to vector<16x128xf32>
    %349 = arith.mulf %344, %348 : vector<16x128xf32>
    %350 = vector.broadcast %329 : vector<1x128xf32> to vector<16x128xf32>
    %351 = arith.mulf %349, %350 : vector<16x128xf32>
    %352 = vector.broadcast %331 : vector<1x128xf32> to vector<16x128xf32>
    %353 = arith.addf %351, %352 : vector<16x128xf32>
    %c2_164 = arith.constant 2 : index
    %c0_165 = arith.constant 0 : index
    %c0_166 = arith.constant 0 : index
    %354 = vector.load %arg8[%c2_164, %c0_165, %c0_166] : memref<4x128x384xf32, #tpu.memory_space<vmem>>, vector<1x128x384xf32>
    %355 = vector.shape_cast %354 : vector<1x128x384xf32> to vector<128x384xf32>
    %cst_167 = arith.constant dense<0.000000e+00> : vector<16x384xf32>
    %356 = tpu.matmul %353, %355, %cst_167 {dimension_numbers = #tpu.dot_dimension_numbers<[1], [0], [0], [1], [0, 0, 1, 1], [], []>} : vector<16x128xf32>, vector<128x384xf32>, vector<16x384xf32> -> vector<16x384xf32>
    %c2_168 = arith.constant 2 : index
    %c0_169 = arith.constant 0 : index
    %c0_170 = arith.constant 0 : index
    %357 = vector.load %arg9[%c2_168, %c0_169, %c0_170] : memref<4x1x384xf32, #tpu.memory_space<vmem>>, vector<1x1x384xf32>
    %358 = vector.shape_cast %357 : vector<1x1x384xf32> to vector<1x384xf32>
    %359 = vector.broadcast %358 : vector<1x384xf32> to vector<16x384xf32>
    %360 = arith.addf %356, %359 : vector<16x384xf32>
    %361 = vector.extract_strided_slice %360 {offsets = [0, 0], sizes = [16, 128], strides = [1, 1]} : vector<16x384xf32> to vector<16x128xf32>
    %362 = vector.extract_strided_slice %360 {offsets = [0, 128], sizes = [16, 128], strides = [1, 1]} : vector<16x384xf32> to vector<16x128xf32>
    %363 = vector.extract_strided_slice %360 {offsets = [0, 256], sizes = [16, 128], strides = [1, 1]} : vector<16x384xf32> to vector<16x128xf32>
    %cst_171 = arith.constant 0.000000e+00 : f32
    %364 = vector.broadcast %cst_171 : f32 to vector<16x128xf32>
    %c0_172 = arith.constant 0 : index
    %c0_173 = arith.constant 0 : index
    %365 = vector.load %arg5[%c0_172, %c0_173] : memref<4x128xf32, #tpu.memory_space<vmem>>, vector<1x128xf32>
    %366 = vector.broadcast %365 : vector<1x128xf32> to vector<16x128xf32>
    %367 = arith.mulf %361, %366 : vector<16x128xf32>
    %cst_174 = arith.constant dense<0.000000e+00> : vector<16x16xf32>
    %368 = tpu.matmul %367, %362, %cst_174 {dimension_numbers = #tpu.dot_dimension_numbers<[1], [1], [0], [0], [0, 0, 1, 0], [], []>} : vector<16x128xf32>, vector<16x128xf32>, vector<16x16xf32> -> vector<16x16xf32>
    %369 = arith.addf %368, %3 : vector<16x16xf32>
    %cst_175 = arith.constant dense<0xFF800000> : vector<16xf32>
    %370 = vector.multi_reduction <maximumf>, %369, %cst_175 [1] : vector<16x16xf32> to vector<16xf32>
    %371 = vector.shape_cast %370 : vector<16xf32> to vector<16x1xf32>
    %372 = vector.broadcast %371 : vector<16x1xf32> to vector<16x16xf32>
    %373 = arith.subf %369, %372 : vector<16x16xf32>
    %374 = math.exp %373 : vector<16x16xf32>
    %cst_176 = arith.constant dense<0.000000e+00> : vector<16xf32>
    %375 = vector.multi_reduction <add>, %374, %cst_176 [1] : vector<16x16xf32> to vector<16xf32>
    %376 = vector.shape_cast %375 : vector<16xf32> to vector<16x1xf32>
    %377 = tpu.reciprocal %376 {approx = true} : vector<16x1xf32> -> vector<16x1xf32>
    %378 = vector.broadcast %377 : vector<16x1xf32> to vector<16x16xf32>
    %379 = arith.mulf %374, %378 : vector<16x16xf32>
    %380 = vector.broadcast %365 : vector<1x128xf32> to vector<16x128xf32>
    %381 = arith.mulf %363, %380 : vector<16x128xf32>
    %cst_177 = arith.constant dense<0.000000e+00> : vector<16x128xf32>
    %382 = tpu.matmul %379, %381, %cst_177 {dimension_numbers = #tpu.dot_dimension_numbers<[1], [0], [0], [1], [0, 0, 1, 1], [], []>} : vector<16x16xf32>, vector<16x128xf32>, vector<16x128xf32> -> vector<16x128xf32>
    %383 = arith.addf %364, %382 : vector<16x128xf32>
    %c1_178 = arith.constant 1 : index
    %c0_179 = arith.constant 0 : index
    %384 = vector.load %arg5[%c1_178, %c0_179] : memref<4x128xf32, #tpu.memory_space<vmem>>, vector<1x128xf32>
    %385 = vector.broadcast %384 : vector<1x128xf32> to vector<16x128xf32>
    %386 = arith.mulf %361, %385 : vector<16x128xf32>
    %cst_180 = arith.constant dense<0.000000e+00> : vector<16x16xf32>
    %387 = tpu.matmul %386, %362, %cst_180 {dimension_numbers = #tpu.dot_dimension_numbers<[1], [1], [0], [0], [0, 0, 1, 0], [], []>} : vector<16x128xf32>, vector<16x128xf32>, vector<16x16xf32> -> vector<16x16xf32>
    %388 = arith.addf %387, %3 : vector<16x16xf32>
    %cst_181 = arith.constant dense<0xFF800000> : vector<16xf32>
    %389 = vector.multi_reduction <maximumf>, %388, %cst_181 [1] : vector<16x16xf32> to vector<16xf32>
    %390 = vector.shape_cast %389 : vector<16xf32> to vector<16x1xf32>
    %391 = vector.broadcast %390 : vector<16x1xf32> to vector<16x16xf32>
    %392 = arith.subf %388, %391 : vector<16x16xf32>
    %393 = math.exp %392 : vector<16x16xf32>
    %cst_182 = arith.constant dense<0.000000e+00> : vector<16xf32>
    %394 = vector.multi_reduction <add>, %393, %cst_182 [1] : vector<16x16xf32> to vector<16xf32>
    %395 = vector.shape_cast %394 : vector<16xf32> to vector<16x1xf32>
    %396 = tpu.reciprocal %395 {approx = true} : vector<16x1xf32> -> vector<16x1xf32>
    %397 = vector.broadcast %396 : vector<16x1xf32> to vector<16x16xf32>
    %398 = arith.mulf %393, %397 : vector<16x16xf32>
    %399 = vector.broadcast %384 : vector<1x128xf32> to vector<16x128xf32>
    %400 = arith.mulf %363, %399 : vector<16x128xf32>
    %cst_183 = arith.constant dense<0.000000e+00> : vector<16x128xf32>
    %401 = tpu.matmul %398, %400, %cst_183 {dimension_numbers = #tpu.dot_dimension_numbers<[1], [0], [0], [1], [0, 0, 1, 1], [], []>} : vector<16x16xf32>, vector<16x128xf32>, vector<16x128xf32> -> vector<16x128xf32>
    %402 = arith.addf %383, %401 : vector<16x128xf32>
    %c2_184 = arith.constant 2 : index
    %c0_185 = arith.constant 0 : index
    %403 = vector.load %arg5[%c2_184, %c0_185] : memref<4x128xf32, #tpu.memory_space<vmem>>, vector<1x128xf32>
    %404 = vector.broadcast %403 : vector<1x128xf32> to vector<16x128xf32>
    %405 = arith.mulf %361, %404 : vector<16x128xf32>
    %cst_186 = arith.constant dense<0.000000e+00> : vector<16x16xf32>
    %406 = tpu.matmul %405, %362, %cst_186 {dimension_numbers = #tpu.dot_dimension_numbers<[1], [1], [0], [0], [0, 0, 1, 0], [], []>} : vector<16x128xf32>, vector<16x128xf32>, vector<16x16xf32> -> vector<16x16xf32>
    %407 = arith.addf %406, %3 : vector<16x16xf32>
    %cst_187 = arith.constant dense<0xFF800000> : vector<16xf32>
    %408 = vector.multi_reduction <maximumf>, %407, %cst_187 [1] : vector<16x16xf32> to vector<16xf32>
    %409 = vector.shape_cast %408 : vector<16xf32> to vector<16x1xf32>
    %410 = vector.broadcast %409 : vector<16x1xf32> to vector<16x16xf32>
    %411 = arith.subf %407, %410 : vector<16x16xf32>
    %412 = math.exp %411 : vector<16x16xf32>
    %cst_188 = arith.constant dense<0.000000e+00> : vector<16xf32>
    %413 = vector.multi_reduction <add>, %412, %cst_188 [1] : vector<16x16xf32> to vector<16xf32>
    %414 = vector.shape_cast %413 : vector<16xf32> to vector<16x1xf32>
    %415 = tpu.reciprocal %414 {approx = true} : vector<16x1xf32> -> vector<16x1xf32>
    %416 = vector.broadcast %415 : vector<16x1xf32> to vector<16x16xf32>
    %417 = arith.mulf %412, %416 : vector<16x16xf32>
    %418 = vector.broadcast %403 : vector<1x128xf32> to vector<16x128xf32>
    %419 = arith.mulf %363, %418 : vector<16x128xf32>
    %cst_189 = arith.constant dense<0.000000e+00> : vector<16x128xf32>
    %420 = tpu.matmul %417, %419, %cst_189 {dimension_numbers = #tpu.dot_dimension_numbers<[1], [0], [0], [1], [0, 0, 1, 1], [], []>} : vector<16x16xf32>, vector<16x128xf32>, vector<16x128xf32> -> vector<16x128xf32>
    %421 = arith.addf %402, %420 : vector<16x128xf32>
    %c3_190 = arith.constant 3 : index
    %c0_191 = arith.constant 0 : index
    %422 = vector.load %arg5[%c3_190, %c0_191] : memref<4x128xf32, #tpu.memory_space<vmem>>, vector<1x128xf32>
    %423 = vector.broadcast %422 : vector<1x128xf32> to vector<16x128xf32>
    %424 = arith.mulf %361, %423 : vector<16x128xf32>
    %cst_192 = arith.constant dense<0.000000e+00> : vector<16x16xf32>
    %425 = tpu.matmul %424, %362, %cst_192 {dimension_numbers = #tpu.dot_dimension_numbers<[1], [1], [0], [0], [0, 0, 1, 0], [], []>} : vector<16x128xf32>, vector<16x128xf32>, vector<16x16xf32> -> vector<16x16xf32>
    %426 = arith.addf %425, %3 : vector<16x16xf32>
    %cst_193 = arith.constant dense<0xFF800000> : vector<16xf32>
    %427 = vector.multi_reduction <maximumf>, %426, %cst_193 [1] : vector<16x16xf32> to vector<16xf32>
    %428 = vector.shape_cast %427 : vector<16xf32> to vector<16x1xf32>
    %429 = vector.broadcast %428 : vector<16x1xf32> to vector<16x16xf32>
    %430 = arith.subf %426, %429 : vector<16x16xf32>
    %431 = math.exp %430 : vector<16x16xf32>
    %cst_194 = arith.constant dense<0.000000e+00> : vector<16xf32>
    %432 = vector.multi_reduction <add>, %431, %cst_194 [1] : vector<16x16xf32> to vector<16xf32>
    %433 = vector.shape_cast %432 : vector<16xf32> to vector<16x1xf32>
    %434 = tpu.reciprocal %433 {approx = true} : vector<16x1xf32> -> vector<16x1xf32>
    %435 = vector.broadcast %434 : vector<16x1xf32> to vector<16x16xf32>
    %436 = arith.mulf %431, %435 : vector<16x16xf32>
    %437 = vector.broadcast %422 : vector<1x128xf32> to vector<16x128xf32>
    %438 = arith.mulf %363, %437 : vector<16x128xf32>
    %cst_195 = arith.constant dense<0.000000e+00> : vector<16x128xf32>
    %439 = tpu.matmul %436, %438, %cst_195 {dimension_numbers = #tpu.dot_dimension_numbers<[1], [0], [0], [1], [0, 0, 1, 1], [], []>} : vector<16x16xf32>, vector<16x128xf32>, vector<16x128xf32> -> vector<16x128xf32>
    %440 = arith.addf %421, %439 : vector<16x128xf32>
    %c2_196 = arith.constant 2 : index
    %c0_197 = arith.constant 0 : index
    %c0_198 = arith.constant 0 : index
    %441 = vector.load %arg10[%c2_196, %c0_197, %c0_198] : memref<4x128x128xf32, #tpu.memory_space<vmem>>, vector<1x128x128xf32>
    %442 = vector.shape_cast %441 : vector<1x128x128xf32> to vector<128x128xf32>
    %cst_199 = arith.constant dense<0.000000e+00> : vector<16x128xf32>
    %443 = tpu.matmul %440, %442, %cst_199 {dimension_numbers = #tpu.dot_dimension_numbers<[1], [0], [0], [1], [0, 0, 1, 1], [], []>} : vector<16x128xf32>, vector<128x128xf32>, vector<16x128xf32> -> vector<16x128xf32>
    %c2_200 = arith.constant 2 : index
    %c0_201 = arith.constant 0 : index
    %c0_202 = arith.constant 0 : index
    %444 = vector.load %arg11[%c2_200, %c0_201, %c0_202] : memref<4x1x128xf32, #tpu.memory_space<vmem>>, vector<1x1x128xf32>
    %445 = vector.shape_cast %444 : vector<1x1x128xf32> to vector<1x128xf32>
    %446 = vector.broadcast %445 : vector<1x128xf32> to vector<16x128xf32>
    %447 = arith.addf %443, %446 : vector<16x128xf32>
    %448 = arith.addf %353, %447 : vector<16x128xf32>
    %c2_203 = arith.constant 2 : index
    %c0_204 = arith.constant 0 : index
    %c0_205 = arith.constant 0 : index
    %449 = vector.load %arg12[%c2_203, %c0_204, %c0_205] : memref<4x1x128xf32, #tpu.memory_space<vmem>>, vector<1x1x128xf32>
    %450 = vector.shape_cast %449 : vector<1x1x128xf32> to vector<1x128xf32>
    %c2_206 = arith.constant 2 : index
    %c0_207 = arith.constant 0 : index
    %c0_208 = arith.constant 0 : index
    %451 = vector.load %arg13[%c2_206, %c0_207, %c0_208] : memref<4x1x128xf32, #tpu.memory_space<vmem>>, vector<1x1x128xf32>
    %452 = vector.shape_cast %451 : vector<1x1x128xf32> to vector<1x128xf32>
    %cst_209 = arith.constant dense<0.000000e+00> : vector<16xf32>
    %453 = vector.multi_reduction <add>, %448, %cst_209 [1] : vector<16x128xf32> to vector<16xf32>
    %454 = vector.shape_cast %453 : vector<16xf32> to vector<16x1xf32>
    %cst_210 = arith.constant 1.280000e+02 : f32
    %455 = vector.broadcast %cst_210 : f32 to vector<16x1xf32>
    %456 = arith.divf %454, %455 : vector<16x1xf32>
    %457 = vector.broadcast %456 : vector<16x1xf32> to vector<16x128xf32>
    %458 = arith.subf %448, %457 : vector<16x128xf32>
    %459 = arith.mulf %458, %458 : vector<16x128xf32>
    %cst_211 = arith.constant dense<0.000000e+00> : vector<16xf32>
    %460 = vector.multi_reduction <add>, %459, %cst_211 [1] : vector<16x128xf32> to vector<16xf32>
    %461 = vector.shape_cast %460 : vector<16xf32> to vector<16x1xf32>
    %cst_212 = arith.constant 1.280000e+02 : f32
    %462 = vector.broadcast %cst_212 : f32 to vector<16x1xf32>
    %463 = arith.divf %461, %462 : vector<16x1xf32>
    %464 = vector.broadcast %456 : vector<16x1xf32> to vector<16x128xf32>
    %465 = arith.subf %448, %464 : vector<16x128xf32>
    %cst_213 = arith.constant 9.99999974E-6 : f32
    %466 = vector.broadcast %cst_213 : f32 to vector<16x1xf32>
    %467 = arith.addf %463, %466 : vector<16x1xf32>
    %468 = math.rsqrt %467 : vector<16x1xf32>
    %469 = vector.broadcast %468 : vector<16x1xf32> to vector<16x128xf32>
    %470 = arith.mulf %465, %469 : vector<16x128xf32>
    %471 = vector.broadcast %450 : vector<1x128xf32> to vector<16x128xf32>
    %472 = arith.mulf %470, %471 : vector<16x128xf32>
    %473 = vector.broadcast %452 : vector<1x128xf32> to vector<16x128xf32>
    %474 = arith.addf %472, %473 : vector<16x128xf32>
    %c2_214 = arith.constant 2 : index
    %c0_215 = arith.constant 0 : index
    %c0_216 = arith.constant 0 : index
    %475 = vector.load %arg14[%c2_214, %c0_215, %c0_216] : memref<4x128x128xf32, #tpu.memory_space<vmem>>, vector<1x128x128xf32>
    %476 = vector.shape_cast %475 : vector<1x128x128xf32> to vector<128x128xf32>
    %cst_217 = arith.constant dense<0.000000e+00> : vector<16x128xf32>
    %477 = tpu.matmul %474, %476, %cst_217 {dimension_numbers = #tpu.dot_dimension_numbers<[1], [0], [0], [1], [0, 0, 1, 1], [], []>} : vector<16x128xf32>, vector<128x128xf32>, vector<16x128xf32> -> vector<16x128xf32>
    %c2_218 = arith.constant 2 : index
    %c0_219 = arith.constant 0 : index
    %c0_220 = arith.constant 0 : index
    %478 = vector.load %arg15[%c2_218, %c0_219, %c0_220] : memref<4x1x128xf32, #tpu.memory_space<vmem>>, vector<1x1x128xf32>
    %479 = vector.shape_cast %478 : vector<1x1x128xf32> to vector<1x128xf32>
    %480 = vector.broadcast %479 : vector<1x128xf32> to vector<16x128xf32>
    %481 = arith.addf %477, %480 : vector<16x128xf32>
    %cst_221 = arith.constant 0.000000e+00 : f32
    %482 = vector.broadcast %cst_221 : f32 to vector<16x128xf32>
    %483 = arith.maximumf %481, %482 : vector<16x128xf32>
    %c2_222 = arith.constant 2 : index
    %c0_223 = arith.constant 0 : index
    %c0_224 = arith.constant 0 : index
    %484 = vector.load %arg16[%c2_222, %c0_223, %c0_224] : memref<4x128x128xf32, #tpu.memory_space<vmem>>, vector<1x128x128xf32>
    %485 = vector.shape_cast %484 : vector<1x128x128xf32> to vector<128x128xf32>
    %cst_225 = arith.constant dense<0.000000e+00> : vector<16x128xf32>
    %486 = tpu.matmul %483, %485, %cst_225 {dimension_numbers = #tpu.dot_dimension_numbers<[1], [0], [0], [1], [0, 0, 1, 1], [], []>} : vector<16x128xf32>, vector<128x128xf32>, vector<16x128xf32> -> vector<16x128xf32>
    %c2_226 = arith.constant 2 : index
    %c0_227 = arith.constant 0 : index
    %c0_228 = arith.constant 0 : index
    %487 = vector.load %arg17[%c2_226, %c0_227, %c0_228] : memref<4x1x128xf32, #tpu.memory_space<vmem>>, vector<1x1x128xf32>
    %488 = vector.shape_cast %487 : vector<1x1x128xf32> to vector<1x128xf32>
    %489 = vector.broadcast %488 : vector<1x128xf32> to vector<16x128xf32>
    %490 = arith.addf %486, %489 : vector<16x128xf32>
    %491 = arith.addf %474, %490 : vector<16x128xf32>
    %c2_229 = arith.constant 2 : index
    %c0_230 = arith.constant 0 : index
    %c0_231 = arith.constant 0 : index
    %492 = vector.load %arg18[%c2_229, %c0_230, %c0_231] : memref<4x1x128xf32, #tpu.memory_space<vmem>>, vector<1x1x128xf32>
    %493 = vector.shape_cast %492 : vector<1x1x128xf32> to vector<1x128xf32>
    %c2_232 = arith.constant 2 : index
    %c0_233 = arith.constant 0 : index
    %c0_234 = arith.constant 0 : index
    %494 = vector.load %arg19[%c2_232, %c0_233, %c0_234] : memref<4x1x128xf32, #tpu.memory_space<vmem>>, vector<1x1x128xf32>
    %495 = vector.shape_cast %494 : vector<1x1x128xf32> to vector<1x128xf32>
    %cst_235 = arith.constant dense<0.000000e+00> : vector<16xf32>
    %496 = vector.multi_reduction <add>, %491, %cst_235 [1] : vector<16x128xf32> to vector<16xf32>
    %497 = vector.shape_cast %496 : vector<16xf32> to vector<16x1xf32>
    %cst_236 = arith.constant 1.280000e+02 : f32
    %498 = vector.broadcast %cst_236 : f32 to vector<16x1xf32>
    %499 = arith.divf %497, %498 : vector<16x1xf32>
    %500 = vector.broadcast %499 : vector<16x1xf32> to vector<16x128xf32>
    %501 = arith.subf %491, %500 : vector<16x128xf32>
    %502 = arith.mulf %501, %501 : vector<16x128xf32>
    %cst_237 = arith.constant dense<0.000000e+00> : vector<16xf32>
    %503 = vector.multi_reduction <add>, %502, %cst_237 [1] : vector<16x128xf32> to vector<16xf32>
    %504 = vector.shape_cast %503 : vector<16xf32> to vector<16x1xf32>
    %cst_238 = arith.constant 1.280000e+02 : f32
    %505 = vector.broadcast %cst_238 : f32 to vector<16x1xf32>
    %506 = arith.divf %504, %505 : vector<16x1xf32>
    %507 = vector.broadcast %499 : vector<16x1xf32> to vector<16x128xf32>
    %508 = arith.subf %491, %507 : vector<16x128xf32>
    %cst_239 = arith.constant 9.99999974E-6 : f32
    %509 = vector.broadcast %cst_239 : f32 to vector<16x1xf32>
    %510 = arith.addf %506, %509 : vector<16x1xf32>
    %511 = math.rsqrt %510 : vector<16x1xf32>
    %512 = vector.broadcast %511 : vector<16x1xf32> to vector<16x128xf32>
    %513 = arith.mulf %508, %512 : vector<16x128xf32>
    %514 = vector.broadcast %493 : vector<1x128xf32> to vector<16x128xf32>
    %515 = arith.mulf %513, %514 : vector<16x128xf32>
    %516 = vector.broadcast %495 : vector<1x128xf32> to vector<16x128xf32>
    %517 = arith.addf %515, %516 : vector<16x128xf32>
    %c3_240 = arith.constant 3 : index
    %c0_241 = arith.constant 0 : index
    %c0_242 = arith.constant 0 : index
    %518 = vector.load %arg8[%c3_240, %c0_241, %c0_242] : memref<4x128x384xf32, #tpu.memory_space<vmem>>, vector<1x128x384xf32>
    %519 = vector.shape_cast %518 : vector<1x128x384xf32> to vector<128x384xf32>
    %cst_243 = arith.constant dense<0.000000e+00> : vector<16x384xf32>
    %520 = tpu.matmul %517, %519, %cst_243 {dimension_numbers = #tpu.dot_dimension_numbers<[1], [0], [0], [1], [0, 0, 1, 1], [], []>} : vector<16x128xf32>, vector<128x384xf32>, vector<16x384xf32> -> vector<16x384xf32>
    %c3_244 = arith.constant 3 : index
    %c0_245 = arith.constant 0 : index
    %c0_246 = arith.constant 0 : index
    %521 = vector.load %arg9[%c3_244, %c0_245, %c0_246] : memref<4x1x384xf32, #tpu.memory_space<vmem>>, vector<1x1x384xf32>
    %522 = vector.shape_cast %521 : vector<1x1x384xf32> to vector<1x384xf32>
    %523 = vector.broadcast %522 : vector<1x384xf32> to vector<16x384xf32>
    %524 = arith.addf %520, %523 : vector<16x384xf32>
    %525 = vector.extract_strided_slice %524 {offsets = [0, 0], sizes = [16, 128], strides = [1, 1]} : vector<16x384xf32> to vector<16x128xf32>
    %526 = vector.extract_strided_slice %524 {offsets = [0, 128], sizes = [16, 128], strides = [1, 1]} : vector<16x384xf32> to vector<16x128xf32>
    %527 = vector.extract_strided_slice %524 {offsets = [0, 256], sizes = [16, 128], strides = [1, 1]} : vector<16x384xf32> to vector<16x128xf32>
    %cst_247 = arith.constant 0.000000e+00 : f32
    %528 = vector.broadcast %cst_247 : f32 to vector<16x128xf32>
    %c0_248 = arith.constant 0 : index
    %c0_249 = arith.constant 0 : index
    %529 = vector.load %arg5[%c0_248, %c0_249] : memref<4x128xf32, #tpu.memory_space<vmem>>, vector<1x128xf32>
    %530 = vector.broadcast %529 : vector<1x128xf32> to vector<16x128xf32>
    %531 = arith.mulf %525, %530 : vector<16x128xf32>
    %cst_250 = arith.constant dense<0.000000e+00> : vector<16x16xf32>
    %532 = tpu.matmul %531, %526, %cst_250 {dimension_numbers = #tpu.dot_dimension_numbers<[1], [1], [0], [0], [0, 0, 1, 0], [], []>} : vector<16x128xf32>, vector<16x128xf32>, vector<16x16xf32> -> vector<16x16xf32>
    %533 = arith.addf %532, %3 : vector<16x16xf32>
    %cst_251 = arith.constant dense<0xFF800000> : vector<16xf32>
    %534 = vector.multi_reduction <maximumf>, %533, %cst_251 [1] : vector<16x16xf32> to vector<16xf32>
    %535 = vector.shape_cast %534 : vector<16xf32> to vector<16x1xf32>
    %536 = vector.broadcast %535 : vector<16x1xf32> to vector<16x16xf32>
    %537 = arith.subf %533, %536 : vector<16x16xf32>
    %538 = math.exp %537 : vector<16x16xf32>
    %cst_252 = arith.constant dense<0.000000e+00> : vector<16xf32>
    %539 = vector.multi_reduction <add>, %538, %cst_252 [1] : vector<16x16xf32> to vector<16xf32>
    %540 = vector.shape_cast %539 : vector<16xf32> to vector<16x1xf32>
    %541 = tpu.reciprocal %540 {approx = true} : vector<16x1xf32> -> vector<16x1xf32>
    %542 = vector.broadcast %541 : vector<16x1xf32> to vector<16x16xf32>
    %543 = arith.mulf %538, %542 : vector<16x16xf32>
    %544 = vector.broadcast %529 : vector<1x128xf32> to vector<16x128xf32>
    %545 = arith.mulf %527, %544 : vector<16x128xf32>
    %cst_253 = arith.constant dense<0.000000e+00> : vector<16x128xf32>
    %546 = tpu.matmul %543, %545, %cst_253 {dimension_numbers = #tpu.dot_dimension_numbers<[1], [0], [0], [1], [0, 0, 1, 1], [], []>} : vector<16x16xf32>, vector<16x128xf32>, vector<16x128xf32> -> vector<16x128xf32>
    %547 = arith.addf %528, %546 : vector<16x128xf32>
    %c1_254 = arith.constant 1 : index
    %c0_255 = arith.constant 0 : index
    %548 = vector.load %arg5[%c1_254, %c0_255] : memref<4x128xf32, #tpu.memory_space<vmem>>, vector<1x128xf32>
    %549 = vector.broadcast %548 : vector<1x128xf32> to vector<16x128xf32>
    %550 = arith.mulf %525, %549 : vector<16x128xf32>
    %cst_256 = arith.constant dense<0.000000e+00> : vector<16x16xf32>
    %551 = tpu.matmul %550, %526, %cst_256 {dimension_numbers = #tpu.dot_dimension_numbers<[1], [1], [0], [0], [0, 0, 1, 0], [], []>} : vector<16x128xf32>, vector<16x128xf32>, vector<16x16xf32> -> vector<16x16xf32>
    %552 = arith.addf %551, %3 : vector<16x16xf32>
    %cst_257 = arith.constant dense<0xFF800000> : vector<16xf32>
    %553 = vector.multi_reduction <maximumf>, %552, %cst_257 [1] : vector<16x16xf32> to vector<16xf32>
    %554 = vector.shape_cast %553 : vector<16xf32> to vector<16x1xf32>
    %555 = vector.broadcast %554 : vector<16x1xf32> to vector<16x16xf32>
    %556 = arith.subf %552, %555 : vector<16x16xf32>
    %557 = math.exp %556 : vector<16x16xf32>
    %cst_258 = arith.constant dense<0.000000e+00> : vector<16xf32>
    %558 = vector.multi_reduction <add>, %557, %cst_258 [1] : vector<16x16xf32> to vector<16xf32>
    %559 = vector.shape_cast %558 : vector<16xf32> to vector<16x1xf32>
    %560 = tpu.reciprocal %559 {approx = true} : vector<16x1xf32> -> vector<16x1xf32>
    %561 = vector.broadcast %560 : vector<16x1xf32> to vector<16x16xf32>
    %562 = arith.mulf %557, %561 : vector<16x16xf32>
    %563 = vector.broadcast %548 : vector<1x128xf32> to vector<16x128xf32>
    %564 = arith.mulf %527, %563 : vector<16x128xf32>
    %cst_259 = arith.constant dense<0.000000e+00> : vector<16x128xf32>
    %565 = tpu.matmul %562, %564, %cst_259 {dimension_numbers = #tpu.dot_dimension_numbers<[1], [0], [0], [1], [0, 0, 1, 1], [], []>} : vector<16x16xf32>, vector<16x128xf32>, vector<16x128xf32> -> vector<16x128xf32>
    %566 = arith.addf %547, %565 : vector<16x128xf32>
    %c2_260 = arith.constant 2 : index
    %c0_261 = arith.constant 0 : index
    %567 = vector.load %arg5[%c2_260, %c0_261] : memref<4x128xf32, #tpu.memory_space<vmem>>, vector<1x128xf32>
    %568 = vector.broadcast %567 : vector<1x128xf32> to vector<16x128xf32>
    %569 = arith.mulf %525, %568 : vector<16x128xf32>
    %cst_262 = arith.constant dense<0.000000e+00> : vector<16x16xf32>
    %570 = tpu.matmul %569, %526, %cst_262 {dimension_numbers = #tpu.dot_dimension_numbers<[1], [1], [0], [0], [0, 0, 1, 0], [], []>} : vector<16x128xf32>, vector<16x128xf32>, vector<16x16xf32> -> vector<16x16xf32>
    %571 = arith.addf %570, %3 : vector<16x16xf32>
    %cst_263 = arith.constant dense<0xFF800000> : vector<16xf32>
    %572 = vector.multi_reduction <maximumf>, %571, %cst_263 [1] : vector<16x16xf32> to vector<16xf32>
    %573 = vector.shape_cast %572 : vector<16xf32> to vector<16x1xf32>
    %574 = vector.broadcast %573 : vector<16x1xf32> to vector<16x16xf32>
    %575 = arith.subf %571, %574 : vector<16x16xf32>
    %576 = math.exp %575 : vector<16x16xf32>
    %cst_264 = arith.constant dense<0.000000e+00> : vector<16xf32>
    %577 = vector.multi_reduction <add>, %576, %cst_264 [1] : vector<16x16xf32> to vector<16xf32>
    %578 = vector.shape_cast %577 : vector<16xf32> to vector<16x1xf32>
    %579 = tpu.reciprocal %578 {approx = true} : vector<16x1xf32> -> vector<16x1xf32>
    %580 = vector.broadcast %579 : vector<16x1xf32> to vector<16x16xf32>
    %581 = arith.mulf %576, %580 : vector<16x16xf32>
    %582 = vector.broadcast %567 : vector<1x128xf32> to vector<16x128xf32>
    %583 = arith.mulf %527, %582 : vector<16x128xf32>
    %cst_265 = arith.constant dense<0.000000e+00> : vector<16x128xf32>
    %584 = tpu.matmul %581, %583, %cst_265 {dimension_numbers = #tpu.dot_dimension_numbers<[1], [0], [0], [1], [0, 0, 1, 1], [], []>} : vector<16x16xf32>, vector<16x128xf32>, vector<16x128xf32> -> vector<16x128xf32>
    %585 = arith.addf %566, %584 : vector<16x128xf32>
    %c3_266 = arith.constant 3 : index
    %c0_267 = arith.constant 0 : index
    %586 = vector.load %arg5[%c3_266, %c0_267] : memref<4x128xf32, #tpu.memory_space<vmem>>, vector<1x128xf32>
    %587 = vector.broadcast %586 : vector<1x128xf32> to vector<16x128xf32>
    %588 = arith.mulf %525, %587 : vector<16x128xf32>
    %cst_268 = arith.constant dense<0.000000e+00> : vector<16x16xf32>
    %589 = tpu.matmul %588, %526, %cst_268 {dimension_numbers = #tpu.dot_dimension_numbers<[1], [1], [0], [0], [0, 0, 1, 0], [], []>} : vector<16x128xf32>, vector<16x128xf32>, vector<16x16xf32> -> vector<16x16xf32>
    %590 = arith.addf %589, %3 : vector<16x16xf32>
    %cst_269 = arith.constant dense<0xFF800000> : vector<16xf32>
    %591 = vector.multi_reduction <maximumf>, %590, %cst_269 [1] : vector<16x16xf32> to vector<16xf32>
    %592 = vector.shape_cast %591 : vector<16xf32> to vector<16x1xf32>
    %593 = vector.broadcast %592 : vector<16x1xf32> to vector<16x16xf32>
    %594 = arith.subf %590, %593 : vector<16x16xf32>
    %595 = math.exp %594 : vector<16x16xf32>
    %cst_270 = arith.constant dense<0.000000e+00> : vector<16xf32>
    %596 = vector.multi_reduction <add>, %595, %cst_270 [1] : vector<16x16xf32> to vector<16xf32>
    %597 = vector.shape_cast %596 : vector<16xf32> to vector<16x1xf32>
    %598 = tpu.reciprocal %597 {approx = true} : vector<16x1xf32> -> vector<16x1xf32>
    %599 = vector.broadcast %598 : vector<16x1xf32> to vector<16x16xf32>
    %600 = arith.mulf %595, %599 : vector<16x16xf32>
    %601 = vector.broadcast %586 : vector<1x128xf32> to vector<16x128xf32>
    %602 = arith.mulf %527, %601 : vector<16x128xf32>
    %cst_271 = arith.constant dense<0.000000e+00> : vector<16x128xf32>
    %603 = tpu.matmul %600, %602, %cst_271 {dimension_numbers = #tpu.dot_dimension_numbers<[1], [0], [0], [1], [0, 0, 1, 1], [], []>} : vector<16x16xf32>, vector<16x128xf32>, vector<16x128xf32> -> vector<16x128xf32>
    %604 = arith.addf %585, %603 : vector<16x128xf32>
    %c3_272 = arith.constant 3 : index
    %c0_273 = arith.constant 0 : index
    %c0_274 = arith.constant 0 : index
    %605 = vector.load %arg10[%c3_272, %c0_273, %c0_274] : memref<4x128x128xf32, #tpu.memory_space<vmem>>, vector<1x128x128xf32>
    %606 = vector.shape_cast %605 : vector<1x128x128xf32> to vector<128x128xf32>
    %cst_275 = arith.constant dense<0.000000e+00> : vector<16x128xf32>
    %607 = tpu.matmul %604, %606, %cst_275 {dimension_numbers = #tpu.dot_dimension_numbers<[1], [0], [0], [1], [0, 0, 1, 1], [], []>} : vector<16x128xf32>, vector<128x128xf32>, vector<16x128xf32> -> vector<16x128xf32>
    %c3_276 = arith.constant 3 : index
    %c0_277 = arith.constant 0 : index
    %c0_278 = arith.constant 0 : index
    %608 = vector.load %arg11[%c3_276, %c0_277, %c0_278] : memref<4x1x128xf32, #tpu.memory_space<vmem>>, vector<1x1x128xf32>
    %609 = vector.shape_cast %608 : vector<1x1x128xf32> to vector<1x128xf32>
    %610 = vector.broadcast %609 : vector<1x128xf32> to vector<16x128xf32>
    %611 = arith.addf %607, %610 : vector<16x128xf32>
    %612 = arith.addf %517, %611 : vector<16x128xf32>
    %c3_279 = arith.constant 3 : index
    %c0_280 = arith.constant 0 : index
    %c0_281 = arith.constant 0 : index
    %613 = vector.load %arg12[%c3_279, %c0_280, %c0_281] : memref<4x1x128xf32, #tpu.memory_space<vmem>>, vector<1x1x128xf32>
    %614 = vector.shape_cast %613 : vector<1x1x128xf32> to vector<1x128xf32>
    %c3_282 = arith.constant 3 : index
    %c0_283 = arith.constant 0 : index
    %c0_284 = arith.constant 0 : index
    %615 = vector.load %arg13[%c3_282, %c0_283, %c0_284] : memref<4x1x128xf32, #tpu.memory_space<vmem>>, vector<1x1x128xf32>
    %616 = vector.shape_cast %615 : vector<1x1x128xf32> to vector<1x128xf32>
    %cst_285 = arith.constant dense<0.000000e+00> : vector<16xf32>
    %617 = vector.multi_reduction <add>, %612, %cst_285 [1] : vector<16x128xf32> to vector<16xf32>
    %618 = vector.shape_cast %617 : vector<16xf32> to vector<16x1xf32>
    %cst_286 = arith.constant 1.280000e+02 : f32
    %619 = vector.broadcast %cst_286 : f32 to vector<16x1xf32>
    %620 = arith.divf %618, %619 : vector<16x1xf32>
    %621 = vector.broadcast %620 : vector<16x1xf32> to vector<16x128xf32>
    %622 = arith.subf %612, %621 : vector<16x128xf32>
    %623 = arith.mulf %622, %622 : vector<16x128xf32>
    %cst_287 = arith.constant dense<0.000000e+00> : vector<16xf32>
    %624 = vector.multi_reduction <add>, %623, %cst_287 [1] : vector<16x128xf32> to vector<16xf32>
    %625 = vector.shape_cast %624 : vector<16xf32> to vector<16x1xf32>
    %cst_288 = arith.constant 1.280000e+02 : f32
    %626 = vector.broadcast %cst_288 : f32 to vector<16x1xf32>
    %627 = arith.divf %625, %626 : vector<16x1xf32>
    %628 = vector.broadcast %620 : vector<16x1xf32> to vector<16x128xf32>
    %629 = arith.subf %612, %628 : vector<16x128xf32>
    %cst_289 = arith.constant 9.99999974E-6 : f32
    %630 = vector.broadcast %cst_289 : f32 to vector<16x1xf32>
    %631 = arith.addf %627, %630 : vector<16x1xf32>
    %632 = math.rsqrt %631 : vector<16x1xf32>
    %633 = vector.broadcast %632 : vector<16x1xf32> to vector<16x128xf32>
    %634 = arith.mulf %629, %633 : vector<16x128xf32>
    %635 = vector.broadcast %614 : vector<1x128xf32> to vector<16x128xf32>
    %636 = arith.mulf %634, %635 : vector<16x128xf32>
    %637 = vector.broadcast %616 : vector<1x128xf32> to vector<16x128xf32>
    %638 = arith.addf %636, %637 : vector<16x128xf32>
    %c3_290 = arith.constant 3 : index
    %c0_291 = arith.constant 0 : index
    %c0_292 = arith.constant 0 : index
    %639 = vector.load %arg14[%c3_290, %c0_291, %c0_292] : memref<4x128x128xf32, #tpu.memory_space<vmem>>, vector<1x128x128xf32>
    %640 = vector.shape_cast %639 : vector<1x128x128xf32> to vector<128x128xf32>
    %cst_293 = arith.constant dense<0.000000e+00> : vector<16x128xf32>
    %641 = tpu.matmul %638, %640, %cst_293 {dimension_numbers = #tpu.dot_dimension_numbers<[1], [0], [0], [1], [0, 0, 1, 1], [], []>} : vector<16x128xf32>, vector<128x128xf32>, vector<16x128xf32> -> vector<16x128xf32>
    %c3_294 = arith.constant 3 : index
    %c0_295 = arith.constant 0 : index
    %c0_296 = arith.constant 0 : index
    %642 = vector.load %arg15[%c3_294, %c0_295, %c0_296] : memref<4x1x128xf32, #tpu.memory_space<vmem>>, vector<1x1x128xf32>
    %643 = vector.shape_cast %642 : vector<1x1x128xf32> to vector<1x128xf32>
    %644 = vector.broadcast %643 : vector<1x128xf32> to vector<16x128xf32>
    %645 = arith.addf %641, %644 : vector<16x128xf32>
    %cst_297 = arith.constant 0.000000e+00 : f32
    %646 = vector.broadcast %cst_297 : f32 to vector<16x128xf32>
    %647 = arith.maximumf %645, %646 : vector<16x128xf32>
    %c3_298 = arith.constant 3 : index
    %c0_299 = arith.constant 0 : index
    %c0_300 = arith.constant 0 : index
    %648 = vector.load %arg16[%c3_298, %c0_299, %c0_300] : memref<4x128x128xf32, #tpu.memory_space<vmem>>, vector<1x128x128xf32>
    %649 = vector.shape_cast %648 : vector<1x128x128xf32> to vector<128x128xf32>
    %cst_301 = arith.constant dense<0.000000e+00> : vector<16x128xf32>
    %650 = tpu.matmul %647, %649, %cst_301 {dimension_numbers = #tpu.dot_dimension_numbers<[1], [0], [0], [1], [0, 0, 1, 1], [], []>} : vector<16x128xf32>, vector<128x128xf32>, vector<16x128xf32> -> vector<16x128xf32>
    %c3_302 = arith.constant 3 : index
    %c0_303 = arith.constant 0 : index
    %c0_304 = arith.constant 0 : index
    %651 = vector.load %arg17[%c3_302, %c0_303, %c0_304] : memref<4x1x128xf32, #tpu.memory_space<vmem>>, vector<1x1x128xf32>
    %652 = vector.shape_cast %651 : vector<1x1x128xf32> to vector<1x128xf32>
    %653 = vector.broadcast %652 : vector<1x128xf32> to vector<16x128xf32>
    %654 = arith.addf %650, %653 : vector<16x128xf32>
    %655 = arith.addf %638, %654 : vector<16x128xf32>
    %c3_305 = arith.constant 3 : index
    %c0_306 = arith.constant 0 : index
    %c0_307 = arith.constant 0 : index
    %656 = vector.load %arg18[%c3_305, %c0_306, %c0_307] : memref<4x1x128xf32, #tpu.memory_space<vmem>>, vector<1x1x128xf32>
    %657 = vector.shape_cast %656 : vector<1x1x128xf32> to vector<1x128xf32>
    %c3_308 = arith.constant 3 : index
    %c0_309 = arith.constant 0 : index
    %c0_310 = arith.constant 0 : index
    %658 = vector.load %arg19[%c3_308, %c0_309, %c0_310] : memref<4x1x128xf32, #tpu.memory_space<vmem>>, vector<1x1x128xf32>
    %659 = vector.shape_cast %658 : vector<1x1x128xf32> to vector<1x128xf32>
    %cst_311 = arith.constant dense<0.000000e+00> : vector<16xf32>
    %660 = vector.multi_reduction <add>, %655, %cst_311 [1] : vector<16x128xf32> to vector<16xf32>
    %661 = vector.shape_cast %660 : vector<16xf32> to vector<16x1xf32>
    %cst_312 = arith.constant 1.280000e+02 : f32
    %662 = vector.broadcast %cst_312 : f32 to vector<16x1xf32>
    %663 = arith.divf %661, %662 : vector<16x1xf32>
    %664 = vector.broadcast %663 : vector<16x1xf32> to vector<16x128xf32>
    %665 = arith.subf %655, %664 : vector<16x128xf32>
    %666 = arith.mulf %665, %665 : vector<16x128xf32>
    %cst_313 = arith.constant dense<0.000000e+00> : vector<16xf32>
    %667 = vector.multi_reduction <add>, %666, %cst_313 [1] : vector<16x128xf32> to vector<16xf32>
    %668 = vector.shape_cast %667 : vector<16xf32> to vector<16x1xf32>
    %cst_314 = arith.constant 1.280000e+02 : f32
    %669 = vector.broadcast %cst_314 : f32 to vector<16x1xf32>
    %670 = arith.divf %668, %669 : vector<16x1xf32>
    %671 = vector.broadcast %663 : vector<16x1xf32> to vector<16x128xf32>
    %672 = arith.subf %655, %671 : vector<16x128xf32>
    %cst_315 = arith.constant 9.99999974E-6 : f32
    %673 = vector.broadcast %cst_315 : f32 to vector<16x1xf32>
    %674 = arith.addf %670, %673 : vector<16x1xf32>
    %675 = math.rsqrt %674 : vector<16x1xf32>
    %676 = vector.broadcast %675 : vector<16x1xf32> to vector<16x128xf32>
    %677 = arith.mulf %672, %676 : vector<16x128xf32>
    %678 = vector.broadcast %657 : vector<1x128xf32> to vector<16x128xf32>
    %679 = arith.mulf %677, %678 : vector<16x128xf32>
    %680 = vector.broadcast %659 : vector<1x128xf32> to vector<16x128xf32>
    %681 = arith.addf %679, %680 : vector<16x128xf32>
    %c0_316 = arith.constant 0 : index
    %c0_317 = arith.constant 0 : index
    %682 = vector.load %arg4[%c0_316, %c0_317] : memref<2x16xf32, #tpu.memory_space<vmem>>, vector<2x16xf32>
    %cst_318 = arith.constant dense<0.000000e+00> : vector<2x128xf32>
    %683 = tpu.matmul %682, %681, %cst_318 {dimension_numbers = #tpu.dot_dimension_numbers<[1], [0], [0], [1], [0, 0, 1, 1], [], []>} : vector<2x16xf32>, vector<16x128xf32>, vector<2x128xf32> -> vector<2x128xf32>
    %c0_319 = arith.constant 0 : index
    %c0_320 = arith.constant 0 : index
    %684 = vector.load %arg20[%c0_319, %c0_320] : memref<128x128xf32, #tpu.memory_space<vmem>>, vector<128x128xf32>
    %cst_321 = arith.constant dense<0.000000e+00> : vector<2x128xf32>
    %685 = tpu.matmul %683, %684, %cst_321 {dimension_numbers = #tpu.dot_dimension_numbers<[1], [0], [0], [1], [0, 0, 1, 1], [], []>} : vector<2x128xf32>, vector<128x128xf32>, vector<2x128xf32> -> vector<2x128xf32>
    %c0_322 = arith.constant 0 : index
    %c0_323 = arith.constant 0 : index
    %686 = vector.load %arg21[%c0_322, %c0_323] : memref<1x128xf32, #tpu.memory_space<vmem>>, vector<1x128xf32>
    %687 = vector.broadcast %686 : vector<1x128xf32> to vector<2x128xf32>
    %688 = arith.addf %685, %687 : vector<2x128xf32>
    %cst_324 = arith.constant 0.000000e+00 : f32
    %689 = vector.broadcast %cst_324 : f32 to vector<2x128xf32>
    %690 = arith.cmpf ogt, %688, %689 : vector<2x128xf32>
    %cst_325 = arith.constant 0.00999999977 : f32
    %691 = vector.broadcast %cst_325 : f32 to vector<2x128xf32>
    %692 = arith.mulf %691, %688 : vector<2x128xf32>
    %693 = arith.select %690, %688, %692 : vector<2x128xi1>, vector<2x128xf32>
    %c0_326 = arith.constant 0 : index
    %c0_327 = arith.constant 0 : index
    %694 = vector.load %arg22[%c0_326, %c0_327] : memref<128x128xf32, #tpu.memory_space<vmem>>, vector<128x128xf32>
    %cst_328 = arith.constant dense<0.000000e+00> : vector<2x128xf32>
    %695 = tpu.matmul %693, %694, %cst_328 {dimension_numbers = #tpu.dot_dimension_numbers<[1], [0], [0], [1], [0, 0, 1, 1], [], []>} : vector<2x128xf32>, vector<128x128xf32>, vector<2x128xf32> -> vector<2x128xf32>
    %c0_329 = arith.constant 0 : index
    %c0_330 = arith.constant 0 : index
    %696 = vector.load %arg23[%c0_329, %c0_330] : memref<1x128xf32, #tpu.memory_space<vmem>>, vector<1x128xf32>
    %697 = vector.broadcast %696 : vector<1x128xf32> to vector<2x128xf32>
    %698 = arith.addf %695, %697 : vector<2x128xf32>
    %cst_331 = arith.constant 0.000000e+00 : f32
    %699 = vector.broadcast %cst_331 : f32 to vector<2x128xf32>
    %700 = arith.cmpf ogt, %698, %699 : vector<2x128xf32>
    %cst_332 = arith.constant 0.00999999977 : f32
    %701 = vector.broadcast %cst_332 : f32 to vector<2x128xf32>
    %702 = arith.mulf %701, %698 : vector<2x128xf32>
    %703 = arith.select %700, %698, %702 : vector<2x128xi1>, vector<2x128xf32>
    %c0_333 = arith.constant 0 : index
    %c0_334 = arith.constant 0 : index
    %704 = vector.load %arg24[%c0_333, %c0_334] : memref<128x1xf32, #tpu.memory_space<vmem>>, vector<128x1xf32>
    %cst_335 = arith.constant dense<0.000000e+00> : vector<2x1xf32>
    %705 = tpu.matmul %703, %704, %cst_335 {dimension_numbers = #tpu.dot_dimension_numbers<[1], [0], [0], [1], [0, 0, 1, 1], [], []>} : vector<2x128xf32>, vector<128x1xf32>, vector<2x1xf32> -> vector<2x1xf32>
    %c0_336 = arith.constant 0 : index
    %c0_337 = arith.constant 0 : index
    %706 = vector.load %arg25[%c0_336, %c0_337] : memref<1x1xf32, #tpu.memory_space<vmem>>, vector<1x1xf32>
    %707 = vector.broadcast %706 : vector<1x1xf32> to vector<2x1xf32>
    %708 = arith.addf %705, %707 : vector<2x1xf32>
    %c0_338 = arith.constant 0 : index
    %c0_339 = arith.constant 0 : index
    %c0_340 = arith.constant 0 : index
    %709 = vector.load %arg26[%c0_338, %c0_339, %c0_340] : memref<1x2x1xf32, #tpu.memory_space<vmem>>, vector<1x2x1xf32>
    %710 = vector.shape_cast %709 : vector<1x2x1xf32> to vector<2x1xf32>
    %711 = vector.shape_cast %708 : vector<2x1xf32> to vector<1x2x1xf32>
    tpu.vector_store %arg26[%c0_338, %c0_339, %c0_340], %711 {strides = array<i32>} : memref<1x2x1xf32, #tpu.memory_space<vmem>>, vector<1x2x1xf32>,
    return
  }
  func.func @transform_0(%arg0: i32) -> (i32, i32, i32) {
    %c0_i32 = arith.constant 0 : i32
    %c0_i32_0 = arith.constant 0 : i32
    %c0_i32_1 = arith.constant 0 : i32
    return %arg0, %c0_i32, %c0_i32_0 : i32, i32, i32
  }
  func.func @transform_1(%arg0: i32) -> (i32, i32, i32) {
    %c0_i32 = arith.constant 0 : i32
    %c0_i32_0 = arith.constant 0 : i32
    %c0_i32_1 = arith.constant 0 : i32
    return %arg0, %c0_i32, %c0_i32_0 : i32, i32, i32
  }
  func.func @transform_2(%arg0: i32) -> (i32, i32) {
    %c0_i32 = arith.constant 0 : i32
    %c0_i32_0 = arith.constant 0 : i32
    %c0_i32_1 = arith.constant 0 : i32
    return %c0_i32, %c0_i32_0 : i32, i32
  }
  func.func @transform_3(%arg0: i32) -> (i32, i32) {
    %c0_i32 = arith.constant 0 : i32
    %c0_i32_0 = arith.constant 0 : i32
    %c0_i32_1 = arith.constant 0 : i32
    return %c0_i32, %c0_i32_0 : i32, i32
  }
  func.func @transform_4(%arg0: i32) -> (i32, i32) {
    %c0_i32 = arith.constant 0 : i32
    %c0_i32_0 = arith.constant 0 : i32
    %c0_i32_1 = arith.constant 0 : i32
    return %c0_i32, %c0_i32_0 : i32, i32
  }
  func.func @transform_5(%arg0: i32) -> (i32, i32) {
    %c0_i32 = arith.constant 0 : i32
    %c0_i32_0 = arith.constant 0 : i32
    %c0_i32_1 = arith.constant 0 : i32
    return %c0_i32, %c0_i32_0 : i32, i32
  }
  func.func @transform_6(%arg0: i32) -> (i32, i32) {
    %c0_i32 = arith.constant 0 : i32
    %c0_i32_0 = arith.constant 0 : i32
    %c0_i32_1 = arith.constant 0 : i32
    return %c0_i32, %c0_i32_0 : i32, i32
  }
  func.func @transform_7(%arg0: i32) -> (i32, i32, i32) {
    %c0_i32 = arith.constant 0 : i32
    %c0_i32_0 = arith.constant 0 : i32
    %c0_i32_1 = arith.constant 0 : i32
    %c0_i32_2 = arith.constant 0 : i32
    return %c0_i32, %c0_i32_0, %c0_i32_1 : i32, i32, i32
  }
  func.func @transform_8(%arg0: i32) -> (i32, i32, i32) {
    %c0_i32 = arith.constant 0 : i32
    %c0_i32_0 = arith.constant 0 : i32
    %c0_i32_1 = arith.constant 0 : i32
    %c0_i32_2 = arith.constant 0 : i32
    return %c0_i32, %c0_i32_0, %c0_i32_1 : i32, i32, i32
  }
  func.func @transform_9(%arg0: i32) -> (i32, i32, i32) {
    %c0_i32 = arith.constant 0 : i32
    %c0_i32_0 = arith.constant 0 : i32
    %c0_i32_1 = arith.constant 0 : i32
    %c0_i32_2 = arith.constant 0 : i32
    return %c0_i32, %c0_i32_0, %c0_i32_1 : i32, i32, i32
  }
  func.func @transform_10(%arg0: i32) -> (i32, i32, i32) {
    %c0_i32 = arith.constant 0 : i32
    %c0_i32_0 = arith.constant 0 : i32
    %c0_i32_1 = arith.constant 0 : i32
    %c0_i32_2 = arith.constant 0 : i32
    return %c0_i32, %c0_i32_0, %c0_i32_1 : i32, i32, i32
  }
  func.func @transform_11(%arg0: i32) -> (i32, i32, i32) {
    %c0_i32 = arith.constant 0 : i32
    %c0_i32_0 = arith.constant 0 : i32
    %c0_i32_1 = arith.constant 0 : i32
    %c0_i32_2 = arith.constant 0 : i32
    return %c0_i32, %c0_i32_0, %c0_i32_1 : i32, i32, i32
  }
  func.func @transform_12(%arg0: i32) -> (i32, i32, i32) {
    %c0_i32 = arith.constant 0 : i32
    %c0_i32_0 = arith.constant 0 : i32
    %c0_i32_1 = arith.constant 0 : i32
    %c0_i32_2 = arith.constant 0 : i32
    return %c0_i32, %c0_i32_0, %c0_i32_1 : i32, i32, i32
  }
  func.func @transform_13(%arg0: i32) -> (i32, i32, i32) {
    %c0_i32 = arith.constant 0 : i32
    %c0_i32_0 = arith.constant 0 : i32
    %c0_i32_1 = arith.constant 0 : i32
    %c0_i32_2 = arith.constant 0 : i32
    return %c0_i32, %c0_i32_0, %c0_i32_1 : i32, i32, i32
  }
  func.func @transform_14(%arg0: i32) -> (i32, i32, i32) {
    %c0_i32 = arith.constant 0 : i32
    %c0_i32_0 = arith.constant 0 : i32
    %c0_i32_1 = arith.constant 0 : i32
    %c0_i32_2 = arith.constant 0 : i32
    return %c0_i32, %c0_i32_0, %c0_i32_1 : i32, i32, i32
  }
  func.func @transform_15(%arg0: i32) -> (i32, i32, i32) {
    %c0_i32 = arith.constant 0 : i32
    %c0_i32_0 = arith.constant 0 : i32
    %c0_i32_1 = arith.constant 0 : i32
    %c0_i32_2 = arith.constant 0 : i32
    return %c0_i32, %c0_i32_0, %c0_i32_1 : i32, i32, i32
  }
  func.func @transform_16(%arg0: i32) -> (i32, i32, i32) {
    %c0_i32 = arith.constant 0 : i32
    %c0_i32_0 = arith.constant 0 : i32
    %c0_i32_1 = arith.constant 0 : i32
    %c0_i32_2 = arith.constant 0 : i32
    return %c0_i32, %c0_i32_0, %c0_i32_1 : i32, i32, i32
  }
  func.func @transform_17(%arg0: i32) -> (i32, i32, i32) {
    %c0_i32 = arith.constant 0 : i32
    %c0_i32_0 = arith.constant 0 : i32
    %c0_i32_1 = arith.constant 0 : i32
    %c0_i32_2 = arith.constant 0 : i32
    return %c0_i32, %c0_i32_0, %c0_i32_1 : i32, i32, i32
  }
  func.func @transform_18(%arg0: i32) -> (i32, i32, i32) {
    %c0_i32 = arith.constant 0 : i32
    %c0_i32_0 = arith.constant 0 : i32
    %c0_i32_1 = arith.constant 0 : i32
    %c0_i32_2 = arith.constant 0 : i32
    return %c0_i32, %c0_i32_0, %c0_i32_1 : i32, i32, i32
  }
  func.func @transform_19(%arg0: i32) -> (i32, i32) {
    %c0_i32 = arith.constant 0 : i32
    %c0_i32_0 = arith.constant 0 : i32
    %c0_i32_1 = arith.constant 0 : i32
    return %c0_i32, %c0_i32_0 : i32, i32
  }
  func.func @transform_20(%arg0: i32) -> (i32, i32) {
    %c0_i32 = arith.constant 0 : i32
    %c0_i32_0 = arith.constant 0 : i32
    %c0_i32_1 = arith.constant 0 : i32
    return %c0_i32, %c0_i32_0 : i32, i32
  }
  func.func @transform_21(%arg0: i32) -> (i32, i32) {
    %c0_i32 = arith.constant 0 : i32
    %c0_i32_0 = arith.constant 0 : i32
    %c0_i32_1 = arith.constant 0 : i32
    return %c0_i32, %c0_i32_0 : i32, i32
  }
  func.func @transform_22(%arg0: i32) -> (i32, i32) {
    %c0_i32 = arith.constant 0 : i32
    %c0_i32_0 = arith.constant 0 : i32
    %c0_i32_1 = arith.constant 0 : i32
    return %c0_i32, %c0_i32_0 : i32, i32
  }
  func.func @transform_23(%arg0: i32) -> (i32, i32) {
    %c0_i32 = arith.constant 0 : i32
    %c0_i32_0 = arith.constant 0 : i32
    %c0_i32_1 = arith.constant 0 : i32
    return %c0_i32, %c0_i32_0 : i32, i32
  }
  func.func @transform_24(%arg0: i32) -> (i32, i32) {
    %c0_i32 = arith.constant 0 : i32
    %c0_i32_0 = arith.constant 0 : i32
    %c0_i32_1 = arith.constant 0 : i32
    return %c0_i32, %c0_i32_0 : i32, i32
  }
  func.func @transform_25(%arg0: i32) -> (i32, i32, i32) {
    %c0_i32 = arith.constant 0 : i32
    %c0_i32_0 = arith.constant 0 : i32
    %c0_i32_1 = arith.constant 0 : i32
    return %arg0, %c0_i32, %c0_i32_0 : i32, i32, i32
  }
}

</mosaic_0001>

<llo_original>
// kernel: shape_ebm_forward.1
$region0: #{shape_ebm_forward.1}
  #allocation0 [shape = 'u32[]', space=smem, size = 0x4, offset = 0x4, fixed_abs, tag = 'smem constant byte address 0x4 - core index']
  #allocation1 [shape = 'u32[144,128]{1,0:T(1,128)}', space=vmem, size = 0x12000, scoped, tag = 'internal scratch']
  #allocation2 [shape = 'f32[1,1]{1,0:T(1,128)S(1)}', space=vmem, size = 0x200, scoped, tag = 'scoped memory for shape_ebm_forward.1']
  %s0 = inlined_call_operand.vmem [shape: f32[1,16,2], index: 0, kind: input, shape index: {}]
  %s1 = inlined_call_operand.vmem [shape: f32[1,16,16], index: 1, kind: input, shape index: {}]
  %s2 = inlined_call_operand.vmem [shape: f32[16,16], index: 2, kind: input, shape index: {}]
  %s3 = inlined_call_operand.vmem [shape: f32[2,16], index: 3, kind: input, shape index: {}]
  %s4 = inlined_call_operand.vmem [shape: f32[4,128], index: 4, kind: input, shape index: {}]
  %s5 = inlined_call_operand.vmem [shape: f32[2,128], index: 5, kind: input, shape index: {}]
  %s6 = inlined_call_operand.vmem [shape: f32[1,128], index: 6, kind: input, shape index: {}]
  %s7 = inlined_call_operand.vmem [shape: f32[4,128,384], index: 7, kind: input, shape index: {}]
  %s8 = inlined_call_operand.vmem [shape: f32[4,1,384], index: 8, kind: input, shape index: {}]
  %s9 = inlined_call_operand.vmem [shape: f32[4,128,128], index: 9, kind: input, shape index: {}]
  %s10 = inlined_call_operand.vmem [shape: f32[4,1,128], index: 10, kind: input, shape index: {}]
  %s11 = inlined_call_operand.vmem [shape: f32[4,1,128], index: 11, kind: input, shape index: {}]
  %s12 = inlined_call_operand.vmem [shape: f32[4,1,128], index: 12, kind: input, shape index: {}]
  %s13 = inlined_call_operand.vmem [shape: f32[4,128,128], index: 13, kind: input, shape index: {}]
  %s14 = inlined_call_operand.vmem [shape: f32[4,1,128], index: 14, kind: input, shape index: {}]
  %s15 = inlined_call_operand.vmem [shape: f32[4,128,128], index: 15, kind: input, shape index: {}]
  %s16 = inlined_call_operand.vmem [shape: f32[4,1,128], index: 16, kind: input, shape index: {}]
  %s17 = inlined_call_operand.vmem [shape: f32[4,1,128], index: 17, kind: input, shape index: {}]
  %s18 = inlined_call_operand.vmem [shape: f32[4,1,128], index: 18, kind: input, shape index: {}]
  %s19 = inlined_call_operand.vmem [shape: f32[128,128], index: 19, kind: input, shape index: {}]
  %s20 = inlined_call_operand.vmem [shape: f32[1,128], index: 20, kind: input, shape index: {}]
  %s21 = inlined_call_operand.vmem [shape: f32[128,128], index: 21, kind: input, shape index: {}]
  %s22 = inlined_call_operand.vmem [shape: f32[1,128], index: 22, kind: input, shape index: {}]
  %s23 = inlined_call_operand.vmem [shape: f32[128,1], index: 23, kind: input, shape index: {}]
  %s24 = inlined_call_operand.<no memory space> [shape: f32[1,1], index: 24, kind: input, shape index: {}]
  %s25 = inlined_call_operand.vmem [shape: f32[1,2,1], index: 25, kind: output, shape index: {}]
  %s26 = sld [smem:[#allocation0]]
  $region110: #{shape_ebm_forward.1} parent=0
    _
  %s28 = ssub.s32 1, %s26
  %s29 = scalar_select 0, %s28, %s26
  %v30 = vstv %s24
  %31 = vst [vmem:[#allocation2] sm:$0x1] %v30
  // Predicated region
  $region2: #{shape_ebm_forward.1} parent=0 // pred_check
    _
  $region3: #{shape_ebm_forward.1} parent=0 // pred_check_branch
    %33 = sbr.rel (0) target = $region5
  $region4: #{shape_ebm_forward.1} parent=0 // pred_region
    _
  $region5: #{shape_ebm_forward.1} parent=0 // pred_fallthru
    _
  // Predicated region
  $region6: #{shape_ebm_forward.1} parent=0 // pred_check
    _
  $region7: #{shape_ebm_forward.1} parent=0 // pred_check_branch
    %35 = sbr.rel (0) target = $region9
  $region8: #{shape_ebm_forward.1} parent=0 // pred_region
    _
  $region9: #{shape_ebm_forward.1} parent=0 // pred_fallthru
    _
  // Predicated region
  $region10: #{shape_ebm_forward.1} parent=0 // pred_check
    _
  $region11: #{shape_ebm_forward.1} parent=0 // pred_check_branch
    %37 = sbr.rel (0) target = $region13
  $region12: #{shape_ebm_forward.1} parent=0 // pred_region
    _
  $region13: #{shape_ebm_forward.1} parent=0 // pred_fallthru
    _
  // Predicated region
  $region14: #{shape_ebm_forward.1} parent=0 // pred_check
    _
  $region15: #{shape_ebm_forward.1} parent=0 // pred_check_branch
    %39 = sbr.rel (0) target = $region17
  $region16: #{shape_ebm_forward.1} parent=0 // pred_region
    _
  $region17: #{shape_ebm_forward.1} parent=0 // pred_fallthru
    _
  // Predicated region
  $region18: #{shape_ebm_forward.1} parent=0 // pred_check
    _
  $region19: #{shape_ebm_forward.1} parent=0 // pred_check_branch
    %41 = sbr.rel (0) target = $region21
  $region20: #{shape_ebm_forward.1} parent=0 // pred_region
    _
  $region21: #{shape_ebm_forward.1} parent=0 // pred_fallthru
    _
  // Predicated region
  $region22: #{shape_ebm_forward.1} parent=0 // pred_check
    _
  $region23: #{shape_ebm_forward.1} parent=0 // pred_check_branch
    %43 = sbr.rel (0) target = $region25
  $region24: #{shape_ebm_forward.1} parent=0 // pred_region
    _
  $region25: #{shape_ebm_forward.1} parent=0 // pred_fallthru
    _
  // Predicated region
  $region26: #{shape_ebm_forward.1} parent=0 // pred_check
    _
  $region27: #{shape_ebm_forward.1} parent=0 // pred_check_branch
    %45 = sbr.rel (0) target = $region29
  $region28: #{shape_ebm_forward.1} parent=0 // pred_region
    _
  $region29: #{shape_ebm_forward.1} parent=0 // pred_fallthru
    _
  // Predicated region
  $region30: #{shape_ebm_forward.1} parent=0 // pred_check
    _
  $region31: #{shape_ebm_forward.1} parent=0 // pred_check_branch
    %47 = sbr.rel (0) target = $region33
  $region32: #{shape_ebm_forward.1} parent=0 // pred_region
    _
  $region33: #{shape_ebm_forward.1} parent=0 // pred_fallthru
    _
  // Predicated region
  $region34: #{shape_ebm_forward.1} parent=0 // pred_check
    _
  $region35: #{shape_ebm_forward.1} parent=0 // pred_check_branch
    %49 = sbr.rel (0) target = $region37
  $region36: #{shape_ebm_forward.1} parent=0 // pred_region
    _
  $region37: #{shape_ebm_forward.1} parent=0 // pred_fallthru
    _
  // Predicated region
  $region38: #{shape_ebm_forward.1} parent=0 // pred_check
    _
  $region39: #{shape_ebm_forward.1} parent=0 // pred_check_branch
    %51 = sbr.rel (0) target = $region41
  $region40: #{shape_ebm_forward.1} parent=0 // pred_region
    _
  $region41: #{shape_ebm_forward.1} parent=0 // pred_fallthru
    _
  // Predicated region
  $region42: #{shape_ebm_forward.1} parent=0 // pred_check
    _
  $region43: #{shape_ebm_forward.1} parent=0 // pred_check_branch
    %53 = sbr.rel (0) target = $region45
  $region44: #{shape_ebm_forward.1} parent=0 // pred_region
    _
  $region45: #{shape_ebm_forward.1} parent=0 // pred_fallthru
    _
  // Predicated region
  $region46: #{shape_ebm_forward.1} parent=0 // pred_check
    _
  $region47: #{shape_ebm_forward.1} parent=0 // pred_check_branch
    %55 = sbr.rel (0) target = $region49
  $region48: #{shape_ebm_forward.1} parent=0 // pred_region
    _
  $region49: #{shape_ebm_forward.1} parent=0 // pred_fallthru
    _
  // Predicated region
  $region50: #{shape_ebm_forward.1} parent=0 // pred_check
    _
  $region51: #{shape_ebm_forward.1} parent=0 // pred_check_branch
    %57 = sbr.rel (0) target = $region53
  $region52: #{shape_ebm_forward.1} parent=0 // pred_region
    _
  $region53: #{shape_ebm_forward.1} parent=0 // pred_fallthru
    _
  // Predicated region
  $region54: #{shape_ebm_forward.1} parent=0 // pred_check
    _
  $region55: #{shape_ebm_forward.1} parent=0 // pred_check_branch
    %59 = sbr.rel (0) target = $region57
  $region56: #{shape_ebm_forward.1} parent=0 // pred_region
    _
  $region57: #{shape_ebm_forward.1} parent=0 // pred_fallthru
    _
  // Predicated region
  $region58: #{shape_ebm_forward.1} parent=0 // pred_check
    _
  $region59: #{shape_ebm_forward.1} parent=0 // pred_check_branch
    %61 = sbr.rel (0) target = $region61
  $region60: #{shape_ebm_forward.1} parent=0 // pred_region
    _
  $region61: #{shape_ebm_forward.1} parent=0 // pred_fallthru
    _
  // Predicated region
  $region62: #{shape_ebm_forward.1} parent=0 // pred_check
    _
  $region63: #{shape_ebm_forward.1} parent=0 // pred_check_branch
    %63 = sbr.rel (0) target = $region65
  $region64: #{shape_ebm_forward.1} parent=0 // pred_region
    _
  $region65: #{shape_ebm_forward.1} parent=0 // pred_fallthru
    _
  // Predicated region
  $region66: #{shape_ebm_forward.1} parent=0 // pred_check
    _
  $region67: #{shape_ebm_forward.1} parent=0 // pred_check_branch
    %65 = sbr.rel (0) target = $region69
  $region68: #{shape_ebm_forward.1} parent=0 // pred_region
    _
  $region69: #{shape_ebm_forward.1} parent=0 // pred_fallthru
    _
  // Predicated region
  $region70: #{shape_ebm_forward.1} parent=0 // pred_check
    _
  $region71: #{shape_ebm_forward.1} parent=0 // pred_check_branch
    %67 = sbr.rel (0) target = $region73
  $region72: #{shape_ebm_forward.1} parent=0 // pred_region
    _
  $region73: #{shape_ebm_forward.1} parent=0 // pred_fallthru
    _
  // Predicated region
  $region74: #{shape_ebm_forward.1} parent=0 // pred_check
    _
  $region75: #{shape_ebm_forward.1} parent=0 // pred_check_branch
    %69 = sbr.rel (0) target = $region77
  $region76: #{shape_ebm_forward.1} parent=0 // pred_region
    _
  $region77: #{shape_ebm_forward.1} parent=0 // pred_fallthru
    _
  // Predicated region
  $region78: #{shape_ebm_forward.1} parent=0 // pred_check
    _
  $region79: #{shape_ebm_forward.1} parent=0 // pred_check_branch
    %71 = sbr.rel (0) target = $region81
  $region80: #{shape_ebm_forward.1} parent=0 // pred_region
    _
  $region81: #{shape_ebm_forward.1} parent=0 // pred_fallthru
    _
  // Predicated region
  $region82: #{shape_ebm_forward.1} parent=0 // pred_check
    _
  $region83: #{shape_ebm_forward.1} parent=0 // pred_check_branch
    %73 = sbr.rel (0) target = $region85
  $region84: #{shape_ebm_forward.1} parent=0 // pred_region
    _
  $region85: #{shape_ebm_forward.1} parent=0 // pred_fallthru
    _
  // Predicated region
  $region86: #{shape_ebm_forward.1} parent=0 // pred_check
    _
  $region87: #{shape_ebm_forward.1} parent=0 // pred_check_branch
    %75 = sbr.rel (0) target = $region89
  $region88: #{shape_ebm_forward.1} parent=0 // pred_region
    _
  $region89: #{shape_ebm_forward.1} parent=0 // pred_fallthru
    _
  // Predicated region
  $region90: #{shape_ebm_forward.1} parent=0 // pred_check
    _
  $region91: #{shape_ebm_forward.1} parent=0 // pred_check_branch
    %77 = sbr.rel (0) target = $region93
  $region92: #{shape_ebm_forward.1} parent=0 // pred_region
    _
  $region93: #{shape_ebm_forward.1} parent=0 // pred_fallthru
    _
  // Predicated region
  $region94: #{shape_ebm_forward.1} parent=0 // pred_check
    _
  $region95: #{shape_ebm_forward.1} parent=0 // pred_check_branch
    %79 = sbr.rel (0) target = $region97
  $region96: #{shape_ebm_forward.1} parent=0 // pred_region
    _
  $region97: #{shape_ebm_forward.1} parent=0 // pred_fallthru
    _
  // Predicated region
  $region98: #{shape_ebm_forward.1} parent=0 // pred_check
    _
  $region99: #{shape_ebm_forward.1} parent=0 // pred_check_branch
    %81 = sbr.rel (0) target = $region101
  $region100: #{shape_ebm_forward.1} parent=0 // pred_region
    _
  $region101: #{shape_ebm_forward.1} parent=0 // pred_fallthru
    _
  %v82 = vld [vmem:[%s0] sm:$0xff]
  %v83 = vld [vmem:[%s0 + $0x8] sm:$0xff]
  %v84 = vld [vmem:[%s1] sm:$0xff]
  %v85 = vld [vmem:[%s1 + $0x8] sm:$0xff]
  %v86 = vld [vmem:[%s2] sm:$0xff]
  %v87 = vld [vmem:[%s2 + $0x8] sm:$0xff]
  %vm88 = vcmask 130048
  %v90 = vsel %vm88, %v86, 0
  %v93 = vsel %vm88, %v87, 0
  %95 = vmatprep.subr.mxu0 0.0
  %96 = vmatpush1.msra.mxu0 %v82
  %97 = vmatprep.subr.mxu0 0.0
  %98 = vmatpush1.msra.mxu0 %v83
  %99 = vmatprep.subr.mxu0 0.0
  %100 = vmatpush1.msra.mxu0 0.0
  %101 = vmatprep.subr.mxu0 0.0
  %102 = vmatpush1.msra.mxu0 0.0
  %103 = vmatprep.subr.mxu0 0.0
  %104 = vmatpush1.msra.mxu0 0.0
  %105 = vmatprep.subr.mxu0 0.0
  %106 = vmatpush1.msra.mxu0 0.0
  %107 = vmatprep.subr.mxu0 0.0
  %108 = vmatpush1.msra.mxu0 0.0
  %109 = vmatprep.subr.mxu0 0.0
  %110 = vmatpush1.msra.mxu0 0.0
  %111 = vmatprep.subr.mxu0 0.0
  %112 = vmatpush1.msra.mxu0 0.0
  %113 = vmatprep.subr.mxu0 0.0
  %114 = vmatpush1.msra.mxu0 0.0
  %115 = vmatprep.subr.mxu0 0.0
  %116 = vmatpush1.msra.mxu0 0.0
  %117 = vmatprep.subr.mxu0 0.0
  %118 = vmatpush1.msra.mxu0 0.0
  %119 = vmatprep.subr.mxu0 0.0
  %120 = vmatpush1.msra.mxu0 0.0
  %121 = vmatprep.subr.mxu0 0.0
  %122 = vmatpush1.msra.mxu0 0.0
  %123 = vmatprep.subr.mxu0 0.0
  %124 = vmatpush1.msra.mxu0 0.0
  %125 = vmatprep.subr.mxu0 0.0
  %126 = vmatpush1.msra.mxu0 0.0
  %127 = vmatprep.subr.mxu0 0.0
  %128 = vmatpush1.msra.mxu0 0.0
  %129 = vmatprep.subr.mxu0 0.0
  %130 = vmatpush1.msra.mxu0 0.0
  %131 = vmatprep.subr.mxu0 0.0
  %132 = vmatpush1.msra.mxu0 0.0
  %133 = vmatprep.subr.mxu0 0.0
  %134 = vmatpush1.msra.mxu0 0.0
  %135 = vmatprep.subr.mxu0 0.0
  %136 = vmatpush1.msra.mxu0 0.0
  %137 = vmatprep.subr.mxu0 0.0
  %138 = vmatpush1.msra.mxu0 0.0
  %139 = vmatprep.subr.mxu0 0.0
  %140 = vmatpush1.msra.mxu0 0.0
  %141 = vmatprep.subr.mxu0 0.0
  %142 = vmatpush1.msra.mxu0 0.0
  %143 = vmatprep.subr.mxu0 0.0
  %144 = vmatpush1.msra.mxu0 0.0
  %145 = vmatprep.subr.mxu0 0.0
  %146 = vmatpush1.msra.mxu0 0.0
  %147 = vmatprep.subr.mxu0 0.0
  %148 = vmatpush1.msra.mxu0 0.0
  %149 = vmatprep.subr.mxu0 0.0
  %150 = vmatpush1.msra.mxu0 0.0
  %151 = vmatprep.subr.mxu0 0.0
  %152 = vmatpush1.msra.mxu0 0.0
  %153 = vmatprep.subr.mxu0 0.0
  %154 = vmatpush1.msra.mxu0 0.0
  %155 = vmatprep.subr.mxu0 0.0
  %156 = vmatpush1.msra.mxu0 0.0
  %157 = vmatprep.subr.mxu0 0.0
  %158 = vmatpush1.msra.mxu0 0.0
  %159 = vmatprep.mubr.f32.mxu0 0.0
  %160 = vmatmul.mubr.f32.gmra.mrb[0].mxu0 %v90
  %v161 = vpop.f32.mrb[0].mxu0
  %v162 = vadd.f32 0.0, %v161
  %v163 = vpop.f32.mrb[0].mxu0
  %164 = vmatprep.mubr.f32.mxu0 0.0
  %165 = vmatmul.mubr.f32.gmra.mrb[0].mxu0 %v93
  %v166 = vpop.f32.mrb[0].mxu0
  %v167 = vadd.f32 0.0, %v166
  %v168 = vpop.f32.mrb[0].mxu0
  %169 = vdwg.mxu0
  %v170 = vsub.f32 %v82, %v162
  %v171 = vsub.f32 %v83, %v167
  %v172 = vld [vmem:[%s5] sm:$0x1]
  %174 = vset.pattern.permute.xlu0 0
  %175 = vperm.xlu0 %174, %v170
  %v176 = vpop.permute.xlu0 %175
  %179 = vset.pattern.permute.xlu0 0
  %180 = vperm.xlu0 %179, %v171
  %v181 = vpop.permute.xlu0 %180
  %v183 = vlaneseq
  %v184 = vshrl.u32 %v183, 7
  %v185 = vsub.s32 0, %v184
  %v186 = vrot.slane %v172, %v185
  %v187 = vmul.f32 %v176, %v186
  %v188 = vmul.f32 %v181, %v186
  %v189 = vld [vmem:[%s5 + $0x1] sm:$0x1]
  %190 = vset.pattern.permute.xlu0 1
  %191 = vperm.xlu0 %190, %v170
  %v192 = vpop.permute.xlu0 %191
  %194 = vset.pattern.permute.xlu0 1
  %195 = vperm.xlu0 %194, %v171
  %v196 = vpop.permute.xlu0 %195
  %v198 = vlaneseq
  %v199 = vshrl.u32 %v198, 7
  %v200 = vsub.s32 0, %v199
  %v201 = vrot.slane %v189, %v200
  %v202 = vmul.f32 %v192, %v201
  %v203 = vmul.f32 %v196, %v201
  %v204 = vadd.f32 %v187, %v202
  %v205 = vadd.f32 %v188, %v203
  %v206 = vld [vmem:[%s6] sm:$0x1]
  %v208 = vlaneseq
  %v209 = vshrl.u32 %v208, 7
  %v210 = vsub.s32 0, %v209
  %v211 = vrot.slane %v206, %v210
  %v213 = vadd.f32 %v204, %v211
  %v214 = vadd.f32 %v205, %v211
  %vm215 = vcmp.gt.f32.partialorder %v213, 0.0
  %vm216 = vcmp.gt.f32.partialorder %v214, 0.0
  %v217 = vmul.f32 %v213, 0.01
  %v218 = vmul.f32 %v214, 0.01
  %v219 = vsel %vm215, %v213, %v217
  %v220 = vsel %vm216, %v214, %v218
  %v221 = vld [vmem:[%s7] sm:$0xff]
  %v222 = vld [vmem:[%s7 + $0x8] sm:$0xff]
  %v223 = vld [vmem:[%s7 + $0x10] sm:$0xff]
  %v224 = vld [vmem:[%s7 + $0x18] sm:$0xff]
  %v225 = vld [vmem:[%s7 + $0x20] sm:$0xff]
  %v226 = vld [vmem:[%s7 + $0x28] sm:$0xff]
  %v227 = vld [vmem:[%s7 + $0x30] sm:$0xff]
  %v228 = vld [vmem:[%s7 + $0x38] sm:$0xff]
  %v229 = vld [vmem:[%s7 + $0x40] sm:$0xff]
  %v230 = vld [vmem:[%s7 + $0x48] sm:$0xff]
  %v231 = vld [vmem:[%s7 + $0x50] sm:$0xff]
  %v232 = vld [vmem:[%s7 + $0x58] sm:$0xff]
  %v233 = vld [vmem:[%s7 + $0x60] sm:$0xff]
  %v234 = vld [vmem:[%s7 + $0x68] sm:$0xff]
  %v235 = vld [vmem:[%s7 + $0x70] sm:$0xff]
  %v236 = vld [vmem:[%s7 + $0x78] sm:$0xff]
  %v237 = vld [vmem:[%s7 + $0x80] sm:$0xff]
  %v238 = vld [vmem:[%s7 + $0x88] sm:$0xff]
  %v239 = vld [vmem:[%s7 + $0x90] sm:$0xff]
  %v240 = vld [vmem:[%s7 + $0x98] sm:$0xff]
  %v241 = vld [vmem:[%s7 + $0xa0] sm:$0xff]
  %v242 = vld [vmem:[%s7 + $0xa8] sm:$0xff]
  %v243 = vld [vmem:[%s7 + $0xb0] sm:$0xff]
  %v244 = vld [vmem:[%s7 + $0xb8] sm:$0xff]
  %v245 = vld [vmem:[%s7 + $0xc0] sm:$0xff]
  %v246 = vld [vmem:[%s7 + $0xc8] sm:$0xff]
  %v247 = vld [vmem:[%s7 + $0xd0] sm:$0xff]
  %v248 = vld [vmem:[%s7 + $0xd8] sm:$0xff]
  %v249 = vld [vmem:[%s7 + $0xe0] sm:$0xff]
  %v250 = vld [vmem:[%s7 + $0xe8] sm:$0xff]
  %v251 = vld [vmem:[%s7 + $0xf0] sm:$0xff]
  %v252 = vld [vmem:[%s7 + $0xf8] sm:$0xff]
  %v253 = vld [vmem:[%s7 + $0x100] sm:$0xff]
  %v254 = vld [vmem:[%s7 + $0x108] sm:$0xff]
  %v255 = vld [vmem:[%s7 + $0x110] sm:$0xff]
  %v256 = vld [vmem:[%s7 + $0x118] sm:$0xff]
  %v257 = vld [vmem:[%s7 + $0x120] sm:$0xff]
  %v258 = vld [vmem:[%s7 + $0x128] sm:$0xff]
  %v259 = vld [vmem:[%s7 + $0x130] sm:$0xff]
  %v260 = vld [vmem:[%s7 + $0x138] sm:$0xff]
  %v261 = vld [vmem:[%s7 + $0x140] sm:$0xff]
  %v262 = vld [vmem:[%s7 + $0x148] sm:$0xff]
  %v263 = vld [vmem:[%s7 + $0x150] sm:$0xff]
  %v264 = vld [vmem:[%s7 + $0x158] sm:$0xff]
  %v265 = vld [vmem:[%s7 + $0x160] sm:$0xff]
  %v266 = vld [vmem:[%s7 + $0x168] sm:$0xff]
  %v267 = vld [vmem:[%s7 + $0x170] sm:$0xff]
  %v268 = vld [vmem:[%s7 + $0x178] sm:$0xff]
  %v269 = vld [vmem:[%s8] sm:$0x7]
  %v271 = vlaneseq
  %v272 = vshrl.u32 %v271, 7
  %v273 = vsub.s32 0, %v272
  %v274 = vrot.slane %v269, %v273
  %v275 = vlaneseq
  %v276 = vshrl.u32 %v275, 7
  %v277 = vsub.s32 1, %v276
  %v278 = vrot.slane %v269, %v277
  %v279 = vlaneseq
  %v280 = vshrl.u32 %v279, 7
  %v281 = vsub.s32 2, %v280
  %v282 = vrot.slane %v269, %v281
  %286 = vmatprep.subr.mxu0 %v222
  %287 = vmatpush1.msra.mxu0 %v221
  %288 = vmatprep.subr.mxu0 %v225
  %289 = vmatpush1.msra.mxu0 %v224
  %290 = vmatprep.subr.mxu0 %v228
  %291 = vmatpush1.msra.mxu0 %v227
  %292 = vmatprep.subr.mxu0 %v231
  %293 = vmatpush1.msra.mxu0 %v230
  %294 = vmatprep.subr.mxu0 %v234
  %295 = vmatpush1.msra.mxu0 %v233
  %296 = vmatprep.subr.mxu0 %v237
  %297 = vmatpush1.msra.mxu0 %v236
  %298 = vmatprep.subr.mxu0 %v240
  %299 = vmatpush1.msra.mxu0 %v239
  %300 = vmatprep.subr.mxu0 %v243
  %301 = vmatpush1.msra.mxu0 %v242
  %302 = vmatprep.subr.mxu0 %v246
  %303 = vmatpush1.msra.mxu0 %v245
  %304 = vmatprep.subr.mxu0 %v249
  %305 = vmatpush1.msra.mxu0 %v248
  %306 = vmatprep.subr.mxu0 %v252
  %307 = vmatpush1.msra.mxu0 %v251
  %308 = vmatprep.subr.mxu0 %v255
  %309 = vmatpush1.msra.mxu0 %v254
  %310 = vmatprep.subr.mxu0 %v258
  %311 = vmatpush1.msra.mxu0 %v257
  %312 = vmatprep.subr.mxu0 %v261
  %313 = vmatpush1.msra.mxu0 %v260
  %314 = vmatprep.subr.mxu0 %v264
  %315 = vmatpush1.msra.mxu0 %v263
  %316 = vmatprep.subr.mxu0 %v267
  %317 = vmatpush1.msra.mxu0 %v266
  %318 = vmatprep.subr.mxu0 0.0
  %319 = vmatpush1.msra.mxu0 0.0
  %320 = vmatprep.subr.mxu0 0.0
  %321 = vmatpush1.msra.mxu0 0.0
  %322 = vmatprep.subr.mxu0 0.0
  %323 = vmatpush1.msra.mxu0 0.0
  %324 = vmatprep.subr.mxu0 0.0
  %325 = vmatpush1.msra.mxu0 0.0
  %326 = vmatprep.subr.mxu0 0.0
  %327 = vmatpush1.msra.mxu0 0.0
  %328 = vmatprep.subr.mxu0 0.0
  %329 = vmatpush1.msra.mxu0 0.0
  %330 = vmatprep.subr.mxu0 0.0
  %331 = vmatpush1.msra.mxu0 0.0
  %332 = vmatprep.subr.mxu0 0.0
  %333 = vmatpush1.msra.mxu0 0.0
  %334 = vmatprep.subr.mxu0 0.0
  %335 = vmatpush1.msra.mxu0 0.0
  %336 = vmatprep.subr.mxu0 0.0
  %337 = vmatpush1.msra.mxu0 0.0
  %338 = vmatprep.subr.mxu0 0.0
  %339 = vmatpush1.msra.mxu0 0.0
  %340 = vmatprep.subr.mxu0 0.0
  %341 = vmatpush1.msra.mxu0 0.0
  %342 = vmatprep.subr.mxu0 0.0
  %343 = vmatpush1.msra.mxu0 0.0
  %344 = vmatprep.subr.mxu0 0.0
  %345 = vmatpush1.msra.mxu0 0.0
  %346 = vmatprep.subr.mxu0 0.0
  %347 = vmatpush1.msra.mxu0 0.0
  %348 = vmatprep.subr.mxu0 0.0
  %349 = vmatpush1.msra.mxu0 0.0
  %350 = vmatprep.mubr.f32.mxu0 0.0
  %351 = vmatmul.mubr.f32.gmra.mrb[0].mxu0 %v219
  %v352 = vpop.f32.mrb[0].mxu0
  %v353 = vadd.f32 %v274, %v352
  %v354 = vpop.f32.mrb[0].mxu0
  %v355 = vadd.f32 %v278, %v354
  %356 = vmatprep.mubr.f32.mxu0 0.0
  %357 = vmatmul.mubr.f32.gmra.mrb[0].mxu0 %v220
  %v358 = vpop.f32.mrb[0].mxu0
  %v359 = vadd.f32 %v274, %v358
  %v360 = vpop.f32.mrb[0].mxu0
  %v361 = vadd.f32 %v278, %v360
  %362 = vdwg.mxu0
  %363 = vmatprep.subr.mxu0 0.0
  %364 = vmatpush1.msra.mxu0 %v223
  %365 = vmatprep.subr.mxu0 0.0
  %366 = vmatpush1.msra.mxu0 %v226
  %367 = vmatprep.subr.mxu0 0.0
  %368 = vmatpush1.msra.mxu0 %v229
  %369 = vmatprep.subr.mxu0 0.0
  %370 = vmatpush1.msra.mxu0 %v232
  %371 = vmatprep.subr.mxu0 0.0
  %372 = vmatpush1.msra.mxu0 %v235
  %373 = vmatprep.subr.mxu0 0.0
  %374 = vmatpush1.msra.mxu0 %v238
  %375 = vmatprep.subr.mxu0 0.0
  %376 = vmatpush1.msra.mxu0 %v241
  %377 = vmatprep.subr.mxu0 0.0
  %378 = vmatpush1.msra.mxu0 %v244
  %379 = vmatprep.subr.mxu0 0.0
  %380 = vmatpush1.msra.mxu0 %v247
  %381 = vmatprep.subr.mxu0 0.0
  %382 = vmatpush1.msra.mxu0 %v250
  %383 = vmatprep.subr.mxu0 0.0
  %384 = vmatpush1.msra.mxu0 %v253
  %385 = vmatprep.subr.mxu0 0.0
  %386 = vmatpush1.msra.mxu0 %v256
  %387 = vmatprep.subr.mxu0 0.0
  %388 = vmatpush1.msra.mxu0 %v259
  %389 = vmatprep.subr.mxu0 0.0
  %390 = vmatpush1.msra.mxu0 %v262
  %391 = vmatprep.subr.mxu0 0.0
  %392 = vmatpush1.msra.mxu0 %v265
  %393 = vmatprep.subr.mxu0 0.0
  %394 = vmatpush1.msra.mxu0 %v268
  %395 = vmatprep.subr.mxu0 0.0
  %396 = vmatpush1.msra.mxu0 0.0
  %397 = vmatprep.subr.mxu0 0.0
  %398 = vmatpush1.msra.mxu0 0.0
  %399 = vmatprep.subr.mxu0 0.0
  %400 = vmatpush1.msra.mxu0 0.0
  %401 = vmatprep.subr.mxu0 0.0
  %402 = vmatpush1.msra.mxu0 0.0
  %403 = vmatprep.subr.mxu0 0.0
  %404 = vmatpush1.msra.mxu0 0.0
  %405 = vmatprep.subr.mxu0 0.0
  %406 = vmatpush1.msra.mxu0 0.0
  %407 = vmatprep.subr.mxu0 0.0
  %408 = vmatpush1.msra.mxu0 0.0
  %409 = vmatprep.subr.mxu0 0.0
  %410 = vmatpush1.msra.mxu0 0.0
  %411 = vmatprep.subr.mxu0 0.0
  %412 = vmatpush1.msra.mxu0 0.0
  %413 = vmatprep.subr.mxu0 0.0
  %414 = vmatpush1.msra.mxu0 0.0
  %415 = vmatprep.subr.mxu0 0.0
  %416 = vmatpush1.msra.mxu0 0.0
  %417 = vmatprep.subr.mxu0 0.0
  %418 = vmatpush1.msra.mxu0 0.0
  %419 = vmatprep.subr.mxu0 0.0
  %420 = vmatpush1.msra.mxu0 0.0
  %421 = vmatprep.subr.mxu0 0.0
  %422 = vmatpush1.msra.mxu0 0.0
  %423 = vmatprep.subr.mxu0 0.0
  %424 = vmatpush1.msra.mxu0 0.0
  %425 = vmatprep.subr.mxu0 0.0
  %426 = vmatpush1.msra.mxu0 0.0
  %427 = vmatprep.mubr.f32.mxu0 0.0
  %428 = vmatmul.mubr.f32.gmra.mrb[0].mxu0 %v219
  %v429 = vpop.f32.mrb[0].mxu0
  %v430 = vadd.f32 %v282, %v429
  %v431 = vpop.f32.mrb[0].mxu0
  %432 = vmatprep.mubr.f32.mxu0 0.0
  %433 = vmatmul.mubr.f32.gmra.mrb[0].mxu0 %v220
  %v434 = vpop.f32.mrb[0].mxu0
  %v435 = vadd.f32 %v282, %v434
  %v436 = vpop.f32.mrb[0].mxu0
  %437 = vdwg.mxu0
  %v438 = vld [vmem:[%s4] sm:$0x1]
  %v439 = vlaneseq
  %v440 = vshrl.u32 %v439, 7
  %v441 = vsub.s32 0, %v440
  %v442 = vrot.slane %v438, %v441
  %v443 = vmul.f32 %v353, %v442
  %v444 = vmul.f32 %v359, %v442
  %445 = vmatprep.subr.mxu0 0.0
  %446 = vmatpush1.xpose.msra.mxu0 %v355
  %447 = vmatprep.subr.mxu0 0.0
  %448 = vmatpush1.xpose.msra.mxu0 %v361
  %449 = vmatprep.subr.mxu0 0.0
  %450 = vmatpush1.xpose.msra.mxu0 0.0
  %451 = vmatprep.subr.mxu0 0.0
  %452 = vmatpush1.xpose.msra.mxu0 0.0
  %453 = vmatprep.subr.mxu0 0.0
  %454 = vmatpush1.xpose.msra.mxu0 0.0
  %455 = vmatprep.subr.mxu0 0.0
  %456 = vmatpush1.xpose.msra.mxu0 0.0
  %457 = vmatprep.subr.mxu0 0.0
  %458 = vmatpush1.xpose.msra.mxu0 0.0
  %459 = vmatprep.subr.mxu0 0.0
  %460 = vmatpush1.xpose.msra.mxu0 0.0
  %461 = vmatprep.subr.mxu0 0.0
  %462 = vmatpush1.xpose.msra.mxu0 0.0
  %463 = vmatprep.subr.mxu0 0.0
  %464 = vmatpush1.xpose.msra.mxu0 0.0
  %465 = vmatprep.subr.mxu0 0.0
  %466 = vmatpush1.xpose.msra.mxu0 0.0
  %467 = vmatprep.subr.mxu0 0.0
  %468 = vmatpush1.xpose.msra.mxu0 0.0
  %469 = vmatprep.subr.mxu0 0.0
  %470 = vmatpush1.xpose.msra.mxu0 0.0
  %471 = vmatprep.subr.mxu0 0.0
  %472 = vmatpush1.xpose.msra.mxu0 0.0
  %473 = vmatprep.subr.mxu0 0.0
  %474 = vmatpush1.xpose.msra.mxu0 0.0
  %475 = vmatprep.subr.mxu0 0.0
  %476 = vmatpush1.xpose.msra.mxu0 0.0
  %477 = vmatprep.subr.mxu0 0.0
  %478 = vmatpush1.xpose.msra.mxu0 0.0
  %479 = vmatprep.subr.mxu0 0.0
  %480 = vmatpush1.xpose.msra.mxu0 0.0
  %481 = vmatprep.subr.mxu0 0.0
  %482 = vmatpush1.xpose.msra.mxu0 0.0
  %483 = vmatprep.subr.mxu0 0.0
  %484 = vmatpush1.xpose.msra.mxu0 0.0
  %485 = vmatprep.subr.mxu0 0.0
  %486 = vmatpush1.xpose.msra.mxu0 0.0
  %487 = vmatprep.subr.mxu0 0.0
  %488 = vmatpush1.xpose.msra.mxu0 0.0
  %489 = vmatprep.subr.mxu0 0.0
  %490 = vmatpush1.xpose.msra.mxu0 0.0
  %491 = vmatprep.subr.mxu0 0.0
  %492 = vmatpush1.xpose.msra.mxu0 0.0
  %493 = vmatprep.subr.mxu0 0.0
  %494 = vmatpush1.xpose.msra.mxu0 0.0
  %495 = vmatprep.subr.mxu0 0.0
  %496 = vmatpush1.xpose.msra.mxu0 0.0
  %497 = vmatprep.subr.mxu0 0.0
  %498 = vmatpush1.xpose.msra.mxu0 0.0
  %499 = vmatprep.subr.mxu0 0.0
  %500 = vmatpush1.xpose.msra.mxu0 0.0
  %501 = vmatprep.subr.mxu0 0.0
  %502 = vmatpush1.xpose.msra.mxu0 0.0
  %503 = vmatprep.subr.mxu0 0.0
  %504 = vmatpush1.xpose.msra.mxu0 0.0
  %505 = vmatprep.subr.mxu0 0.0
  %506 = vmatpush1.xpose.msra.mxu0 0.0
  %507 = vmatprep.subr.mxu0 0.0
  %508 = vmatpush1.xpose.msra.mxu0 0.0
  %509 = vmatprep.mubr.f32.mxu0 0.0
  %510 = vmatmul.mubr.f32.gmra.mrb[0].mxu0 %v443
  %v511 = vpop.f32.mrb[0].mxu0
  %v512 = vadd.f32 %v84, %v511
  %v513 = vpop.f32.mrb[0].mxu0
  %514 = vmatprep.mubr.f32.mxu0 0.0
  %515 = vmatmul.mubr.f32.gmra.mrb[0].mxu0 %v444
  %v516 = vpop.f32.mrb[0].mxu0
  %v517 = vadd.f32 %v85, %v516
  %v518 = vpop.f32.mrb[0].mxu0
  %519 = vdwg.mxu0
  %v520 = vsel %vm88, %v512, -inf
  %521 = vmax.xlane.f32.xlu0 %v520
  %v522 = vpop.xlane.xlu0 %521
  %v523 = vsel %vm88, %v517, -inf
  %524 = vmax.xlane.f32.xlu0 %v523
  %v525 = vpop.xlane.xlu0 %524
  %v526 = vsub.f32 %v512, %v522
  %v527 = vsub.f32 %v517, %v525
  %v528 = vmul.f32 %v526, 1.442695
  %v529 = vpow.pop %v528
  %v530 = vmul.f32 %v527, 1.442695
  %v531 = vpow.pop %v530
  %v532 = vsel %vm88, %v529, 0.0
  %533 = vadd.xlane.f32.xlu0 %v532
  %v534 = vpop.xlane.xlu0 %533
  %v535 = vsel %vm88, %v531, 0.0
  %536 = vadd.xlane.f32.xlu0 %v535
  %v537 = vpop.xlane.xlu0 %536
  %v538 = vrcp.pop %v534
  %v539 = vrcp.pop %v537
  %v540 = vmul.f32 %v529, %v538
  %v541 = vmul.f32 %v531, %v539
  %v542 = vmul.f32 %v430, %v442
  %v543 = vmul.f32 %v435, %v442
  %v544 = vld [vmem:[%s4 + $0x1] sm:$0x1]
  %v545 = vlaneseq
  %v546 = vshrl.u32 %v545, 7
  %v547 = vsub.s32 0, %v546
  %v548 = vrot.slane %v544, %v547
  %v549 = vmul.f32 %v353, %v548
  %v550 = vmul.f32 %v359, %v548
  %551 = vmatprep.subr.mxu0 0.0
  %552 = vmatpush1.xpose.msra.mxu0 %v355
  %553 = vmatprep.subr.mxu0 0.0
  %554 = vmatpush1.xpose.msra.mxu0 %v361
  %555 = vmatprep.subr.mxu0 0.0
  %556 = vmatpush1.xpose.msra.mxu0 0.0
  %557 = vmatprep.subr.mxu0 0.0
  %558 = vmatpush1.xpose.msra.mxu0 0.0
  %559 = vmatprep.subr.mxu0 0.0
  %560 = vmatpush1.xpose.msra.mxu0 0.0
  %561 = vmatprep.subr.mxu0 0.0
  %562 = vmatpush1.xpose.msra.mxu0 0.0
  %563 = vmatprep.subr.mxu0 0.0
  %564 = vmatpush1.xpose.msra.mxu0 0.0
  %565 = vmatprep.subr.mxu0 0.0
  %566 = vmatpush1.xpose.msra.mxu0 0.0
  %567 = vmatprep.subr.mxu0 0.0
  %568 = vmatpush1.xpose.msra.mxu0 0.0
  %569 = vmatprep.subr.mxu0 0.0
  %570 = vmatpush1.xpose.msra.mxu0 0.0
  %571 = vmatprep.subr.mxu0 0.0
  %572 = vmatpush1.xpose.msra.mxu0 0.0
  %573 = vmatprep.subr.mxu0 0.0
  %574 = vmatpush1.xpose.msra.mxu0 0.0
  %575 = vmatprep.subr.mxu0 0.0
  %576 = vmatpush1.xpose.msra.mxu0 0.0
  %577 = vmatprep.subr.mxu0 0.0
  %578 = vmatpush1.xpose.msra.mxu0 0.0
  %579 = vmatprep.subr.mxu0 0.0
  %580 = vmatpush1.xpose.msra.mxu0 0.0
  %581 = vmatprep.subr.mxu0 0.0
  %582 = vmatpush1.xpose.msra.mxu0 0.0
  %583 = vmatprep.subr.mxu0 0.0
  %584 = vmatpush1.xpose.msra.mxu0 0.0
  %585 = vmatprep.subr.mxu0 0.0
  %586 = vmatpush1.xpose.msra.mxu0 0.0
  %587 = vmatprep.subr.mxu0 0.0
  %588 = vmatpush1.xpose.msra.mxu0 0.0
  %589 = vmatprep.subr.mxu0 0.0
  %590 = vmatpush1.xpose.msra.mxu0 0.0
  %591 = vmatprep.subr.mxu0 0.0
  %592 = vmatpush1.xpose.msra.mxu0 0.0
  %593 = vmatprep.subr.mxu0 0.0
  %594 = vmatpush1.xpose.msra.mxu0 0.0
  %595 = vmatprep.subr.mxu0 0.0
  %596 = vmatpush1.xpose.msra.mxu0 0.0
  %597 = vmatprep.subr.mxu0 0.0
  %598 = vmatpush1.xpose.msra.mxu0 0.0
  %599 = vmatprep.subr.mxu0 0.0
  %600 = vmatpush1.xpose.msra.mxu0 0.0
  %601 = vmatprep.subr.mxu0 0.0
  %602 = vmatpush1.xpose.msra.mxu0 0.0
  %603 = vmatprep.subr.mxu0 0.0
  %604 = vmatpush1.xpose.msra.mxu0 0.0
  %605 = vmatprep.subr.mxu0 0.0
  %606 = vmatpush1.xpose.msra.mxu0 0.0
  %607 = vmatprep.subr.mxu0 0.0
  %608 = vmatpush1.xpose.msra.mxu0 0.0
  %609 = vmatprep.subr.mxu0 0.0
  %610 = vmatpush1.xpose.msra.mxu0 0.0
  %611 = vmatprep.subr.mxu0 0.0
  %612 = vmatpush1.xpose.msra.mxu0 0.0
  %613 = vmatprep.subr.mxu0 0.0
  %614 = vmatpush1.xpose.msra.mxu0 0.0
  %615 = vmatprep.mubr.f32.mxu0 0.0
  %616 = vmatmul.mubr.f32.gmra.mrb[0].mxu0 %v549
  %v617 = vpop.f32.mrb[0].mxu0
  %v618 = vadd.f32 %v84, %v617
  %v619 = vpop.f32.mrb[0].mxu0
  %620 = vmatprep.mubr.f32.mxu0 0.0
  %621 = vmatmul.mubr.f32.gmra.mrb[0].mxu0 %v550
  %v622 = vpop.f32.mrb[0].mxu0
  %v623 = vadd.f32 %v85, %v622
  %v624 = vpop.f32.mrb[0].mxu0
  %625 = vdwg.mxu0
  %v626 = vsel %vm88, %v618, -inf
  %627 = vmax.xlane.f32.xlu0 %v626
  %v628 = vpop.xlane.xlu0 %627
  %v629 = vsel %vm88, %v623, -inf
  %630 = vmax.xlane.f32.xlu0 %v629
  %v631 = vpop.xlane.xlu0 %630
  %v632 = vsub.f32 %v618, %v628
  %v633 = vsub.f32 %v623, %v631
  %v634 = vmul.f32 %v632, 1.442695
  %v635 = vpow.pop %v634
  %v636 = vmul.f32 %v633, 1.442695
  %v637 = vpow.pop %v636
  %v638 = vsel %vm88, %v635, 0.0
  %639 = vadd.xlane.f32.xlu0 %v638
  %v640 = vpop.xlane.xlu0 %639
  %v641 = vsel %vm88, %v637, 0.0
  %642 = vadd.xlane.f32.xlu0 %v641
  %v643 = vpop.xlane.xlu0 %642
  %v644 = vrcp.pop %v640
  %v645 = vrcp.pop %v643
  %v646 = vmul.f32 %v635, %v644
  %v647 = vmul.f32 %v637, %v645
  %v648 = vmul.f32 %v430, %v548
  %v649 = vmul.f32 %v435, %v548
  %v651 = vsel %vm88, %v646, 0
  %v654 = vsel %vm88, %v647, 0
  %656 = vmatprep.subr.mxu0 0.0
  %657 = vmatpush1.msra.mxu0 %v648
  %658 = vmatprep.subr.mxu0 0.0
  %659 = vmatpush1.msra.mxu0 %v649
  %660 = vmatprep.subr.mxu0 0.0
  %661 = vmatpush1.msra.mxu0 0.0
  %662 = vmatprep.subr.mxu0 0.0
  %663 = vmatpush1.msra.mxu0 0.0
  %664 = vmatprep.subr.mxu0 0.0
  %665 = vmatpush1.msra.mxu0 0.0
  %666 = vmatprep.subr.mxu0 0.0
  %667 = vmatpush1.msra.mxu0 0.0
  %668 = vmatprep.subr.mxu0 0.0
  %669 = vmatpush1.msra.mxu0 0.0
  %670 = vmatprep.subr.mxu0 0.0
  %671 = vmatpush1.msra.mxu0 0.0
  %672 = vmatprep.subr.mxu0 0.0
  %673 = vmatpush1.msra.mxu0 0.0
  %674 = vmatprep.subr.mxu0 0.0
  %675 = vmatpush1.msra.mxu0 0.0
  %676 = vmatprep.subr.mxu0 0.0
  %677 = vmatpush1.msra.mxu0 0.0
  %678 = vmatprep.subr.mxu0 0.0
  %679 = vmatpush1.msra.mxu0 0.0
  %680 = vmatprep.subr.mxu0 0.0
  %681 = vmatpush1.msra.mxu0 0.0
  %682 = vmatprep.subr.mxu0 0.0
  %683 = vmatpush1.msra.mxu0 0.0
  %684 = vmatprep.subr.mxu0 0.0
  %685 = vmatpush1.msra.mxu0 0.0
  %686 = vmatprep.subr.mxu0 0.0
  %687 = vmatpush1.msra.mxu0 0.0
  %688 = vmatprep.subr.mxu0 0.0
  %689 = vmatpush1.msra.mxu0 0.0
  %690 = vmatprep.subr.mxu0 0.0
  %691 = vmatpush1.msra.mxu0 0.0
  %692 = vmatprep.subr.mxu0 0.0
  %693 = vmatpush1.msra.mxu0 0.0
  %694 = vmatprep.subr.mxu0 0.0
  %695 = vmatpush1.msra.mxu0 0.0
  %696 = vmatprep.subr.mxu0 0.0
  %697 = vmatpush1.msra.mxu0 0.0
  %698 = vmatprep.subr.mxu0 0.0
  %699 = vmatpush1.msra.mxu0 0.0
  %700 = vmatprep.subr.mxu0 0.0
  %701 = vmatpush1.msra.mxu0 0.0
  %702 = vmatprep.subr.mxu0 0.0
  %703 = vmatpush1.msra.mxu0 0.0
  %704 = vmatprep.subr.mxu0 0.0
  %705 = vmatpush1.msra.mxu0 0.0
  %706 = vmatprep.subr.mxu0 0.0
  %707 = vmatpush1.msra.mxu0 0.0
  %708 = vmatprep.subr.mxu0 0.0
  %709 = vmatpush1.msra.mxu0 0.0
  %710 = vmatprep.subr.mxu0 0.0
  %711 = vmatpush1.msra.mxu0 0.0
  %712 = vmatprep.subr.mxu0 0.0
  %713 = vmatpush1.msra.mxu0 0.0
  %714 = vmatprep.subr.mxu0 0.0
  %715 = vmatpush1.msra.mxu0 0.0
  %716 = vmatprep.subr.mxu0 0.0
  %717 = vmatpush1.msra.mxu0 0.0
  %718 = vmatprep.subr.mxu0 0.0
  %719 = vmatpush1.msra.mxu0 0.0
  %720 = vmatprep.mubr.f32.mxu0 0.0
  %721 = vmatmul.mubr.f32.gmra.mrb[0].mxu0 %v651
  %v722 = vpop.f32.mrb[0].mxu0
  %v723 = vadd.f32 0.0, %v722
  %v724 = vpop.f32.mrb[0].mxu0
  %725 = vmatprep.mubr.f32.mxu0 0.0
  %726 = vmatmul.mubr.f32.gmra.mrb[0].mxu0 %v654
  %v727 = vpop.f32.mrb[0].mxu0
  %v728 = vadd.f32 0.0, %v727
  %v729 = vpop.f32.mrb[0].mxu0
  %730 = vdwg.mxu0
  %v732 = vsel %vm88, %v540, 0
  %v735 = vsel %vm88, %v541, 0
  %737 = vmatprep.subr.mxu0 0.0
  %738 = vmatpush1.msra.mxu0 %v542
  %739 = vmatprep.subr.mxu0 0.0
  %740 = vmatpush1.msra.mxu0 %v543
  %741 = vmatprep.subr.mxu0 0.0
  %742 = vmatpush1.msra.mxu0 0.0
  %743 = vmatprep.subr.mxu0 0.0
  %744 = vmatpush1.msra.mxu0 0.0
  %745 = vmatprep.subr.mxu0 0.0
  %746 = vmatpush1.msra.mxu0 0.0
  %747 = vmatprep.subr.mxu0 0.0
  %748 = vmatpush1.msra.mxu0 0.0
  %749 = vmatprep.subr.mxu0 0.0
  %750 = vmatpush1.msra.mxu0 0.0
  %751 = vmatprep.subr.mxu0 0.0
  %752 = vmatpush1.msra.mxu0 0.0
  %753 = vmatprep.subr.mxu0 0.0
  %754 = vmatpush1.msra.mxu0 0.0
  %755 = vmatprep.subr.mxu0 0.0
  %756 = vmatpush1.msra.mxu0 0.0
  %757 = vmatprep.subr.mxu0 0.0
  %758 = vmatpush1.msra.mxu0 0.0
  %759 = vmatprep.subr.mxu0 0.0
  %760 = vmatpush1.msra.mxu0 0.0
  %761 = vmatprep.subr.mxu0 0.0
  %762 = vmatpush1.msra.mxu0 0.0
  %763 = vmatprep.subr.mxu0 0.0
  %764 = vmatpush1.msra.mxu0 0.0
  %765 = vmatprep.subr.mxu0 0.0
  %766 = vmatpush1.msra.mxu0 0.0
  %767 = vmatprep.subr.mxu0 0.0
  %768 = vmatpush1.msra.mxu0 0.0
  %769 = vmatprep.subr.mxu0 0.0
  %770 = vmatpush1.msra.mxu0 0.0
  %771 = vmatprep.subr.mxu0 0.0
  %772 = vmatpush1.msra.mxu0 0.0
  %773 = vmatprep.subr.mxu0 0.0
  %774 = vmatpush1.msra.mxu0 0.0
  %775 = vmatprep.subr.mxu0 0.0
  %776 = vmatpush1.msra.mxu0 0.0
  %777 = vmatprep.subr.mxu0 0.0
  %778 = vmatpush1.msra.mxu0 0.0
  %779 = vmatprep.subr.mxu0 0.0
  %780 = vmatpush1.msra.mxu0 0.0
  %781 = vmatprep.subr.mxu0 0.0
  %782 = vmatpush1.msra.mxu0 0.0
  %783 = vmatprep.subr.mxu0 0.0
  %784 = vmatpush1.msra.mxu0 0.0
  %785 = vmatprep.subr.mxu0 0.0
  %786 = vmatpush1.msra.mxu0 0.0
  %787 = vmatprep.subr.mxu0 0.0
  %788 = vmatpush1.msra.mxu0 0.0
  %789 = vmatprep.subr.mxu0 0.0
  %790 = vmatpush1.msra.mxu0 0.0
  %791 = vmatprep.subr.mxu0 0.0
  %792 = vmatpush1.msra.mxu0 0.0
  %793 = vmatprep.subr.mxu0 0.0
  %794 = vmatpush1.msra.mxu0 0.0
  %795 = vmatprep.subr.mxu0 0.0
  %796 = vmatpush1.msra.mxu0 0.0
  %797 = vmatprep.subr.mxu0 0.0
  %798 = vmatpush1.msra.mxu0 0.0
  %799 = vmatprep.subr.mxu0 0.0
  %800 = vmatpush1.msra.mxu0 0.0
  %801 = vmatprep.mubr.f32.mxu0 0.0
  %802 = vmatmul.mubr.f32.gmra.mrb[0].mxu0 %v732
  %v803 = vpop.f32.mrb[0].mxu0
  %v804 = vadd.f32 %v723, %v803
  %v805 = vpop.f32.mrb[0].mxu0
  %806 = vmatprep.mubr.f32.mxu0 0.0
  %807 = vmatmul.mubr.f32.gmra.mrb[0].mxu0 %v735
  %v808 = vpop.f32.mrb[0].mxu0
  %v809 = vadd.f32 %v728, %v808
  %v810 = vpop.f32.mrb[0].mxu0
  %811 = vdwg.mxu0
  %v812 = vld [vmem:[%s4 + $0x2] sm:$0x1]
  %v813 = vlaneseq
  %v814 = vshrl.u32 %v813, 7
  %v815 = vsub.s32 0, %v814
  %v816 = vrot.slane %v812, %v815
  %v817 = vmul.f32 %v353, %v816
  %v818 = vmul.f32 %v359, %v816
  %819 = vmatprep.subr.mxu0 0.0
  %820 = vmatpush1.xpose.msra.mxu0 %v355
  %821 = vmatprep.subr.mxu0 0.0
  %822 = vmatpush1.xpose.msra.mxu0 %v361
  %823 = vmatprep.subr.mxu0 0.0
  %824 = vmatpush1.xpose.msra.mxu0 0.0
  %825 = vmatprep.subr.mxu0 0.0
  %826 = vmatpush1.xpose.msra.mxu0 0.0
  %827 = vmatprep.subr.mxu0 0.0
  %828 = vmatpush1.xpose.msra.mxu0 0.0
  %829 = vmatprep.subr.mxu0 0.0
  %830 = vmatpush1.xpose.msra.mxu0 0.0
  %831 = vmatprep.subr.mxu0 0.0
  %832 = vmatpush1.xpose.msra.mxu0 0.0
  %833 = vmatprep.subr.mxu0 0.0
  %834 = vmatpush1.xpose.msra.mxu0 0.0
  %835 = vmatprep.subr.mxu0 0.0
  %836 = vmatpush1.xpose.msra.mxu0 0.0
  %837 = vmatprep.subr.mxu0 0.0
  %838 = vmatpush1.xpose.msra.mxu0 0.0
  %839 = vmatprep.subr.mxu0 0.0
  %840 = vmatpush1.xpose.msra.mxu0 0.0
  %841 = vmatprep.subr.mxu0 0.0
  %842 = vmatpush1.xpose.msra.mxu0 0.0
  %843 = vmatprep.subr.mxu0 0.0
  %844 = vmatpush1.xpose.msra.mxu0 0.0
  %845 = vmatprep.subr.mxu0 0.0
  %846 = vmatpush1.xpose.msra.mxu0 0.0
  %847 = vmatprep.subr.mxu0 0.0
  %848 = vmatpush1.xpose.msra.mxu0 0.0
  %849 = vmatprep.subr.mxu0 0.0
  %850 = vmatpush1.xpose.msra.mxu0 0.0
  %851 = vmatprep.subr.mxu0 0.0
  %852 = vmatpush1.xpose.msra.mxu0 0.0
  %853 = vmatprep.subr.mxu0 0.0
  %854 = vmatpush1.xpose.msra.mxu0 0.0
  %855 = vmatprep.subr.mxu0 0.0
  %856 = vmatpush1.xpose.msra.mxu0 0.0
  %857 = vmatprep.subr.mxu0 0.0
  %858 = vmatpush1.xpose.msra.mxu0 0.0
  %859 = vmatprep.subr.mxu0 0.0
  %860 = vmatpush1.xpose.msra.mxu0 0.0
  %861 = vmatprep.subr.mxu0 0.0
  %862 = vmatpush1.xpose.msra.mxu0 0.0
  %863 = vmatprep.subr.mxu0 0.0
  %864 = vmatpush1.xpose.msra.mxu0 0.0
  %865 = vmatprep.subr.mxu0 0.0
  %866 = vmatpush1.xpose.msra.mxu0 0.0
  %867 = vmatprep.subr.mxu0 0.0
  %868 = vmatpush1.xpose.msra.mxu0 0.0
  %869 = vmatprep.subr.mxu0 0.0
  %870 = vmatpush1.xpose.msra.mxu0 0.0
  %871 = vmatprep.subr.mxu0 0.0
  %872 = vmatpush1.xpose.msra.mxu0 0.0
  %873 = vmatprep.subr.mxu0 0.0
  %874 = vmatpush1.xpose.msra.mxu0 0.0
  %875 = vmatprep.subr.mxu0 0.0
  %876 = vmatpush1.xpose.msra.mxu0 0.0
  %877 = vmatprep.subr.mxu0 0.0
  %878 = vmatpush1.xpose.msra.mxu0 0.0
  %879 = vmatprep.subr.mxu0 0.0
  %880 = vmatpush1.xpose.msra.mxu0 0.0
  %881 = vmatprep.subr.mxu0 0.0
  %882 = vmatpush1.xpose.msra.mxu0 0.0
  %883 = vmatprep.mubr.f32.mxu0 0.0
  %884 = vmatmul.mubr.f32.gmra.mrb[0].mxu0 %v817
  %v885 = vpop.f32.mrb[0].mxu0
  %v886 = vadd.f32 %v84, %v885
  %v887 = vpop.f32.mrb[0].mxu0
  %888 = vmatprep.mubr.f32.mxu0 0.0
  %889 = vmatmul.mubr.f32.gmra.mrb[0].mxu0 %v818
  %v890 = vpop.f32.mrb[0].mxu0
  %v891 = vadd.f32 %v85, %v890
  %v892 = vpop.f32.mrb[0].mxu0
  %893 = vdwg.mxu0
  %v894 = vsel %vm88, %v886, -inf
  %895 = vmax.xlane.f32.xlu0 %v894
  %v896 = vpop.xlane.xlu0 %895
  %v897 = vsel %vm88, %v891, -inf
  %898 = vmax.xlane.f32.xlu0 %v897
  %v899 = vpop.xlane.xlu0 %898
  %v900 = vsub.f32 %v886, %v896
  %v901 = vsub.f32 %v891, %v899
  %v902 = vmul.f32 %v900, 1.442695
  %v903 = vpow.pop %v902
  %v904 = vmul.f32 %v901, 1.442695
  %v905 = vpow.pop %v904
  %v906 = vsel %vm88, %v903, 0.0
  %907 = vadd.xlane.f32.xlu0 %v906
  %v908 = vpop.xlane.xlu0 %907
  %v909 = vsel %vm88, %v905, 0.0
  %910 = vadd.xlane.f32.xlu0 %v909
  %v911 = vpop.xlane.xlu0 %910
  %v912 = vrcp.pop %v908
  %v913 = vrcp.pop %v911
  %v914 = vmul.f32 %v903, %v912
  %v915 = vmul.f32 %v905, %v913
  %v916 = vmul.f32 %v430, %v816
  %v917 = vmul.f32 %v435, %v816
  %v919 = vsel %vm88, %v914, 0
  %v922 = vsel %vm88, %v915, 0
  %924 = vmatprep.subr.mxu0 0.0
  %925 = vmatpush1.msra.mxu0 %v916
  %926 = vmatprep.subr.mxu0 0.0
  %927 = vmatpush1.msra.mxu0 %v917
  %928 = vmatprep.subr.mxu0 0.0
  %929 = vmatpush1.msra.mxu0 0.0
  %930 = vmatprep.subr.mxu0 0.0
  %931 = vmatpush1.msra.mxu0 0.0
  %932 = vmatprep.subr.mxu0 0.0
  %933 = vmatpush1.msra.mxu0 0.0
  %934 = vmatprep.subr.mxu0 0.0
  %935 = vmatpush1.msra.mxu0 0.0
  %936 = vmatprep.subr.mxu0 0.0
  %937 = vmatpush1.msra.mxu0 0.0
  %938 = vmatprep.subr.mxu0 0.0
  %939 = vmatpush1.msra.mxu0 0.0
  %940 = vmatprep.subr.mxu0 0.0
  %941 = vmatpush1.msra.mxu0 0.0
  %942 = vmatprep.subr.mxu0 0.0
  %943 = vmatpush1.msra.mxu0 0.0
  %944 = vmatprep.subr.mxu0 0.0
  %945 = vmatpush1.msra.mxu0 0.0
  %946 = vmatprep.subr.mxu0 0.0
  %947 = vmatpush1.msra.mxu0 0.0
  %948 = vmatprep.subr.mxu0 0.0
  %949 = vmatpush1.msra.mxu0 0.0
  %950 = vmatprep.subr.mxu0 0.0
  %951 = vmatpush1.msra.mxu0 0.0
  %952 = vmatprep.subr.mxu0 0.0
  %953 = vmatpush1.msra.mxu0 0.0
  %954 = vmatprep.subr.mxu0 0.0
  %955 = vmatpush1.msra.mxu0 0.0
  %956 = vmatprep.subr.mxu0 0.0
  %957 = vmatpush1.msra.mxu0 0.0
  %958 = vmatprep.subr.mxu0 0.0
  %959 = vmatpush1.msra.mxu0 0.0
  %960 = vmatprep.subr.mxu0 0.0
  %961 = vmatpush1.msra.mxu0 0.0
  %962 = vmatprep.subr.mxu0 0.0
  %963 = vmatpush1.msra.mxu0 0.0
  %964 = vmatprep.subr.mxu0 0.0
  %965 = vmatpush1.msra.mxu0 0.0
  %966 = vmatprep.subr.mxu0 0.0
  %967 = vmatpush1.msra.mxu0 0.0
  %968 = vmatprep.subr.mxu0 0.0
  %969 = vmatpush1.msra.mxu0 0.0
  %970 = vmatprep.subr.mxu0 0.0
  %971 = vmatpush1.msra.mxu0 0.0
  %972 = vmatprep.subr.mxu0 0.0
  %973 = vmatpush1.msra.mxu0 0.0
  %974 = vmatprep.subr.mxu0 0.0
  %975 = vmatpush1.msra.mxu0 0.0
  %976 = vmatprep.subr.mxu0 0.0
  %977 = vmatpush1.msra.mxu0 0.0
  %978 = vmatprep.subr.mxu0 0.0
  %979 = vmatpush1.msra.mxu0 0.0
  %980 = vmatprep.subr.mxu0 0.0
  %981 = vmatpush1.msra.mxu0 0.0
  %982 = vmatprep.subr.mxu0 0.0
  %983 = vmatpush1.msra.mxu0 0.0
  %984 = vmatprep.subr.mxu0 0.0
  %985 = vmatpush1.msra.mxu0 0.0
  %986 = vmatprep.subr.mxu0 0.0
  %987 = vmatpush1.msra.mxu0 0.0
  %988 = vmatprep.mubr.f32.mxu0 0.0
  %989 = vmatmul.mubr.f32.gmra.mrb[0].mxu0 %v919
  %v990 = vpop.f32.mrb[0].mxu0
  %v991 = vadd.f32 0.0, %v990
  %v992 = vpop.f32.mrb[0].mxu0
  %993 = vmatprep.mubr.f32.mxu0 0.0
  %994 = vmatmul.mubr.f32.gmra.mrb[0].mxu0 %v922
  %v995 = vpop.f32.mrb[0].mxu0
  %v996 = vadd.f32 0.0, %v995
  %v997 = vpop.f32.mrb[0].mxu0
  %998 = vdwg.mxu0
  %v999 = vadd.f32 %v804, %v991
  %v1000 = vadd.f32 %v809, %v996
  %v1001 = vld [vmem:[%s4 + $0x3] sm:$0x1]
  %v1002 = vlaneseq
  %v1003 = vshrl.u32 %v1002, 7
  %v1004 = vsub.s32 0, %v1003
  %v1005 = vrot.slane %v1001, %v1004
  %v1006 = vmul.f32 %v353, %v1005
  %v1007 = vmul.f32 %v359, %v1005
  %1008 = vmatprep.subr.mxu0 0.0
  %1009 = vmatpush1.xpose.msra.mxu0 %v355
  %1010 = vmatprep.subr.mxu0 0.0
  %1011 = vmatpush1.xpose.msra.mxu0 %v361
  %1012 = vmatprep.subr.mxu0 0.0
  %1013 = vmatpush1.xpose.msra.mxu0 0.0
  %1014 = vmatprep.subr.mxu0 0.0
  %1015 = vmatpush1.xpose.msra.mxu0 0.0
  %1016 = vmatprep.subr.mxu0 0.0
  %1017 = vmatpush1.xpose.msra.mxu0 0.0
  %1018 = vmatprep.subr.mxu0 0.0
  %1019 = vmatpush1.xpose.msra.mxu0 0.0
  %1020 = vmatprep.subr.mxu0 0.0
  %1021 = vmatpush1.xpose.msra.mxu0 0.0
  %1022 = vmatprep.subr.mxu0 0.0
  %1023 = vmatpush1.xpose.msra.mxu0 0.0
  %1024 = vmatprep.subr.mxu0 0.0
  %1025 = vmatpush1.xpose.msra.mxu0 0.0
  %1026 = vmatprep.subr.mxu0 0.0
  %1027 = vmatpush1.xpose.msra.mxu0 0.0
  %1028 = vmatprep.subr.mxu0 0.0
  %1029 = vmatpush1.xpose.msra.mxu0 0.0
  %1030 = vmatprep.subr.mxu0 0.0
  %1031 = vmatpush1.xpose.msra.mxu0 0.0
  %1032 = vmatprep.subr.mxu0 0.0
  %1033 = vmatpush1.xpose.msra.mxu0 0.0
  %1034 = vmatprep.subr.mxu0 0.0
  %1035 = vmatpush1.xpose.msra.mxu0 0.0
  %1036 = vmatprep.subr.mxu0 0.0
  %1037 = vmatpush1.xpose.msra.mxu0 0.0
  %1038 = vmatprep.subr.mxu0 0.0
  %1039 = vmatpush1.xpose.msra.mxu0 0.0
  %1040 = vmatprep.subr.mxu0 0.0
  %1041 = vmatpush1.xpose.msra.mxu0 0.0
  %1042 = vmatprep.subr.mxu0 0.0
  %1043 = vmatpush1.xpose.msra.mxu0 0.0
  %1044 = vmatprep.subr.mxu0 0.0
  %1045 = vmatpush1.xpose.msra.mxu0 0.0
  %1046 = vmatprep.subr.mxu0 0.0
  %1047 = vmatpush1.xpose.msra.mxu0 0.0
  %1048 = vmatprep.subr.mxu0 0.0
  %1049 = vmatpush1.xpose.msra.mxu0 0.0
  %1050 = vmatprep.subr.mxu0 0.0
  %1051 = vmatpush1.xpose.msra.mxu0 0.0
  %1052 = vmatprep.subr.mxu0 0.0
  %1053 = vmatpush1.xpose.msra.mxu0 0.0
  %1054 = vmatprep.subr.mxu0 0.0
  %1055 = vmatpush1.xpose.msra.mxu0 0.0
  %1056 = vmatprep.subr.mxu0 0.0
  %1057 = vmatpush1.xpose.msra.mxu0 0.0
  %1058 = vmatprep.subr.mxu0 0.0
  %1059 = vmatpush1.xpose.msra.mxu0 0.0
  %1060 = vmatprep.subr.mxu0 0.0
  %1061 = vmatpush1.xpose.msra.mxu0 0.0
  %1062 = vmatprep.subr.mxu0 0.0
  %1063 = vmatpush1.xpose.msra.mxu0 0.0
  %1064 = vmatprep.subr.mxu0 0.0
  %1065 = vmatpush1.xpose.msra.mxu0 0.0
  %1066 = vmatprep.subr.mxu0 0.0
  %1067 = vmatpush1.xpose.msra.mxu0 0.0
  %1068 = vmatprep.subr.mxu0 0.0
  %1069 = vmatpush1.xpose.msra.mxu0 0.0
  %1070 = vmatprep.subr.mxu0 0.0
  %1071 = vmatpush1.xpose.msra.mxu0 0.0
  %1072 = vmatprep.mubr.f32.mxu0 0.0
  %1073 = vmatmul.mubr.f32.gmra.mrb[0].mxu0 %v1006
  %v1074 = vpop.f32.mrb[0].mxu0
  %v1075 = vadd.f32 %v84, %v1074
  %v1076 = vpop.f32.mrb[0].mxu0
  %1077 = vmatprep.mubr.f32.mxu0 0.0
  %1078 = vmatmul.mubr.f32.gmra.mrb[0].mxu0 %v1007
  %v1079 = vpop.f32.mrb[0].mxu0
  %v1080 = vadd.f32 %v85, %v1079
  %v1081 = vpop.f32.mrb[0].mxu0
  %1082 = vdwg.mxu0
  %v1083 = vsel %vm88, %v1075, -inf
  %1084 = vmax.xlane.f32.xlu0 %v1083
  %v1085 = vpop.xlane.xlu0 %1084
  %v1086 = vsel %vm88, %v1080, -inf
  %1087 = vmax.xlane.f32.xlu0 %v1086
  %v1088 = vpop.xlane.xlu0 %1087
  %v1089 = vsub.f32 %v1075, %v1085
  %v1090 = vsub.f32 %v1080, %v1088
  %v1091 = vmul.f32 %v1089, 1.442695
  %v1092 = vpow.pop %v1091
  %v1093 = vmul.f32 %v1090, 1.442695
  %v1094 = vpow.pop %v1093
  %v1095 = vsel %vm88, %v1092, 0.0
  %1096 = vadd.xlane.f32.xlu0 %v1095
  %v1097 = vpop.xlane.xlu0 %1096
  %v1098 = vsel %vm88, %v1094, 0.0
  %1099 = vadd.xlane.f32.xlu0 %v1098
  %v1100 = vpop.xlane.xlu0 %1099
  %v1101 = vrcp.pop %v1097
  %v1102 = vrcp.pop %v1100
  %v1103 = vmul.f32 %v1092, %v1101
  %v1104 = vmul.f32 %v1094, %v1102
  %v1105 = vmul.f32 %v430, %v1005
  %v1106 = vmul.f32 %v435, %v1005
  %v1108 = vsel %vm88, %v1103, 0
  %v1111 = vsel %vm88, %v1104, 0
  %1113 = vmatprep.subr.mxu0 0.0
  %1114 = vmatpush1.msra.mxu0 %v1105
  %1115 = vmatprep.subr.mxu0 0.0
  %1116 = vmatpush1.msra.mxu0 %v1106
  %1117 = vmatprep.subr.mxu0 0.0
  %1118 = vmatpush1.msra.mxu0 0.0
  %1119 = vmatprep.subr.mxu0 0.0
  %1120 = vmatpush1.msra.mxu0 0.0
  %1121 = vmatprep.subr.mxu0 0.0
  %1122 = vmatpush1.msra.mxu0 0.0
  %1123 = vmatprep.subr.mxu0 0.0
  %1124 = vmatpush1.msra.mxu0 0.0
  %1125 = vmatprep.subr.mxu0 0.0
  %1126 = vmatpush1.msra.mxu0 0.0
  %1127 = vmatprep.subr.mxu0 0.0
  %1128 = vmatpush1.msra.mxu0 0.0
  %1129 = vmatprep.subr.mxu0 0.0
  %1130 = vmatpush1.msra.mxu0 0.0
  %1131 = vmatprep.subr.mxu0 0.0
  %1132 = vmatpush1.msra.mxu0 0.0
  %1133 = vmatprep.subr.mxu0 0.0
  %1134 = vmatpush1.msra.mxu0 0.0
  %1135 = vmatprep.subr.mxu0 0.0
  %1136 = vmatpush1.msra.mxu0 0.0
  %1137 = vmatprep.subr.mxu0 0.0
  %1138 = vmatpush1.msra.mxu0 0.0
  %1139 = vmatprep.subr.mxu0 0.0
  %1140 = vmatpush1.msra.mxu0 0.0
  %1141 = vmatprep.subr.mxu0 0.0
  %1142 = vmatpush1.msra.mxu0 0.0
  %1143 = vmatprep.subr.mxu0 0.0
  %1144 = vmatpush1.msra.mxu0 0.0
  %1145 = vmatprep.subr.mxu0 0.0
  %1146 = vmatpush1.msra.mxu0 0.0
  %1147 = vmatprep.subr.mxu0 0.0
  %1148 = vmatpush1.msra.mxu0 0.0
  %1149 = vmatprep.subr.mxu0 0.0
  %1150 = vmatpush1.msra.mxu0 0.0
  %1151 = vmatprep.subr.mxu0 0.0
  %1152 = vmatpush1.msra.mxu0 0.0
  %1153 = vmatprep.subr.mxu0 0.0
  %1154 = vmatpush1.msra.mxu0 0.0
  %1155 = vmatprep.subr.mxu0 0.0
  %1156 = vmatpush1.msra.mxu0 0.0
  %1157 = vmatprep.subr.mxu0 0.0
  %1158 = vmatpush1.msra.mxu0 0.0
  %1159 = vmatprep.subr.mxu0 0.0
  %1160 = vmatpush1.msra.mxu0 0.0
  %1161 = vmatprep.subr.mxu0 0.0
  %1162 = vmatpush1.msra.mxu0 0.0
  %1163 = vmatprep.subr.mxu0 0.0
  %1164 = vmatpush1.msra.mxu0 0.0
  %1165 = vmatprep.subr.mxu0 0.0
  %1166 = vmatpush1.msra.mxu0 0.0
  %1167 = vmatprep.subr.mxu0 0.0
  %1168 = vmatpush1.msra.mxu0 0.0
  %1169 = vmatprep.subr.mxu0 0.0
  %1170 = vmatpush1.msra.mxu0 0.0
  %1171 = vmatprep.subr.mxu0 0.0
  %1172 = vmatpush1.msra.mxu0 0.0
  %1173 = vmatprep.subr.mxu0 0.0
  %1174 = vmatpush1.msra.mxu0 0.0
  %1175 = vmatprep.subr.mxu0 0.0
  %1176 = vmatpush1.msra.mxu0 0.0
  %1177 = vmatprep.mubr.f32.mxu0 0.0
  %1178 = vmatmul.mubr.f32.gmra.mrb[0].mxu0 %v1108
  %v1179 = vpop.f32.mrb[0].mxu0
  %v1180 = vadd.f32 0.0, %v1179
  %v1181 = vpop.f32.mrb[0].mxu0
  %1182 = vmatprep.mubr.f32.mxu0 0.0
  %1183 = vmatmul.mubr.f32.gmra.mrb[0].mxu0 %v1111
  %v1184 = vpop.f32.mrb[0].mxu0
  %v1185 = vadd.f32 0.0, %v1184
  %v1186 = vpop.f32.mrb[0].mxu0
  %1187 = vdwg.mxu0
  %v1188 = vadd.f32 %v999, %v1180
  %v1189 = vadd.f32 %v1000, %v1185
  %v1190 = vld [vmem:[%s9] sm:$0xff]
  %v1191 = vld [vmem:[%s9 + $0x8] sm:$0xff]
  %v1192 = vld [vmem:[%s9 + $0x10] sm:$0xff]
  %v1193 = vld [vmem:[%s9 + $0x18] sm:$0xff]
  %v1194 = vld [vmem:[%s9 + $0x20] sm:$0xff]
  %v1195 = vld [vmem:[%s9 + $0x28] sm:$0xff]
  %v1196 = vld [vmem:[%s9 + $0x30] sm:$0xff]
  %v1197 = vld [vmem:[%s9 + $0x38] sm:$0xff]
  %v1198 = vld [vmem:[%s9 + $0x40] sm:$0xff]
  %v1199 = vld [vmem:[%s9 + $0x48] sm:$0xff]
  %v1200 = vld [vmem:[%s9 + $0x50] sm:$0xff]
  %v1201 = vld [vmem:[%s9 + $0x58] sm:$0xff]
  %v1202 = vld [vmem:[%s9 + $0x60] sm:$0xff]
  %v1203 = vld [vmem:[%s9 + $0x68] sm:$0xff]
  %v1204 = vld [vmem:[%s9 + $0x70] sm:$0xff]
  %v1205 = vld [vmem:[%s9 + $0x78] sm:$0xff]
  %v1206 = vld [vmem:[%s10] sm:$0x1]
  %v1208 = vlaneseq
  %v1209 = vshrl.u32 %v1208, 7
  %v1210 = vsub.s32 0, %v1209
  %v1211 = vrot.slane %v1206, %v1210
  %1213 = vmatprep.subr.mxu0 0.0
  %1214 = vmatpush1.msra.mxu0 %v1190
  %1215 = vmatprep.subr.mxu0 0.0
  %1216 = vmatpush1.msra.mxu0 %v1191
  %1217 = vmatprep.subr.mxu0 0.0
  %1218 = vmatpush1.msra.mxu0 %v1192
  %1219 = vmatprep.subr.mxu0 0.0
  %1220 = vmatpush1.msra.mxu0 %v1193
  %1221 = vmatprep.subr.mxu0 0.0
  %1222 = vmatpush1.msra.mxu0 %v1194
  %1223 = vmatprep.subr.mxu0 0.0
  %1224 = vmatpush1.msra.mxu0 %v1195
  %1225 = vmatprep.subr.mxu0 0.0
  %1226 = vmatpush1.msra.mxu0 %v1196
  %1227 = vmatprep.subr.mxu0 0.0
  %1228 = vmatpush1.msra.mxu0 %v1197
  %1229 = vmatprep.subr.mxu0 0.0
  %1230 = vmatpush1.msra.mxu0 %v1198
  %1231 = vmatprep.subr.mxu0 0.0
  %1232 = vmatpush1.msra.mxu0 %v1199
  %1233 = vmatprep.subr.mxu0 0.0
  %1234 = vmatpush1.msra.mxu0 %v1200
  %1235 = vmatprep.subr.mxu0 0.0
  %1236 = vmatpush1.msra.mxu0 %v1201
  %1237 = vmatprep.subr.mxu0 0.0
  %1238 = vmatpush1.msra.mxu0 %v1202
  %1239 = vmatprep.subr.mxu0 0.0
  %1240 = vmatpush1.msra.mxu0 %v1203
  %1241 = vmatprep.subr.mxu0 0.0
  %1242 = vmatpush1.msra.mxu0 %v1204
  %1243 = vmatprep.subr.mxu0 0.0
  %1244 = vmatpush1.msra.mxu0 %v1205
  %1245 = vmatprep.subr.mxu0 0.0
  %1246 = vmatpush1.msra.mxu0 0.0
  %1247 = vmatprep.subr.mxu0 0.0
  %1248 = vmatpush1.msra.mxu0 0.0
  %1249 = vmatprep.subr.mxu0 0.0
  %1250 = vmatpush1.msra.mxu0 0.0
  %1251 = vmatprep.subr.mxu0 0.0
  %1252 = vmatpush1.msra.mxu0 0.0
  %1253 = vmatprep.subr.mxu0 0.0
  %1254 = vmatpush1.msra.mxu0 0.0
  %1255 = vmatprep.subr.mxu0 0.0
  %1256 = vmatpush1.msra.mxu0 0.0
  %1257 = vmatprep.subr.mxu0 0.0
  %1258 = vmatpush1.msra.mxu0 0.0
  %1259 = vmatprep.subr.mxu0 0.0
  %1260 = vmatpush1.msra.mxu0 0.0
  %1261 = vmatprep.subr.mxu0 0.0
  %1262 = vmatpush1.msra.mxu0 0.0
  %1263 = vmatprep.subr.mxu0 0.0
  %1264 = vmatpush1.msra.mxu0 0.0
  %1265 = vmatprep.subr.mxu0 0.0
  %1266 = vmatpush1.msra.mxu0 0.0
  %1267 = vmatprep.subr.mxu0 0.0
  %1268 = vmatpush1.msra.mxu0 0.0
  %1269 = vmatprep.subr.mxu0 0.0
  %1270 = vmatpush1.msra.mxu0 0.0
  %1271 = vmatprep.subr.mxu0 0.0
  %1272 = vmatpush1.msra.mxu0 0.0
  %1273 = vmatprep.subr.mxu0 0.0
  %1274 = vmatpush1.msra.mxu0 0.0
  %1275 = vmatprep.subr.mxu0 0.0
  %1276 = vmatpush1.msra.mxu0 0.0
  %1277 = vmatprep.mubr.f32.mxu0 0.0
  %1278 = vmatmul.mubr.f32.gmra.mrb[0].mxu0 %v1188
  %v1279 = vpop.f32.mrb[0].mxu0
  %v1280 = vadd.f32 %v1211, %v1279
  %v1281 = vpop.f32.mrb[0].mxu0
  %1282 = vmatprep.mubr.f32.mxu0 0.0
  %1283 = vmatmul.mubr.f32.gmra.mrb[0].mxu0 %v1189
  %v1284 = vpop.f32.mrb[0].mxu0
  %v1285 = vadd.f32 %v1211, %v1284
  %v1286 = vpop.f32.mrb[0].mxu0
  %1287 = vdwg.mxu0
  %v1288 = vadd.f32 %v219, %v1280
  %v1289 = vadd.f32 %v220, %v1285
  %v1290 = vld [vmem:[%s11] sm:$0x1]
  %v1291 = vld [vmem:[%s12] sm:$0x1]
  %1292 = vadd.xlane.f32.xlu0 %v1288
  %v1293 = vpop.xlane.xlu0 %1292
  %1294 = vadd.xlane.f32.xlu0 %v1289
  %v1295 = vpop.xlane.xlu0 %1294
  %v1296 = vrcp.pop 128.0
  %v1297 = vmul.f32 %v1293, %v1296
  %v1298 = vmul.f32 %v1295, %v1296
  %v1299 = vsub.f32 %v1288, %v1297
  %v1300 = vsub.f32 %v1289, %v1298
  %v1301 = vmul.f32 %v1299, %v1299
  %v1302 = vmul.f32 %v1300, %v1300
  %1303 = vadd.xlane.f32.xlu0 %v1301
  %v1304 = vpop.xlane.xlu0 %1303
  %1305 = vadd.xlane.f32.xlu0 %v1302
  %v1306 = vpop.xlane.xlu0 %1305
  %v1307 = vmul.f32 %v1304, %v1296
  %v1308 = vmul.f32 %v1306, %v1296
  %v1309 = vadd.f32 %v1307, 1e-05
  %v1310 = vadd.f32 %v1308, 1e-05
  %v1311 = vrsqrt.pop %v1309
  %v1312 = vrsqrt.pop %v1310
  %v1313 = vmul.f32 %v1299, %v1311
  %v1314 = vmul.f32 %v1300, %v1312
  %v1316 = vlaneseq
  %v1317 = vshrl.u32 %v1316, 7
  %v1318 = vsub.s32 0, %v1317
  %v1319 = vrot.slane %v1290, %v1318
  %v1321 = vmul.f32 %v1313, %v1319
  %v1322 = vmul.f32 %v1314, %v1319
  %v1324 = vlaneseq
  %v1325 = vshrl.u32 %v1324, 7
  %v1326 = vsub.s32 0, %v1325
  %v1327 = vrot.slane %v1291, %v1326
  %v1329 = vadd.f32 %v1321, %v1327
  %v1330 = vadd.f32 %v1322, %v1327
  %v1331 = vld [vmem:[%s13] sm:$0xff]
  %v1332 = vld [vmem:[%s13 + $0x8] sm:$0xff]
  %v1333 = vld [vmem:[%s13 + $0x10] sm:$0xff]
  %v1334 = vld [vmem:[%s13 + $0x18] sm:$0xff]
  %v1335 = vld [vmem:[%s13 + $0x20] sm:$0xff]
  %v1336 = vld [vmem:[%s13 + $0x28] sm:$0xff]
  %v1337 = vld [vmem:[%s13 + $0x30] sm:$0xff]
  %v1338 = vld [vmem:[%s13 + $0x38] sm:$0xff]
  %v1339 = vld [vmem:[%s13 + $0x40] sm:$0xff]
  %v1340 = vld [vmem:[%s13 + $0x48] sm:$0xff]
  %v1341 = vld [vmem:[%s13 + $0x50] sm:$0xff]
  %v1342 = vld [vmem:[%s13 + $0x58] sm:$0xff]
  %v1343 = vld [vmem:[%s13 + $0x60] sm:$0xff]
  %v1344 = vld [vmem:[%s13 + $0x68] sm:$0xff]
  %v1345 = vld [vmem:[%s13 + $0x70] sm:$0xff]
  %v1346 = vld [vmem:[%s13 + $0x78] sm:$0xff]
  %v1347 = vld [vmem:[%s14] sm:$0x1]
  %v1349 = vlaneseq
  %v1350 = vshrl.u32 %v1349, 7
  %v1351 = vsub.s32 0, %v1350
  %v1352 = vrot.slane %v1347, %v1351
  %1354 = vmatprep.subr.mxu0 0.0
  %1355 = vmatpush1.msra.mxu0 %v1331
  %1356 = vmatprep.subr.mxu0 0.0
  %1357 = vmatpush1.msra.mxu0 %v1332
  %1358 = vmatprep.subr.mxu0 0.0
  %1359 = vmatpush1.msra.mxu0 %v1333
  %1360 = vmatprep.subr.mxu0 0.0
  %1361 = vmatpush1.msra.mxu0 %v1334
  %1362 = vmatprep.subr.mxu0 0.0
  %1363 = vmatpush1.msra.mxu0 %v1335
  %1364 = vmatprep.subr.mxu0 0.0
  %1365 = vmatpush1.msra.mxu0 %v1336
  %1366 = vmatprep.subr.mxu0 0.0
  %1367 = vmatpush1.msra.mxu0 %v1337
  %1368 = vmatprep.subr.mxu0 0.0
  %1369 = vmatpush1.msra.mxu0 %v1338
  %1370 = vmatprep.subr.mxu0 0.0
  %1371 = vmatpush1.msra.mxu0 %v1339
  %1372 = vmatprep.subr.mxu0 0.0
  %1373 = vmatpush1.msra.mxu0 %v1340
  %1374 = vmatprep.subr.mxu0 0.0
  %1375 = vmatpush1.msra.mxu0 %v1341
  %1376 = vmatprep.subr.mxu0 0.0
  %1377 = vmatpush1.msra.mxu0 %v1342
  %1378 = vmatprep.subr.mxu0 0.0
  %1379 = vmatpush1.msra.mxu0 %v1343
  %1380 = vmatprep.subr.mxu0 0.0
  %1381 = vmatpush1.msra.mxu0 %v1344
  %1382 = vmatprep.subr.mxu0 0.0
  %1383 = vmatpush1.msra.mxu0 %v1345
  %1384 = vmatprep.subr.mxu0 0.0
  %1385 = vmatpush1.msra.mxu0 %v1346
  %1386 = vmatprep.subr.mxu0 0.0
  %1387 = vmatpush1.msra.mxu0 0.0
  %1388 = vmatprep.subr.mxu0 0.0
  %1389 = vmatpush1.msra.mxu0 0.0
  %1390 = vmatprep.subr.mxu0 0.0
  %1391 = vmatpush1.msra.mxu0 0.0
  %1392 = vmatprep.subr.mxu0 0.0
  %1393 = vmatpush1.msra.mxu0 0.0
  %1394 = vmatprep.subr.mxu0 0.0
  %1395 = vmatpush1.msra.mxu0 0.0
  %1396 = vmatprep.subr.mxu0 0.0
  %1397 = vmatpush1.msra.mxu0 0.0
  %1398 = vmatprep.subr.mxu0 0.0
  %1399 = vmatpush1.msra.mxu0 0.0
  %1400 = vmatprep.subr.mxu0 0.0
  %1401 = vmatpush1.msra.mxu0 0.0
  %1402 = vmatprep.subr.mxu0 0.0
  %1403 = vmatpush1.msra.mxu0 0.0
  %1404 = vmatprep.subr.mxu0 0.0
  %1405 = vmatpush1.msra.mxu0 0.0
  %1406 = vmatprep.subr.mxu0 0.0
  %1407 = vmatpush1.msra.mxu0 0.0
  %1408 = vmatprep.subr.mxu0 0.0
  %1409 = vmatpush1.msra.mxu0 0.0
  %1410 = vmatprep.subr.mxu0 0.0
  %1411 = vmatpush1.msra.mxu0 0.0
  %1412 = vmatprep.subr.mxu0 0.0
  %1413 = vmatpush1.msra.mxu0 0.0
  %1414 = vmatprep.subr.mxu0 0.0
  %1415 = vmatpush1.msra.mxu0 0.0
  %1416 = vmatprep.subr.mxu0 0.0
  %1417 = vmatpush1.msra.mxu0 0.0
  %1418 = vmatprep.mubr.f32.mxu0 0.0
  %1419 = vmatmul.mubr.f32.gmra.mrb[0].mxu0 %v1329
  %v1420 = vpop.f32.mrb[0].mxu0
  %v1421 = vadd.f32 %v1352, %v1420
  %v1422 = vpop.f32.mrb[0].mxu0
  %1423 = vmatprep.mubr.f32.mxu0 0.0
  %1424 = vmatmul.mubr.f32.gmra.mrb[0].mxu0 %v1330
  %v1425 = vpop.f32.mrb[0].mxu0
  %v1426 = vadd.f32 %v1352, %v1425
  %v1427 = vpop.f32.mrb[0].mxu0
  %1428 = vdwg.mxu0
  %v1429 = vmax.f32 %v1421, 0.0
  %v1430 = vmax.f32 %v1426, 0.0
  %v1431 = vld [vmem:[%s15] sm:$0xff]
  %v1432 = vld [vmem:[%s15 + $0x8] sm:$0xff]
  %v1433 = vld [vmem:[%s15 + $0x10] sm:$0xff]
  %v1434 = vld [vmem:[%s15 + $0x18] sm:$0xff]
  %v1435 = vld [vmem:[%s15 + $0x20] sm:$0xff]
  %v1436 = vld [vmem:[%s15 + $0x28] sm:$0xff]
  %v1437 = vld [vmem:[%s15 + $0x30] sm:$0xff]
  %v1438 = vld [vmem:[%s15 + $0x38] sm:$0xff]
  %v1439 = vld [vmem:[%s15 + $0x40] sm:$0xff]
  %v1440 = vld [vmem:[%s15 + $0x48] sm:$0xff]
  %v1441 = vld [vmem:[%s15 + $0x50] sm:$0xff]
  %v1442 = vld [vmem:[%s15 + $0x58] sm:$0xff]
  %v1443 = vld [vmem:[%s15 + $0x60] sm:$0xff]
  %v1444 = vld [vmem:[%s15 + $0x68] sm:$0xff]
  %v1445 = vld [vmem:[%s15 + $0x70] sm:$0xff]
  %v1446 = vld [vmem:[%s15 + $0x78] sm:$0xff]
  %v1447 = vld [vmem:[%s16] sm:$0x1]
  %v1449 = vlaneseq
  %v1450 = vshrl.u32 %v1449, 7
  %v1451 = vsub.s32 0, %v1450
  %v1452 = vrot.slane %v1447, %v1451
  %1454 = vmatprep.subr.mxu0 0.0
  %1455 = vmatpush1.msra.mxu0 %v1431
  %1456 = vmatprep.subr.mxu0 0.0
  %1457 = vmatpush1.msra.mxu0 %v1432
  %1458 = vmatprep.subr.mxu0 0.0
  %1459 = vmatpush1.msra.mxu0 %v1433
  %1460 = vmatprep.subr.mxu0 0.0
  %1461 = vmatpush1.msra.mxu0 %v1434
  %1462 = vmatprep.subr.mxu0 0.0
  %1463 = vmatpush1.msra.mxu0 %v1435
  %1464 = vmatprep.subr.mxu0 0.0
  %1465 = vmatpush1.msra.mxu0 %v1436
  %1466 = vmatprep.subr.mxu0 0.0
  %1467 = vmatpush1.msra.mxu0 %v1437
  %1468 = vmatprep.subr.mxu0 0.0
  %1469 = vmatpush1.msra.mxu0 %v1438
  %1470 = vmatprep.subr.mxu0 0.0
  %1471 = vmatpush1.msra.mxu0 %v1439
  %1472 = vmatprep.subr.mxu0 0.0
  %1473 = vmatpush1.msra.mxu0 %v1440
  %1474 = vmatprep.subr.mxu0 0.0
  %1475 = vmatpush1.msra.mxu0 %v1441
  %1476 = vmatprep.subr.mxu0 0.0
  %1477 = vmatpush1.msra.mxu0 %v1442
  %1478 = vmatprep.subr.mxu0 0.0
  %1479 = vmatpush1.msra.mxu0 %v1443
  %1480 = vmatprep.subr.mxu0 0.0
  %1481 = vmatpush1.msra.mxu0 %v1444
  %1482 = vmatprep.subr.mxu0 0.0
  %1483 = vmatpush1.msra.mxu0 %v1445
  %1484 = vmatprep.subr.mxu0 0.0
  %1485 = vmatpush1.msra.mxu0 %v1446
  %1486 = vmatprep.subr.mxu0 0.0
  %1487 = vmatpush1.msra.mxu0 0.0
  %1488 = vmatprep.subr.mxu0 0.0
  %1489 = vmatpush1.msra.mxu0 0.0
  %1490 = vmatprep.subr.mxu0 0.0
  %1491 = vmatpush1.msra.mxu0 0.0
  %1492 = vmatprep.subr.mxu0 0.0
  %1493 = vmatpush1.msra.mxu0 0.0
  %1494 = vmatprep.subr.mxu0 0.0
  %1495 = vmatpush1.msra.mxu0 0.0
  %1496 = vmatprep.subr.mxu0 0.0
  %1497 = vmatpush1.msra.mxu0 0.0
  %1498 = vmatprep.subr.mxu0 0.0
  %1499 = vmatpush1.msra.mxu0 0.0
  %1500 = vmatprep.subr.mxu0 0.0
  %1501 = vmatpush1.msra.mxu0 0.0
  %1502 = vmatprep.subr.mxu0 0.0
  %1503 = vmatpush1.msra.mxu0 0.0
  %1504 = vmatprep.subr.mxu0 0.0
  %1505 = vmatpush1.msra.mxu0 0.0
  %1506 = vmatprep.subr.mxu0 0.0
  %1507 = vmatpush1.msra.mxu0 0.0
  %1508 = vmatprep.subr.mxu0 0.0
  %1509 = vmatpush1.msra.mxu0 0.0
  %1510 = vmatprep.subr.mxu0 0.0
  %1511 = vmatpush1.msra.mxu0 0.0
  %1512 = vmatprep.subr.mxu0 0.0
  %1513 = vmatpush1.msra.mxu0 0.0
  %1514 = vmatprep.subr.mxu0 0.0
  %1515 = vmatpush1.msra.mxu0 0.0
  %1516 = vmatprep.subr.mxu0 0.0
  %1517 = vmatpush1.msra.mxu0 0.0
  %1518 = vmatprep.mubr.f32.mxu0 0.0
  %1519 = vmatmul.mubr.f32.gmra.mrb[0].mxu0 %v1429
  %v1520 = vpop.f32.mrb[0].mxu0
  %v1521 = vadd.f32 %v1452, %v1520
  %v1522 = vpop.f32.mrb[0].mxu0
  %1523 = vmatprep.mubr.f32.mxu0 0.0
  %1524 = vmatmul.mubr.f32.gmra.mrb[0].mxu0 %v1430
  %v1525 = vpop.f32.mrb[0].mxu0
  %v1526 = vadd.f32 %v1452, %v1525
  %v1527 = vpop.f32.mrb[0].mxu0
  %1528 = vdwg.mxu0
  %v1529 = vadd.f32 %v1329, %v1521
  %v1530 = vadd.f32 %v1330, %v1526
  %v1531 = vld [vmem:[%s17] sm:$0x1]
  %v1532 = vld [vmem:[%s18] sm:$0x1]
  %1533 = vadd.xlane.f32.xlu0 %v1529
  %v1534 = vpop.xlane.xlu0 %1533
  %1535 = vadd.xlane.f32.xlu0 %v1530
  %v1536 = vpop.xlane.xlu0 %1535
  %v1537 = vmul.f32 %v1534, %v1296
  %v1538 = vmul.f32 %v1536, %v1296
  %v1539 = vsub.f32 %v1529, %v1537
  %v1540 = vsub.f32 %v1530, %v1538
  %v1541 = vmul.f32 %v1539, %v1539
  %v1542 = vmul.f32 %v1540, %v1540
  %1543 = vadd.xlane.f32.xlu0 %v1541
  %v1544 = vpop.xlane.xlu0 %1543
  %1545 = vadd.xlane.f32.xlu0 %v1542
  %v1546 = vpop.xlane.xlu0 %1545
  %v1547 = vmul.f32 %v1544, %v1296
  %v1548 = vmul.f32 %v1546, %v1296
  %v1549 = vadd.f32 %v1547, 1e-05
  %v1550 = vadd.f32 %v1548, 1e-05
  %v1551 = vrsqrt.pop %v1549
  %v1552 = vrsqrt.pop %v1550
  %v1553 = vmul.f32 %v1539, %v1551
  %v1554 = vmul.f32 %v1540, %v1552
  %v1556 = vlaneseq
  %v1557 = vshrl.u32 %v1556, 7
  %v1558 = vsub.s32 0, %v1557
  %v1559 = vrot.slane %v1531, %v1558
  %v1561 = vmul.f32 %v1553, %v1559
  %v1562 = vmul.f32 %v1554, %v1559
  %v1564 = vlaneseq
  %v1565 = vshrl.u32 %v1564, 7
  %v1566 = vsub.s32 0, %v1565
  %v1567 = vrot.slane %v1532, %v1566
  %v1569 = vadd.f32 %v1561, %v1567
  %v1570 = vadd.f32 %v1562, %v1567
  %s1571 = scalar_lea.vmem %s7, 384
  %v1572 = vld [vmem:[%s1571] sm:$0xff]
  %v1573 = vld [vmem:[%s1571 + $0x8] sm:$0xff]
  %v1574 = vld [vmem:[%s1571 + $0x10] sm:$0xff]
  %v1575 = vld [vmem:[%s1571 + $0x18] sm:$0xff]
  %v1576 = vld [vmem:[%s1571 + $0x20] sm:$0xff]
  %v1577 = vld [vmem:[%s1571 + $0x28] sm:$0xff]
  %v1578 = vld [vmem:[%s1571 + $0x30] sm:$0xff]
  %v1579 = vld [vmem:[%s1571 + $0x38] sm:$0xff]
  %v1580 = vld [vmem:[%s1571 + $0x40] sm:$0xff]
  %v1581 = vld [vmem:[%s1571 + $0x48] sm:$0xff]
  %v1582 = vld [vmem:[%s1571 + $0x50] sm:$0xff]
  %v1583 = vld [vmem:[%s1571 + $0x58] sm:$0xff]
  %v1584 = vld [vmem:[%s1571 + $0x60] sm:$0xff]
  %v1585 = vld [vmem:[%s1571 + $0x68] sm:$0xff]
  %v1586 = vld [vmem:[%s1571 + $0x70] sm:$0xff]
  %v1587 = vld [vmem:[%s1571 + $0x78] sm:$0xff]
  %v1588 = vld [vmem:[%s1571 + $0x80] sm:$0xff]
  %v1589 = vld [vmem:[%s1571 + $0x88] sm:$0xff]
  %v1590 = vld [vmem:[%s1571 + $0x90] sm:$0xff]
  %v1591 = vld [vmem:[%s1571 + $0x98] sm:$0xff]
  %v1592 = vld [vmem:[%s1571 + $0xa0] sm:$0xff]
  %v1593 = vld [vmem:[%s1571 + $0xa8] sm:$0xff]
  %v1594 = vld [vmem:[%s1571 + $0xb0] sm:$0xff]
  %v1595 = vld [vmem:[%s1571 + $0xb8] sm:$0xff]
  %v1596 = vld [vmem:[%s1571 + $0xc0] sm:$0xff]
  %v1597 = vld [vmem:[%s1571 + $0xc8] sm:$0xff]
  %v1598 = vld [vmem:[%s1571 + $0xd0] sm:$0xff]
  %v1599 = vld [vmem:[%s1571 + $0xd8] sm:$0xff]
  %v1600 = vld [vmem:[%s1571 + $0xe0] sm:$0xff]
  %v1601 = vld [vmem:[%s1571 + $0xe8] sm:$0xff]
  %v1602 = vld [vmem:[%s1571 + $0xf0] sm:$0xff]
  %v1603 = vld [vmem:[%s1571 + $0xf8] sm:$0xff]
  %v1604 = vld [vmem:[%s1571 + $0x100] sm:$0xff]
  %v1605 = vld [vmem:[%s1571 + $0x108] sm:$0xff]
  %v1606 = vld [vmem:[%s1571 + $0x110] sm:$0xff]
  %v1607 = vld [vmem:[%s1571 + $0x118] sm:$0xff]
  %v1608 = vld [vmem:[%s1571 + $0x120] sm:$0xff]
  %v1609 = vld [vmem:[%s1571 + $0x128] sm:$0xff]
  %v1610 = vld [vmem:[%s1571 + $0x130] sm:$0xff]
  %v1611 = vld [vmem:[%s1571 + $0x138] sm:$0xff]
  %v1612 = vld [vmem:[%s1571 + $0x140] sm:$0xff]
  %v1613 = vld [vmem:[%s1571 + $0x148] sm:$0xff]
  %v1614 = vld [vmem:[%s1571 + $0x150] sm:$0xff]
  %v1615 = vld [vmem:[%s1571 + $0x158] sm:$0xff]
  %v1616 = vld [vmem:[%s1571 + $0x160] sm:$0xff]
  %v1617 = vld [vmem:[%s1571 + $0x168] sm:$0xff]
  %v1618 = vld [vmem:[%s1571 + $0x170] sm:$0xff]
  %v1619 = vld [vmem:[%s1571 + $0x178] sm:$0xff]
  %s1620 = scalar_lea.vmem %s8, 3
  %v1621 = vld [vmem:[%s1620] sm:$0x7]
  %v1623 = vlaneseq
  %v1624 = vshrl.u32 %v1623, 7
  %v1625 = vsub.s32 0, %v1624
  %v1626 = vrot.slane %v1621, %v1625
  %v1627 = vlaneseq
  %v1628 = vshrl.u32 %v1627, 7
  %v1629 = vsub.s32 1, %v1628
  %v1630 = vrot.slane %v1621, %v1629
  %v1631 = vlaneseq
  %v1632 = vshrl.u32 %v1631, 7
  %v1633 = vsub.s32 2, %v1632
  %v1634 = vrot.slane %v1621, %v1633
  %1638 = vmatprep.subr.mxu0 %v1573
  %1639 = vmatpush1.msra.mxu0 %v1572
  %1640 = vmatprep.subr.mxu0 %v1576
  %1641 = vmatpush1.msra.mxu0 %v1575
  %1642 = vmatprep.subr.mxu0 %v1579
  %1643 = vmatpush1.msra.mxu0 %v1578
  %1644 = vmatprep.subr.mxu0 %v1582
  %1645 = vmatpush1.msra.mxu0 %v1581
  %1646 = vmatprep.subr.mxu0 %v1585
  %1647 = vmatpush1.msra.mxu0 %v1584
  %1648 = vmatprep.subr.mxu0 %v1588
  %1649 = vmatpush1.msra.mxu0 %v1587
  %1650 = vmatprep.subr.mxu0 %v1591
  %1651 = vmatpush1.msra.mxu0 %v1590
  %1652 = vmatprep.subr.mxu0 %v1594
  %1653 = vmatpush1.msra.mxu0 %v1593
  %1654 = vmatprep.subr.mxu0 %v1597
  %1655 = vmatpush1.msra.mxu0 %v1596
  %1656 = vmatprep.subr.mxu0 %v1600
  %1657 = vmatpush1.msra.mxu0 %v1599
  %1658 = vmatprep.subr.mxu0 %v1603
  %1659 = vmatpush1.msra.mxu0 %v1602
  %1660 = vmatprep.subr.mxu0 %v1606
  %1661 = vmatpush1.msra.mxu0 %v1605
  %1662 = vmatprep.subr.mxu0 %v1609
  %1663 = vmatpush1.msra.mxu0 %v1608
  %1664 = vmatprep.subr.mxu0 %v1612
  %1665 = vmatpush1.msra.mxu0 %v1611
  %1666 = vmatprep.subr.mxu0 %v1615
  %1667 = vmatpush1.msra.mxu0 %v1614
  %1668 = vmatprep.subr.mxu0 %v1618
  %1669 = vmatpush1.msra.mxu0 %v1617
  %1670 = vmatprep.subr.mxu0 0.0
  %1671 = vmatpush1.msra.mxu0 0.0
  %1672 = vmatprep.subr.mxu0 0.0
  %1673 = vmatpush1.msra.mxu0 0.0
  %1674 = vmatprep.subr.mxu0 0.0
  %1675 = vmatpush1.msra.mxu0 0.0
  %1676 = vmatprep.subr.mxu0 0.0
  %1677 = vmatpush1.msra.mxu0 0.0
  %1678 = vmatprep.subr.mxu0 0.0
  %1679 = vmatpush1.msra.mxu0 0.0
  %1680 = vmatprep.subr.mxu0 0.0
  %1681 = vmatpush1.msra.mxu0 0.0
  %1682 = vmatprep.subr.mxu0 0.0
  %1683 = vmatpush1.msra.mxu0 0.0
  %1684 = vmatprep.subr.mxu0 0.0
  %1685 = vmatpush1.msra.mxu0 0.0
  %1686 = vmatprep.subr.mxu0 0.0
  %1687 = vmatpush1.msra.mxu0 0.0
  %1688 = vmatprep.subr.mxu0 0.0
  %1689 = vmatpush1.msra.mxu0 0.0
  %1690 = vmatprep.subr.mxu0 0.0
  %1691 = vmatpush1.msra.mxu0 0.0
  %1692 = vmatprep.subr.mxu0 0.0
  %1693 = vmatpush1.msra.mxu0 0.0
  %1694 = vmatprep.subr.mxu0 0.0
  %1695 = vmatpush1.msra.mxu0 0.0
  %1696 = vmatprep.subr.mxu0 0.0
  %1697 = vmatpush1.msra.mxu0 0.0
  %1698 = vmatprep.subr.mxu0 0.0
  %1699 = vmatpush1.msra.mxu0 0.0
  %1700 = vmatprep.subr.mxu0 0.0
  %1701 = vmatpush1.msra.mxu0 0.0
  %1702 = vmatprep.mubr.f32.mxu0 0.0
  %1703 = vmatmul.mubr.f32.gmra.mrb[0].mxu0 %v1569
  %v1704 = vpop.f32.mrb[0].mxu0
  %v1705 = vadd.f32 %v1626, %v1704
  %v1706 = vpop.f32.mrb[0].mxu0
  %v1707 = vadd.f32 %v1630, %v1706
  %1708 = vmatprep.mubr.f32.mxu0 0.0
  %1709 = vmatmul.mubr.f32.gmra.mrb[0].mxu0 %v1570
  %v1710 = vpop.f32.mrb[0].mxu0
  %v1711 = vadd.f32 %v1626, %v1710
  %v1712 = vpop.f32.mrb[0].mxu0
  %v1713 = vadd.f32 %v1630, %v1712
  %1714 = vdwg.mxu0
  %1715 = vmatprep.subr.mxu0 0.0
  %1716 = vmatpush1.msra.mxu0 %v1574
  %1717 = vmatprep.subr.mxu0 0.0
  %1718 = vmatpush1.msra.mxu0 %v1577
  %1719 = vmatprep.subr.mxu0 0.0
  %1720 = vmatpush1.msra.mxu0 %v1580
  %1721 = vmatprep.subr.mxu0 0.0
  %1722 = vmatpush1.msra.mxu0 %v1583
  %1723 = vmatprep.subr.mxu0 0.0
  %1724 = vmatpush1.msra.mxu0 %v1586
  %1725 = vmatprep.subr.mxu0 0.0
  %1726 = vmatpush1.msra.mxu0 %v1589
  %1727 = vmatprep.subr.mxu0 0.0
  %1728 = vmatpush1.msra.mxu0 %v1592
  %1729 = vmatprep.subr.mxu0 0.0
  %1730 = vmatpush1.msra.mxu0 %v1595
  %1731 = vmatprep.subr.mxu0 0.0
  %1732 = vmatpush1.msra.mxu0 %v1598
  %1733 = vmatprep.subr.mxu0 0.0
  %1734 = vmatpush1.msra.mxu0 %v1601
  %1735 = vmatprep.subr.mxu0 0.0
  %1736 = vmatpush1.msra.mxu0 %v1604
  %1737 = vmatprep.subr.mxu0 0.0
  %1738 = vmatpush1.msra.mxu0 %v1607
  %1739 = vmatprep.subr.mxu0 0.0
  %1740 = vmatpush1.msra.mxu0 %v1610
  %1741 = vmatprep.subr.mxu0 0.0
  %1742 = vmatpush1.msra.mxu0 %v1613
  %1743 = vmatprep.subr.mxu0 0.0
  %1744 = vmatpush1.msra.mxu0 %v1616
  %1745 = vmatprep.subr.mxu0 0.0
  %1746 = vmatpush1.msra.mxu0 %v1619
  %1747 = vmatprep.subr.mxu0 0.0
  %1748 = vmatpush1.msra.mxu0 0.0
  %1749 = vmatprep.subr.mxu0 0.0
  %1750 = vmatpush1.msra.mxu0 0.0
  %1751 = vmatprep.subr.mxu0 0.0
  %1752 = vmatpush1.msra.mxu0 0.0
  %1753 = vmatprep.subr.mxu0 0.0
  %1754 = vmatpush1.msra.mxu0 0.0
  %1755 = vmatprep.subr.mxu0 0.0
  %1756 = vmatpush1.msra.mxu0 0.0
  %1757 = vmatprep.subr.mxu0 0.0
  %1758 = vmatpush1.msra.mxu0 0.0
  %1759 = vmatprep.subr.mxu0 0.0
  %1760 = vmatpush1.msra.mxu0 0.0
  %1761 = vmatprep.subr.mxu0 0.0
  %1762 = vmatpush1.msra.mxu0 0.0
  %1763 = vmatprep.subr.mxu0 0.0
  %1764 = vmatpush1.msra.mxu0 0.0
  %1765 = vmatprep.subr.mxu0 0.0
  %1766 = vmatpush1.msra.mxu0 0.0
  %1767 = vmatprep.subr.mxu0 0.0
  %1768 = vmatpush1.msra.mxu0 0.0
  %1769 = vmatprep.subr.mxu0 0.0
  %1770 = vmatpush1.msra.mxu0 0.0
  %1771 = vmatprep.subr.mxu0 0.0
  %1772 = vmatpush1.msra.mxu0 0.0
  %1773 = vmatprep.subr.mxu0 0.0
  %1774 = vmatpush1.msra.mxu0 0.0
  %1775 = vmatprep.subr.mxu0 0.0
  %1776 = vmatpush1.msra.mxu0 0.0
  %1777 = vmatprep.subr.mxu0 0.0
  %1778 = vmatpush1.msra.mxu0 0.0
  %1779 = vmatprep.mubr.f32.mxu0 0.0
  %1780 = vmatmul.mubr.f32.gmra.mrb[0].mxu0 %v1569
  %v1781 = vpop.f32.mrb[0].mxu0
  %v1782 = vadd.f32 %v1634, %v1781
  %v1783 = vpop.f32.mrb[0].mxu0
  %1784 = vmatprep.mubr.f32.mxu0 0.0
  %1785 = vmatmul.mubr.f32.gmra.mrb[0].mxu0 %v1570
  %v1786 = vpop.f32.mrb[0].mxu0
  %v1787 = vadd.f32 %v1634, %v1786
  %v1788 = vpop.f32.mrb[0].mxu0
  %1789 = vdwg.mxu0
  %v1790 = vmul.f32 %v1705, %v442
  %v1791 = vmul.f32 %v1711, %v442
  %1792 = vmatprep.subr.mxu0 0.0
  %1793 = vmatpush1.xpose.msra.mxu0 %v1707
  %1794 = vmatprep.subr.mxu0 0.0
  %1795 = vmatpush1.xpose.msra.mxu0 %v1713
  %1796 = vmatprep.subr.mxu0 0.0
  %1797 = vmatpush1.xpose.msra.mxu0 0.0
  %1798 = vmatprep.subr.mxu0 0.0
  %1799 = vmatpush1.xpose.msra.mxu0 0.0
  %1800 = vmatprep.subr.mxu0 0.0
  %1801 = vmatpush1.xpose.msra.mxu0 0.0
  %1802 = vmatprep.subr.mxu0 0.0
  %1803 = vmatpush1.xpose.msra.mxu0 0.0
  %1804 = vmatprep.subr.mxu0 0.0
  %1805 = vmatpush1.xpose.msra.mxu0 0.0
  %1806 = vmatprep.subr.mxu0 0.0
  %1807 = vmatpush1.xpose.msra.mxu0 0.0
  %1808 = vmatprep.subr.mxu0 0.0
  %1809 = vmatpush1.xpose.msra.mxu0 0.0
  %1810 = vmatprep.subr.mxu0 0.0
  %1811 = vmatpush1.xpose.msra.mxu0 0.0
  %1812 = vmatprep.subr.mxu0 0.0
  %1813 = vmatpush1.xpose.msra.mxu0 0.0
  %1814 = vmatprep.subr.mxu0 0.0
  %1815 = vmatpush1.xpose.msra.mxu0 0.0
  %1816 = vmatprep.subr.mxu0 0.0
  %1817 = vmatpush1.xpose.msra.mxu0 0.0
  %1818 = vmatprep.subr.mxu0 0.0
  %1819 = vmatpush1.xpose.msra.mxu0 0.0
  %1820 = vmatprep.subr.mxu0 0.0
  %1821 = vmatpush1.xpose.msra.mxu0 0.0
  %1822 = vmatprep.subr.mxu0 0.0
  %1823 = vmatpush1.xpose.msra.mxu0 0.0
  %1824 = vmatprep.subr.mxu0 0.0
  %1825 = vmatpush1.xpose.msra.mxu0 0.0
  %1826 = vmatprep.subr.mxu0 0.0
  %1827 = vmatpush1.xpose.msra.mxu0 0.0
  %1828 = vmatprep.subr.mxu0 0.0
  %1829 = vmatpush1.xpose.msra.mxu0 0.0
  %1830 = vmatprep.subr.mxu0 0.0
  %1831 = vmatpush1.xpose.msra.mxu0 0.0
  %1832 = vmatprep.subr.mxu0 0.0
  %1833 = vmatpush1.xpose.msra.mxu0 0.0
  %1834 = vmatprep.subr.mxu0 0.0
  %1835 = vmatpush1.xpose.msra.mxu0 0.0
  %1836 = vmatprep.subr.mxu0 0.0
  %1837 = vmatpush1.xpose.msra.mxu0 0.0
  %1838 = vmatprep.subr.mxu0 0.0
  %1839 = vmatpush1.xpose.msra.mxu0 0.0
  %1840 = vmatprep.subr.mxu0 0.0
  %1841 = vmatpush1.xpose.msra.mxu0 0.0
  %1842 = vmatprep.subr.mxu0 0.0
  %1843 = vmatpush1.xpose.msra.mxu0 0.0
  %1844 = vmatprep.subr.mxu0 0.0
  %1845 = vmatpush1.xpose.msra.mxu0 0.0
  %1846 = vmatprep.subr.mxu0 0.0
  %1847 = vmatpush1.xpose.msra.mxu0 0.0
  %1848 = vmatprep.subr.mxu0 0.0
  %1849 = vmatpush1.xpose.msra.mxu0 0.0
  %1850 = vmatprep.subr.mxu0 0.0
  %1851 = vmatpush1.xpose.msra.mxu0 0.0
  %1852 = vmatprep.subr.mxu0 0.0
  %1853 = vmatpush1.xpose.msra.mxu0 0.0
  %1854 = vmatprep.subr.mxu0 0.0
  %1855 = vmatpush1.xpose.msra.mxu0 0.0
  %1856 = vmatprep.mubr.f32.mxu0 0.0
  %1857 = vmatmul.mubr.f32.gmra.mrb[0].mxu0 %v1790
  %v1858 = vpop.f32.mrb[0].mxu0
  %v1859 = vadd.f32 %v84, %v1858
  %v1860 = vpop.f32.mrb[0].mxu0
  %1861 = vmatprep.mubr.f32.mxu0 0.0
  %1862 = vmatmul.mubr.f32.gmra.mrb[0].mxu0 %v1791
  %v1863 = vpop.f32.mrb[0].mxu0
  %v1864 = vadd.f32 %v85, %v1863
  %v1865 = vpop.f32.mrb[0].mxu0
  %1866 = vdwg.mxu0
  %v1867 = vsel %vm88, %v1859, -inf
  %1868 = vmax.xlane.f32.xlu0 %v1867
  %v1869 = vpop.xlane.xlu0 %1868
  %v1870 = vsel %vm88, %v1864, -inf
  %1871 = vmax.xlane.f32.xlu0 %v1870
  %v1872 = vpop.xlane.xlu0 %1871
  %v1873 = vsub.f32 %v1859, %v1869
  %v1874 = vsub.f32 %v1864, %v1872
  %v1875 = vmul.f32 %v1873, 1.442695
  %v1876 = vpow.pop %v1875
  %v1877 = vmul.f32 %v1874, 1.442695
  %v1878 = vpow.pop %v1877
  %v1879 = vsel %vm88, %v1876, 0.0
  %1880 = vadd.xlane.f32.xlu0 %v1879
  %v1881 = vpop.xlane.xlu0 %1880
  %v1882 = vsel %vm88, %v1878, 0.0
  %1883 = vadd.xlane.f32.xlu0 %v1882
  %v1884 = vpop.xlane.xlu0 %1883
  %v1885 = vrcp.pop %v1881
  %v1886 = vrcp.pop %v1884
  %v1887 = vmul.f32 %v1876, %v1885
  %v1888 = vmul.f32 %v1878, %v1886
  %v1889 = vmul.f32 %v1782, %v442
  %v1890 = vmul.f32 %v1787, %v442
  %v1891 = vmul.f32 %v1705, %v548
  %v1892 = vmul.f32 %v1711, %v548
  %1893 = vmatprep.subr.mxu0 0.0
  %1894 = vmatpush1.xpose.msra.mxu0 %v1707
  %1895 = vmatprep.subr.mxu0 0.0
  %1896 = vmatpush1.xpose.msra.mxu0 %v1713
  %1897 = vmatprep.subr.mxu0 0.0
  %1898 = vmatpush1.xpose.msra.mxu0 0.0
  %1899 = vmatprep.subr.mxu0 0.0
  %1900 = vmatpush1.xpose.msra.mxu0 0.0
  %1901 = vmatprep.subr.mxu0 0.0
  %1902 = vmatpush1.xpose.msra.mxu0 0.0
  %1903 = vmatprep.subr.mxu0 0.0
  %1904 = vmatpush1.xpose.msra.mxu0 0.0
  %1905 = vmatprep.subr.mxu0 0.0
  %1906 = vmatpush1.xpose.msra.mxu0 0.0
  %1907 = vmatprep.subr.mxu0 0.0
  %1908 = vmatpush1.xpose.msra.mxu0 0.0
  %1909 = vmatprep.subr.mxu0 0.0
  %1910 = vmatpush1.xpose.msra.mxu0 0.0
  %1911 = vmatprep.subr.mxu0 0.0
  %1912 = vmatpush1.xpose.msra.mxu0 0.0
  %1913 = vmatprep.subr.mxu0 0.0
  %1914 = vmatpush1.xpose.msra.mxu0 0.0
  %1915 = vmatprep.subr.mxu0 0.0
  %1916 = vmatpush1.xpose.msra.mxu0 0.0
  %1917 = vmatprep.subr.mxu0 0.0
  %1918 = vmatpush1.xpose.msra.mxu0 0.0
  %1919 = vmatprep.subr.mxu0 0.0
  %1920 = vmatpush1.xpose.msra.mxu0 0.0
  %1921 = vmatprep.subr.mxu0 0.0
  %1922 = vmatpush1.xpose.msra.mxu0 0.0
  %1923 = vmatprep.subr.mxu0 0.0
  %1924 = vmatpush1.xpose.msra.mxu0 0.0
  %1925 = vmatprep.subr.mxu0 0.0
  %1926 = vmatpush1.xpose.msra.mxu0 0.0
  %1927 = vmatprep.subr.mxu0 0.0
  %1928 = vmatpush1.xpose.msra.mxu0 0.0
  %1929 = vmatprep.subr.mxu0 0.0
  %1930 = vmatpush1.xpose.msra.mxu0 0.0
  %1931 = vmatprep.subr.mxu0 0.0
  %1932 = vmatpush1.xpose.msra.mxu0 0.0
  %1933 = vmatprep.subr.mxu0 0.0
  %1934 = vmatpush1.xpose.msra.mxu0 0.0
  %1935 = vmatprep.subr.mxu0 0.0
  %1936 = vmatpush1.xpose.msra.mxu0 0.0
  %1937 = vmatprep.subr.mxu0 0.0
  %1938 = vmatpush1.xpose.msra.mxu0 0.0
  %1939 = vmatprep.subr.mxu0 0.0
  %1940 = vmatpush1.xpose.msra.mxu0 0.0
  %1941 = vmatprep.subr.mxu0 0.0
  %1942 = vmatpush1.xpose.msra.mxu0 0.0
  %1943 = vmatprep.subr.mxu0 0.0
  %1944 = vmatpush1.xpose.msra.mxu0 0.0
  %1945 = vmatprep.subr.mxu0 0.0
  %1946 = vmatpush1.xpose.msra.mxu0 0.0
  %1947 = vmatprep.subr.mxu0 0.0
  %1948 = vmatpush1.xpose.msra.mxu0 0.0
  %1949 = vmatprep.subr.mxu0 0.0
  %1950 = vmatpush1.xpose.msra.mxu0 0.0
  %1951 = vmatprep.subr.mxu0 0.0
  %1952 = vmatpush1.xpose.msra.mxu0 0.0
  %1953 = vmatprep.subr.mxu0 0.0
  %1954 = vmatpush1.xpose.msra.mxu0 0.0
  %1955 = vmatprep.subr.mxu0 0.0
  %1956 = vmatpush1.xpose.msra.mxu0 0.0
  %1957 = vmatprep.mubr.f32.mxu0 0.0
  %1958 = vmatmul.mubr.f32.gmra.mrb[0].mxu0 %v1891
  %v1959 = vpop.f32.mrb[0].mxu0
  %v1960 = vadd.f32 %v84, %v1959
  %v1961 = vpop.f32.mrb[0].mxu0
  %1962 = vmatprep.mubr.f32.mxu0 0.0
  %1963 = vmatmul.mubr.f32.gmra.mrb[0].mxu0 %v1892
  %v1964 = vpop.f32.mrb[0].mxu0
  %v1965 = vadd.f32 %v85, %v1964
  %v1966 = vpop.f32.mrb[0].mxu0
  %1967 = vdwg.mxu0
  %v1968 = vsel %vm88, %v1960, -inf
  %1969 = vmax.xlane.f32.xlu0 %v1968
  %v1970 = vpop.xlane.xlu0 %1969
  %v1971 = vsel %vm88, %v1965, -inf
  %1972 = vmax.xlane.f32.xlu0 %v1971
  %v1973 = vpop.xlane.xlu0 %1972
  %v1974 = vsub.f32 %v1960, %v1970
  %v1975 = vsub.f32 %v1965, %v1973
  %v1976 = vmul.f32 %v1974, 1.442695
  %v1977 = vpow.pop %v1976
  %v1978 = vmul.f32 %v1975, 1.442695
  %v1979 = vpow.pop %v1978
  %v1980 = vsel %vm88, %v1977, 0.0
  %1981 = vadd.xlane.f32.xlu0 %v1980
  %v1982 = vpop.xlane.xlu0 %1981
  %v1983 = vsel %vm88, %v1979, 0.0
  %1984 = vadd.xlane.f32.xlu0 %v1983
  %v1985 = vpop.xlane.xlu0 %1984
  %v1986 = vrcp.pop %v1982
  %v1987 = vrcp.pop %v1985
  %v1988 = vmul.f32 %v1977, %v1986
  %v1989 = vmul.f32 %v1979, %v1987
  %v1990 = vmul.f32 %v1782, %v548
  %v1991 = vmul.f32 %v1787, %v548
  %v1993 = vsel %vm88, %v1988, 0
  %v1996 = vsel %vm88, %v1989, 0
  %1998 = vmatprep.subr.mxu0 0.0
  %1999 = vmatpush1.msra.mxu0 %v1990
  %2000 = vmatprep.subr.mxu0 0.0
  %2001 = vmatpush1.msra.mxu0 %v1991
  %2002 = vmatprep.subr.mxu0 0.0
  %2003 = vmatpush1.msra.mxu0 0.0
  %2004 = vmatprep.subr.mxu0 0.0
  %2005 = vmatpush1.msra.mxu0 0.0
  %2006 = vmatprep.subr.mxu0 0.0
  %2007 = vmatpush1.msra.mxu0 0.0
  %2008 = vmatprep.subr.mxu0 0.0
  %2009 = vmatpush1.msra.mxu0 0.0
  %2010 = vmatprep.subr.mxu0 0.0
  %2011 = vmatpush1.msra.mxu0 0.0
  %2012 = vmatprep.subr.mxu0 0.0
  %2013 = vmatpush1.msra.mxu0 0.0
  %2014 = vmatprep.subr.mxu0 0.0
  %2015 = vmatpush1.msra.mxu0 0.0
  %2016 = vmatprep.subr.mxu0 0.0
  %2017 = vmatpush1.msra.mxu0 0.0
  %2018 = vmatprep.subr.mxu0 0.0
  %2019 = vmatpush1.msra.mxu0 0.0
  %2020 = vmatprep.subr.mxu0 0.0
  %2021 = vmatpush1.msra.mxu0 0.0
  %2022 = vmatprep.subr.mxu0 0.0
  %2023 = vmatpush1.msra.mxu0 0.0
  %2024 = vmatprep.subr.mxu0 0.0
  %2025 = vmatpush1.msra.mxu0 0.0
  %2026 = vmatprep.subr.mxu0 0.0
  %2027 = vmatpush1.msra.mxu0 0.0
  %2028 = vmatprep.subr.mxu0 0.0
  %2029 = vmatpush1.msra.mxu0 0.0
  %2030 = vmatprep.subr.mxu0 0.0
  %2031 = vmatpush1.msra.mxu0 0.0
  %2032 = vmatprep.subr.mxu0 0.0
  %2033 = vmatpush1.msra.mxu0 0.0
  %2034 = vmatprep.subr.mxu0 0.0
  %2035 = vmatpush1.msra.mxu0 0.0
  %2036 = vmatprep.subr.mxu0 0.0
  %2037 = vmatpush1.msra.mxu0 0.0
  %2038 = vmatprep.subr.mxu0 0.0
  %2039 = vmatpush1.msra.mxu0 0.0
  %2040 = vmatprep.subr.mxu0 0.0
  %2041 = vmatpush1.msra.mxu0 0.0
  %2042 = vmatprep.subr.mxu0 0.0
  %2043 = vmatpush1.msra.mxu0 0.0
  %2044 = vmatprep.subr.mxu0 0.0
  %2045 = vmatpush1.msra.mxu0 0.0
  %2046 = vmatprep.subr.mxu0 0.0
  %2047 = vmatpush1.msra.mxu0 0.0
  %2048 = vmatprep.subr.mxu0 0.0
  %2049 = vmatpush1.msra.mxu0 0.0
  %2050 = vmatprep.subr.mxu0 0.0
  %2051 = vmatpush1.msra.mxu0 0.0
  %2052 = vmatprep.subr.mxu0 0.0
  %2053 = vmatpush1.msra.mxu0 0.0
  %2054 = vmatprep.subr.mxu0 0.0
  %2055 = vmatpush1.msra.mxu0 0.0
  %2056 = vmatprep.subr.mxu0 0.0
  %2057 = vmatpush1.msra.mxu0 0.0
  %2058 = vmatprep.subr.mxu0 0.0
  %2059 = vmatpush1.msra.mxu0 0.0
  %2060 = vmatprep.subr.mxu0 0.0
  %2061 = vmatpush1.msra.mxu0 0.0
  %2062 = vmatprep.mubr.f32.mxu0 0.0
  %2063 = vmatmul.mubr.f32.gmra.mrb[0].mxu0 %v1993
  %v2064 = vpop.f32.mrb[0].mxu0
  %v2065 = vadd.f32 0.0, %v2064
  %v2066 = vpop.f32.mrb[0].mxu0
  %2067 = vmatprep.mubr.f32.mxu0 0.0
  %2068 = vmatmul.mubr.f32.gmra.mrb[0].mxu0 %v1996
  %v2069 = vpop.f32.mrb[0].mxu0
  %v2070 = vadd.f32 0.0, %v2069
  %v2071 = vpop.f32.mrb[0].mxu0
  %2072 = vdwg.mxu0
  %v2074 = vsel %vm88, %v1887, 0
  %v2077 = vsel %vm88, %v1888, 0
  %2079 = vmatprep.subr.mxu0 0.0
  %2080 = vmatpush1.msra.mxu0 %v1889
  %2081 = vmatprep.subr.mxu0 0.0
  %2082 = vmatpush1.msra.mxu0 %v1890
  %2083 = vmatprep.subr.mxu0 0.0
  %2084 = vmatpush1.msra.mxu0 0.0
  %2085 = vmatprep.subr.mxu0 0.0
  %2086 = vmatpush1.msra.mxu0 0.0
  %2087 = vmatprep.subr.mxu0 0.0
  %2088 = vmatpush1.msra.mxu0 0.0
  %2089 = vmatprep.subr.mxu0 0.0
  %2090 = vmatpush1.msra.mxu0 0.0
  %2091 = vmatprep.subr.mxu0 0.0
  %2092 = vmatpush1.msra.mxu0 0.0
  %2093 = vmatprep.subr.mxu0 0.0
  %2094 = vmatpush1.msra.mxu0 0.0
  %2095 = vmatprep.subr.mxu0 0.0
  %2096 = vmatpush1.msra.mxu0 0.0
  %2097 = vmatprep.subr.mxu0 0.0
  %2098 = vmatpush1.msra.mxu0 0.0
  %2099 = vmatprep.subr.mxu0 0.0
  %2100 = vmatpush1.msra.mxu0 0.0
  %2101 = vmatprep.subr.mxu0 0.0
  %2102 = vmatpush1.msra.mxu0 0.0
  %2103 = vmatprep.subr.mxu0 0.0
  %2104 = vmatpush1.msra.mxu0 0.0
  %2105 = vmatprep.subr.mxu0 0.0
  %2106 = vmatpush1.msra.mxu0 0.0
  %2107 = vmatprep.subr.mxu0 0.0
  %2108 = vmatpush1.msra.mxu0 0.0
  %2109 = vmatprep.subr.mxu0 0.0
  %2110 = vmatpush1.msra.mxu0 0.0
  %2111 = vmatprep.subr.mxu0 0.0
  %2112 = vmatpush1.msra.mxu0 0.0
  %2113 = vmatprep.subr.mxu0 0.0
  %2114 = vmatpush1.msra.mxu0 0.0
  %2115 = vmatprep.subr.mxu0 0.0
  %2116 = vmatpush1.msra.mxu0 0.0
  %2117 = vmatprep.subr.mxu0 0.0
  %2118 = vmatpush1.msra.mxu0 0.0
  %2119 = vmatprep.subr.mxu0 0.0
  %2120 = vmatpush1.msra.mxu0 0.0
  %2121 = vmatprep.subr.mxu0 0.0
  %2122 = vmatpush1.msra.mxu0 0.0
  %2123 = vmatprep.subr.mxu0 0.0
  %2124 = vmatpush1.msra.mxu0 0.0
  %2125 = vmatprep.subr.mxu0 0.0
  %2126 = vmatpush1.msra.mxu0 0.0
  %2127 = vmatprep.subr.mxu0 0.0
  %2128 = vmatpush1.msra.mxu0 0.0
  %2129 = vmatprep.subr.mxu0 0.0
  %2130 = vmatpush1.msra.mxu0 0.0
  %2131 = vmatprep.subr.mxu0 0.0
  %2132 = vmatpush1.msra.mxu0 0.0
  %2133 = vmatprep.subr.mxu0 0.0
  %2134 = vmatpush1.msra.mxu0 0.0
  %2135 = vmatprep.subr.mxu0 0.0
  %2136 = vmatpush1.msra.mxu0 0.0
  %2137 = vmatprep.subr.mxu0 0.0
  %2138 = vmatpush1.msra.mxu0 0.0
  %2139 = vmatprep.subr.mxu0 0.0
  %2140 = vmatpush1.msra.mxu0 0.0
  %2141 = vmatprep.subr.mxu0 0.0
  %2142 = vmatpush1.msra.mxu0 0.0
  %2143 = vmatprep.mubr.f32.mxu0 0.0
  %2144 = vmatmul.mubr.f32.gmra.mrb[0].mxu0 %v2074
  %v2145 = vpop.f32.mrb[0].mxu0
  %v2146 = vadd.f32 %v2065, %v2145
  %v2147 = vpop.f32.mrb[0].mxu0
  %2148 = vmatprep.mubr.f32.mxu0 0.0
  %2149 = vmatmul.mubr.f32.gmra.mrb[0].mxu0 %v2077
  %v2150 = vpop.f32.mrb[0].mxu0
  %v2151 = vadd.f32 %v2070, %v2150
  %v2152 = vpop.f32.mrb[0].mxu0
  %2153 = vdwg.mxu0
  %v2154 = vmul.f32 %v1705, %v816
  %v2155 = vmul.f32 %v1711, %v816
  %2156 = vmatprep.subr.mxu0 0.0
  %2157 = vmatpush1.xpose.msra.mxu0 %v1707
  %2158 = vmatprep.subr.mxu0 0.0
  %2159 = vmatpush1.xpose.msra.mxu0 %v1713
  %2160 = vmatprep.subr.mxu0 0.0
  %2161 = vmatpush1.xpose.msra.mxu0 0.0
  %2162 = vmatprep.subr.mxu0 0.0
  %2163 = vmatpush1.xpose.msra.mxu0 0.0
  %2164 = vmatprep.subr.mxu0 0.0
  %2165 = vmatpush1.xpose.msra.mxu0 0.0
  %2166 = vmatprep.subr.mxu0 0.0
  %2167 = vmatpush1.xpose.msra.mxu0 0.0
  %2168 = vmatprep.subr.mxu0 0.0
  %2169 = vmatpush1.xpose.msra.mxu0 0.0
  %2170 = vmatprep.subr.mxu0 0.0
  %2171 = vmatpush1.xpose.msra.mxu0 0.0
  %2172 = vmatprep.subr.mxu0 0.0
  %2173 = vmatpush1.xpose.msra.mxu0 0.0
  %2174 = vmatprep.subr.mxu0 0.0
  %2175 = vmatpush1.xpose.msra.mxu0 0.0
  %2176 = vmatprep.subr.mxu0 0.0
  %2177 = vmatpush1.xpose.msra.mxu0 0.0
  %2178 = vmatprep.subr.mxu0 0.0
  %2179 = vmatpush1.xpose.msra.mxu0 0.0
  %2180 = vmatprep.subr.mxu0 0.0
  %2181 = vmatpush1.xpose.msra.mxu0 0.0
  %2182 = vmatprep.subr.mxu0 0.0
  %2183 = vmatpush1.xpose.msra.mxu0 0.0
  %2184 = vmatprep.subr.mxu0 0.0
  %2185 = vmatpush1.xpose.msra.mxu0 0.0
  %2186 = vmatprep.subr.mxu0 0.0
  %2187 = vmatpush1.xpose.msra.mxu0 0.0
  %2188 = vmatprep.subr.mxu0 0.0
  %2189 = vmatpush1.xpose.msra.mxu0 0.0
  %2190 = vmatprep.subr.mxu0 0.0
  %2191 = vmatpush1.xpose.msra.mxu0 0.0
  %2192 = vmatprep.subr.mxu0 0.0
  %2193 = vmatpush1.xpose.msra.mxu0 0.0
  %2194 = vmatprep.subr.mxu0 0.0
  %2195 = vmatpush1.xpose.msra.mxu0 0.0
  %2196 = vmatprep.subr.mxu0 0.0
  %2197 = vmatpush1.xpose.msra.mxu0 0.0
  %2198 = vmatprep.subr.mxu0 0.0
  %2199 = vmatpush1.xpose.msra.mxu0 0.0
  %2200 = vmatprep.subr.mxu0 0.0
  %2201 = vmatpush1.xpose.msra.mxu0 0.0
  %2202 = vmatprep.subr.mxu0 0.0
  %2203 = vmatpush1.xpose.msra.mxu0 0.0
  %2204 = vmatprep.subr.mxu0 0.0
  %2205 = vmatpush1.xpose.msra.mxu0 0.0
  %2206 = vmatprep.subr.mxu0 0.0
  %2207 = vmatpush1.xpose.msra.mxu0 0.0
  %2208 = vmatprep.subr.mxu0 0.0
  %2209 = vmatpush1.xpose.msra.mxu0 0.0
  %2210 = vmatprep.subr.mxu0 0.0
  %2211 = vmatpush1.xpose.msra.mxu0 0.0
  %2212 = vmatprep.subr.mxu0 0.0
  %2213 = vmatpush1.xpose.msra.mxu0 0.0
  %2214 = vmatprep.subr.mxu0 0.0
  %2215 = vmatpush1.xpose.msra.mxu0 0.0
  %2216 = vmatprep.subr.mxu0 0.0
  %2217 = vmatpush1.xpose.msra.mxu0 0.0
  %2218 = vmatprep.subr.mxu0 0.0
  %2219 = vmatpush1.xpose.msra.mxu0 0.0
  %2220 = vmatprep.mubr.f32.mxu0 0.0
  %2221 = vmatmul.mubr.f32.gmra.mrb[0].mxu0 %v2154
  %v2222 = vpop.f32.mrb[0].mxu0
  %v2223 = vadd.f32 %v84, %v2222
  %v2224 = vpop.f32.mrb[0].mxu0
  %2225 = vmatprep.mubr.f32.mxu0 0.0
  %2226 = vmatmul.mubr.f32.gmra.mrb[0].mxu0 %v2155
  %v2227 = vpop.f32.mrb[0].mxu0
  %v2228 = vadd.f32 %v85, %v2227
  %v2229 = vpop.f32.mrb[0].mxu0
  %2230 = vdwg.mxu0
  %v2231 = vsel %vm88, %v2223, -inf
  %2232 = vmax.xlane.f32.xlu0 %v2231
  %v2233 = vpop.xlane.xlu0 %2232
  %v2234 = vsel %vm88, %v2228, -inf
  %2235 = vmax.xlane.f32.xlu0 %v2234
  %v2236 = vpop.xlane.xlu0 %2235
  %v2237 = vsub.f32 %v2223, %v2233
  %v2238 = vsub.f32 %v2228, %v2236
  %v2239 = vmul.f32 %v2237, 1.442695
  %v2240 = vpow.pop %v2239
  %v2241 = vmul.f32 %v2238, 1.442695
  %v2242 = vpow.pop %v2241
  %v2243 = vsel %vm88, %v2240, 0.0
  %2244 = vadd.xlane.f32.xlu0 %v2243
  %v2245 = vpop.xlane.xlu0 %2244
  %v2246 = vsel %vm88, %v2242, 0.0
  %2247 = vadd.xlane.f32.xlu0 %v2246
  %v2248 = vpop.xlane.xlu0 %2247
  %v2249 = vrcp.pop %v2245
  %v2250 = vrcp.pop %v2248
  %v2251 = vmul.f32 %v2240, %v2249
  %v2252 = vmul.f32 %v2242, %v2250
  %v2253 = vmul.f32 %v1782, %v816
  %v2254 = vmul.f32 %v1787, %v816
  %v2256 = vsel %vm88, %v2251, 0
  %v2259 = vsel %vm88, %v2252, 0
  %2261 = vmatprep.subr.mxu0 0.0
  %2262 = vmatpush1.msra.mxu0 %v2253
  %2263 = vmatprep.subr.mxu0 0.0
  %2264 = vmatpush1.msra.mxu0 %v2254
  %2265 = vmatprep.subr.mxu0 0.0
  %2266 = vmatpush1.msra.mxu0 0.0
  %2267 = vmatprep.subr.mxu0 0.0
  %2268 = vmatpush1.msra.mxu0 0.0
  %2269 = vmatprep.subr.mxu0 0.0
  %2270 = vmatpush1.msra.mxu0 0.0
  %2271 = vmatprep.subr.mxu0 0.0
  %2272 = vmatpush1.msra.mxu0 0.0
  %2273 = vmatprep.subr.mxu0 0.0
  %2274 = vmatpush1.msra.mxu0 0.0
  %2275 = vmatprep.subr.mxu0 0.0
  %2276 = vmatpush1.msra.mxu0 0.0
  %2277 = vmatprep.subr.mxu0 0.0
  %2278 = vmatpush1.msra.mxu0 0.0
  %2279 = vmatprep.subr.mxu0 0.0
  %2280 = vmatpush1.msra.mxu0 0.0
  %2281 = vmatprep.subr.mxu0 0.0
  %2282 = vmatpush1.msra.mxu0 0.0
  %2283 = vmatprep.subr.mxu0 0.0
  %2284 = vmatpush1.msra.mxu0 0.0
  %2285 = vmatprep.subr.mxu0 0.0
  %2286 = vmatpush1.msra.mxu0 0.0
  %2287 = vmatprep.subr.mxu0 0.0
  %2288 = vmatpush1.msra.mxu0 0.0
  %2289 = vmatprep.subr.mxu0 0.0
  %2290 = vmatpush1.msra.mxu0 0.0
  %2291 = vmatprep.subr.mxu0 0.0
  %2292 = vmatpush1.msra.mxu0 0.0
  %2293 = vmatprep.subr.mxu0 0.0
  %2294 = vmatpush1.msra.mxu0 0.0
  %2295 = vmatprep.subr.mxu0 0.0
  %2296 = vmatpush1.msra.mxu0 0.0
  %2297 = vmatprep.subr.mxu0 0.0
  %2298 = vmatpush1.msra.mxu0 0.0
  %2299 = vmatprep.subr.mxu0 0.0
  %2300 = vmatpush1.msra.mxu0 0.0
  %2301 = vmatprep.subr.mxu0 0.0
  %2302 = vmatpush1.msra.mxu0 0.0
  %2303 = vmatprep.subr.mxu0 0.0
  %2304 = vmatpush1.msra.mxu0 0.0
  %2305 = vmatprep.subr.mxu0 0.0
  %2306 = vmatpush1.msra.mxu0 0.0
  %2307 = vmatprep.subr.mxu0 0.0
  %2308 = vmatpush1.msra.mxu0 0.0
  %2309 = vmatprep.subr.mxu0 0.0
  %2310 = vmatpush1.msra.mxu0 0.0
  %2311 = vmatprep.subr.mxu0 0.0
  %2312 = vmatpush1.msra.mxu0 0.0
  %2313 = vmatprep.subr.mxu0 0.0
  %2314 = vmatpush1.msra.mxu0 0.0
  %2315 = vmatprep.subr.mxu0 0.0
  %2316 = vmatpush1.msra.mxu0 0.0
  %2317 = vmatprep.subr.mxu0 0.0
  %2318 = vmatpush1.msra.mxu0 0.0
  %2319 = vmatprep.subr.mxu0 0.0
  %2320 = vmatpush1.msra.mxu0 0.0
  %2321 = vmatprep.subr.mxu0 0.0
  %2322 = vmatpush1.msra.mxu0 0.0
  %2323 = vmatprep.subr.mxu0 0.0
  %2324 = vmatpush1.msra.mxu0 0.0
  %2325 = vmatprep.mubr.f32.mxu0 0.0
  %2326 = vmatmul.mubr.f32.gmra.mrb[0].mxu0 %v2256
  %v2327 = vpop.f32.mrb[0].mxu0
  %v2328 = vadd.f32 0.0, %v2327
  %v2329 = vpop.f32.mrb[0].mxu0
  %2330 = vmatprep.mubr.f32.mxu0 0.0
  %2331 = vmatmul.mubr.f32.gmra.mrb[0].mxu0 %v2259
  %v2332 = vpop.f32.mrb[0].mxu0
  %v2333 = vadd.f32 0.0, %v2332
  %v2334 = vpop.f32.mrb[0].mxu0
  %2335 = vdwg.mxu0
  %v2336 = vadd.f32 %v2146, %v2328
  %v2337 = vadd.f32 %v2151, %v2333
  %v2338 = vmul.f32 %v1705, %v1005
  %v2339 = vmul.f32 %v1711, %v1005
  %2340 = vmatprep.subr.mxu0 0.0
  %2341 = vmatpush1.xpose.msra.mxu0 %v1707
  %2342 = vmatprep.subr.mxu0 0.0
  %2343 = vmatpush1.xpose.msra.mxu0 %v1713
  %2344 = vmatprep.subr.mxu0 0.0
  %2345 = vmatpush1.xpose.msra.mxu0 0.0
  %2346 = vmatprep.subr.mxu0 0.0
  %2347 = vmatpush1.xpose.msra.mxu0 0.0
  %2348 = vmatprep.subr.mxu0 0.0
  %2349 = vmatpush1.xpose.msra.mxu0 0.0
  %2350 = vmatprep.subr.mxu0 0.0
  %2351 = vmatpush1.xpose.msra.mxu0 0.0
  %2352 = vmatprep.subr.mxu0 0.0
  %2353 = vmatpush1.xpose.msra.mxu0 0.0
  %2354 = vmatprep.subr.mxu0 0.0
  %2355 = vmatpush1.xpose.msra.mxu0 0.0
  %2356 = vmatprep.subr.mxu0 0.0
  %2357 = vmatpush1.xpose.msra.mxu0 0.0
  %2358 = vmatprep.subr.mxu0 0.0
  %2359 = vmatpush1.xpose.msra.mxu0 0.0
  %2360 = vmatprep.subr.mxu0 0.0
  %2361 = vmatpush1.xpose.msra.mxu0 0.0
  %2362 = vmatprep.subr.mxu0 0.0
  %2363 = vmatpush1.xpose.msra.mxu0 0.0
  %2364 = vmatprep.subr.mxu0 0.0
  %2365 = vmatpush1.xpose.msra.mxu0 0.0
  %2366 = vmatprep.subr.mxu0 0.0
  %2367 = vmatpush1.xpose.msra.mxu0 0.0
  %2368 = vmatprep.subr.mxu0 0.0
  %2369 = vmatpush1.xpose.msra.mxu0 0.0
  %2370 = vmatprep.subr.mxu0 0.0
  %2371 = vmatpush1.xpose.msra.mxu0 0.0
  %2372 = vmatprep.subr.mxu0 0.0
  %2373 = vmatpush1.xpose.msra.mxu0 0.0
  %2374 = vmatprep.subr.mxu0 0.0
  %2375 = vmatpush1.xpose.msra.mxu0 0.0
  %2376 = vmatprep.subr.mxu0 0.0
  %2377 = vmatpush1.xpose.msra.mxu0 0.0
  %2378 = vmatprep.subr.mxu0 0.0
  %2379 = vmatpush1.xpose.msra.mxu0 0.0
  %2380 = vmatprep.subr.mxu0 0.0
  %2381 = vmatpush1.xpose.msra.mxu0 0.0
  %2382 = vmatprep.subr.mxu0 0.0
  %2383 = vmatpush1.xpose.msra.mxu0 0.0
  %2384 = vmatprep.subr.mxu0 0.0
  %2385 = vmatpush1.xpose.msra.mxu0 0.0
  %2386 = vmatprep.subr.mxu0 0.0
  %2387 = vmatpush1.xpose.msra.mxu0 0.0
  %2388 = vmatprep.subr.mxu0 0.0
  %2389 = vmatpush1.xpose.msra.mxu0 0.0
  %2390 = vmatprep.subr.mxu0 0.0
  %2391 = vmatpush1.xpose.msra.mxu0 0.0
  %2392 = vmatprep.subr.mxu0 0.0
  %2393 = vmatpush1.xpose.msra.mxu0 0.0
  %2394 = vmatprep.subr.mxu0 0.0
  %2395 = vmatpush1.xpose.msra.mxu0 0.0
  %2396 = vmatprep.subr.mxu0 0.0
  %2397 = vmatpush1.xpose.msra.mxu0 0.0
  %2398 = vmatprep.subr.mxu0 0.0
  %2399 = vmatpush1.xpose.msra.mxu0 0.0
  %2400 = vmatprep.subr.mxu0 0.0
  %2401 = vmatpush1.xpose.msra.mxu0 0.0
  %2402 = vmatprep.subr.mxu0 0.0
  %2403 = vmatpush1.xpose.msra.mxu0 0.0
  %2404 = vmatprep.mubr.f32.mxu0 0.0
  %2405 = vmatmul.mubr.f32.gmra.mrb[0].mxu0 %v2338
  %v2406 = vpop.f32.mrb[0].mxu0
  %v2407 = vadd.f32 %v84, %v2406
  %v2408 = vpop.f32.mrb[0].mxu0
  %2409 = vmatprep.mubr.f32.mxu0 0.0
  %2410 = vmatmul.mubr.f32.gmra.mrb[0].mxu0 %v2339
  %v2411 = vpop.f32.mrb[0].mxu0
  %v2412 = vadd.f32 %v85, %v2411
  %v2413 = vpop.f32.mrb[0].mxu0
  %2414 = vdwg.mxu0
  %v2415 = vsel %vm88, %v2407, -inf
  %2416 = vmax.xlane.f32.xlu0 %v2415
  %v2417 = vpop.xlane.xlu0 %2416
  %v2418 = vsel %vm88, %v2412, -inf
  %2419 = vmax.xlane.f32.xlu0 %v2418
  %v2420 = vpop.xlane.xlu0 %2419
  %v2421 = vsub.f32 %v2407, %v2417
  %v2422 = vsub.f32 %v2412, %v2420
  %v2423 = vmul.f32 %v2421, 1.442695
  %v2424 = vpow.pop %v2423
  %v2425 = vmul.f32 %v2422, 1.442695
  %v2426 = vpow.pop %v2425
  %v2427 = vsel %vm88, %v2424, 0.0
  %2428 = vadd.xlane.f32.xlu0 %v2427
  %v2429 = vpop.xlane.xlu0 %2428
  %v2430 = vsel %vm88, %v2426, 0.0
  %2431 = vadd.xlane.f32.xlu0 %v2430
  %v2432 = vpop.xlane.xlu0 %2431
  %v2433 = vrcp.pop %v2429
  %v2434 = vrcp.pop %v2432
  %v2435 = vmul.f32 %v2424, %v2433
  %v2436 = vmul.f32 %v2426, %v2434
  %v2437 = vmul.f32 %v1782, %v1005
  %v2438 = vmul.f32 %v1787, %v1005
  %v2440 = vsel %vm88, %v2435, 0
  %v2443 = vsel %vm88, %v2436, 0
  %2445 = vmatprep.subr.mxu0 0.0
  %2446 = vmatpush1.msra.mxu0 %v2437
  %2447 = vmatprep.subr.mxu0 0.0
  %2448 = vmatpush1.msra.mxu0 %v2438
  %2449 = vmatprep.subr.mxu0 0.0
  %2450 = vmatpush1.msra.mxu0 0.0
  %2451 = vmatprep.subr.mxu0 0.0
  %2452 = vmatpush1.msra.mxu0 0.0
  %2453 = vmatprep.subr.mxu0 0.0
  %2454 = vmatpush1.msra.mxu0 0.0
  %2455 = vmatprep.subr.mxu0 0.0
  %2456 = vmatpush1.msra.mxu0 0.0
  %2457 = vmatprep.subr.mxu0 0.0
  %2458 = vmatpush1.msra.mxu0 0.0
  %2459 = vmatprep.subr.mxu0 0.0
  %2460 = vmatpush1.msra.mxu0 0.0
  %2461 = vmatprep.subr.mxu0 0.0
  %2462 = vmatpush1.msra.mxu0 0.0
  %2463 = vmatprep.subr.mxu0 0.0
  %2464 = vmatpush1.msra.mxu0 0.0
  %2465 = vmatprep.subr.mxu0 0.0
  %2466 = vmatpush1.msra.mxu0 0.0
  %2467 = vmatprep.subr.mxu0 0.0
  %2468 = vmatpush1.msra.mxu0 0.0
  %2469 = vmatprep.subr.mxu0 0.0
  %2470 = vmatpush1.msra.mxu0 0.0
  %2471 = vmatprep.subr.mxu0 0.0
  %2472 = vmatpush1.msra.mxu0 0.0
  %2473 = vmatprep.subr.mxu0 0.0
  %2474 = vmatpush1.msra.mxu0 0.0
  %2475 = vmatprep.subr.mxu0 0.0
  %2476 = vmatpush1.msra.mxu0 0.0
  %2477 = vmatprep.subr.mxu0 0.0
  %2478 = vmatpush1.msra.mxu0 0.0
  %2479 = vmatprep.subr.mxu0 0.0
  %2480 = vmatpush1.msra.mxu0 0.0
  %2481 = vmatprep.subr.mxu0 0.0
  %2482 = vmatpush1.msra.mxu0 0.0
  %2483 = vmatprep.subr.mxu0 0.0
  %2484 = vmatpush1.msra.mxu0 0.0
  %2485 = vmatprep.subr.mxu0 0.0
  %2486 = vmatpush1.msra.mxu0 0.0
  %2487 = vmatprep.subr.mxu0 0.0
  %2488 = vmatpush1.msra.mxu0 0.0
  %2489 = vmatprep.subr.mxu0 0.0
  %2490 = vmatpush1.msra.mxu0 0.0
  %2491 = vmatprep.subr.mxu0 0.0
  %2492 = vmatpush1.msra.mxu0 0.0
  %2493 = vmatprep.subr.mxu0 0.0
  %2494 = vmatpush1.msra.mxu0 0.0
  %2495 = vmatprep.subr.mxu0 0.0
  %2496 = vmatpush1.msra.mxu0 0.0
  %2497 = vmatprep.subr.mxu0 0.0
  %2498 = vmatpush1.msra.mxu0 0.0
  %2499 = vmatprep.subr.mxu0 0.0
  %2500 = vmatpush1.msra.mxu0 0.0
  %2501 = vmatprep.subr.mxu0 0.0
  %2502 = vmatpush1.msra.mxu0 0.0
  %2503 = vmatprep.subr.mxu0 0.0
  %2504 = vmatpush1.msra.mxu0 0.0
  %2505 = vmatprep.subr.mxu0 0.0
  %2506 = vmatpush1.msra.mxu0 0.0
  %2507 = vmatprep.subr.mxu0 0.0
  %2508 = vmatpush1.msra.mxu0 0.0
  %2509 = vmatprep.mubr.f32.mxu0 0.0
  %2510 = vmatmul.mubr.f32.gmra.mrb[0].mxu0 %v2440
  %v2511 = vpop.f32.mrb[0].mxu0
  %v2512 = vadd.f32 0.0, %v2511
  %v2513 = vpop.f32.mrb[0].mxu0
  %2514 = vmatprep.mubr.f32.mxu0 0.0
  %2515 = vmatmul.mubr.f32.gmra.mrb[0].mxu0 %v2443
  %v2516 = vpop.f32.mrb[0].mxu0
  %v2517 = vadd.f32 0.0, %v2516
  %v2518 = vpop.f32.mrb[0].mxu0
  %2519 = vdwg.mxu0
  %v2520 = vadd.f32 %v2336, %v2512
  %v2521 = vadd.f32 %v2337, %v2517
  %s2522 = scalar_lea.vmem %s9, 128
  %v2523 = vld [vmem:[%s2522] sm:$0xff]
  %v2524 = vld [vmem:[%s2522 + $0x8] sm:$0xff]
  %v2525 = vld [vmem:[%s2522 + $0x10] sm:$0xff]
  %v2526 = vld [vmem:[%s2522 + $0x18] sm:$0xff]
  %v2527 = vld [vmem:[%s2522 + $0x20] sm:$0xff]
  %v2528 = vld [vmem:[%s2522 + $0x28] sm:$0xff]
  %v2529 = vld [vmem:[%s2522 + $0x30] sm:$0xff]
  %v2530 = vld [vmem:[%s2522 + $0x38] sm:$0xff]
  %v2531 = vld [vmem:[%s2522 + $0x40] sm:$0xff]
  %v2532 = vld [vmem:[%s2522 + $0x48] sm:$0xff]
  %v2533 = vld [vmem:[%s2522 + $0x50] sm:$0xff]
  %v2534 = vld [vmem:[%s2522 + $0x58] sm:$0xff]
  %v2535 = vld [vmem:[%s2522 + $0x60] sm:$0xff]
  %v2536 = vld [vmem:[%s2522 + $0x68] sm:$0xff]
  %v2537 = vld [vmem:[%s2522 + $0x70] sm:$0xff]
  %v2538 = vld [vmem:[%s2522 + $0x78] sm:$0xff]
  %s2539 = scalar_lea.vmem %s10, 1
  %v2540 = vld [vmem:[%s2539] sm:$0x1]
  %v2542 = vlaneseq
  %v2543 = vshrl.u32 %v2542, 7
  %v2544 = vsub.s32 0, %v2543
  %v2545 = vrot.slane %v2540, %v2544
  %2547 = vmatprep.subr.mxu0 0.0
  %2548 = vmatpush1.msra.mxu0 %v2523
  %2549 = vmatprep.subr.mxu0 0.0
  %2550 = vmatpush1.msra.mxu0 %v2524
  %2551 = vmatprep.subr.mxu0 0.0
  %2552 = vmatpush1.msra.mxu0 %v2525
  %2553 = vmatprep.subr.mxu0 0.0
  %2554 = vmatpush1.msra.mxu0 %v2526
  %2555 = vmatprep.subr.mxu0 0.0
  %2556 = vmatpush1.msra.mxu0 %v2527
  %2557 = vmatprep.subr.mxu0 0.0
  %2558 = vmatpush1.msra.mxu0 %v2528
  %2559 = vmatprep.subr.mxu0 0.0
  %2560 = vmatpush1.msra.mxu0 %v2529
  %2561 = vmatprep.subr.mxu0 0.0
  %2562 = vmatpush1.msra.mxu0 %v2530
  %2563 = vmatprep.subr.mxu0 0.0
  %2564 = vmatpush1.msra.mxu0 %v2531
  %2565 = vmatprep.subr.mxu0 0.0
  %2566 = vmatpush1.msra.mxu0 %v2532
  %2567 = vmatprep.subr.mxu0 0.0
  %2568 = vmatpush1.msra.mxu0 %v2533
  %2569 = vmatprep.subr.mxu0 0.0
  %2570 = vmatpush1.msra.mxu0 %v2534
  %2571 = vmatprep.subr.mxu0 0.0
  %2572 = vmatpush1.msra.mxu0 %v2535
  %2573 = vmatprep.subr.mxu0 0.0
  %2574 = vmatpush1.msra.mxu0 %v2536
  %2575 = vmatprep.subr.mxu0 0.0
  %2576 = vmatpush1.msra.mxu0 %v2537
  %2577 = vmatprep.subr.mxu0 0.0
  %2578 = vmatpush1.msra.mxu0 %v2538
  %2579 = vmatprep.subr.mxu0 0.0
  %2580 = vmatpush1.msra.mxu0 0.0
  %2581 = vmatprep.subr.mxu0 0.0
  %2582 = vmatpush1.msra.mxu0 0.0
  %2583 = vmatprep.subr.mxu0 0.0
  %2584 = vmatpush1.msra.mxu0 0.0
  %2585 = vmatprep.subr.mxu0 0.0
  %2586 = vmatpush1.msra.mxu0 0.0
  %2587 = vmatprep.subr.mxu0 0.0
  %2588 = vmatpush1.msra.mxu0 0.0
  %2589 = vmatprep.subr.mxu0 0.0
  %2590 = vmatpush1.msra.mxu0 0.0
  %2591 = vmatprep.subr.mxu0 0.0
  %2592 = vmatpush1.msra.mxu0 0.0
  %2593 = vmatprep.subr.mxu0 0.0
  %2594 = vmatpush1.msra.mxu0 0.0
  %2595 = vmatprep.subr.mxu0 0.0
  %2596 = vmatpush1.msra.mxu0 0.0
  %2597 = vmatprep.subr.mxu0 0.0
  %2598 = vmatpush1.msra.mxu0 0.0
  %2599 = vmatprep.subr.mxu0 0.0
  %2600 = vmatpush1.msra.mxu0 0.0
  %2601 = vmatprep.subr.mxu0 0.0
  %2602 = vmatpush1.msra.mxu0 0.0
  %2603 = vmatprep.subr.mxu0 0.0
  %2604 = vmatpush1.msra.mxu0 0.0
  %2605 = vmatprep.subr.mxu0 0.0
  %2606 = vmatpush1.msra.mxu0 0.0
  %2607 = vmatprep.subr.mxu0 0.0
  %2608 = vmatpush1.msra.mxu0 0.0
  %2609 = vmatprep.subr.mxu0 0.0
  %2610 = vmatpush1.msra.mxu0 0.0
  %2611 = vmatprep.mubr.f32.mxu0 0.0
  %2612 = vmatmul.mubr.f32.gmra.mrb[0].mxu0 %v2520
  %v2613 = vpop.f32.mrb[0].mxu0
  %v2614 = vadd.f32 %v2545, %v2613
  %v2615 = vpop.f32.mrb[0].mxu0
  %2616 = vmatprep.mubr.f32.mxu0 0.0
  %2617 = vmatmul.mubr.f32.gmra.mrb[0].mxu0 %v2521
  %v2618 = vpop.f32.mrb[0].mxu0
  %v2619 = vadd.f32 %v2545, %v2618
  %v2620 = vpop.f32.mrb[0].mxu0
  %2621 = vdwg.mxu0
  %v2622 = vadd.f32 %v1569, %v2614
  %v2623 = vadd.f32 %v1570, %v2619
  %s2624 = scalar_lea.vmem %s11, 1
  %v2625 = vld [vmem:[%s2624] sm:$0x1]
  %s2626 = scalar_lea.vmem %s12, 1
  %v2627 = vld [vmem:[%s2626] sm:$0x1]
  %2628 = vadd.xlane.f32.xlu0 %v2622
  %v2629 = vpop.xlane.xlu0 %2628
  %2630 = vadd.xlane.f32.xlu0 %v2623
  %v2631 = vpop.xlane.xlu0 %2630
  %v2632 = vmul.f32 %v2629, %v1296
  %v2633 = vmul.f32 %v2631, %v1296
  %v2634 = vsub.f32 %v2622, %v2632
  %v2635 = vsub.f32 %v2623, %v2633
  %v2636 = vmul.f32 %v2634, %v2634
  %v2637 = vmul.f32 %v2635, %v2635
  %2638 = vadd.xlane.f32.xlu0 %v2636
  %v2639 = vpop.xlane.xlu0 %2638
  %2640 = vadd.xlane.f32.xlu0 %v2637
  %v2641 = vpop.xlane.xlu0 %2640
  %v2642 = vmul.f32 %v2639, %v1296
  %v2643 = vmul.f32 %v2641, %v1296
  %v2644 = vadd.f32 %v2642, 1e-05
  %v2645 = vadd.f32 %v2643, 1e-05
  %v2646 = vrsqrt.pop %v2644
  %v2647 = vrsqrt.pop %v2645
  %v2648 = vmul.f32 %v2634, %v2646
  %v2649 = vmul.f32 %v2635, %v2647
  %v2651 = vlaneseq
  %v2652 = vshrl.u32 %v2651, 7
  %v2653 = vsub.s32 0, %v2652
  %v2654 = vrot.slane %v2625, %v2653
  %v2656 = vmul.f32 %v2648, %v2654
  %v2657 = vmul.f32 %v2649, %v2654
  %v2659 = vlaneseq
  %v2660 = vshrl.u32 %v2659, 7
  %v2661 = vsub.s32 0, %v2660
  %v2662 = vrot.slane %v2627, %v2661
  %v2664 = vadd.f32 %v2656, %v2662
  %v2665 = vadd.f32 %v2657, %v2662
  %s2666 = scalar_lea.vmem %s13, 128
  %v2667 = vld [vmem:[%s2666] sm:$0xff]
  %v2668 = vld [vmem:[%s2666 + $0x8] sm:$0xff]
  %v2669 = vld [vmem:[%s2666 + $0x10] sm:$0xff]
  %v2670 = vld [vmem:[%s2666 + $0x18] sm:$0xff]
  %v2671 = vld [vmem:[%s2666 + $0x20] sm:$0xff]
  %v2672 = vld [vmem:[%s2666 + $0x28] sm:$0xff]
  %v2673 = vld [vmem:[%s2666 + $0x30] sm:$0xff]
  %v2674 = vld [vmem:[%s2666 + $0x38] sm:$0xff]
  %v2675 = vld [vmem:[%s2666 + $0x40] sm:$0xff]
  %v2676 = vld [vmem:[%s2666 + $0x48] sm:$0xff]
  %v2677 = vld [vmem:[%s2666 + $0x50] sm:$0xff]
  %v2678 = vld [vmem:[%s2666 + $0x58] sm:$0xff]
  %v2679 = vld [vmem:[%s2666 + $0x60] sm:$0xff]
  %v2680 = vld [vmem:[%s2666 + $0x68] sm:$0xff]
  %v2681 = vld [vmem:[%s2666 + $0x70] sm:$0xff]
  %v2682 = vld [vmem:[%s2666 + $0x78] sm:$0xff]
  %s2683 = scalar_lea.vmem %s14, 1
  %v2684 = vld [vmem:[%s2683] sm:$0x1]
  %v2686 = vlaneseq
  %v2687 = vshrl.u32 %v2686, 7
  %v2688 = vsub.s32 0, %v2687
  %v2689 = vrot.slane %v2684, %v2688
  %2691 = vmatprep.subr.mxu0 0.0
  %2692 = vmatpush1.msra.mxu0 %v2667
  %2693 = vmatprep.subr.mxu0 0.0
  %2694 = vmatpush1.msra.mxu0 %v2668
  %2695 = vmatprep.subr.mxu0 0.0
  %2696 = vmatpush1.msra.mxu0 %v2669
  %2697 = vmatprep.subr.mxu0 0.0
  %2698 = vmatpush1.msra.mxu0 %v2670
  %2699 = vmatprep.subr.mxu0 0.0
  %2700 = vmatpush1.msra.mxu0 %v2671
  %2701 = vmatprep.subr.mxu0 0.0
  %2702 = vmatpush1.msra.mxu0 %v2672
  %2703 = vmatprep.subr.mxu0 0.0
  %2704 = vmatpush1.msra.mxu0 %v2673
  %2705 = vmatprep.subr.mxu0 0.0
  %2706 = vmatpush1.msra.mxu0 %v2674
  %2707 = vmatprep.subr.mxu0 0.0
  %2708 = vmatpush1.msra.mxu0 %v2675
  %2709 = vmatprep.subr.mxu0 0.0
  %2710 = vmatpush1.msra.mxu0 %v2676
  %2711 = vmatprep.subr.mxu0 0.0
  %2712 = vmatpush1.msra.mxu0 %v2677
  %2713 = vmatprep.subr.mxu0 0.0
  %2714 = vmatpush1.msra.mxu0 %v2678
  %2715 = vmatprep.subr.mxu0 0.0
  %2716 = vmatpush1.msra.mxu0 %v2679
  %2717 = vmatprep.subr.mxu0 0.0
  %2718 = vmatpush1.msra.mxu0 %v2680
  %2719 = vmatprep.subr.mxu0 0.0
  %2720 = vmatpush1.msra.mxu0 %v2681
  %2721 = vmatprep.subr.mxu0 0.0
  %2722 = vmatpush1.msra.mxu0 %v2682
  %2723 = vmatprep.subr.mxu0 0.0
  %2724 = vmatpush1.msra.mxu0 0.0
  %2725 = vmatprep.subr.mxu0 0.0
  %2726 = vmatpush1.msra.mxu0 0.0
  %2727 = vmatprep.subr.mxu0 0.0
  %2728 = vmatpush1.msra.mxu0 0.0
  %2729 = vmatprep.subr.mxu0 0.0
  %2730 = vmatpush1.msra.mxu0 0.0
  %2731 = vmatprep.subr.mxu0 0.0
  %2732 = vmatpush1.msra.mxu0 0.0
  %2733 = vmatprep.subr.mxu0 0.0
  %2734 = vmatpush1.msra.mxu0 0.0
  %2735 = vmatprep.subr.mxu0 0.0
  %2736 = vmatpush1.msra.mxu0 0.0
  %2737 = vmatprep.subr.mxu0 0.0
  %2738 = vmatpush1.msra.mxu0 0.0
  %2739 = vmatprep.subr.mxu0 0.0
  %2740 = vmatpush1.msra.mxu0 0.0
  %2741 = vmatprep.subr.mxu0 0.0
  %2742 = vmatpush1.msra.mxu0 0.0
  %2743 = vmatprep.subr.mxu0 0.0
  %2744 = vmatpush1.msra.mxu0 0.0
  %2745 = vmatprep.subr.mxu0 0.0
  %2746 = vmatpush1.msra.mxu0 0.0
  %2747 = vmatprep.subr.mxu0 0.0
  %2748 = vmatpush1.msra.mxu0 0.0
  %2749 = vmatprep.subr.mxu0 0.0
  %2750 = vmatpush1.msra.mxu0 0.0
  %2751 = vmatprep.subr.mxu0 0.0
  %2752 = vmatpush1.msra.mxu0 0.0
  %2753 = vmatprep.subr.mxu0 0.0
  %2754 = vmatpush1.msra.mxu0 0.0
  %2755 = vmatprep.mubr.f32.mxu0 0.0
  %2756 = vmatmul.mubr.f32.gmra.mrb[0].mxu0 %v2664
  %v2757 = vpop.f32.mrb[0].mxu0
  %v2758 = vadd.f32 %v2689, %v2757
  %v2759 = vpop.f32.mrb[0].mxu0
  %2760 = vmatprep.mubr.f32.mxu0 0.0
  %2761 = vmatmul.mubr.f32.gmra.mrb[0].mxu0 %v2665
  %v2762 = vpop.f32.mrb[0].mxu0
  %v2763 = vadd.f32 %v2689, %v2762
  %v2764 = vpop.f32.mrb[0].mxu0
  %2765 = vdwg.mxu0
  %v2766 = vmax.f32 %v2758, 0.0
  %v2767 = vmax.f32 %v2763, 0.0
  %s2768 = scalar_lea.vmem %s15, 128
  %v2769 = vld [vmem:[%s2768] sm:$0xff]
  %v2770 = vld [vmem:[%s2768 + $0x8] sm:$0xff]
  %v2771 = vld [vmem:[%s2768 + $0x10] sm:$0xff]
  %v2772 = vld [vmem:[%s2768 + $0x18] sm:$0xff]
  %v2773 = vld [vmem:[%s2768 + $0x20] sm:$0xff]
  %v2774 = vld [vmem:[%s2768 + $0x28] sm:$0xff]
  %v2775 = vld [vmem:[%s2768 + $0x30] sm:$0xff]
  %v2776 = vld [vmem:[%s2768 + $0x38] sm:$0xff]
  %v2777 = vld [vmem:[%s2768 + $0x40] sm:$0xff]
  %v2778 = vld [vmem:[%s2768 + $0x48] sm:$0xff]
  %v2779 = vld [vmem:[%s2768 + $0x50] sm:$0xff]
  %v2780 = vld [vmem:[%s2768 + $0x58] sm:$0xff]
  %v2781 = vld [vmem:[%s2768 + $0x60] sm:$0xff]
  %v2782 = vld [vmem:[%s2768 + $0x68] sm:$0xff]
  %v2783 = vld [vmem:[%s2768 + $0x70] sm:$0xff]
  %v2784 = vld [vmem:[%s2768 + $0x78] sm:$0xff]
  %s2785 = scalar_lea.vmem %s16, 1
  %v2786 = vld [vmem:[%s2785] sm:$0x1]
  %v2788 = vlaneseq
  %v2789 = vshrl.u32 %v2788, 7
  %v2790 = vsub.s32 0, %v2789
  %v2791 = vrot.slane %v2786, %v2790
  %2793 = vmatprep.subr.mxu0 0.0
  %2794 = vmatpush1.msra.mxu0 %v2769
  %2795 = vmatprep.subr.mxu0 0.0
  %2796 = vmatpush1.msra.mxu0 %v2770
  %2797 = vmatprep.subr.mxu0 0.0
  %2798 = vmatpush1.msra.mxu0 %v2771
  %2799 = vmatprep.subr.mxu0 0.0
  %2800 = vmatpush1.msra.mxu0 %v2772
  %2801 = vmatprep.subr.mxu0 0.0
  %2802 = vmatpush1.msra.mxu0 %v2773
  %2803 = vmatprep.subr.mxu0 0.0
  %2804 = vmatpush1.msra.mxu0 %v2774
  %2805 = vmatprep.subr.mxu0 0.0
  %2806 = vmatpush1.msra.mxu0 %v2775
  %2807 = vmatprep.subr.mxu0 0.0
  %2808 = vmatpush1.msra.mxu0 %v2776
  %2809 = vmatprep.subr.mxu0 0.0
  %2810 = vmatpush1.msra.mxu0 %v2777
  %2811 = vmatprep.subr.mxu0 0.0
  %2812 = vmatpush1.msra.mxu0 %v2778
  %2813 = vmatprep.subr.mxu0 0.0
  %2814 = vmatpush1.msra.mxu0 %v2779
  %2815 = vmatprep.subr.mxu0 0.0
  %2816 = vmatpush1.msra.mxu0 %v2780
  %2817 = vmatprep.subr.mxu0 0.0
  %2818 = vmatpush1.msra.mxu0 %v2781
  %2819 = vmatprep.subr.mxu0 0.0
  %2820 = vmatpush1.msra.mxu0 %v2782
  %2821 = vmatprep.subr.mxu0 0.0
  %2822 = vmatpush1.msra.mxu0 %v2783
  %2823 = vmatprep.subr.mxu0 0.0
  %2824 = vmatpush1.msra.mxu0 %v2784
  %2825 = vmatprep.subr.mxu0 0.0
  %2826 = vmatpush1.msra.mxu0 0.0
  %2827 = vmatprep.subr.mxu0 0.0
  %2828 = vmatpush1.msra.mxu0 0.0
  %2829 = vmatprep.subr.mxu0 0.0
  %2830 = vmatpush1.msra.mxu0 0.0
  %2831 = vmatprep.subr.mxu0 0.0
  %2832 = vmatpush1.msra.mxu0 0.0
  %2833 = vmatprep.subr.mxu0 0.0
  %2834 = vmatpush1.msra.mxu0 0.0
  %2835 = vmatprep.subr.mxu0 0.0
  %2836 = vmatpush1.msra.mxu0 0.0
  %2837 = vmatprep.subr.mxu0 0.0
  %2838 = vmatpush1.msra.mxu0 0.0
  %2839 = vmatprep.subr.mxu0 0.0
  %2840 = vmatpush1.msra.mxu0 0.0
  %2841 = vmatprep.subr.mxu0 0.0
  %2842 = vmatpush1.msra.mxu0 0.0
  %2843 = vmatprep.subr.mxu0 0.0
  %2844 = vmatpush1.msra.mxu0 0.0
  %2845 = vmatprep.subr.mxu0 0.0
  %2846 = vmatpush1.msra.mxu0 0.0
  %2847 = vmatprep.subr.mxu0 0.0
  %2848 = vmatpush1.msra.mxu0 0.0
  %2849 = vmatprep.subr.mxu0 0.0
  %2850 = vmatpush1.msra.mxu0 0.0
  %2851 = vmatprep.subr.mxu0 0.0
  %2852 = vmatpush1.msra.mxu0 0.0
  %2853 = vmatprep.subr.mxu0 0.0
  %2854 = vmatpush1.msra.mxu0 0.0
  %2855 = vmatprep.subr.mxu0 0.0
  %2856 = vmatpush1.msra.mxu0 0.0
  %2857 = vmatprep.mubr.f32.mxu0 0.0
  %2858 = vmatmul.mubr.f32.gmra.mrb[0].mxu0 %v2766
  %v2859 = vpop.f32.mrb[0].mxu0
  %v2860 = vadd.f32 %v2791, %v2859
  %v2861 = vpop.f32.mrb[0].mxu0
  %2862 = vmatprep.mubr.f32.mxu0 0.0
  %2863 = vmatmul.mubr.f32.gmra.mrb[0].mxu0 %v2767
  %v2864 = vpop.f32.mrb[0].mxu0
  %v2865 = vadd.f32 %v2791, %v2864
  %v2866 = vpop.f32.mrb[0].mxu0
  %2867 = vdwg.mxu0
  %v2868 = vadd.f32 %v2664, %v2860
  %v2869 = vadd.f32 %v2665, %v2865
  %s2870 = scalar_lea.vmem %s17, 1
  %v2871 = vld [vmem:[%s2870] sm:$0x1]
  %s2872 = scalar_lea.vmem %s18, 1
  %v2873 = vld [vmem:[%s2872] sm:$0x1]
  %2874 = vadd.xlane.f32.xlu0 %v2868
  %v2875 = vpop.xlane.xlu0 %2874
  %2876 = vadd.xlane.f32.xlu0 %v2869
  %v2877 = vpop.xlane.xlu0 %2876
  %v2878 = vmul.f32 %v2875, %v1296
  %v2879 = vmul.f32 %v2877, %v1296
  %v2880 = vsub.f32 %v2868, %v2878
  %v2881 = vsub.f32 %v2869, %v2879
  %v2882 = vmul.f32 %v2880, %v2880
  %v2883 = vmul.f32 %v2881, %v2881
  %2884 = vadd.xlane.f32.xlu0 %v2882
  %v2885 = vpop.xlane.xlu0 %2884
  %2886 = vadd.xlane.f32.xlu0 %v2883
  %v2887 = vpop.xlane.xlu0 %2886
  %v2888 = vmul.f32 %v2885, %v1296
  %v2889 = vmul.f32 %v2887, %v1296
  %v2890 = vadd.f32 %v2888, 1e-05
  %v2891 = vadd.f32 %v2889, 1e-05
  %v2892 = vrsqrt.pop %v2890
  %v2893 = vrsqrt.pop %v2891
  %v2894 = vmul.f32 %v2880, %v2892
  %v2895 = vmul.f32 %v2881, %v2893
  %v2897 = vlaneseq
  %v2898 = vshrl.u32 %v2897, 7
  %v2899 = vsub.s32 0, %v2898
  %v2900 = vrot.slane %v2871, %v2899
  %v2902 = vmul.f32 %v2894, %v2900
  %v2903 = vmul.f32 %v2895, %v2900
  %v2905 = vlaneseq
  %v2906 = vshrl.u32 %v2905, 7
  %v2907 = vsub.s32 0, %v2906
  %v2908 = vrot.slane %v2873, %v2907
  %v2910 = vadd.f32 %v2902, %v2908
  %v2911 = vadd.f32 %v2903, %v2908
  %s2912 = scalar_lea.vmem %s7, 768
  %v2913 = vld [vmem:[%s2912] sm:$0xff]
  %v2914 = vld [vmem:[%s2912 + $0x8] sm:$0xff]
  %v2915 = vld [vmem:[%s2912 + $0x10] sm:$0xff]
  %v2916 = vld [vmem:[%s2912 + $0x18] sm:$0xff]
  %v2917 = vld [vmem:[%s2912 + $0x20] sm:$0xff]
  %v2918 = vld [vmem:[%s2912 + $0x28] sm:$0xff]
  %v2919 = vld [vmem:[%s2912 + $0x30] sm:$0xff]
  %v2920 = vld [vmem:[%s2912 + $0x38] sm:$0xff]
  %v2921 = vld [vmem:[%s2912 + $0x40] sm:$0xff]
  %v2922 = vld [vmem:[%s2912 + $0x48] sm:$0xff]
  %v2923 = vld [vmem:[%s2912 + $0x50] sm:$0xff]
  %v2924 = vld [vmem:[%s2912 + $0x58] sm:$0xff]
  %v2925 = vld [vmem:[%s2912 + $0x60] sm:$0xff]
  %v2926 = vld [vmem:[%s2912 + $0x68] sm:$0xff]
  %v2927 = vld [vmem:[%s2912 + $0x70] sm:$0xff]
  %v2928 = vld [vmem:[%s2912 + $0x78] sm:$0xff]
  %v2929 = vld [vmem:[%s2912 + $0x80] sm:$0xff]
  %v2930 = vld [vmem:[%s2912 + $0x88] sm:$0xff]
  %v2931 = vld [vmem:[%s2912 + $0x90] sm:$0xff]
  %v2932 = vld [vmem:[%s2912 + $0x98] sm:$0xff]
  %v2933 = vld [vmem:[%s2912 + $0xa0] sm:$0xff]
  %v2934 = vld [vmem:[%s2912 + $0xa8] sm:$0xff]
  %v2935 = vld [vmem:[%s2912 + $0xb0] sm:$0xff]
  %v2936 = vld [vmem:[%s2912 + $0xb8] sm:$0xff]
  %v2937 = vld [vmem:[%s2912 + $0xc0] sm:$0xff]
  %v2938 = vld [vmem:[%s2912 + $0xc8] sm:$0xff]
  %v2939 = vld [vmem:[%s2912 + $0xd0] sm:$0xff]
  %v2940 = vld [vmem:[%s2912 + $0xd8] sm:$0xff]
  %v2941 = vld [vmem:[%s2912 + $0xe0] sm:$0xff]
  %v2942 = vld [vmem:[%s2912 + $0xe8] sm:$0xff]
  %v2943 = vld [vmem:[%s2912 + $0xf0] sm:$0xff]
  %v2944 = vld [vmem:[%s2912 + $0xf8] sm:$0xff]
  %v2945 = vld [vmem:[%s2912 + $0x100] sm:$0xff]
  %v2946 = vld [vmem:[%s2912 + $0x108] sm:$0xff]
  %v2947 = vld [vmem:[%s2912 + $0x110] sm:$0xff]
  %v2948 = vld [vmem:[%s2912 + $0x118] sm:$0xff]
  %v2949 = vld [vmem:[%s2912 + $0x120] sm:$0xff]
  %v2950 = vld [vmem:[%s2912 + $0x128] sm:$0xff]
  %v2951 = vld [vmem:[%s2912 + $0x130] sm:$0xff]
  %v2952 = vld [vmem:[%s2912 + $0x138] sm:$0xff]
  %v2953 = vld [vmem:[%s2912 + $0x140] sm:$0xff]
  %v2954 = vld [vmem:[%s2912 + $0x148] sm:$0xff]
  %v2955 = vld [vmem:[%s2912 + $0x150] sm:$0xff]
  %v2956 = vld [vmem:[%s2912 + $0x158] sm:$0xff]
  %v2957 = vld [vmem:[%s2912 + $0x160] sm:$0xff]
  %v2958 = vld [vmem:[%s2912 + $0x168] sm:$0xff]
  %v2959 = vld [vmem:[%s2912 + $0x170] sm:$0xff]
  %v2960 = vld [vmem:[%s2912 + $0x178] sm:$0xff]
  %s2961 = scalar_lea.vmem %s8, 6
  %v2962 = vld [vmem:[%s2961] sm:$0x7]
  %v2964 = vlaneseq
  %v2965 = vshrl.u32 %v2964, 7
  %v2966 = vsub.s32 0, %v2965
  %v2967 = vrot.slane %v2962, %v2966
  %v2968 = vlaneseq
  %v2969 = vshrl.u32 %v2968, 7
  %v2970 = vsub.s32 1, %v2969
  %v2971 = vrot.slane %v2962, %v2970
  %v2972 = vlaneseq
  %v2973 = vshrl.u32 %v2972, 7
  %v2974 = vsub.s32 2, %v2973
  %v2975 = vrot.slane %v2962, %v2974
  %2979 = vmatprep.subr.mxu0 %v2914
  %2980 = vmatpush1.msra.mxu0 %v2913
  %2981 = vmatprep.subr.mxu0 %v2917
  %2982 = vmatpush1.msra.mxu0 %v2916
  %2983 = vmatprep.subr.mxu0 %v2920
  %2984 = vmatpush1.msra.mxu0 %v2919
  %2985 = vmatprep.subr.mxu0 %v2923
  %2986 = vmatpush1.msra.mxu0 %v2922
  %2987 = vmatprep.subr.mxu0 %v2926
  %2988 = vmatpush1.msra.mxu0 %v2925
  %2989 = vmatprep.subr.mxu0 %v2929
  %2990 = vmatpush1.msra.mxu0 %v2928
  %2991 = vmatprep.subr.mxu0 %v2932
  %2992 = vmatpush1.msra.mxu0 %v2931
  %2993 = vmatprep.subr.mxu0 %v2935
  %2994 = vmatpush1.msra.mxu0 %v2934
  %2995 = vmatprep.subr.mxu0 %v2938
  %2996 = vmatpush1.msra.mxu0 %v2937
  %2997 = vmatprep.subr.mxu0 %v2941
  %2998 = vmatpush1.msra.mxu0 %v2940
  %2999 = vmatprep.subr.mxu0 %v2944
  %3000 = vmatpush1.msra.mxu0 %v2943
  %3001 = vmatprep.subr.mxu0 %v2947
  %3002 = vmatpush1.msra.mxu0 %v2946
  %3003 = vmatprep.subr.mxu0 %v2950
  %3004 = vmatpush1.msra.mxu0 %v2949
  %3005 = vmatprep.subr.mxu0 %v2953
  %3006 = vmatpush1.msra.mxu0 %v2952
  %3007 = vmatprep.subr.mxu0 %v2956
  %3008 = vmatpush1.msra.mxu0 %v2955
  %3009 = vmatprep.subr.mxu0 %v2959
  %3010 = vmatpush1.msra.mxu0 %v2958
  %3011 = vmatprep.subr.mxu0 0.0
  %3012 = vmatpush1.msra.mxu0 0.0
  %3013 = vmatprep.subr.mxu0 0.0
  %3014 = vmatpush1.msra.mxu0 0.0
  %3015 = vmatprep.subr.mxu0 0.0
  %3016 = vmatpush1.msra.mxu0 0.0
  %3017 = vmatprep.subr.mxu0 0.0
  %3018 = vmatpush1.msra.mxu0 0.0
  %3019 = vmatprep.subr.mxu0 0.0
  %3020 = vmatpush1.msra.mxu0 0.0
  %3021 = vmatprep.subr.mxu0 0.0
  %3022 = vmatpush1.msra.mxu0 0.0
  %3023 = vmatprep.subr.mxu0 0.0
  %3024 = vmatpush1.msra.mxu0 0.0
  %3025 = vmatprep.subr.mxu0 0.0
  %3026 = vmatpush1.msra.mxu0 0.0
  %3027 = vmatprep.subr.mxu0 0.0
  %3028 = vmatpush1.msra.mxu0 0.0
  %3029 = vmatprep.subr.mxu0 0.0
  %3030 = vmatpush1.msra.mxu0 0.0
  %3031 = vmatprep.subr.mxu0 0.0
  %3032 = vmatpush1.msra.mxu0 0.0
  %3033 = vmatprep.subr.mxu0 0.0
  %3034 = vmatpush1.msra.mxu0 0.0
  %3035 = vmatprep.subr.mxu0 0.0
  %3036 = vmatpush1.msra.mxu0 0.0
  %3037 = vmatprep.subr.mxu0 0.0
  %3038 = vmatpush1.msra.mxu0 0.0
  %3039 = vmatprep.subr.mxu0 0.0
  %3040 = vmatpush1.msra.mxu0 0.0
  %3041 = vmatprep.subr.mxu0 0.0
  %3042 = vmatpush1.msra.mxu0 0.0
  %3043 = vmatprep.mubr.f32.mxu0 0.0
  %3044 = vmatmul.mubr.f32.gmra.mrb[0].mxu0 %v2910
  %v3045 = vpop.f32.mrb[0].mxu0
  %v3046 = vadd.f32 %v2967, %v3045
  %v3047 = vpop.f32.mrb[0].mxu0
  %v3048 = vadd.f32 %v2971, %v3047
  %3049 = vmatprep.mubr.f32.mxu0 0.0
  %3050 = vmatmul.mubr.f32.gmra.mrb[0].mxu0 %v2911
  %v3051 = vpop.f32.mrb[0].mxu0
  %v3052 = vadd.f32 %v2967, %v3051
  %v3053 = vpop.f32.mrb[0].mxu0
  %v3054 = vadd.f32 %v2971, %v3053
  %3055 = vdwg.mxu0
  %3056 = vmatprep.subr.mxu0 0.0
  %3057 = vmatpush1.msra.mxu0 %v2915
  %3058 = vmatprep.subr.mxu0 0.0
  %3059 = vmatpush1.msra.mxu0 %v2918
  %3060 = vmatprep.subr.mxu0 0.0
  %3061 = vmatpush1.msra.mxu0 %v2921
  %3062 = vmatprep.subr.mxu0 0.0
  %3063 = vmatpush1.msra.mxu0 %v2924
  %3064 = vmatprep.subr.mxu0 0.0
  %3065 = vmatpush1.msra.mxu0 %v2927
  %3066 = vmatprep.subr.mxu0 0.0
  %3067 = vmatpush1.msra.mxu0 %v2930
  %3068 = vmatprep.subr.mxu0 0.0
  %3069 = vmatpush1.msra.mxu0 %v2933
  %3070 = vmatprep.subr.mxu0 0.0
  %3071 = vmatpush1.msra.mxu0 %v2936
  %3072 = vmatprep.subr.mxu0 0.0
  %3073 = vmatpush1.msra.mxu0 %v2939
  %3074 = vmatprep.subr.mxu0 0.0
  %3075 = vmatpush1.msra.mxu0 %v2942
  %3076 = vmatprep.subr.mxu0 0.0
  %3077 = vmatpush1.msra.mxu0 %v2945
  %3078 = vmatprep.subr.mxu0 0.0
  %3079 = vmatpush1.msra.mxu0 %v2948
  %3080 = vmatprep.subr.mxu0 0.0
  %3081 = vmatpush1.msra.mxu0 %v2951
  %3082 = vmatprep.subr.mxu0 0.0
  %3083 = vmatpush1.msra.mxu0 %v2954
  %3084 = vmatprep.subr.mxu0 0.0
  %3085 = vmatpush1.msra.mxu0 %v2957
  %3086 = vmatprep.subr.mxu0 0.0
  %3087 = vmatpush1.msra.mxu0 %v2960
  %3088 = vmatprep.subr.mxu0 0.0
  %3089 = vmatpush1.msra.mxu0 0.0
  %3090 = vmatprep.subr.mxu0 0.0
  %3091 = vmatpush1.msra.mxu0 0.0
  %3092 = vmatprep.subr.mxu0 0.0
  %3093 = vmatpush1.msra.mxu0 0.0
  %3094 = vmatprep.subr.mxu0 0.0
  %3095 = vmatpush1.msra.mxu0 0.0
  %3096 = vmatprep.subr.mxu0 0.0
  %3097 = vmatpush1.msra.mxu0 0.0
  %3098 = vmatprep.subr.mxu0 0.0
  %3099 = vmatpush1.msra.mxu0 0.0
  %3100 = vmatprep.subr.mxu0 0.0
  %3101 = vmatpush1.msra.mxu0 0.0
  %3102 = vmatprep.subr.mxu0 0.0
  %3103 = vmatpush1.msra.mxu0 0.0
  %3104 = vmatprep.subr.mxu0 0.0
  %3105 = vmatpush1.msra.mxu0 0.0
  %3106 = vmatprep.subr.mxu0 0.0
  %3107 = vmatpush1.msra.mxu0 0.0
  %3108 = vmatprep.subr.mxu0 0.0
  %3109 = vmatpush1.msra.mxu0 0.0
  %3110 = vmatprep.subr.mxu0 0.0
  %3111 = vmatpush1.msra.mxu0 0.0
  %3112 = vmatprep.subr.mxu0 0.0
  %3113 = vmatpush1.msra.mxu0 0.0
  %3114 = vmatprep.subr.mxu0 0.0
  %3115 = vmatpush1.msra.mxu0 0.0
  %3116 = vmatprep.subr.mxu0 0.0
  %3117 = vmatpush1.msra.mxu0 0.0
  %3118 = vmatprep.subr.mxu0 0.0
  %3119 = vmatpush1.msra.mxu0 0.0
  %3120 = vmatprep.mubr.f32.mxu0 0.0
  %3121 = vmatmul.mubr.f32.gmra.mrb[0].mxu0 %v2910
  %v3122 = vpop.f32.mrb[0].mxu0
  %v3123 = vadd.f32 %v2975, %v3122
  %v3124 = vpop.f32.mrb[0].mxu0
  %3125 = vmatprep.mubr.f32.mxu0 0.0
  %3126 = vmatmul.mubr.f32.gmra.mrb[0].mxu0 %v2911
  %v3127 = vpop.f32.mrb[0].mxu0
  %v3128 = vadd.f32 %v2975, %v3127
  %v3129 = vpop.f32.mrb[0].mxu0
  %3130 = vdwg.mxu0
  %v3131 = vmul.f32 %v3046, %v442
  %v3132 = vmul.f32 %v3052, %v442
  %3133 = vmatprep.subr.mxu0 0.0
  %3134 = vmatpush1.xpose.msra.mxu0 %v3048
  %3135 = vmatprep.subr.mxu0 0.0
  %3136 = vmatpush1.xpose.msra.mxu0 %v3054
  %3137 = vmatprep.subr.mxu0 0.0
  %3138 = vmatpush1.xpose.msra.mxu0 0.0
  %3139 = vmatprep.subr.mxu0 0.0
  %3140 = vmatpush1.xpose.msra.mxu0 0.0
  %3141 = vmatprep.subr.mxu0 0.0
  %3142 = vmatpush1.xpose.msra.mxu0 0.0
  %3143 = vmatprep.subr.mxu0 0.0
  %3144 = vmatpush1.xpose.msra.mxu0 0.0
  %3145 = vmatprep.subr.mxu0 0.0
  %3146 = vmatpush1.xpose.msra.mxu0 0.0
  %3147 = vmatprep.subr.mxu0 0.0
  %3148 = vmatpush1.xpose.msra.mxu0 0.0
  %3149 = vmatprep.subr.mxu0 0.0
  %3150 = vmatpush1.xpose.msra.mxu0 0.0
  %3151 = vmatprep.subr.mxu0 0.0
  %3152 = vmatpush1.xpose.msra.mxu0 0.0
  %3153 = vmatprep.subr.mxu0 0.0
  %3154 = vmatpush1.xpose.msra.mxu0 0.0
  %3155 = vmatprep.subr.mxu0 0.0
  %3156 = vmatpush1.xpose.msra.mxu0 0.0
  %3157 = vmatprep.subr.mxu0 0.0
  %3158 = vmatpush1.xpose.msra.mxu0 0.0
  %3159 = vmatprep.subr.mxu0 0.0
  %3160 = vmatpush1.xpose.msra.mxu0 0.0
  %3161 = vmatprep.subr.mxu0 0.0
  %3162 = vmatpush1.xpose.msra.mxu0 0.0
  %3163 = vmatprep.subr.mxu0 0.0
  %3164 = vmatpush1.xpose.msra.mxu0 0.0
  %3165 = vmatprep.subr.mxu0 0.0
  %3166 = vmatpush1.xpose.msra.mxu0 0.0
  %3167 = vmatprep.subr.mxu0 0.0
  %3168 = vmatpush1.xpose.msra.mxu0 0.0
  %3169 = vmatprep.subr.mxu0 0.0
  %3170 = vmatpush1.xpose.msra.mxu0 0.0
  %3171 = vmatprep.subr.mxu0 0.0
  %3172 = vmatpush1.xpose.msra.mxu0 0.0
  %3173 = vmatprep.subr.mxu0 0.0
  %3174 = vmatpush1.xpose.msra.mxu0 0.0
  %3175 = vmatprep.subr.mxu0 0.0
  %3176 = vmatpush1.xpose.msra.mxu0 0.0
  %3177 = vmatprep.subr.mxu0 0.0
  %3178 = vmatpush1.xpose.msra.mxu0 0.0
  %3179 = vmatprep.subr.mxu0 0.0
  %3180 = vmatpush1.xpose.msra.mxu0 0.0
  %3181 = vmatprep.subr.mxu0 0.0
  %3182 = vmatpush1.xpose.msra.mxu0 0.0
  %3183 = vmatprep.subr.mxu0 0.0
  %3184 = vmatpush1.xpose.msra.mxu0 0.0
  %3185 = vmatprep.subr.mxu0 0.0
  %3186 = vmatpush1.xpose.msra.mxu0 0.0
  %3187 = vmatprep.subr.mxu0 0.0
  %3188 = vmatpush1.xpose.msra.mxu0 0.0
  %3189 = vmatprep.subr.mxu0 0.0
  %3190 = vmatpush1.xpose.msra.mxu0 0.0
  %3191 = vmatprep.subr.mxu0 0.0
  %3192 = vmatpush1.xpose.msra.mxu0 0.0
  %3193 = vmatprep.subr.mxu0 0.0
  %3194 = vmatpush1.xpose.msra.mxu0 0.0
  %3195 = vmatprep.subr.mxu0 0.0
  %3196 = vmatpush1.xpose.msra.mxu0 0.0
  %3197 = vmatprep.mubr.f32.mxu0 0.0
  %3198 = vmatmul.mubr.f32.gmra.mrb[0].mxu0 %v3131
  %v3199 = vpop.f32.mrb[0].mxu0
  %v3200 = vadd.f32 %v84, %v3199
  %v3201 = vpop.f32.mrb[0].mxu0
  %3202 = vmatprep.mubr.f32.mxu0 0.0
  %3203 = vmatmul.mubr.f32.gmra.mrb[0].mxu0 %v3132
  %v3204 = vpop.f32.mrb[0].mxu0
  %v3205 = vadd.f32 %v85, %v3204
  %v3206 = vpop.f32.mrb[0].mxu0
  %3207 = vdwg.mxu0
  %v3208 = vsel %vm88, %v3200, -inf
  %3209 = vmax.xlane.f32.xlu0 %v3208
  %v3210 = vpop.xlane.xlu0 %3209
  %v3211 = vsel %vm88, %v3205, -inf
  %3212 = vmax.xlane.f32.xlu0 %v3211
  %v3213 = vpop.xlane.xlu0 %3212
  %v3214 = vsub.f32 %v3200, %v3210
  %v3215 = vsub.f32 %v3205, %v3213
  %v3216 = vmul.f32 %v3214, 1.442695
  %v3217 = vpow.pop %v3216
  %v3218 = vmul.f32 %v3215, 1.442695
  %v3219 = vpow.pop %v3218
  %v3220 = vsel %vm88, %v3217, 0.0
  %3221 = vadd.xlane.f32.xlu0 %v3220
  %v3222 = vpop.xlane.xlu0 %3221
  %v3223 = vsel %vm88, %v3219, 0.0
  %3224 = vadd.xlane.f32.xlu0 %v3223
  %v3225 = vpop.xlane.xlu0 %3224
  %v3226 = vrcp.pop %v3222
  %v3227 = vrcp.pop %v3225
  %v3228 = vmul.f32 %v3217, %v3226
  %v3229 = vmul.f32 %v3219, %v3227
  %v3230 = vmul.f32 %v3123, %v442
  %v3231 = vmul.f32 %v3128, %v442
  %v3232 = vmul.f32 %v3046, %v548
  %v3233 = vmul.f32 %v3052, %v548
  %3234 = vmatprep.subr.mxu0 0.0
  %3235 = vmatpush1.xpose.msra.mxu0 %v3048
  %3236 = vmatprep.subr.mxu0 0.0
  %3237 = vmatpush1.xpose.msra.mxu0 %v3054
  %3238 = vmatprep.subr.mxu0 0.0
  %3239 = vmatpush1.xpose.msra.mxu0 0.0
  %3240 = vmatprep.subr.mxu0 0.0
  %3241 = vmatpush1.xpose.msra.mxu0 0.0
  %3242 = vmatprep.subr.mxu0 0.0
  %3243 = vmatpush1.xpose.msra.mxu0 0.0
  %3244 = vmatprep.subr.mxu0 0.0
  %3245 = vmatpush1.xpose.msra.mxu0 0.0
  %3246 = vmatprep.subr.mxu0 0.0
  %3247 = vmatpush1.xpose.msra.mxu0 0.0
  %3248 = vmatprep.subr.mxu0 0.0
  %3249 = vmatpush1.xpose.msra.mxu0 0.0
  %3250 = vmatprep.subr.mxu0 0.0
  %3251 = vmatpush1.xpose.msra.mxu0 0.0
  %3252 = vmatprep.subr.mxu0 0.0
  %3253 = vmatpush1.xpose.msra.mxu0 0.0
  %3254 = vmatprep.subr.mxu0 0.0
  %3255 = vmatpush1.xpose.msra.mxu0 0.0
  %3256 = vmatprep.subr.mxu0 0.0
  %3257 = vmatpush1.xpose.msra.mxu0 0.0
  %3258 = vmatprep.subr.mxu0 0.0
  %3259 = vmatpush1.xpose.msra.mxu0 0.0
  %3260 = vmatprep.subr.mxu0 0.0
  %3261 = vmatpush1.xpose.msra.mxu0 0.0
  %3262 = vmatprep.subr.mxu0 0.0
  %3263 = vmatpush1.xpose.msra.mxu0 0.0
  %3264 = vmatprep.subr.mxu0 0.0
  %3265 = vmatpush1.xpose.msra.mxu0 0.0
  %3266 = vmatprep.subr.mxu0 0.0
  %3267 = vmatpush1.xpose.msra.mxu0 0.0
  %3268 = vmatprep.subr.mxu0 0.0
  %3269 = vmatpush1.xpose.msra.mxu0 0.0
  %3270 = vmatprep.subr.mxu0 0.0
  %3271 = vmatpush1.xpose.msra.mxu0 0.0
  %3272 = vmatprep.subr.mxu0 0.0
  %3273 = vmatpush1.xpose.msra.mxu0 0.0
  %3274 = vmatprep.subr.mxu0 0.0
  %3275 = vmatpush1.xpose.msra.mxu0 0.0
  %3276 = vmatprep.subr.mxu0 0.0
  %3277 = vmatpush1.xpose.msra.mxu0 0.0
  %3278 = vmatprep.subr.mxu0 0.0
  %3279 = vmatpush1.xpose.msra.mxu0 0.0
  %3280 = vmatprep.subr.mxu0 0.0
  %3281 = vmatpush1.xpose.msra.mxu0 0.0
  %3282 = vmatprep.subr.mxu0 0.0
  %3283 = vmatpush1.xpose.msra.mxu0 0.0
  %3284 = vmatprep.subr.mxu0 0.0
  %3285 = vmatpush1.xpose.msra.mxu0 0.0
  %3286 = vmatprep.subr.mxu0 0.0
  %3287 = vmatpush1.xpose.msra.mxu0 0.0
  %3288 = vmatprep.subr.mxu0 0.0
  %3289 = vmatpush1.xpose.msra.mxu0 0.0
  %3290 = vmatprep.subr.mxu0 0.0
  %3291 = vmatpush1.xpose.msra.mxu0 0.0
  %3292 = vmatprep.subr.mxu0 0.0
  %3293 = vmatpush1.xpose.msra.mxu0 0.0
  %3294 = vmatprep.subr.mxu0 0.0
  %3295 = vmatpush1.xpose.msra.mxu0 0.0
  %3296 = vmatprep.subr.mxu0 0.0
  %3297 = vmatpush1.xpose.msra.mxu0 0.0
  %3298 = vmatprep.mubr.f32.mxu0 0.0
  %3299 = vmatmul.mubr.f32.gmra.mrb[0].mxu0 %v3232
  %v3300 = vpop.f32.mrb[0].mxu0
  %v3301 = vadd.f32 %v84, %v3300
  %v3302 = vpop.f32.mrb[0].mxu0
  %3303 = vmatprep.mubr.f32.mxu0 0.0
  %3304 = vmatmul.mubr.f32.gmra.mrb[0].mxu0 %v3233
  %v3305 = vpop.f32.mrb[0].mxu0
  %v3306 = vadd.f32 %v85, %v3305
  %v3307 = vpop.f32.mrb[0].mxu0
  %3308 = vdwg.mxu0
  %v3309 = vsel %vm88, %v3301, -inf
  %3310 = vmax.xlane.f32.xlu0 %v3309
  %v3311 = vpop.xlane.xlu0 %3310
  %v3312 = vsel %vm88, %v3306, -inf
  %3313 = vmax.xlane.f32.xlu0 %v3312
  %v3314 = vpop.xlane.xlu0 %3313
  %v3315 = vsub.f32 %v3301, %v3311
  %v3316 = vsub.f32 %v3306, %v3314
  %v3317 = vmul.f32 %v3315, 1.442695
  %v3318 = vpow.pop %v3317
  %v3319 = vmul.f32 %v3316, 1.442695
  %v3320 = vpow.pop %v3319
  %v3321 = vsel %vm88, %v3318, 0.0
  %3322 = vadd.xlane.f32.xlu0 %v3321
  %v3323 = vpop.xlane.xlu0 %3322
  %v3324 = vsel %vm88, %v3320, 0.0
  %3325 = vadd.xlane.f32.xlu0 %v3324
  %v3326 = vpop.xlane.xlu0 %3325
  %v3327 = vrcp.pop %v3323
  %v3328 = vrcp.pop %v3326
  %v3329 = vmul.f32 %v3318, %v3327
  %v3330 = vmul.f32 %v3320, %v3328
  %v3331 = vmul.f32 %v3123, %v548
  %v3332 = vmul.f32 %v3128, %v548
  %v3334 = vsel %vm88, %v3329, 0
  %v3337 = vsel %vm88, %v3330, 0
  %3339 = vmatprep.subr.mxu0 0.0
  %3340 = vmatpush1.msra.mxu0 %v3331
  %3341 = vmatprep.subr.mxu0 0.0
  %3342 = vmatpush1.msra.mxu0 %v3332
  %3343 = vmatprep.subr.mxu0 0.0
  %3344 = vmatpush1.msra.mxu0 0.0
  %3345 = vmatprep.subr.mxu0 0.0
  %3346 = vmatpush1.msra.mxu0 0.0
  %3347 = vmatprep.subr.mxu0 0.0
  %3348 = vmatpush1.msra.mxu0 0.0
  %3349 = vmatprep.subr.mxu0 0.0
  %3350 = vmatpush1.msra.mxu0 0.0
  %3351 = vmatprep.subr.mxu0 0.0
  %3352 = vmatpush1.msra.mxu0 0.0
  %3353 = vmatprep.subr.mxu0 0.0
  %3354 = vmatpush1.msra.mxu0 0.0
  %3355 = vmatprep.subr.mxu0 0.0
  %3356 = vmatpush1.msra.mxu0 0.0
  %3357 = vmatprep.subr.mxu0 0.0
  %3358 = vmatpush1.msra.mxu0 0.0
  %3359 = vmatprep.subr.mxu0 0.0
  %3360 = vmatpush1.msra.mxu0 0.0
  %3361 = vmatprep.subr.mxu0 0.0
  %3362 = vmatpush1.msra.mxu0 0.0
  %3363 = vmatprep.subr.mxu0 0.0
  %3364 = vmatpush1.msra.mxu0 0.0
  %3365 = vmatprep.subr.mxu0 0.0
  %3366 = vmatpush1.msra.mxu0 0.0
  %3367 = vmatprep.subr.mxu0 0.0
  %3368 = vmatpush1.msra.mxu0 0.0
  %3369 = vmatprep.subr.mxu0 0.0
  %3370 = vmatpush1.msra.mxu0 0.0
  %3371 = vmatprep.subr.mxu0 0.0
  %3372 = vmatpush1.msra.mxu0 0.0
  %3373 = vmatprep.subr.mxu0 0.0
  %3374 = vmatpush1.msra.mxu0 0.0
  %3375 = vmatprep.subr.mxu0 0.0
  %3376 = vmatpush1.msra.mxu0 0.0
  %3377 = vmatprep.subr.mxu0 0.0
  %3378 = vmatpush1.msra.mxu0 0.0
  %3379 = vmatprep.subr.mxu0 0.0
  %3380 = vmatpush1.msra.mxu0 0.0
  %3381 = vmatprep.subr.mxu0 0.0
  %3382 = vmatpush1.msra.mxu0 0.0
  %3383 = vmatprep.subr.mxu0 0.0
  %3384 = vmatpush1.msra.mxu0 0.0
  %3385 = vmatprep.subr.mxu0 0.0
  %3386 = vmatpush1.msra.mxu0 0.0
  %3387 = vmatprep.subr.mxu0 0.0
  %3388 = vmatpush1.msra.mxu0 0.0
  %3389 = vmatprep.subr.mxu0 0.0
  %3390 = vmatpush1.msra.mxu0 0.0
  %3391 = vmatprep.subr.mxu0 0.0
  %3392 = vmatpush1.msra.mxu0 0.0
  %3393 = vmatprep.subr.mxu0 0.0
  %3394 = vmatpush1.msra.mxu0 0.0
  %3395 = vmatprep.subr.mxu0 0.0
  %3396 = vmatpush1.msra.mxu0 0.0
  %3397 = vmatprep.subr.mxu0 0.0
  %3398 = vmatpush1.msra.mxu0 0.0
  %3399 = vmatprep.subr.mxu0 0.0
  %3400 = vmatpush1.msra.mxu0 0.0
  %3401 = vmatprep.subr.mxu0 0.0
  %3402 = vmatpush1.msra.mxu0 0.0
  %3403 = vmatprep.mubr.f32.mxu0 0.0
  %3404 = vmatmul.mubr.f32.gmra.mrb[0].mxu0 %v3334
  %v3405 = vpop.f32.mrb[0].mxu0
  %v3406 = vadd.f32 0.0, %v3405
  %v3407 = vpop.f32.mrb[0].mxu0
  %3408 = vmatprep.mubr.f32.mxu0 0.0
  %3409 = vmatmul.mubr.f32.gmra.mrb[0].mxu0 %v3337
  %v3410 = vpop.f32.mrb[0].mxu0
  %v3411 = vadd.f32 0.0, %v3410
  %v3412 = vpop.f32.mrb[0].mxu0
  %3413 = vdwg.mxu0
  %v3415 = vsel %vm88, %v3228, 0
  %v3418 = vsel %vm88, %v3229, 0
  %3420 = vmatprep.subr.mxu0 0.0
  %3421 = vmatpush1.msra.mxu0 %v3230
  %3422 = vmatprep.subr.mxu0 0.0
  %3423 = vmatpush1.msra.mxu0 %v3231
  %3424 = vmatprep.subr.mxu0 0.0
  %3425 = vmatpush1.msra.mxu0 0.0
  %3426 = vmatprep.subr.mxu0 0.0
  %3427 = vmatpush1.msra.mxu0 0.0
  %3428 = vmatprep.subr.mxu0 0.0
  %3429 = vmatpush1.msra.mxu0 0.0
  %3430 = vmatprep.subr.mxu0 0.0
  %3431 = vmatpush1.msra.mxu0 0.0
  %3432 = vmatprep.subr.mxu0 0.0
  %3433 = vmatpush1.msra.mxu0 0.0
  %3434 = vmatprep.subr.mxu0 0.0
  %3435 = vmatpush1.msra.mxu0 0.0
  %3436 = vmatprep.subr.mxu0 0.0
  %3437 = vmatpush1.msra.mxu0 0.0
  %3438 = vmatprep.subr.mxu0 0.0
  %3439 = vmatpush1.msra.mxu0 0.0
  %3440 = vmatprep.subr.mxu0 0.0
  %3441 = vmatpush1.msra.mxu0 0.0
  %3442 = vmatprep.subr.mxu0 0.0
  %3443 = vmatpush1.msra.mxu0 0.0
  %3444 = vmatprep.subr.mxu0 0.0
  %3445 = vmatpush1.msra.mxu0 0.0
  %3446 = vmatprep.subr.mxu0 0.0
  %3447 = vmatpush1.msra.mxu0 0.0
  %3448 = vmatprep.subr.mxu0 0.0
  %3449 = vmatpush1.msra.mxu0 0.0
  %3450 = vmatprep.subr.mxu0 0.0
  %3451 = vmatpush1.msra.mxu0 0.0
  %3452 = vmatprep.subr.mxu0 0.0
  %3453 = vmatpush1.msra.mxu0 0.0
  %3454 = vmatprep.subr.mxu0 0.0
  %3455 = vmatpush1.msra.mxu0 0.0
  %3456 = vmatprep.subr.mxu0 0.0
  %3457 = vmatpush1.msra.mxu0 0.0
  %3458 = vmatprep.subr.mxu0 0.0
  %3459 = vmatpush1.msra.mxu0 0.0
  %3460 = vmatprep.subr.mxu0 0.0
  %3461 = vmatpush1.msra.mxu0 0.0
  %3462 = vmatprep.subr.mxu0 0.0
  %3463 = vmatpush1.msra.mxu0 0.0
  %3464 = vmatprep.subr.mxu0 0.0
  %3465 = vmatpush1.msra.mxu0 0.0
  %3466 = vmatprep.subr.mxu0 0.0
  %3467 = vmatpush1.msra.mxu0 0.0
  %3468 = vmatprep.subr.mxu0 0.0
  %3469 = vmatpush1.msra.mxu0 0.0
  %3470 = vmatprep.subr.mxu0 0.0
  %3471 = vmatpush1.msra.mxu0 0.0
  %3472 = vmatprep.subr.mxu0 0.0
  %3473 = vmatpush1.msra.mxu0 0.0
  %3474 = vmatprep.subr.mxu0 0.0
  %3475 = vmatpush1.msra.mxu0 0.0
  %3476 = vmatprep.subr.mxu0 0.0
  %3477 = vmatpush1.msra.mxu0 0.0
  %3478 = vmatprep.subr.mxu0 0.0
  %3479 = vmatpush1.msra.mxu0 0.0
  %3480 = vmatprep.subr.mxu0 0.0
  %3481 = vmatpush1.msra.mxu0 0.0
  %3482 = vmatprep.subr.mxu0 0.0
  %3483 = vmatpush1.msra.mxu0 0.0
  %3484 = vmatprep.mubr.f32.mxu0 0.0
  %3485 = vmatmul.mubr.f32.gmra.mrb[0].mxu0 %v3415
  %v3486 = vpop.f32.mrb[0].mxu0
  %v3487 = vadd.f32 %v3406, %v3486
  %v3488 = vpop.f32.mrb[0].mxu0
  %3489 = vmatprep.mubr.f32.mxu0 0.0
  %3490 = vmatmul.mubr.f32.gmra.mrb[0].mxu0 %v3418
  %v3491 = vpop.f32.mrb[0].mxu0
  %v3492 = vadd.f32 %v3411, %v3491
  %v3493 = vpop.f32.mrb[0].mxu0
  %3494 = vdwg.mxu0
  %v3495 = vmul.f32 %v3046, %v816
  %v3496 = vmul.f32 %v3052, %v816
  %3497 = vmatprep.subr.mxu0 0.0
  %3498 = vmatpush1.xpose.msra.mxu0 %v3048
  %3499 = vmatprep.subr.mxu0 0.0
  %3500 = vmatpush1.xpose.msra.mxu0 %v3054
  %3501 = vmatprep.subr.mxu0 0.0
  %3502 = vmatpush1.xpose.msra.mxu0 0.0
  %3503 = vmatprep.subr.mxu0 0.0
  %3504 = vmatpush1.xpose.msra.mxu0 0.0
  %3505 = vmatprep.subr.mxu0 0.0
  %3506 = vmatpush1.xpose.msra.mxu0 0.0
  %3507 = vmatprep.subr.mxu0 0.0
  %3508 = vmatpush1.xpose.msra.mxu0 0.0
  %3509 = vmatprep.subr.mxu0 0.0
  %3510 = vmatpush1.xpose.msra.mxu0 0.0
  %3511 = vmatprep.subr.mxu0 0.0
  %3512 = vmatpush1.xpose.msra.mxu0 0.0
  %3513 = vmatprep.subr.mxu0 0.0
  %3514 = vmatpush1.xpose.msra.mxu0 0.0
  %3515 = vmatprep.subr.mxu0 0.0
  %3516 = vmatpush1.xpose.msra.mxu0 0.0
  %3517 = vmatprep.subr.mxu0 0.0
  %3518 = vmatpush1.xpose.msra.mxu0 0.0
  %3519 = vmatprep.subr.mxu0 0.0
  %3520 = vmatpush1.xpose.msra.mxu0 0.0
  %3521 = vmatprep.subr.mxu0 0.0
  %3522 = vmatpush1.xpose.msra.mxu0 0.0
  %3523 = vmatprep.subr.mxu0 0.0
  %3524 = vmatpush1.xpose.msra.mxu0 0.0
  %3525 = vmatprep.subr.mxu0 0.0
  %3526 = vmatpush1.xpose.msra.mxu0 0.0
  %3527 = vmatprep.subr.mxu0 0.0
  %3528 = vmatpush1.xpose.msra.mxu0 0.0
  %3529 = vmatprep.subr.mxu0 0.0
  %3530 = vmatpush1.xpose.msra.mxu0 0.0
  %3531 = vmatprep.subr.mxu0 0.0
  %3532 = vmatpush1.xpose.msra.mxu0 0.0
  %3533 = vmatprep.subr.mxu0 0.0
  %3534 = vmatpush1.xpose.msra.mxu0 0.0
  %3535 = vmatprep.subr.mxu0 0.0
  %3536 = vmatpush1.xpose.msra.mxu0 0.0
  %3537 = vmatprep.subr.mxu0 0.0
  %3538 = vmatpush1.xpose.msra.mxu0 0.0
  %3539 = vmatprep.subr.mxu0 0.0
  %3540 = vmatpush1.xpose.msra.mxu0 0.0
  %3541 = vmatprep.subr.mxu0 0.0
  %3542 = vmatpush1.xpose.msra.mxu0 0.0
  %3543 = vmatprep.subr.mxu0 0.0
  %3544 = vmatpush1.xpose.msra.mxu0 0.0
  %3545 = vmatprep.subr.mxu0 0.0
  %3546 = vmatpush1.xpose.msra.mxu0 0.0
  %3547 = vmatprep.subr.mxu0 0.0
  %3548 = vmatpush1.xpose.msra.mxu0 0.0
  %3549 = vmatprep.subr.mxu0 0.0
  %3550 = vmatpush1.xpose.msra.mxu0 0.0
  %3551 = vmatprep.subr.mxu0 0.0
  %3552 = vmatpush1.xpose.msra.mxu0 0.0
  %3553 = vmatprep.subr.mxu0 0.0
  %3554 = vmatpush1.xpose.msra.mxu0 0.0
  %3555 = vmatprep.subr.mxu0 0.0
  %3556 = vmatpush1.xpose.msra.mxu0 0.0
  %3557 = vmatprep.subr.mxu0 0.0
  %3558 = vmatpush1.xpose.msra.mxu0 0.0
  %3559 = vmatprep.subr.mxu0 0.0
  %3560 = vmatpush1.xpose.msra.mxu0 0.0
  %3561 = vmatprep.mubr.f32.mxu0 0.0
  %3562 = vmatmul.mubr.f32.gmra.mrb[0].mxu0 %v3495
  %v3563 = vpop.f32.mrb[0].mxu0
  %v3564 = vadd.f32 %v84, %v3563
  %v3565 = vpop.f32.mrb[0].mxu0
  %3566 = vmatprep.mubr.f32.mxu0 0.0
  %3567 = vmatmul.mubr.f32.gmra.mrb[0].mxu0 %v3496
  %v3568 = vpop.f32.mrb[0].mxu0
  %v3569 = vadd.f32 %v85, %v3568
  %v3570 = vpop.f32.mrb[0].mxu0
  %3571 = vdwg.mxu0
  %v3572 = vsel %vm88, %v3564, -inf
  %3573 = vmax.xlane.f32.xlu0 %v3572
  %v3574 = vpop.xlane.xlu0 %3573
  %v3575 = vsel %vm88, %v3569, -inf
  %3576 = vmax.xlane.f32.xlu0 %v3575
  %v3577 = vpop.xlane.xlu0 %3576
  %v3578 = vsub.f32 %v3564, %v3574
  %v3579 = vsub.f32 %v3569, %v3577
  %v3580 = vmul.f32 %v3578, 1.442695
  %v3581 = vpow.pop %v3580
  %v3582 = vmul.f32 %v3579, 1.442695
  %v3583 = vpow.pop %v3582
  %v3584 = vsel %vm88, %v3581, 0.0
  %3585 = vadd.xlane.f32.xlu0 %v3584
  %v3586 = vpop.xlane.xlu0 %3585
  %v3587 = vsel %vm88, %v3583, 0.0
  %3588 = vadd.xlane.f32.xlu0 %v3587
  %v3589 = vpop.xlane.xlu0 %3588
  %v3590 = vrcp.pop %v3586
  %v3591 = vrcp.pop %v3589
  %v3592 = vmul.f32 %v3581, %v3590
  %v3593 = vmul.f32 %v3583, %v3591
  %v3594 = vmul.f32 %v3123, %v816
  %v3595 = vmul.f32 %v3128, %v816
  %v3597 = vsel %vm88, %v3592, 0
  %v3600 = vsel %vm88, %v3593, 0
  %3602 = vmatprep.subr.mxu0 0.0
  %3603 = vmatpush1.msra.mxu0 %v3594
  %3604 = vmatprep.subr.mxu0 0.0
  %3605 = vmatpush1.msra.mxu0 %v3595
  %3606 = vmatprep.subr.mxu0 0.0
  %3607 = vmatpush1.msra.mxu0 0.0
  %3608 = vmatprep.subr.mxu0 0.0
  %3609 = vmatpush1.msra.mxu0 0.0
  %3610 = vmatprep.subr.mxu0 0.0
  %3611 = vmatpush1.msra.mxu0 0.0
  %3612 = vmatprep.subr.mxu0 0.0
  %3613 = vmatpush1.msra.mxu0 0.0
  %3614 = vmatprep.subr.mxu0 0.0
  %3615 = vmatpush1.msra.mxu0 0.0
  %3616 = vmatprep.subr.mxu0 0.0
  %3617 = vmatpush1.msra.mxu0 0.0
  %3618 = vmatprep.subr.mxu0 0.0
  %3619 = vmatpush1.msra.mxu0 0.0
  %3620 = vmatprep.subr.mxu0 0.0
  %3621 = vmatpush1.msra.mxu0 0.0
  %3622 = vmatprep.subr.mxu0 0.0
  %3623 = vmatpush1.msra.mxu0 0.0
  %3624 = vmatprep.subr.mxu0 0.0
  %3625 = vmatpush1.msra.mxu0 0.0
  %3626 = vmatprep.subr.mxu0 0.0
  %3627 = vmatpush1.msra.mxu0 0.0
  %3628 = vmatprep.subr.mxu0 0.0
  %3629 = vmatpush1.msra.mxu0 0.0
  %3630 = vmatprep.subr.mxu0 0.0
  %3631 = vmatpush1.msra.mxu0 0.0
  %3632 = vmatprep.subr.mxu0 0.0
  %3633 = vmatpush1.msra.mxu0 0.0
  %3634 = vmatprep.subr.mxu0 0.0
  %3635 = vmatpush1.msra.mxu0 0.0
  %3636 = vmatprep.subr.mxu0 0.0
  %3637 = vmatpush1.msra.mxu0 0.0
  %3638 = vmatprep.subr.mxu0 0.0
  %3639 = vmatpush1.msra.mxu0 0.0
  %3640 = vmatprep.subr.mxu0 0.0
  %3641 = vmatpush1.msra.mxu0 0.0
  %3642 = vmatprep.subr.mxu0 0.0
  %3643 = vmatpush1.msra.mxu0 0.0
  %3644 = vmatprep.subr.mxu0 0.0
  %3645 = vmatpush1.msra.mxu0 0.0
  %3646 = vmatprep.subr.mxu0 0.0
  %3647 = vmatpush1.msra.mxu0 0.0
  %3648 = vmatprep.subr.mxu0 0.0
  %3649 = vmatpush1.msra.mxu0 0.0
  %3650 = vmatprep.subr.mxu0 0.0
  %3651 = vmatpush1.msra.mxu0 0.0
  %3652 = vmatprep.subr.mxu0 0.0
  %3653 = vmatpush1.msra.mxu0 0.0
  %3654 = vmatprep.subr.mxu0 0.0
  %3655 = vmatpush1.msra.mxu0 0.0
  %3656 = vmatprep.subr.mxu0 0.0
  %3657 = vmatpush1.msra.mxu0 0.0
  %3658 = vmatprep.subr.mxu0 0.0
  %3659 = vmatpush1.msra.mxu0 0.0
  %3660 = vmatprep.subr.mxu0 0.0
  %3661 = vmatpush1.msra.mxu0 0.0
  %3662 = vmatprep.subr.mxu0 0.0
  %3663 = vmatpush1.msra.mxu0 0.0
  %3664 = vmatprep.subr.mxu0 0.0
  %3665 = vmatpush1.msra.mxu0 0.0
  %3666 = vmatprep.mubr.f32.mxu0 0.0
  %3667 = vmatmul.mubr.f32.gmra.mrb[0].mxu0 %v3597
  %v3668 = vpop.f32.mrb[0].mxu0
  %v3669 = vadd.f32 0.0, %v3668
  %v3670 = vpop.f32.mrb[0].mxu0
  %3671 = vmatprep.mubr.f32.mxu0 0.0
  %3672 = vmatmul.mubr.f32.gmra.mrb[0].mxu0 %v3600
  %v3673 = vpop.f32.mrb[0].mxu0
  %v3674 = vadd.f32 0.0, %v3673
  %v3675 = vpop.f32.mrb[0].mxu0
  %3676 = vdwg.mxu0
  %v3677 = vadd.f32 %v3487, %v3669
  %v3678 = vadd.f32 %v3492, %v3674
  %v3679 = vmul.f32 %v3046, %v1005
  %v3680 = vmul.f32 %v3052, %v1005
  %3681 = vmatprep.subr.mxu0 0.0
  %3682 = vmatpush1.xpose.msra.mxu0 %v3048
  %3683 = vmatprep.subr.mxu0 0.0
  %3684 = vmatpush1.xpose.msra.mxu0 %v3054
  %3685 = vmatprep.subr.mxu0 0.0
  %3686 = vmatpush1.xpose.msra.mxu0 0.0
  %3687 = vmatprep.subr.mxu0 0.0
  %3688 = vmatpush1.xpose.msra.mxu0 0.0
  %3689 = vmatprep.subr.mxu0 0.0
  %3690 = vmatpush1.xpose.msra.mxu0 0.0
  %3691 = vmatprep.subr.mxu0 0.0
  %3692 = vmatpush1.xpose.msra.mxu0 0.0
  %3693 = vmatprep.subr.mxu0 0.0
  %3694 = vmatpush1.xpose.msra.mxu0 0.0
  %3695 = vmatprep.subr.mxu0 0.0
  %3696 = vmatpush1.xpose.msra.mxu0 0.0
  %3697 = vmatprep.subr.mxu0 0.0
  %3698 = vmatpush1.xpose.msra.mxu0 0.0
  %3699 = vmatprep.subr.mxu0 0.0
  %3700 = vmatpush1.xpose.msra.mxu0 0.0
  %3701 = vmatprep.subr.mxu0 0.0
  %3702 = vmatpush1.xpose.msra.mxu0 0.0
  %3703 = vmatprep.subr.mxu0 0.0
  %3704 = vmatpush1.xpose.msra.mxu0 0.0
  %3705 = vmatprep.subr.mxu0 0.0
  %3706 = vmatpush1.xpose.msra.mxu0 0.0
  %3707 = vmatprep.subr.mxu0 0.0
  %3708 = vmatpush1.xpose.msra.mxu0 0.0
  %3709 = vmatprep.subr.mxu0 0.0
  %3710 = vmatpush1.xpose.msra.mxu0 0.0
  %3711 = vmatprep.subr.mxu0 0.0
  %3712 = vmatpush1.xpose.msra.mxu0 0.0
  %3713 = vmatprep.subr.mxu0 0.0
  %3714 = vmatpush1.xpose.msra.mxu0 0.0
  %3715 = vmatprep.subr.mxu0 0.0
  %3716 = vmatpush1.xpose.msra.mxu0 0.0
  %3717 = vmatprep.subr.mxu0 0.0
  %3718 = vmatpush1.xpose.msra.mxu0 0.0
  %3719 = vmatprep.subr.mxu0 0.0
  %3720 = vmatpush1.xpose.msra.mxu0 0.0
  %3721 = vmatprep.subr.mxu0 0.0
  %3722 = vmatpush1.xpose.msra.mxu0 0.0
  %3723 = vmatprep.subr.mxu0 0.0
  %3724 = vmatpush1.xpose.msra.mxu0 0.0
  %3725 = vmatprep.subr.mxu0 0.0
  %3726 = vmatpush1.xpose.msra.mxu0 0.0
  %3727 = vmatprep.subr.mxu0 0.0
  %3728 = vmatpush1.xpose.msra.mxu0 0.0
  %3729 = vmatprep.subr.mxu0 0.0
  %3730 = vmatpush1.xpose.msra.mxu0 0.0
  %3731 = vmatprep.subr.mxu0 0.0
  %3732 = vmatpush1.xpose.msra.mxu0 0.0
  %3733 = vmatprep.subr.mxu0 0.0
  %3734 = vmatpush1.xpose.msra.mxu0 0.0
  %3735 = vmatprep.subr.mxu0 0.0
  %3736 = vmatpush1.xpose.msra.mxu0 0.0
  %3737 = vmatprep.subr.mxu0 0.0
  %3738 = vmatpush1.xpose.msra.mxu0 0.0
  %3739 = vmatprep.subr.mxu0 0.0
  %3740 = vmatpush1.xpose.msra.mxu0 0.0
  %3741 = vmatprep.subr.mxu0 0.0
  %3742 = vmatpush1.xpose.msra.mxu0 0.0
  %3743 = vmatprep.subr.mxu0 0.0
  %3744 = vmatpush1.xpose.msra.mxu0 0.0
  %3745 = vmatprep.mubr.f32.mxu0 0.0
  %3746 = vmatmul.mubr.f32.gmra.mrb[0].mxu0 %v3679
  %v3747 = vpop.f32.mrb[0].mxu0
  %v3748 = vadd.f32 %v84, %v3747
  %v3749 = vpop.f32.mrb[0].mxu0
  %3750 = vmatprep.mubr.f32.mxu0 0.0
  %3751 = vmatmul.mubr.f32.gmra.mrb[0].mxu0 %v3680
  %v3752 = vpop.f32.mrb[0].mxu0
  %v3753 = vadd.f32 %v85, %v3752
  %v3754 = vpop.f32.mrb[0].mxu0
  %3755 = vdwg.mxu0
  %v3756 = vsel %vm88, %v3748, -inf
  %3757 = vmax.xlane.f32.xlu0 %v3756
  %v3758 = vpop.xlane.xlu0 %3757
  %v3759 = vsel %vm88, %v3753, -inf
  %3760 = vmax.xlane.f32.xlu0 %v3759
  %v3761 = vpop.xlane.xlu0 %3760
  %v3762 = vsub.f32 %v3748, %v3758
  %v3763 = vsub.f32 %v3753, %v3761
  %v3764 = vmul.f32 %v3762, 1.442695
  %v3765 = vpow.pop %v3764
  %v3766 = vmul.f32 %v3763, 1.442695
  %v3767 = vpow.pop %v3766
  %v3768 = vsel %vm88, %v3765, 0.0
  %3769 = vadd.xlane.f32.xlu0 %v3768
  %v3770 = vpop.xlane.xlu0 %3769
  %v3771 = vsel %vm88, %v3767, 0.0
  %3772 = vadd.xlane.f32.xlu0 %v3771
  %v3773 = vpop.xlane.xlu0 %3772
  %v3774 = vrcp.pop %v3770
  %v3775 = vrcp.pop %v3773
  %v3776 = vmul.f32 %v3765, %v3774
  %v3777 = vmul.f32 %v3767, %v3775
  %v3778 = vmul.f32 %v3123, %v1005
  %v3779 = vmul.f32 %v3128, %v1005
  %v3781 = vsel %vm88, %v3776, 0
  %v3784 = vsel %vm88, %v3777, 0
  %3786 = vmatprep.subr.mxu0 0.0
  %3787 = vmatpush1.msra.mxu0 %v3778
  %3788 = vmatprep.subr.mxu0 0.0
  %3789 = vmatpush1.msra.mxu0 %v3779
  %3790 = vmatprep.subr.mxu0 0.0
  %3791 = vmatpush1.msra.mxu0 0.0
  %3792 = vmatprep.subr.mxu0 0.0
  %3793 = vmatpush1.msra.mxu0 0.0
  %3794 = vmatprep.subr.mxu0 0.0
  %3795 = vmatpush1.msra.mxu0 0.0
  %3796 = vmatprep.subr.mxu0 0.0
  %3797 = vmatpush1.msra.mxu0 0.0
  %3798 = vmatprep.subr.mxu0 0.0
  %3799 = vmatpush1.msra.mxu0 0.0
  %3800 = vmatprep.subr.mxu0 0.0
  %3801 = vmatpush1.msra.mxu0 0.0
  %3802 = vmatprep.subr.mxu0 0.0
  %3803 = vmatpush1.msra.mxu0 0.0
  %3804 = vmatprep.subr.mxu0 0.0
  %3805 = vmatpush1.msra.mxu0 0.0
  %3806 = vmatprep.subr.mxu0 0.0
  %3807 = vmatpush1.msra.mxu0 0.0
  %3808 = vmatprep.subr.mxu0 0.0
  %3809 = vmatpush1.msra.mxu0 0.0
  %3810 = vmatprep.subr.mxu0 0.0
  %3811 = vmatpush1.msra.mxu0 0.0
  %3812 = vmatprep.subr.mxu0 0.0
  %3813 = vmatpush1.msra.mxu0 0.0
  %3814 = vmatprep.subr.mxu0 0.0
  %3815 = vmatpush1.msra.mxu0 0.0
  %3816 = vmatprep.subr.mxu0 0.0
  %3817 = vmatpush1.msra.mxu0 0.0
  %3818 = vmatprep.subr.mxu0 0.0
  %3819 = vmatpush1.msra.mxu0 0.0
  %3820 = vmatprep.subr.mxu0 0.0
  %3821 = vmatpush1.msra.mxu0 0.0
  %3822 = vmatprep.subr.mxu0 0.0
  %3823 = vmatpush1.msra.mxu0 0.0
  %3824 = vmatprep.subr.mxu0 0.0
  %3825 = vmatpush1.msra.mxu0 0.0
  %3826 = vmatprep.subr.mxu0 0.0
  %3827 = vmatpush1.msra.mxu0 0.0
  %3828 = vmatprep.subr.mxu0 0.0
  %3829 = vmatpush1.msra.mxu0 0.0
  %3830 = vmatprep.subr.mxu0 0.0
  %3831 = vmatpush1.msra.mxu0 0.0
  %3832 = vmatprep.subr.mxu0 0.0
  %3833 = vmatpush1.msra.mxu0 0.0
  %3834 = vmatprep.subr.mxu0 0.0
  %3835 = vmatpush1.msra.mxu0 0.0
  %3836 = vmatprep.subr.mxu0 0.0
  %3837 = vmatpush1.msra.mxu0 0.0
  %3838 = vmatprep.subr.mxu0 0.0
  %3839 = vmatpush1.msra.mxu0 0.0
  %3840 = vmatprep.subr.mxu0 0.0
  %3841 = vmatpush1.msra.mxu0 0.0
  %3842 = vmatprep.subr.mxu0 0.0
  %3843 = vmatpush1.msra.mxu0 0.0
  %3844 = vmatprep.subr.mxu0 0.0
  %3845 = vmatpush1.msra.mxu0 0.0
  %3846 = vmatprep.subr.mxu0 0.0
  %3847 = vmatpush1.msra.mxu0 0.0
  %3848 = vmatprep.subr.mxu0 0.0
  %3849 = vmatpush1.msra.mxu0 0.0
  %3850 = vmatprep.mubr.f32.mxu0 0.0
  %3851 = vmatmul.mubr.f32.gmra.mrb[0].mxu0 %v3781
  %v3852 = vpop.f32.mrb[0].mxu0
  %v3853 = vadd.f32 0.0, %v3852
  %v3854 = vpop.f32.mrb[0].mxu0
  %3855 = vmatprep.mubr.f32.mxu0 0.0
  %3856 = vmatmul.mubr.f32.gmra.mrb[0].mxu0 %v3784
  %v3857 = vpop.f32.mrb[0].mxu0
  %v3858 = vadd.f32 0.0, %v3857
  %v3859 = vpop.f32.mrb[0].mxu0
  %3860 = vdwg.mxu0
  %v3861 = vadd.f32 %v3677, %v3853
  %v3862 = vadd.f32 %v3678, %v3858
  %s3863 = scalar_lea.vmem %s9, 256
  %v3864 = vld [vmem:[%s3863] sm:$0xff]
  %v3865 = vld [vmem:[%s3863 + $0x8] sm:$0xff]
  %v3866 = vld [vmem:[%s3863 + $0x10] sm:$0xff]
  %v3867 = vld [vmem:[%s3863 + $0x18] sm:$0xff]
  %v3868 = vld [vmem:[%s3863 + $0x20] sm:$0xff]
  %v3869 = vld [vmem:[%s3863 + $0x28] sm:$0xff]
  %v3870 = vld [vmem:[%s3863 + $0x30] sm:$0xff]
  %v3871 = vld [vmem:[%s3863 + $0x38] sm:$0xff]
  %v3872 = vld [vmem:[%s3863 + $0x40] sm:$0xff]
  %v3873 = vld [vmem:[%s3863 + $0x48] sm:$0xff]
  %v3874 = vld [vmem:[%s3863 + $0x50] sm:$0xff]
  %v3875 = vld [vmem:[%s3863 + $0x58] sm:$0xff]
  %v3876 = vld [vmem:[%s3863 + $0x60] sm:$0xff]
  %v3877 = vld [vmem:[%s3863 + $0x68] sm:$0xff]
  %v3878 = vld [vmem:[%s3863 + $0x70] sm:$0xff]
  %v3879 = vld [vmem:[%s3863 + $0x78] sm:$0xff]
  %s3880 = scalar_lea.vmem %s10, 2
  %v3881 = vld [vmem:[%s3880] sm:$0x1]
  %v3883 = vlaneseq
  %v3884 = vshrl.u32 %v3883, 7
  %v3885 = vsub.s32 0, %v3884
  %v3886 = vrot.slane %v3881, %v3885
  %3888 = vmatprep.subr.mxu0 0.0
  %3889 = vmatpush1.msra.mxu0 %v3864
  %3890 = vmatprep.subr.mxu0 0.0
  %3891 = vmatpush1.msra.mxu0 %v3865
  %3892 = vmatprep.subr.mxu0 0.0
  %3893 = vmatpush1.msra.mxu0 %v3866
  %3894 = vmatprep.subr.mxu0 0.0
  %3895 = vmatpush1.msra.mxu0 %v3867
  %3896 = vmatprep.subr.mxu0 0.0
  %3897 = vmatpush1.msra.mxu0 %v3868
  %3898 = vmatprep.subr.mxu0 0.0
  %3899 = vmatpush1.msra.mxu0 %v3869
  %3900 = vmatprep.subr.mxu0 0.0
  %3901 = vmatpush1.msra.mxu0 %v3870
  %3902 = vmatprep.subr.mxu0 0.0
  %3903 = vmatpush1.msra.mxu0 %v3871
  %3904 = vmatprep.subr.mxu0 0.0
  %3905 = vmatpush1.msra.mxu0 %v3872
  %3906 = vmatprep.subr.mxu0 0.0
  %3907 = vmatpush1.msra.mxu0 %v3873
  %3908 = vmatprep.subr.mxu0 0.0
  %3909 = vmatpush1.msra.mxu0 %v3874
  %3910 = vmatprep.subr.mxu0 0.0
  %3911 = vmatpush1.msra.mxu0 %v3875
  %3912 = vmatprep.subr.mxu0 0.0
  %3913 = vmatpush1.msra.mxu0 %v3876
  %3914 = vmatprep.subr.mxu0 0.0
  %3915 = vmatpush1.msra.mxu0 %v3877
  %3916 = vmatprep.subr.mxu0 0.0
  %3917 = vmatpush1.msra.mxu0 %v3878
  %3918 = vmatprep.subr.mxu0 0.0
  %3919 = vmatpush1.msra.mxu0 %v3879
  %3920 = vmatprep.subr.mxu0 0.0
  %3921 = vmatpush1.msra.mxu0 0.0
  %3922 = vmatprep.subr.mxu0 0.0
  %3923 = vmatpush1.msra.mxu0 0.0
  %3924 = vmatprep.subr.mxu0 0.0
  %3925 = vmatpush1.msra.mxu0 0.0
  %3926 = vmatprep.subr.mxu0 0.0
  %3927 = vmatpush1.msra.mxu0 0.0
  %3928 = vmatprep.subr.mxu0 0.0
  %3929 = vmatpush1.msra.mxu0 0.0
  %3930 = vmatprep.subr.mxu0 0.0
  %3931 = vmatpush1.msra.mxu0 0.0
  %3932 = vmatprep.subr.mxu0 0.0
  %3933 = vmatpush1.msra.mxu0 0.0
  %3934 = vmatprep.subr.mxu0 0.0
  %3935 = vmatpush1.msra.mxu0 0.0
  %3936 = vmatprep.subr.mxu0 0.0
  %3937 = vmatpush1.msra.mxu0 0.0
  %3938 = vmatprep.subr.mxu0 0.0
  %3939 = vmatpush1.msra.mxu0 0.0
  %3940 = vmatprep.subr.mxu0 0.0
  %3941 = vmatpush1.msra.mxu0 0.0
  %3942 = vmatprep.subr.mxu0 0.0
  %3943 = vmatpush1.msra.mxu0 0.0
  %3944 = vmatprep.subr.mxu0 0.0
  %3945 = vmatpush1.msra.mxu0 0.0
  %3946 = vmatprep.subr.mxu0 0.0
  %3947 = vmatpush1.msra.mxu0 0.0
  %3948 = vmatprep.subr.mxu0 0.0
  %3949 = vmatpush1.msra.mxu0 0.0
  %3950 = vmatprep.subr.mxu0 0.0
  %3951 = vmatpush1.msra.mxu0 0.0
  %3952 = vmatprep.mubr.f32.mxu0 0.0
  %3953 = vmatmul.mubr.f32.gmra.mrb[0].mxu0 %v3861
  %v3954 = vpop.f32.mrb[0].mxu0
  %v3955 = vadd.f32 %v3886, %v3954
  %v3956 = vpop.f32.mrb[0].mxu0
  %3957 = vmatprep.mubr.f32.mxu0 0.0
  %3958 = vmatmul.mubr.f32.gmra.mrb[0].mxu0 %v3862
  %v3959 = vpop.f32.mrb[0].mxu0
  %v3960 = vadd.f32 %v3886, %v3959
  %v3961 = vpop.f32.mrb[0].mxu0
  %3962 = vdwg.mxu0
  %v3963 = vadd.f32 %v2910, %v3955
  %v3964 = vadd.f32 %v2911, %v3960
  %s3965 = scalar_lea.vmem %s11, 2
  %v3966 = vld [vmem:[%s3965] sm:$0x1]
  %s3967 = scalar_lea.vmem %s12, 2
  %v3968 = vld [vmem:[%s3967] sm:$0x1]
  %3969 = vadd.xlane.f32.xlu0 %v3963
  %v3970 = vpop.xlane.xlu0 %3969
  %3971 = vadd.xlane.f32.xlu0 %v3964
  %v3972 = vpop.xlane.xlu0 %3971
  %v3973 = vmul.f32 %v3970, %v1296
  %v3974 = vmul.f32 %v3972, %v1296
  %v3975 = vsub.f32 %v3963, %v3973
  %v3976 = vsub.f32 %v3964, %v3974
  %v3977 = vmul.f32 %v3975, %v3975
  %v3978 = vmul.f32 %v3976, %v3976
  %3979 = vadd.xlane.f32.xlu0 %v3977
  %v3980 = vpop.xlane.xlu0 %3979
  %3981 = vadd.xlane.f32.xlu0 %v3978
  %v3982 = vpop.xlane.xlu0 %3981
  %v3983 = vmul.f32 %v3980, %v1296
  %v3984 = vmul.f32 %v3982, %v1296
  %v3985 = vadd.f32 %v3983, 1e-05
  %v3986 = vadd.f32 %v3984, 1e-05
  %v3987 = vrsqrt.pop %v3985
  %v3988 = vrsqrt.pop %v3986
  %v3989 = vmul.f32 %v3975, %v3987
  %v3990 = vmul.f32 %v3976, %v3988
  %v3992 = vlaneseq
  %v3993 = vshrl.u32 %v3992, 7
  %v3994 = vsub.s32 0, %v3993
  %v3995 = vrot.slane %v3966, %v3994
  %v3997 = vmul.f32 %v3989, %v3995
  %v3998 = vmul.f32 %v3990, %v3995
  %v4000 = vlaneseq
  %v4001 = vshrl.u32 %v4000, 7
  %v4002 = vsub.s32 0, %v4001
  %v4003 = vrot.slane %v3968, %v4002
  %v4005 = vadd.f32 %v3997, %v4003
  %v4006 = vadd.f32 %v3998, %v4003
  %s4007 = scalar_lea.vmem %s13, 256
  %v4008 = vld [vmem:[%s4007] sm:$0xff]
  %v4009 = vld [vmem:[%s4007 + $0x8] sm:$0xff]
  %v4010 = vld [vmem:[%s4007 + $0x10] sm:$0xff]
  %v4011 = vld [vmem:[%s4007 + $0x18] sm:$0xff]
  %v4012 = vld [vmem:[%s4007 + $0x20] sm:$0xff]
  %v4013 = vld [vmem:[%s4007 + $0x28] sm:$0xff]
  %v4014 = vld [vmem:[%s4007 + $0x30] sm:$0xff]
  %v4015 = vld [vmem:[%s4007 + $0x38] sm:$0xff]
  %v4016 = vld [vmem:[%s4007 + $0x40] sm:$0xff]
  %v4017 = vld [vmem:[%s4007 + $0x48] sm:$0xff]
  %v4018 = vld [vmem:[%s4007 + $0x50] sm:$0xff]
  %v4019 = vld [vmem:[%s4007 + $0x58] sm:$0xff]
  %v4020 = vld [vmem:[%s4007 + $0x60] sm:$0xff]
  %v4021 = vld [vmem:[%s4007 + $0x68] sm:$0xff]
  %v4022 = vld [vmem:[%s4007 + $0x70] sm:$0xff]
  %v4023 = vld [vmem:[%s4007 + $0x78] sm:$0xff]
  %s4024 = scalar_lea.vmem %s14, 2
  %v4025 = vld [vmem:[%s4024] sm:$0x1]
  %v4027 = vlaneseq
  %v4028 = vshrl.u32 %v4027, 7
  %v4029 = vsub.s32 0, %v4028
  %v4030 = vrot.slane %v4025, %v4029
  %4032 = vmatprep.subr.mxu0 0.0
  %4033 = vmatpush1.msra.mxu0 %v4008
  %4034 = vmatprep.subr.mxu0 0.0
  %4035 = vmatpush1.msra.mxu0 %v4009
  %4036 = vmatprep.subr.mxu0 0.0
  %4037 = vmatpush1.msra.mxu0 %v4010
  %4038 = vmatprep.subr.mxu0 0.0
  %4039 = vmatpush1.msra.mxu0 %v4011
  %4040 = vmatprep.subr.mxu0 0.0
  %4041 = vmatpush1.msra.mxu0 %v4012
  %4042 = vmatprep.subr.mxu0 0.0
  %4043 = vmatpush1.msra.mxu0 %v4013
  %4044 = vmatprep.subr.mxu0 0.0
  %4045 = vmatpush1.msra.mxu0 %v4014
  %4046 = vmatprep.subr.mxu0 0.0
  %4047 = vmatpush1.msra.mxu0 %v4015
  %4048 = vmatprep.subr.mxu0 0.0
  %4049 = vmatpush1.msra.mxu0 %v4016
  %4050 = vmatprep.subr.mxu0 0.0
  %4051 = vmatpush1.msra.mxu0 %v4017
  %4052 = vmatprep.subr.mxu0 0.0
  %4053 = vmatpush1.msra.mxu0 %v4018
  %4054 = vmatprep.subr.mxu0 0.0
  %4055 = vmatpush1.msra.mxu0 %v4019
  %4056 = vmatprep.subr.mxu0 0.0
  %4057 = vmatpush1.msra.mxu0 %v4020
  %4058 = vmatprep.subr.mxu0 0.0
  %4059 = vmatpush1.msra.mxu0 %v4021
  %4060 = vmatprep.subr.mxu0 0.0
  %4061 = vmatpush1.msra.mxu0 %v4022
  %4062 = vmatprep.subr.mxu0 0.0
  %4063 = vmatpush1.msra.mxu0 %v4023
  %4064 = vmatprep.subr.mxu0 0.0
  %4065 = vmatpush1.msra.mxu0 0.0
  %4066 = vmatprep.subr.mxu0 0.0
  %4067 = vmatpush1.msra.mxu0 0.0
  %4068 = vmatprep.subr.mxu0 0.0
  %4069 = vmatpush1.msra.mxu0 0.0
  %4070 = vmatprep.subr.mxu0 0.0
  %4071 = vmatpush1.msra.mxu0 0.0
  %4072 = vmatprep.subr.mxu0 0.0
  %4073 = vmatpush1.msra.mxu0 0.0
  %4074 = vmatprep.subr.mxu0 0.0
  %4075 = vmatpush1.msra.mxu0 0.0
  %4076 = vmatprep.subr.mxu0 0.0
  %4077 = vmatpush1.msra.mxu0 0.0
  %4078 = vmatprep.subr.mxu0 0.0
  %4079 = vmatpush1.msra.mxu0 0.0
  %4080 = vmatprep.subr.mxu0 0.0
  %4081 = vmatpush1.msra.mxu0 0.0
  %4082 = vmatprep.subr.mxu0 0.0
  %4083 = vmatpush1.msra.mxu0 0.0
  %4084 = vmatprep.subr.mxu0 0.0
  %4085 = vmatpush1.msra.mxu0 0.0
  %4086 = vmatprep.subr.mxu0 0.0
  %4087 = vmatpush1.msra.mxu0 0.0
  %4088 = vmatprep.subr.mxu0 0.0
  %4089 = vmatpush1.msra.mxu0 0.0
  %4090 = vmatprep.subr.mxu0 0.0
  %4091 = vmatpush1.msra.mxu0 0.0
  %4092 = vmatprep.subr.mxu0 0.0
  %4093 = vmatpush1.msra.mxu0 0.0
  %4094 = vmatprep.subr.mxu0 0.0
  %4095 = vmatpush1.msra.mxu0 0.0
  %4096 = vmatprep.mubr.f32.mxu0 0.0
  %4097 = vmatmul.mubr.f32.gmra.mrb[0].mxu0 %v4005
  %v4098 = vpop.f32.mrb[0].mxu0
  %v4099 = vadd.f32 %v4030, %v4098
  %v4100 = vpop.f32.mrb[0].mxu0
  %4101 = vmatprep.mubr.f32.mxu0 0.0
  %4102 = vmatmul.mubr.f32.gmra.mrb[0].mxu0 %v4006
  %v4103 = vpop.f32.mrb[0].mxu0
  %v4104 = vadd.f32 %v4030, %v4103
  %v4105 = vpop.f32.mrb[0].mxu0
  %4106 = vdwg.mxu0
  %v4107 = vmax.f32 %v4099, 0.0
  %v4108 = vmax.f32 %v4104, 0.0
  %s4109 = scalar_lea.vmem %s15, 256
  %v4110 = vld [vmem:[%s4109] sm:$0xff]
  %v4111 = vld [vmem:[%s4109 + $0x8] sm:$0xff]
  %v4112 = vld [vmem:[%s4109 + $0x10] sm:$0xff]
  %v4113 = vld [vmem:[%s4109 + $0x18] sm:$0xff]
  %v4114 = vld [vmem:[%s4109 + $0x20] sm:$0xff]
  %v4115 = vld [vmem:[%s4109 + $0x28] sm:$0xff]
  %v4116 = vld [vmem:[%s4109 + $0x30] sm:$0xff]
  %v4117 = vld [vmem:[%s4109 + $0x38] sm:$0xff]
  %v4118 = vld [vmem:[%s4109 + $0x40] sm:$0xff]
  %v4119 = vld [vmem:[%s4109 + $0x48] sm:$0xff]
  %v4120 = vld [vmem:[%s4109 + $0x50] sm:$0xff]
  %v4121 = vld [vmem:[%s4109 + $0x58] sm:$0xff]
  %v4122 = vld [vmem:[%s4109 + $0x60] sm:$0xff]
  %v4123 = vld [vmem:[%s4109 + $0x68] sm:$0xff]
  %v4124 = vld [vmem:[%s4109 + $0x70] sm:$0xff]
  %v4125 = vld [vmem:[%s4109 + $0x78] sm:$0xff]
  %s4126 = scalar_lea.vmem %s16, 2
  %v4127 = vld [vmem:[%s4126] sm:$0x1]
  %v4129 = vlaneseq
  %v4130 = vshrl.u32 %v4129, 7
  %v4131 = vsub.s32 0, %v4130
  %v4132 = vrot.slane %v4127, %v4131
  %4134 = vmatprep.subr.mxu0 0.0
  %4135 = vmatpush1.msra.mxu0 %v4110
  %4136 = vmatprep.subr.mxu0 0.0
  %4137 = vmatpush1.msra.mxu0 %v4111
  %4138 = vmatprep.subr.mxu0 0.0
  %4139 = vmatpush1.msra.mxu0 %v4112
  %4140 = vmatprep.subr.mxu0 0.0
  %4141 = vmatpush1.msra.mxu0 %v4113
  %4142 = vmatprep.subr.mxu0 0.0
  %4143 = vmatpush1.msra.mxu0 %v4114
  %4144 = vmatprep.subr.mxu0 0.0
  %4145 = vmatpush1.msra.mxu0 %v4115
  %4146 = vmatprep.subr.mxu0 0.0
  %4147 = vmatpush1.msra.mxu0 %v4116
  %4148 = vmatprep.subr.mxu0 0.0
  %4149 = vmatpush1.msra.mxu0 %v4117
  %4150 = vmatprep.subr.mxu0 0.0
  %4151 = vmatpush1.msra.mxu0 %v4118
  %4152 = vmatprep.subr.mxu0 0.0
  %4153 = vmatpush1.msra.mxu0 %v4119
  %4154 = vmatprep.subr.mxu0 0.0
  %4155 = vmatpush1.msra.mxu0 %v4120
  %4156 = vmatprep.subr.mxu0 0.0
  %4157 = vmatpush1.msra.mxu0 %v4121
  %4158 = vmatprep.subr.mxu0 0.0
  %4159 = vmatpush1.msra.mxu0 %v4122
  %4160 = vmatprep.subr.mxu0 0.0
  %4161 = vmatpush1.msra.mxu0 %v4123
  %4162 = vmatprep.subr.mxu0 0.0
  %4163 = vmatpush1.msra.mxu0 %v4124
  %4164 = vmatprep.subr.mxu0 0.0
  %4165 = vmatpush1.msra.mxu0 %v4125
  %4166 = vmatprep.subr.mxu0 0.0
  %4167 = vmatpush1.msra.mxu0 0.0
  %4168 = vmatprep.subr.mxu0 0.0
  %4169 = vmatpush1.msra.mxu0 0.0
  %4170 = vmatprep.subr.mxu0 0.0
  %4171 = vmatpush1.msra.mxu0 0.0
  %4172 = vmatprep.subr.mxu0 0.0
  %4173 = vmatpush1.msra.mxu0 0.0
  %4174 = vmatprep.subr.mxu0 0.0
  %4175 = vmatpush1.msra.mxu0 0.0
  %4176 = vmatprep.subr.mxu0 0.0
  %4177 = vmatpush1.msra.mxu0 0.0
  %4178 = vmatprep.subr.mxu0 0.0
  %4179 = vmatpush1.msra.mxu0 0.0
  %4180 = vmatprep.subr.mxu0 0.0
  %4181 = vmatpush1.msra.mxu0 0.0
  %4182 = vmatprep.subr.mxu0 0.0
  %4183 = vmatpush1.msra.mxu0 0.0
  %4184 = vmatprep.subr.mxu0 0.0
  %4185 = vmatpush1.msra.mxu0 0.0
  %4186 = vmatprep.subr.mxu0 0.0
  %4187 = vmatpush1.msra.mxu0 0.0
  %4188 = vmatprep.subr.mxu0 0.0
  %4189 = vmatpush1.msra.mxu0 0.0
  %4190 = vmatprep.subr.mxu0 0.0
  %4191 = vmatpush1.msra.mxu0 0.0
  %4192 = vmatprep.subr.mxu0 0.0
  %4193 = vmatpush1.msra.mxu0 0.0
  %4194 = vmatprep.subr.mxu0 0.0
  %4195 = vmatpush1.msra.mxu0 0.0
  %4196 = vmatprep.subr.mxu0 0.0
  %4197 = vmatpush1.msra.mxu0 0.0
  %4198 = vmatprep.mubr.f32.mxu0 0.0
  %4199 = vmatmul.mubr.f32.gmra.mrb[0].mxu0 %v4107
  %v4200 = vpop.f32.mrb[0].mxu0
  %v4201 = vadd.f32 %v4132, %v4200
  %v4202 = vpop.f32.mrb[0].mxu0
  %4203 = vmatprep.mubr.f32.mxu0 0.0
  %4204 = vmatmul.mubr.f32.gmra.mrb[0].mxu0 %v4108
  %v4205 = vpop.f32.mrb[0].mxu0
  %v4206 = vadd.f32 %v4132, %v4205
  %v4207 = vpop.f32.mrb[0].mxu0
  %4208 = vdwg.mxu0
  %v4209 = vadd.f32 %v4005, %v4201
  %v4210 = vadd.f32 %v4006, %v4206
  %s4211 = scalar_lea.vmem %s17, 2
  %v4212 = vld [vmem:[%s4211] sm:$0x1]
  %s4213 = scalar_lea.vmem %s18, 2
  %v4214 = vld [vmem:[%s4213] sm:$0x1]
  %4215 = vadd.xlane.f32.xlu0 %v4209
  %v4216 = vpop.xlane.xlu0 %4215
  %4217 = vadd.xlane.f32.xlu0 %v4210
  %v4218 = vpop.xlane.xlu0 %4217
  %v4219 = vmul.f32 %v4216, %v1296
  %v4220 = vmul.f32 %v4218, %v1296
  %v4221 = vsub.f32 %v4209, %v4219
  %v4222 = vsub.f32 %v4210, %v4220
  %v4223 = vmul.f32 %v4221, %v4221
  %v4224 = vmul.f32 %v4222, %v4222
  %4225 = vadd.xlane.f32.xlu0 %v4223
  %v4226 = vpop.xlane.xlu0 %4225
  %4227 = vadd.xlane.f32.xlu0 %v4224
  %v4228 = vpop.xlane.xlu0 %4227
  %v4229 = vmul.f32 %v4226, %v1296
  %v4230 = vmul.f32 %v4228, %v1296
  %v4231 = vadd.f32 %v4229, 1e-05
  %v4232 = vadd.f32 %v4230, 1e-05
  %v4233 = vrsqrt.pop %v4231
  %v4234 = vrsqrt.pop %v4232
  %v4235 = vmul.f32 %v4221, %v4233
  %v4236 = vmul.f32 %v4222, %v4234
  %v4238 = vlaneseq
  %v4239 = vshrl.u32 %v4238, 7
  %v4240 = vsub.s32 0, %v4239
  %v4241 = vrot.slane %v4212, %v4240
  %v4243 = vmul.f32 %v4235, %v4241
  %v4244 = vmul.f32 %v4236, %v4241
  %v4246 = vlaneseq
  %v4247 = vshrl.u32 %v4246, 7
  %v4248 = vsub.s32 0, %v4247
  %v4249 = vrot.slane %v4214, %v4248
  %v4251 = vadd.f32 %v4243, %v4249
  %v4252 = vadd.f32 %v4244, %v4249
  %s4253 = scalar_lea.vmem %s7, 1152
  %v4254 = vld [vmem:[%s4253] sm:$0xff]
  %v4255 = vld [vmem:[%s4253 + $0x8] sm:$0xff]
  %v4256 = vld [vmem:[%s4253 + $0x10] sm:$0xff]
  %v4257 = vld [vmem:[%s4253 + $0x18] sm:$0xff]
  %v4258 = vld [vmem:[%s4253 + $0x20] sm:$0xff]
  %v4259 = vld [vmem:[%s4253 + $0x28] sm:$0xff]
  %v4260 = vld [vmem:[%s4253 + $0x30] sm:$0xff]
  %v4261 = vld [vmem:[%s4253 + $0x38] sm:$0xff]
  %v4262 = vld [vmem:[%s4253 + $0x40] sm:$0xff]
  %v4263 = vld [vmem:[%s4253 + $0x48] sm:$0xff]
  %v4264 = vld [vmem:[%s4253 + $0x50] sm:$0xff]
  %v4265 = vld [vmem:[%s4253 + $0x58] sm:$0xff]
  %v4266 = vld [vmem:[%s4253 + $0x60] sm:$0xff]
  %v4267 = vld [vmem:[%s4253 + $0x68] sm:$0xff]
  %v4268 = vld [vmem:[%s4253 + $0x70] sm:$0xff]
  %v4269 = vld [vmem:[%s4253 + $0x78] sm:$0xff]
  %v4270 = vld [vmem:[%s4253 + $0x80] sm:$0xff]
  %v4271 = vld [vmem:[%s4253 + $0x88] sm:$0xff]
  %v4272 = vld [vmem:[%s4253 + $0x90] sm:$0xff]
  %v4273 = vld [vmem:[%s4253 + $0x98] sm:$0xff]
  %v4274 = vld [vmem:[%s4253 + $0xa0] sm:$0xff]
  %v4275 = vld [vmem:[%s4253 + $0xa8] sm:$0xff]
  %v4276 = vld [vmem:[%s4253 + $0xb0] sm:$0xff]
  %v4277 = vld [vmem:[%s4253 + $0xb8] sm:$0xff]
  %v4278 = vld [vmem:[%s4253 + $0xc0] sm:$0xff]
  %v4279 = vld [vmem:[%s4253 + $0xc8] sm:$0xff]
  %v4280 = vld [vmem:[%s4253 + $0xd0] sm:$0xff]
  %v4281 = vld [vmem:[%s4253 + $0xd8] sm:$0xff]
  %v4282 = vld [vmem:[%s4253 + $0xe0] sm:$0xff]
  %v4283 = vld [vmem:[%s4253 + $0xe8] sm:$0xff]
  %v4284 = vld [vmem:[%s4253 + $0xf0] sm:$0xff]
  %v4285 = vld [vmem:[%s4253 + $0xf8] sm:$0xff]
  %v4286 = vld [vmem:[%s4253 + $0x100] sm:$0xff]
  %v4287 = vld [vmem:[%s4253 + $0x108] sm:$0xff]
  %v4288 = vld [vmem:[%s4253 + $0x110] sm:$0xff]
  %v4289 = vld [vmem:[%s4253 + $0x118] sm:$0xff]
  %v4290 = vld [vmem:[%s4253 + $0x120] sm:$0xff]
  %v4291 = vld [vmem:[%s4253 + $0x128] sm:$0xff]
  %v4292 = vld [vmem:[%s4253 + $0x130] sm:$0xff]
  %v4293 = vld [vmem:[%s4253 + $0x138] sm:$0xff]
  %v4294 = vld [vmem:[%s4253 + $0x140] sm:$0xff]
  %v4295 = vld [vmem:[%s4253 + $0x148] sm:$0xff]
  %v4296 = vld [vmem:[%s4253 + $0x150] sm:$0xff]
  %v4297 = vld [vmem:[%s4253 + $0x158] sm:$0xff]
  %v4298 = vld [vmem:[%s4253 + $0x160] sm:$0xff]
  %v4299 = vld [vmem:[%s4253 + $0x168] sm:$0xff]
  %v4300 = vld [vmem:[%s4253 + $0x170] sm:$0xff]
  %v4301 = vld [vmem:[%s4253 + $0x178] sm:$0xff]
  %s4302 = scalar_lea.vmem %s8, 9
  %v4303 = vld [vmem:[%s4302] sm:$0x7]
  %v4305 = vlaneseq
  %v4306 = vshrl.u32 %v4305, 7
  %v4307 = vsub.s32 0, %v4306
  %v4308 = vrot.slane %v4303, %v4307
  %v4309 = vlaneseq
  %v4310 = vshrl.u32 %v4309, 7
  %v4311 = vsub.s32 1, %v4310
  %v4312 = vrot.slane %v4303, %v4311
  %v4313 = vlaneseq
  %v4314 = vshrl.u32 %v4313, 7
  %v4315 = vsub.s32 2, %v4314
  %v4316 = vrot.slane %v4303, %v4315
  %4320 = vmatprep.subr.mxu0 %v4255
  %4321 = vmatpush1.msra.mxu0 %v4254
  %4322 = vmatprep.subr.mxu0 %v4258
  %4323 = vmatpush1.msra.mxu0 %v4257
  %4324 = vmatprep.subr.mxu0 %v4261
  %4325 = vmatpush1.msra.mxu0 %v4260
  %4326 = vmatprep.subr.mxu0 %v4264
  %4327 = vmatpush1.msra.mxu0 %v4263
  %4328 = vmatprep.subr.mxu0 %v4267
  %4329 = vmatpush1.msra.mxu0 %v4266
  %4330 = vmatprep.subr.mxu0 %v4270
  %4331 = vmatpush1.msra.mxu0 %v4269
  %4332 = vmatprep.subr.mxu0 %v4273
  %4333 = vmatpush1.msra.mxu0 %v4272
  %4334 = vmatprep.subr.mxu0 %v4276
  %4335 = vmatpush1.msra.mxu0 %v4275
  %4336 = vmatprep.subr.mxu0 %v4279
  %4337 = vmatpush1.msra.mxu0 %v4278
  %4338 = vmatprep.subr.mxu0 %v4282
  %4339 = vmatpush1.msra.mxu0 %v4281
  %4340 = vmatprep.subr.mxu0 %v4285
  %4341 = vmatpush1.msra.mxu0 %v4284
  %4342 = vmatprep.subr.mxu0 %v4288
  %4343 = vmatpush1.msra.mxu0 %v4287
  %4344 = vmatprep.subr.mxu0 %v4291
  %4345 = vmatpush1.msra.mxu0 %v4290
  %4346 = vmatprep.subr.mxu0 %v4294
  %4347 = vmatpush1.msra.mxu0 %v4293
  %4348 = vmatprep.subr.mxu0 %v4297
  %4349 = vmatpush1.msra.mxu0 %v4296
  %4350 = vmatprep.subr.mxu0 %v4300
  %4351 = vmatpush1.msra.mxu0 %v4299
  %4352 = vmatprep.subr.mxu0 0.0
  %4353 = vmatpush1.msra.mxu0 0.0
  %4354 = vmatprep.subr.mxu0 0.0
  %4355 = vmatpush1.msra.mxu0 0.0
  %4356 = vmatprep.subr.mxu0 0.0
  %4357 = vmatpush1.msra.mxu0 0.0
  %4358 = vmatprep.subr.mxu0 0.0
  %4359 = vmatpush1.msra.mxu0 0.0
  %4360 = vmatprep.subr.mxu0 0.0
  %4361 = vmatpush1.msra.mxu0 0.0
  %4362 = vmatprep.subr.mxu0 0.0
  %4363 = vmatpush1.msra.mxu0 0.0
  %4364 = vmatprep.subr.mxu0 0.0
  %4365 = vmatpush1.msra.mxu0 0.0
  %4366 = vmatprep.subr.mxu0 0.0
  %4367 = vmatpush1.msra.mxu0 0.0
  %4368 = vmatprep.subr.mxu0 0.0
  %4369 = vmatpush1.msra.mxu0 0.0
  %4370 = vmatprep.subr.mxu0 0.0
  %4371 = vmatpush1.msra.mxu0 0.0
  %4372 = vmatprep.subr.mxu0 0.0
  %4373 = vmatpush1.msra.mxu0 0.0
  %4374 = vmatprep.subr.mxu0 0.0
  %4375 = vmatpush1.msra.mxu0 0.0
  %4376 = vmatprep.subr.mxu0 0.0
  %4377 = vmatpush1.msra.mxu0 0.0
  %4378 = vmatprep.subr.mxu0 0.0
  %4379 = vmatpush1.msra.mxu0 0.0
  %4380 = vmatprep.subr.mxu0 0.0
  %4381 = vmatpush1.msra.mxu0 0.0
  %4382 = vmatprep.subr.mxu0 0.0
  %4383 = vmatpush1.msra.mxu0 0.0
  %4384 = vmatprep.mubr.f32.mxu0 0.0
  %4385 = vmatmul.mubr.f32.gmra.mrb[0].mxu0 %v4251
  %v4386 = vpop.f32.mrb[0].mxu0
  %v4387 = vadd.f32 %v4308, %v4386
  %v4388 = vpop.f32.mrb[0].mxu0
  %v4389 = vadd.f32 %v4312, %v4388
  %4390 = vmatprep.mubr.f32.mxu0 0.0
  %4391 = vmatmul.mubr.f32.gmra.mrb[0].mxu0 %v4252
  %v4392 = vpop.f32.mrb[0].mxu0
  %v4393 = vadd.f32 %v4308, %v4392
  %v4394 = vpop.f32.mrb[0].mxu0
  %v4395 = vadd.f32 %v4312, %v4394
  %4396 = vdwg.mxu0
  %4397 = vmatprep.subr.mxu0 0.0
  %4398 = vmatpush1.msra.mxu0 %v4256
  %4399 = vmatprep.subr.mxu0 0.0
  %4400 = vmatpush1.msra.mxu0 %v4259
  %4401 = vmatprep.subr.mxu0 0.0
  %4402 = vmatpush1.msra.mxu0 %v4262
  %4403 = vmatprep.subr.mxu0 0.0
  %4404 = vmatpush1.msra.mxu0 %v4265
  %4405 = vmatprep.subr.mxu0 0.0
  %4406 = vmatpush1.msra.mxu0 %v4268
  %4407 = vmatprep.subr.mxu0 0.0
  %4408 = vmatpush1.msra.mxu0 %v4271
  %4409 = vmatprep.subr.mxu0 0.0
  %4410 = vmatpush1.msra.mxu0 %v4274
  %4411 = vmatprep.subr.mxu0 0.0
  %4412 = vmatpush1.msra.mxu0 %v4277
  %4413 = vmatprep.subr.mxu0 0.0
  %4414 = vmatpush1.msra.mxu0 %v4280
  %4415 = vmatprep.subr.mxu0 0.0
  %4416 = vmatpush1.msra.mxu0 %v4283
  %4417 = vmatprep.subr.mxu0 0.0
  %4418 = vmatpush1.msra.mxu0 %v4286
  %4419 = vmatprep.subr.mxu0 0.0
  %4420 = vmatpush1.msra.mxu0 %v4289
  %4421 = vmatprep.subr.mxu0 0.0
  %4422 = vmatpush1.msra.mxu0 %v4292
  %4423 = vmatprep.subr.mxu0 0.0
  %4424 = vmatpush1.msra.mxu0 %v4295
  %4425 = vmatprep.subr.mxu0 0.0
  %4426 = vmatpush1.msra.mxu0 %v4298
  %4427 = vmatprep.subr.mxu0 0.0
  %4428 = vmatpush1.msra.mxu0 %v4301
  %4429 = vmatprep.subr.mxu0 0.0
  %4430 = vmatpush1.msra.mxu0 0.0
  %4431 = vmatprep.subr.mxu0 0.0
  %4432 = vmatpush1.msra.mxu0 0.0
  %4433 = vmatprep.subr.mxu0 0.0
  %4434 = vmatpush1.msra.mxu0 0.0
  %4435 = vmatprep.subr.mxu0 0.0
  %4436 = vmatpush1.msra.mxu0 0.0
  %4437 = vmatprep.subr.mxu0 0.0
  %4438 = vmatpush1.msra.mxu0 0.0
  %4439 = vmatprep.subr.mxu0 0.0
  %4440 = vmatpush1.msra.mxu0 0.0
  %4441 = vmatprep.subr.mxu0 0.0
  %4442 = vmatpush1.msra.mxu0 0.0
  %4443 = vmatprep.subr.mxu0 0.0
  %4444 = vmatpush1.msra.mxu0 0.0
  %4445 = vmatprep.subr.mxu0 0.0
  %4446 = vmatpush1.msra.mxu0 0.0
  %4447 = vmatprep.subr.mxu0 0.0
  %4448 = vmatpush1.msra.mxu0 0.0
  %4449 = vmatprep.subr.mxu0 0.0
  %4450 = vmatpush1.msra.mxu0 0.0
  %4451 = vmatprep.subr.mxu0 0.0
  %4452 = vmatpush1.msra.mxu0 0.0
  %4453 = vmatprep.subr.mxu0 0.0
  %4454 = vmatpush1.msra.mxu0 0.0
  %4455 = vmatprep.subr.mxu0 0.0
  %4456 = vmatpush1.msra.mxu0 0.0
  %4457 = vmatprep.subr.mxu0 0.0
  %4458 = vmatpush1.msra.mxu0 0.0
  %4459 = vmatprep.subr.mxu0 0.0
  %4460 = vmatpush1.msra.mxu0 0.0
  %4461 = vmatprep.mubr.f32.mxu0 0.0
  %4462 = vmatmul.mubr.f32.gmra.mrb[0].mxu0 %v4251
  %v4463 = vpop.f32.mrb[0].mxu0
  %v4464 = vadd.f32 %v4316, %v4463
  %v4465 = vpop.f32.mrb[0].mxu0
  %4466 = vmatprep.mubr.f32.mxu0 0.0
  %4467 = vmatmul.mubr.f32.gmra.mrb[0].mxu0 %v4252
  %v4468 = vpop.f32.mrb[0].mxu0
  %v4469 = vadd.f32 %v4316, %v4468
  %v4470 = vpop.f32.mrb[0].mxu0
  %4471 = vdwg.mxu0
  %v4472 = vmul.f32 %v4387, %v442
  %v4473 = vmul.f32 %v4393, %v442
  %4474 = vmatprep.subr.mxu0 0.0
  %4475 = vmatpush1.xpose.msra.mxu0 %v4389
  %4476 = vmatprep.subr.mxu0 0.0
  %4477 = vmatpush1.xpose.msra.mxu0 %v4395
  %4478 = vmatprep.subr.mxu0 0.0
  %4479 = vmatpush1.xpose.msra.mxu0 0.0
  %4480 = vmatprep.subr.mxu0 0.0
  %4481 = vmatpush1.xpose.msra.mxu0 0.0
  %4482 = vmatprep.subr.mxu0 0.0
  %4483 = vmatpush1.xpose.msra.mxu0 0.0
  %4484 = vmatprep.subr.mxu0 0.0
  %4485 = vmatpush1.xpose.msra.mxu0 0.0
  %4486 = vmatprep.subr.mxu0 0.0
  %4487 = vmatpush1.xpose.msra.mxu0 0.0
  %4488 = vmatprep.subr.mxu0 0.0
  %4489 = vmatpush1.xpose.msra.mxu0 0.0
  %4490 = vmatprep.subr.mxu0 0.0
  %4491 = vmatpush1.xpose.msra.mxu0 0.0
  %4492 = vmatprep.subr.mxu0 0.0
  %4493 = vmatpush1.xpose.msra.mxu0 0.0
  %4494 = vmatprep.subr.mxu0 0.0
  %4495 = vmatpush1.xpose.msra.mxu0 0.0
  %4496 = vmatprep.subr.mxu0 0.0
  %4497 = vmatpush1.xpose.msra.mxu0 0.0
  %4498 = vmatprep.subr.mxu0 0.0
  %4499 = vmatpush1.xpose.msra.mxu0 0.0
  %4500 = vmatprep.subr.mxu0 0.0
  %4501 = vmatpush1.xpose.msra.mxu0 0.0
  %4502 = vmatprep.subr.mxu0 0.0
  %4503 = vmatpush1.xpose.msra.mxu0 0.0
  %4504 = vmatprep.subr.mxu0 0.0
  %4505 = vmatpush1.xpose.msra.mxu0 0.0
  %4506 = vmatprep.subr.mxu0 0.0
  %4507 = vmatpush1.xpose.msra.mxu0 0.0
  %4508 = vmatprep.subr.mxu0 0.0
  %4509 = vmatpush1.xpose.msra.mxu0 0.0
  %4510 = vmatprep.subr.mxu0 0.0
  %4511 = vmatpush1.xpose.msra.mxu0 0.0
  %4512 = vmatprep.subr.mxu0 0.0
  %4513 = vmatpush1.xpose.msra.mxu0 0.0
  %4514 = vmatprep.subr.mxu0 0.0
  %4515 = vmatpush1.xpose.msra.mxu0 0.0
  %4516 = vmatprep.subr.mxu0 0.0
  %4517 = vmatpush1.xpose.msra.mxu0 0.0
  %4518 = vmatprep.subr.mxu0 0.0
  %4519 = vmatpush1.xpose.msra.mxu0 0.0
  %4520 = vmatprep.subr.mxu0 0.0
  %4521 = vmatpush1.xpose.msra.mxu0 0.0
  %4522 = vmatprep.subr.mxu0 0.0
  %4523 = vmatpush1.xpose.msra.mxu0 0.0
  %4524 = vmatprep.subr.mxu0 0.0
  %4525 = vmatpush1.xpose.msra.mxu0 0.0
  %4526 = vmatprep.subr.mxu0 0.0
  %4527 = vmatpush1.xpose.msra.mxu0 0.0
  %4528 = vmatprep.subr.mxu0 0.0
  %4529 = vmatpush1.xpose.msra.mxu0 0.0
  %4530 = vmatprep.subr.mxu0 0.0
  %4531 = vmatpush1.xpose.msra.mxu0 0.0
  %4532 = vmatprep.subr.mxu0 0.0
  %4533 = vmatpush1.xpose.msra.mxu0 0.0
  %4534 = vmatprep.subr.mxu0 0.0
  %4535 = vmatpush1.xpose.msra.mxu0 0.0
  %4536 = vmatprep.subr.mxu0 0.0
  %4537 = vmatpush1.xpose.msra.mxu0 0.0
  %4538 = vmatprep.mubr.f32.mxu0 0.0
  %4539 = vmatmul.mubr.f32.gmra.mrb[0].mxu0 %v4472
  %v4540 = vpop.f32.mrb[0].mxu0
  %v4541 = vadd.f32 %v84, %v4540
  %v4542 = vpop.f32.mrb[0].mxu0
  %4543 = vmatprep.mubr.f32.mxu0 0.0
  %4544 = vmatmul.mubr.f32.gmra.mrb[0].mxu0 %v4473
  %v4545 = vpop.f32.mrb[0].mxu0
  %v4546 = vadd.f32 %v85, %v4545
  %v4547 = vpop.f32.mrb[0].mxu0
  %4548 = vdwg.mxu0
  %v4549 = vsel %vm88, %v4541, -inf
  %4550 = vmax.xlane.f32.xlu0 %v4549
  %v4551 = vpop.xlane.xlu0 %4550
  %v4552 = vsel %vm88, %v4546, -inf
  %4553 = vmax.xlane.f32.xlu0 %v4552
  %v4554 = vpop.xlane.xlu0 %4553
  %v4555 = vsub.f32 %v4541, %v4551
  %v4556 = vsub.f32 %v4546, %v4554
  %v4557 = vmul.f32 %v4555, 1.442695
  %v4558 = vpow.pop %v4557
  %v4559 = vmul.f32 %v4556, 1.442695
  %v4560 = vpow.pop %v4559
  %v4561 = vsel %vm88, %v4558, 0.0
  %4562 = vadd.xlane.f32.xlu0 %v4561
  %v4563 = vpop.xlane.xlu0 %4562
  %v4564 = vsel %vm88, %v4560, 0.0
  %4565 = vadd.xlane.f32.xlu0 %v4564
  %v4566 = vpop.xlane.xlu0 %4565
  %v4567 = vrcp.pop %v4563
  %v4568 = vrcp.pop %v4566
  %v4569 = vmul.f32 %v4558, %v4567
  %v4570 = vmul.f32 %v4560, %v4568
  %v4571 = vmul.f32 %v4464, %v442
  %v4572 = vmul.f32 %v4469, %v442
  %v4573 = vmul.f32 %v4387, %v548
  %v4574 = vmul.f32 %v4393, %v548
  %4575 = vmatprep.subr.mxu0 0.0
  %4576 = vmatpush1.xpose.msra.mxu0 %v4389
  %4577 = vmatprep.subr.mxu0 0.0
  %4578 = vmatpush1.xpose.msra.mxu0 %v4395
  %4579 = vmatprep.subr.mxu0 0.0
  %4580 = vmatpush1.xpose.msra.mxu0 0.0
  %4581 = vmatprep.subr.mxu0 0.0
  %4582 = vmatpush1.xpose.msra.mxu0 0.0
  %4583 = vmatprep.subr.mxu0 0.0
  %4584 = vmatpush1.xpose.msra.mxu0 0.0
  %4585 = vmatprep.subr.mxu0 0.0
  %4586 = vmatpush1.xpose.msra.mxu0 0.0
  %4587 = vmatprep.subr.mxu0 0.0
  %4588 = vmatpush1.xpose.msra.mxu0 0.0
  %4589 = vmatprep.subr.mxu0 0.0
  %4590 = vmatpush1.xpose.msra.mxu0 0.0
  %4591 = vmatprep.subr.mxu0 0.0
  %4592 = vmatpush1.xpose.msra.mxu0 0.0
  %4593 = vmatprep.subr.mxu0 0.0
  %4594 = vmatpush1.xpose.msra.mxu0 0.0
  %4595 = vmatprep.subr.mxu0 0.0
  %4596 = vmatpush1.xpose.msra.mxu0 0.0
  %4597 = vmatprep.subr.mxu0 0.0
  %4598 = vmatpush1.xpose.msra.mxu0 0.0
  %4599 = vmatprep.subr.mxu0 0.0
  %4600 = vmatpush1.xpose.msra.mxu0 0.0
  %4601 = vmatprep.subr.mxu0 0.0
  %4602 = vmatpush1.xpose.msra.mxu0 0.0
  %4603 = vmatprep.subr.mxu0 0.0
  %4604 = vmatpush1.xpose.msra.mxu0 0.0
  %4605 = vmatprep.subr.mxu0 0.0
  %4606 = vmatpush1.xpose.msra.mxu0 0.0
  %4607 = vmatprep.subr.mxu0 0.0
  %4608 = vmatpush1.xpose.msra.mxu0 0.0
  %4609 = vmatprep.subr.mxu0 0.0
  %4610 = vmatpush1.xpose.msra.mxu0 0.0
  %4611 = vmatprep.subr.mxu0 0.0
  %4612 = vmatpush1.xpose.msra.mxu0 0.0
  %4613 = vmatprep.subr.mxu0 0.0
  %4614 = vmatpush1.xpose.msra.mxu0 0.0
  %4615 = vmatprep.subr.mxu0 0.0
  %4616 = vmatpush1.xpose.msra.mxu0 0.0
  %4617 = vmatprep.subr.mxu0 0.0
  %4618 = vmatpush1.xpose.msra.mxu0 0.0
  %4619 = vmatprep.subr.mxu0 0.0
  %4620 = vmatpush1.xpose.msra.mxu0 0.0
  %4621 = vmatprep.subr.mxu0 0.0
  %4622 = vmatpush1.xpose.msra.mxu0 0.0
  %4623 = vmatprep.subr.mxu0 0.0
  %4624 = vmatpush1.xpose.msra.mxu0 0.0
  %4625 = vmatprep.subr.mxu0 0.0
  %4626 = vmatpush1.xpose.msra.mxu0 0.0
  %4627 = vmatprep.subr.mxu0 0.0
  %4628 = vmatpush1.xpose.msra.mxu0 0.0
  %4629 = vmatprep.subr.mxu0 0.0
  %4630 = vmatpush1.xpose.msra.mxu0 0.0
  %4631 = vmatprep.subr.mxu0 0.0
  %4632 = vmatpush1.xpose.msra.mxu0 0.0
  %4633 = vmatprep.subr.mxu0 0.0
  %4634 = vmatpush1.xpose.msra.mxu0 0.0
  %4635 = vmatprep.subr.mxu0 0.0
  %4636 = vmatpush1.xpose.msra.mxu0 0.0
  %4637 = vmatprep.subr.mxu0 0.0
  %4638 = vmatpush1.xpose.msra.mxu0 0.0
  %4639 = vmatprep.mubr.f32.mxu0 0.0
  %4640 = vmatmul.mubr.f32.gmra.mrb[0].mxu0 %v4573
  %v4641 = vpop.f32.mrb[0].mxu0
  %v4642 = vadd.f32 %v84, %v4641
  %v4643 = vpop.f32.mrb[0].mxu0
  %4644 = vmatprep.mubr.f32.mxu0 0.0
  %4645 = vmatmul.mubr.f32.gmra.mrb[0].mxu0 %v4574
  %v4646 = vpop.f32.mrb[0].mxu0
  %v4647 = vadd.f32 %v85, %v4646
  %v4648 = vpop.f32.mrb[0].mxu0
  %4649 = vdwg.mxu0
  %v4650 = vsel %vm88, %v4642, -inf
  %4651 = vmax.xlane.f32.xlu0 %v4650
  %v4652 = vpop.xlane.xlu0 %4651
  %v4653 = vsel %vm88, %v4647, -inf
  %4654 = vmax.xlane.f32.xlu0 %v4653
  %v4655 = vpop.xlane.xlu0 %4654
  %v4656 = vsub.f32 %v4642, %v4652
  %v4657 = vsub.f32 %v4647, %v4655
  %v4658 = vmul.f32 %v4656, 1.442695
  %v4659 = vpow.pop %v4658
  %v4660 = vmul.f32 %v4657, 1.442695
  %v4661 = vpow.pop %v4660
  %v4662 = vsel %vm88, %v4659, 0.0
  %4663 = vadd.xlane.f32.xlu0 %v4662
  %v4664 = vpop.xlane.xlu0 %4663
  %v4665 = vsel %vm88, %v4661, 0.0
  %4666 = vadd.xlane.f32.xlu0 %v4665
  %v4667 = vpop.xlane.xlu0 %4666
  %v4668 = vrcp.pop %v4664
  %v4669 = vrcp.pop %v4667
  %v4670 = vmul.f32 %v4659, %v4668
  %v4671 = vmul.f32 %v4661, %v4669
  %v4672 = vmul.f32 %v4464, %v548
  %v4673 = vmul.f32 %v4469, %v548
  %v4675 = vsel %vm88, %v4670, 0
  %v4678 = vsel %vm88, %v4671, 0
  %4680 = vmatprep.subr.mxu0 0.0
  %4681 = vmatpush1.msra.mxu0 %v4672
  %4682 = vmatprep.subr.mxu0 0.0
  %4683 = vmatpush1.msra.mxu0 %v4673
  %4684 = vmatprep.subr.mxu0 0.0
  %4685 = vmatpush1.msra.mxu0 0.0
  %4686 = vmatprep.subr.mxu0 0.0
  %4687 = vmatpush1.msra.mxu0 0.0
  %4688 = vmatprep.subr.mxu0 0.0
  %4689 = vmatpush1.msra.mxu0 0.0
  %4690 = vmatprep.subr.mxu0 0.0
  %4691 = vmatpush1.msra.mxu0 0.0
  %4692 = vmatprep.subr.mxu0 0.0
  %4693 = vmatpush1.msra.mxu0 0.0
  %4694 = vmatprep.subr.mxu0 0.0
  %4695 = vmatpush1.msra.mxu0 0.0
  %4696 = vmatprep.subr.mxu0 0.0
  %4697 = vmatpush1.msra.mxu0 0.0
  %4698 = vmatprep.subr.mxu0 0.0
  %4699 = vmatpush1.msra.mxu0 0.0
  %4700 = vmatprep.subr.mxu0 0.0
  %4701 = vmatpush1.msra.mxu0 0.0
  %4702 = vmatprep.subr.mxu0 0.0
  %4703 = vmatpush1.msra.mxu0 0.0
  %4704 = vmatprep.subr.mxu0 0.0
  %4705 = vmatpush1.msra.mxu0 0.0
  %4706 = vmatprep.subr.mxu0 0.0
  %4707 = vmatpush1.msra.mxu0 0.0
  %4708 = vmatprep.subr.mxu0 0.0
  %4709 = vmatpush1.msra.mxu0 0.0
  %4710 = vmatprep.subr.mxu0 0.0
  %4711 = vmatpush1.msra.mxu0 0.0
  %4712 = vmatprep.subr.mxu0 0.0
  %4713 = vmatpush1.msra.mxu0 0.0
  %4714 = vmatprep.subr.mxu0 0.0
  %4715 = vmatpush1.msra.mxu0 0.0
  %4716 = vmatprep.subr.mxu0 0.0
  %4717 = vmatpush1.msra.mxu0 0.0
  %4718 = vmatprep.subr.mxu0 0.0
  %4719 = vmatpush1.msra.mxu0 0.0
  %4720 = vmatprep.subr.mxu0 0.0
  %4721 = vmatpush1.msra.mxu0 0.0
  %4722 = vmatprep.subr.mxu0 0.0
  %4723 = vmatpush1.msra.mxu0 0.0
  %4724 = vmatprep.subr.mxu0 0.0
  %4725 = vmatpush1.msra.mxu0 0.0
  %4726 = vmatprep.subr.mxu0 0.0
  %4727 = vmatpush1.msra.mxu0 0.0
  %4728 = vmatprep.subr.mxu0 0.0
  %4729 = vmatpush1.msra.mxu0 0.0
  %4730 = vmatprep.subr.mxu0 0.0
  %4731 = vmatpush1.msra.mxu0 0.0
  %4732 = vmatprep.subr.mxu0 0.0
  %4733 = vmatpush1.msra.mxu0 0.0
  %4734 = vmatprep.subr.mxu0 0.0
  %4735 = vmatpush1.msra.mxu0 0.0
  %4736 = vmatprep.subr.mxu0 0.0
  %4737 = vmatpush1.msra.mxu0 0.0
  %4738 = vmatprep.subr.mxu0 0.0
  %4739 = vmatpush1.msra.mxu0 0.0
  %4740 = vmatprep.subr.mxu0 0.0
  %4741 = vmatpush1.msra.mxu0 0.0
  %4742 = vmatprep.subr.mxu0 0.0
  %4743 = vmatpush1.msra.mxu0 0.0
  %4744 = vmatprep.mubr.f32.mxu0 0.0
  %4745 = vmatmul.mubr.f32.gmra.mrb[0].mxu0 %v4675
  %v4746 = vpop.f32.mrb[0].mxu0
  %v4747 = vadd.f32 0.0, %v4746
  %v4748 = vpop.f32.mrb[0].mxu0
  %4749 = vmatprep.mubr.f32.mxu0 0.0
  %4750 = vmatmul.mubr.f32.gmra.mrb[0].mxu0 %v4678
  %v4751 = vpop.f32.mrb[0].mxu0
  %v4752 = vadd.f32 0.0, %v4751
  %v4753 = vpop.f32.mrb[0].mxu0
  %4754 = vdwg.mxu0
  %v4756 = vsel %vm88, %v4569, 0
  %v4759 = vsel %vm88, %v4570, 0
  %4761 = vmatprep.subr.mxu0 0.0
  %4762 = vmatpush1.msra.mxu0 %v4571
  %4763 = vmatprep.subr.mxu0 0.0
  %4764 = vmatpush1.msra.mxu0 %v4572
  %4765 = vmatprep.subr.mxu0 0.0
  %4766 = vmatpush1.msra.mxu0 0.0
  %4767 = vmatprep.subr.mxu0 0.0
  %4768 = vmatpush1.msra.mxu0 0.0
  %4769 = vmatprep.subr.mxu0 0.0
  %4770 = vmatpush1.msra.mxu0 0.0
  %4771 = vmatprep.subr.mxu0 0.0
  %4772 = vmatpush1.msra.mxu0 0.0
  %4773 = vmatprep.subr.mxu0 0.0
  %4774 = vmatpush1.msra.mxu0 0.0
  %4775 = vmatprep.subr.mxu0 0.0
  %4776 = vmatpush1.msra.mxu0 0.0
  %4777 = vmatprep.subr.mxu0 0.0
  %4778 = vmatpush1.msra.mxu0 0.0
  %4779 = vmatprep.subr.mxu0 0.0
  %4780 = vmatpush1.msra.mxu0 0.0
  %4781 = vmatprep.subr.mxu0 0.0
  %4782 = vmatpush1.msra.mxu0 0.0
  %4783 = vmatprep.subr.mxu0 0.0
  %4784 = vmatpush1.msra.mxu0 0.0
  %4785 = vmatprep.subr.mxu0 0.0
  %4786 = vmatpush1.msra.mxu0 0.0
  %4787 = vmatprep.subr.mxu0 0.0
  %4788 = vmatpush1.msra.mxu0 0.0
  %4789 = vmatprep.subr.mxu0 0.0
  %4790 = vmatpush1.msra.mxu0 0.0
  %4791 = vmatprep.subr.mxu0 0.0
  %4792 = vmatpush1.msra.mxu0 0.0
  %4793 = vmatprep.subr.mxu0 0.0
  %4794 = vmatpush1.msra.mxu0 0.0
  %4795 = vmatprep.subr.mxu0 0.0
  %4796 = vmatpush1.msra.mxu0 0.0
  %4797 = vmatprep.subr.mxu0 0.0
  %4798 = vmatpush1.msra.mxu0 0.0
  %4799 = vmatprep.subr.mxu0 0.0
  %4800 = vmatpush1.msra.mxu0 0.0
  %4801 = vmatprep.subr.mxu0 0.0
  %4802 = vmatpush1.msra.mxu0 0.0
  %4803 = vmatprep.subr.mxu0 0.0
  %4804 = vmatpush1.msra.mxu0 0.0
  %4805 = vmatprep.subr.mxu0 0.0
  %4806 = vmatpush1.msra.mxu0 0.0
  %4807 = vmatprep.subr.mxu0 0.0
  %4808 = vmatpush1.msra.mxu0 0.0
  %4809 = vmatprep.subr.mxu0 0.0
  %4810 = vmatpush1.msra.mxu0 0.0
  %4811 = vmatprep.subr.mxu0 0.0
  %4812 = vmatpush1.msra.mxu0 0.0
  %4813 = vmatprep.subr.mxu0 0.0
  %4814 = vmatpush1.msra.mxu0 0.0
  %4815 = vmatprep.subr.mxu0 0.0
  %4816 = vmatpush1.msra.mxu0 0.0
  %4817 = vmatprep.subr.mxu0 0.0
  %4818 = vmatpush1.msra.mxu0 0.0
  %4819 = vmatprep.subr.mxu0 0.0
  %4820 = vmatpush1.msra.mxu0 0.0
  %4821 = vmatprep.subr.mxu0 0.0
  %4822 = vmatpush1.msra.mxu0 0.0
  %4823 = vmatprep.subr.mxu0 0.0
  %4824 = vmatpush1.msra.mxu0 0.0
  %4825 = vmatprep.mubr.f32.mxu0 0.0
  %4826 = vmatmul.mubr.f32.gmra.mrb[0].mxu0 %v4756
  %v4827 = vpop.f32.mrb[0].mxu0
  %v4828 = vadd.f32 %v4747, %v4827
  %v4829 = vpop.f32.mrb[0].mxu0
  %4830 = vmatprep.mubr.f32.mxu0 0.0
  %4831 = vmatmul.mubr.f32.gmra.mrb[0].mxu0 %v4759
  %v4832 = vpop.f32.mrb[0].mxu0
  %v4833 = vadd.f32 %v4752, %v4832
  %v4834 = vpop.f32.mrb[0].mxu0
  %4835 = vdwg.mxu0
  %v4836 = vmul.f32 %v4387, %v816
  %v4837 = vmul.f32 %v4393, %v816
  %4838 = vmatprep.subr.mxu0 0.0
  %4839 = vmatpush1.xpose.msra.mxu0 %v4389
  %4840 = vmatprep.subr.mxu0 0.0
  %4841 = vmatpush1.xpose.msra.mxu0 %v4395
  %4842 = vmatprep.subr.mxu0 0.0
  %4843 = vmatpush1.xpose.msra.mxu0 0.0
  %4844 = vmatprep.subr.mxu0 0.0
  %4845 = vmatpush1.xpose.msra.mxu0 0.0
  %4846 = vmatprep.subr.mxu0 0.0
  %4847 = vmatpush1.xpose.msra.mxu0 0.0
  %4848 = vmatprep.subr.mxu0 0.0
  %4849 = vmatpush1.xpose.msra.mxu0 0.0
  %4850 = vmatprep.subr.mxu0 0.0
  %4851 = vmatpush1.xpose.msra.mxu0 0.0
  %4852 = vmatprep.subr.mxu0 0.0
  %4853 = vmatpush1.xpose.msra.mxu0 0.0
  %4854 = vmatprep.subr.mxu0 0.0
  %4855 = vmatpush1.xpose.msra.mxu0 0.0
  %4856 = vmatprep.subr.mxu0 0.0
  %4857 = vmatpush1.xpose.msra.mxu0 0.0
  %4858 = vmatprep.subr.mxu0 0.0
  %4859 = vmatpush1.xpose.msra.mxu0 0.0
  %4860 = vmatprep.subr.mxu0 0.0
  %4861 = vmatpush1.xpose.msra.mxu0 0.0
  %4862 = vmatprep.subr.mxu0 0.0
  %4863 = vmatpush1.xpose.msra.mxu0 0.0
  %4864 = vmatprep.subr.mxu0 0.0
  %4865 = vmatpush1.xpose.msra.mxu0 0.0
  %4866 = vmatprep.subr.mxu0 0.0
  %4867 = vmatpush1.xpose.msra.mxu0 0.0
  %4868 = vmatprep.subr.mxu0 0.0
  %4869 = vmatpush1.xpose.msra.mxu0 0.0
  %4870 = vmatprep.subr.mxu0 0.0
  %4871 = vmatpush1.xpose.msra.mxu0 0.0
  %4872 = vmatprep.subr.mxu0 0.0
  %4873 = vmatpush1.xpose.msra.mxu0 0.0
  %4874 = vmatprep.subr.mxu0 0.0
  %4875 = vmatpush1.xpose.msra.mxu0 0.0
  %4876 = vmatprep.subr.mxu0 0.0
  %4877 = vmatpush1.xpose.msra.mxu0 0.0
  %4878 = vmatprep.subr.mxu0 0.0
  %4879 = vmatpush1.xpose.msra.mxu0 0.0
  %4880 = vmatprep.subr.mxu0 0.0
  %4881 = vmatpush1.xpose.msra.mxu0 0.0
  %4882 = vmatprep.subr.mxu0 0.0
  %4883 = vmatpush1.xpose.msra.mxu0 0.0
  %4884 = vmatprep.subr.mxu0 0.0
  %4885 = vmatpush1.xpose.msra.mxu0 0.0
  %4886 = vmatprep.subr.mxu0 0.0
  %4887 = vmatpush1.xpose.msra.mxu0 0.0
  %4888 = vmatprep.subr.mxu0 0.0
  %4889 = vmatpush1.xpose.msra.mxu0 0.0
  %4890 = vmatprep.subr.mxu0 0.0
  %4891 = vmatpush1.xpose.msra.mxu0 0.0
  %4892 = vmatprep.subr.mxu0 0.0
  %4893 = vmatpush1.xpose.msra.mxu0 0.0
  %4894 = vmatprep.subr.mxu0 0.0
  %4895 = vmatpush1.xpose.msra.mxu0 0.0
  %4896 = vmatprep.subr.mxu0 0.0
  %4897 = vmatpush1.xpose.msra.mxu0 0.0
  %4898 = vmatprep.subr.mxu0 0.0
  %4899 = vmatpush1.xpose.msra.mxu0 0.0
  %4900 = vmatprep.subr.mxu0 0.0
  %4901 = vmatpush1.xpose.msra.mxu0 0.0
  %4902 = vmatprep.mubr.f32.mxu0 0.0
  %4903 = vmatmul.mubr.f32.gmra.mrb[0].mxu0 %v4836
  %v4904 = vpop.f32.mrb[0].mxu0
  %v4905 = vadd.f32 %v84, %v4904
  %v4906 = vpop.f32.mrb[0].mxu0
  %4907 = vmatprep.mubr.f32.mxu0 0.0
  %4908 = vmatmul.mubr.f32.gmra.mrb[0].mxu0 %v4837
  %v4909 = vpop.f32.mrb[0].mxu0
  %v4910 = vadd.f32 %v85, %v4909
  %v4911 = vpop.f32.mrb[0].mxu0
  %4912 = vdwg.mxu0
  %v4913 = vsel %vm88, %v4905, -inf
  %4914 = vmax.xlane.f32.xlu0 %v4913
  %v4915 = vpop.xlane.xlu0 %4914
  %v4916 = vsel %vm88, %v4910, -inf
  %4917 = vmax.xlane.f32.xlu0 %v4916
  %v4918 = vpop.xlane.xlu0 %4917
  %v4919 = vsub.f32 %v4905, %v4915
  %v4920 = vsub.f32 %v4910, %v4918
  %v4921 = vmul.f32 %v4919, 1.442695
  %v4922 = vpow.pop %v4921
  %v4923 = vmul.f32 %v4920, 1.442695
  %v4924 = vpow.pop %v4923
  %v4925 = vsel %vm88, %v4922, 0.0
  %4926 = vadd.xlane.f32.xlu0 %v4925
  %v4927 = vpop.xlane.xlu0 %4926
  %v4928 = vsel %vm88, %v4924, 0.0
  %4929 = vadd.xlane.f32.xlu0 %v4928
  %v4930 = vpop.xlane.xlu0 %4929
  %v4931 = vrcp.pop %v4927
  %v4932 = vrcp.pop %v4930
  %v4933 = vmul.f32 %v4922, %v4931
  %v4934 = vmul.f32 %v4924, %v4932
  %v4935 = vmul.f32 %v4464, %v816
  %v4936 = vmul.f32 %v4469, %v816
  %v4938 = vsel %vm88, %v4933, 0
  %v4941 = vsel %vm88, %v4934, 0
  %4943 = vmatprep.subr.mxu0 0.0
  %4944 = vmatpush1.msra.mxu0 %v4935
  %4945 = vmatprep.subr.mxu0 0.0
  %4946 = vmatpush1.msra.mxu0 %v4936
  %4947 = vmatprep.subr.mxu0 0.0
  %4948 = vmatpush1.msra.mxu0 0.0
  %4949 = vmatprep.subr.mxu0 0.0
  %4950 = vmatpush1.msra.mxu0 0.0
  %4951 = vmatprep.subr.mxu0 0.0
  %4952 = vmatpush1.msra.mxu0 0.0
  %4953 = vmatprep.subr.mxu0 0.0
  %4954 = vmatpush1.msra.mxu0 0.0
  %4955 = vmatprep.subr.mxu0 0.0
  %4956 = vmatpush1.msra.mxu0 0.0
  %4957 = vmatprep.subr.mxu0 0.0
  %4958 = vmatpush1.msra.mxu0 0.0
  %4959 = vmatprep.subr.mxu0 0.0
  %4960 = vmatpush1.msra.mxu0 0.0
  %4961 = vmatprep.subr.mxu0 0.0
  %4962 = vmatpush1.msra.mxu0 0.0
  %4963 = vmatprep.subr.mxu0 0.0
  %4964 = vmatpush1.msra.mxu0 0.0
  %4965 = vmatprep.subr.mxu0 0.0
  %4966 = vmatpush1.msra.mxu0 0.0
  %4967 = vmatprep.subr.mxu0 0.0
  %4968 = vmatpush1.msra.mxu0 0.0
  %4969 = vmatprep.subr.mxu0 0.0
  %4970 = vmatpush1.msra.mxu0 0.0
  %4971 = vmatprep.subr.mxu0 0.0
  %4972 = vmatpush1.msra.mxu0 0.0
  %4973 = vmatprep.subr.mxu0 0.0
  %4974 = vmatpush1.msra.mxu0 0.0
  %4975 = vmatprep.subr.mxu0 0.0
  %4976 = vmatpush1.msra.mxu0 0.0
  %4977 = vmatprep.subr.mxu0 0.0
  %4978 = vmatpush1.msra.mxu0 0.0
  %4979 = vmatprep.subr.mxu0 0.0
  %4980 = vmatpush1.msra.mxu0 0.0
  %4981 = vmatprep.subr.mxu0 0.0
  %4982 = vmatpush1.msra.mxu0 0.0
  %4983 = vmatprep.subr.mxu0 0.0
  %4984 = vmatpush1.msra.mxu0 0.0
  %4985 = vmatprep.subr.mxu0 0.0
  %4986 = vmatpush1.msra.mxu0 0.0
  %4987 = vmatprep.subr.mxu0 0.0
  %4988 = vmatpush1.msra.mxu0 0.0
  %4989 = vmatprep.subr.mxu0 0.0
  %4990 = vmatpush1.msra.mxu0 0.0
  %4991 = vmatprep.subr.mxu0 0.0
  %4992 = vmatpush1.msra.mxu0 0.0
  %4993 = vmatprep.subr.mxu0 0.0
  %4994 = vmatpush1.msra.mxu0 0.0
  %4995 = vmatprep.subr.mxu0 0.0
  %4996 = vmatpush1.msra.mxu0 0.0
  %4997 = vmatprep.subr.mxu0 0.0
  %4998 = vmatpush1.msra.mxu0 0.0
  %4999 = vmatprep.subr.mxu0 0.0
  %5000 = vmatpush1.msra.mxu0 0.0
  %5001 = vmatprep.subr.mxu0 0.0
  %5002 = vmatpush1.msra.mxu0 0.0
  %5003 = vmatprep.subr.mxu0 0.0
  %5004 = vmatpush1.msra.mxu0 0.0
  %5005 = vmatprep.subr.mxu0 0.0
  %5006 = vmatpush1.msra.mxu0 0.0
  %5007 = vmatprep.mubr.f32.mxu0 0.0
  %5008 = vmatmul.mubr.f32.gmra.mrb[0].mxu0 %v4938
  %v5009 = vpop.f32.mrb[0].mxu0
  %v5010 = vadd.f32 0.0, %v5009
  %v5011 = vpop.f32.mrb[0].mxu0
  %5012 = vmatprep.mubr.f32.mxu0 0.0
  %5013 = vmatmul.mubr.f32.gmra.mrb[0].mxu0 %v4941
  %v5014 = vpop.f32.mrb[0].mxu0
  %v5015 = vadd.f32 0.0, %v5014
  %v5016 = vpop.f32.mrb[0].mxu0
  %5017 = vdwg.mxu0
  %v5018 = vadd.f32 %v4828, %v5010
  %v5019 = vadd.f32 %v4833, %v5015
  %v5020 = vmul.f32 %v4387, %v1005
  %v5021 = vmul.f32 %v4393, %v1005
  %5022 = vmatprep.subr.mxu0 0.0
  %5023 = vmatpush1.xpose.msra.mxu0 %v4389
  %5024 = vmatprep.subr.mxu0 0.0
  %5025 = vmatpush1.xpose.msra.mxu0 %v4395
  %5026 = vmatprep.subr.mxu0 0.0
  %5027 = vmatpush1.xpose.msra.mxu0 0.0
  %5028 = vmatprep.subr.mxu0 0.0
  %5029 = vmatpush1.xpose.msra.mxu0 0.0
  %5030 = vmatprep.subr.mxu0 0.0
  %5031 = vmatpush1.xpose.msra.mxu0 0.0
  %5032 = vmatprep.subr.mxu0 0.0
  %5033 = vmatpush1.xpose.msra.mxu0 0.0
  %5034 = vmatprep.subr.mxu0 0.0
  %5035 = vmatpush1.xpose.msra.mxu0 0.0
  %5036 = vmatprep.subr.mxu0 0.0
  %5037 = vmatpush1.xpose.msra.mxu0 0.0
  %5038 = vmatprep.subr.mxu0 0.0
  %5039 = vmatpush1.xpose.msra.mxu0 0.0
  %5040 = vmatprep.subr.mxu0 0.0
  %5041 = vmatpush1.xpose.msra.mxu0 0.0
  %5042 = vmatprep.subr.mxu0 0.0
  %5043 = vmatpush1.xpose.msra.mxu0 0.0
  %5044 = vmatprep.subr.mxu0 0.0
  %5045 = vmatpush1.xpose.msra.mxu0 0.0
  %5046 = vmatprep.subr.mxu0 0.0
  %5047 = vmatpush1.xpose.msra.mxu0 0.0
  %5048 = vmatprep.subr.mxu0 0.0
  %5049 = vmatpush1.xpose.msra.mxu0 0.0
  %5050 = vmatprep.subr.mxu0 0.0
  %5051 = vmatpush1.xpose.msra.mxu0 0.0
  %5052 = vmatprep.subr.mxu0 0.0
  %5053 = vmatpush1.xpose.msra.mxu0 0.0
  %5054 = vmatprep.subr.mxu0 0.0
  %5055 = vmatpush1.xpose.msra.mxu0 0.0
  %5056 = vmatprep.subr.mxu0 0.0
  %5057 = vmatpush1.xpose.msra.mxu0 0.0
  %5058 = vmatprep.subr.mxu0 0.0
  %5059 = vmatpush1.xpose.msra.mxu0 0.0
  %5060 = vmatprep.subr.mxu0 0.0
  %5061 = vmatpush1.xpose.msra.mxu0 0.0
  %5062 = vmatprep.subr.mxu0 0.0
  %5063 = vmatpush1.xpose.msra.mxu0 0.0
  %5064 = vmatprep.subr.mxu0 0.0
  %5065 = vmatpush1.xpose.msra.mxu0 0.0
  %5066 = vmatprep.subr.mxu0 0.0
  %5067 = vmatpush1.xpose.msra.mxu0 0.0
  %5068 = vmatprep.subr.mxu0 0.0
  %5069 = vmatpush1.xpose.msra.mxu0 0.0
  %5070 = vmatprep.subr.mxu0 0.0
  %5071 = vmatpush1.xpose.msra.mxu0 0.0
  %5072 = vmatprep.subr.mxu0 0.0
  %5073 = vmatpush1.xpose.msra.mxu0 0.0
  %5074 = vmatprep.subr.mxu0 0.0
  %5075 = vmatpush1.xpose.msra.mxu0 0.0
  %5076 = vmatprep.subr.mxu0 0.0
  %5077 = vmatpush1.xpose.msra.mxu0 0.0
  %5078 = vmatprep.subr.mxu0 0.0
  %5079 = vmatpush1.xpose.msra.mxu0 0.0
  %5080 = vmatprep.subr.mxu0 0.0
  %5081 = vmatpush1.xpose.msra.mxu0 0.0
  %5082 = vmatprep.subr.mxu0 0.0
  %5083 = vmatpush1.xpose.msra.mxu0 0.0
  %5084 = vmatprep.subr.mxu0 0.0
  %5085 = vmatpush1.xpose.msra.mxu0 0.0
  %5086 = vmatprep.mubr.f32.mxu0 0.0
  %5087 = vmatmul.mubr.f32.gmra.mrb[0].mxu0 %v5020
  %v5088 = vpop.f32.mrb[0].mxu0
  %v5089 = vadd.f32 %v84, %v5088
  %v5090 = vpop.f32.mrb[0].mxu0
  %5091 = vmatprep.mubr.f32.mxu0 0.0
  %5092 = vmatmul.mubr.f32.gmra.mrb[0].mxu0 %v5021
  %v5093 = vpop.f32.mrb[0].mxu0
  %v5094 = vadd.f32 %v85, %v5093
  %v5095 = vpop.f32.mrb[0].mxu0
  %5096 = vdwg.mxu0
  %v5097 = vsel %vm88, %v5089, -inf
  %5098 = vmax.xlane.f32.xlu0 %v5097
  %v5099 = vpop.xlane.xlu0 %5098
  %v5100 = vsel %vm88, %v5094, -inf
  %5101 = vmax.xlane.f32.xlu0 %v5100
  %v5102 = vpop.xlane.xlu0 %5101
  %v5103 = vsub.f32 %v5089, %v5099
  %v5104 = vsub.f32 %v5094, %v5102
  %v5105 = vmul.f32 %v5103, 1.442695
  %v5106 = vpow.pop %v5105
  %v5107 = vmul.f32 %v5104, 1.442695
  %v5108 = vpow.pop %v5107
  %v5109 = vsel %vm88, %v5106, 0.0
  %5110 = vadd.xlane.f32.xlu0 %v5109
  %v5111 = vpop.xlane.xlu0 %5110
  %v5112 = vsel %vm88, %v5108, 0.0
  %5113 = vadd.xlane.f32.xlu0 %v5112
  %v5114 = vpop.xlane.xlu0 %5113
  %v5115 = vrcp.pop %v5111
  %v5116 = vrcp.pop %v5114
  %v5117 = vmul.f32 %v5106, %v5115
  %v5118 = vmul.f32 %v5108, %v5116
  %v5119 = vmul.f32 %v4464, %v1005
  %v5120 = vmul.f32 %v4469, %v1005
  %v5122 = vsel %vm88, %v5117, 0
  %v5125 = vsel %vm88, %v5118, 0
  %5127 = vmatprep.subr.mxu0 0.0
  %5128 = vmatpush1.msra.mxu0 %v5119
  %5129 = vmatprep.subr.mxu0 0.0
  %5130 = vmatpush1.msra.mxu0 %v5120
  %5131 = vmatprep.subr.mxu0 0.0
  %5132 = vmatpush1.msra.mxu0 0.0
  %5133 = vmatprep.subr.mxu0 0.0
  %5134 = vmatpush1.msra.mxu0 0.0
  %5135 = vmatprep.subr.mxu0 0.0
  %5136 = vmatpush1.msra.mxu0 0.0
  %5137 = vmatprep.subr.mxu0 0.0
  %5138 = vmatpush1.msra.mxu0 0.0
  %5139 = vmatprep.subr.mxu0 0.0
  %5140 = vmatpush1.msra.mxu0 0.0
  %5141 = vmatprep.subr.mxu0 0.0
  %5142 = vmatpush1.msra.mxu0 0.0
  %5143 = vmatprep.subr.mxu0 0.0
  %5144 = vmatpush1.msra.mxu0 0.0
  %5145 = vmatprep.subr.mxu0 0.0
  %5146 = vmatpush1.msra.mxu0 0.0
  %5147 = vmatprep.subr.mxu0 0.0
  %5148 = vmatpush1.msra.mxu0 0.0
  %5149 = vmatprep.subr.mxu0 0.0
  %5150 = vmatpush1.msra.mxu0 0.0
  %5151 = vmatprep.subr.mxu0 0.0
  %5152 = vmatpush1.msra.mxu0 0.0
  %5153 = vmatprep.subr.mxu0 0.0
  %5154 = vmatpush1.msra.mxu0 0.0
  %5155 = vmatprep.subr.mxu0 0.0
  %5156 = vmatpush1.msra.mxu0 0.0
  %5157 = vmatprep.subr.mxu0 0.0
  %5158 = vmatpush1.msra.mxu0 0.0
  %5159 = vmatprep.subr.mxu0 0.0
  %5160 = vmatpush1.msra.mxu0 0.0
  %5161 = vmatprep.subr.mxu0 0.0
  %5162 = vmatpush1.msra.mxu0 0.0
  %5163 = vmatprep.subr.mxu0 0.0
  %5164 = vmatpush1.msra.mxu0 0.0
  %5165 = vmatprep.subr.mxu0 0.0
  %5166 = vmatpush1.msra.mxu0 0.0
  %5167 = vmatprep.subr.mxu0 0.0
  %5168 = vmatpush1.msra.mxu0 0.0
  %5169 = vmatprep.subr.mxu0 0.0
  %5170 = vmatpush1.msra.mxu0 0.0
  %5171 = vmatprep.subr.mxu0 0.0
  %5172 = vmatpush1.msra.mxu0 0.0
  %5173 = vmatprep.subr.mxu0 0.0
  %5174 = vmatpush1.msra.mxu0 0.0
  %5175 = vmatprep.subr.mxu0 0.0
  %5176 = vmatpush1.msra.mxu0 0.0
  %5177 = vmatprep.subr.mxu0 0.0
  %5178 = vmatpush1.msra.mxu0 0.0
  %5179 = vmatprep.subr.mxu0 0.0
  %5180 = vmatpush1.msra.mxu0 0.0
  %5181 = vmatprep.subr.mxu0 0.0
  %5182 = vmatpush1.msra.mxu0 0.0
  %5183 = vmatprep.subr.mxu0 0.0
  %5184 = vmatpush1.msra.mxu0 0.0
  %5185 = vmatprep.subr.mxu0 0.0
  %5186 = vmatpush1.msra.mxu0 0.0
  %5187 = vmatprep.subr.mxu0 0.0
  %5188 = vmatpush1.msra.mxu0 0.0
  %5189 = vmatprep.subr.mxu0 0.0
  %5190 = vmatpush1.msra.mxu0 0.0
  %5191 = vmatprep.mubr.f32.mxu0 0.0
  %5192 = vmatmul.mubr.f32.gmra.mrb[0].mxu0 %v5122
  %v5193 = vpop.f32.mrb[0].mxu0
  %v5194 = vadd.f32 0.0, %v5193
  %v5195 = vpop.f32.mrb[0].mxu0
  %5196 = vmatprep.mubr.f32.mxu0 0.0
  %5197 = vmatmul.mubr.f32.gmra.mrb[0].mxu0 %v5125
  %v5198 = vpop.f32.mrb[0].mxu0
  %v5199 = vadd.f32 0.0, %v5198
  %v5200 = vpop.f32.mrb[0].mxu0
  %5201 = vdwg.mxu0
  %v5202 = vadd.f32 %v5018, %v5194
  %v5203 = vadd.f32 %v5019, %v5199
  %s5204 = scalar_lea.vmem %s9, 384
  %v5205 = vld [vmem:[%s5204] sm:$0xff]
  %v5206 = vld [vmem:[%s5204 + $0x8] sm:$0xff]
  %v5207 = vld [vmem:[%s5204 + $0x10] sm:$0xff]
  %v5208 = vld [vmem:[%s5204 + $0x18] sm:$0xff]
  %v5209 = vld [vmem:[%s5204 + $0x20] sm:$0xff]
  %v5210 = vld [vmem:[%s5204 + $0x28] sm:$0xff]
  %v5211 = vld [vmem:[%s5204 + $0x30] sm:$0xff]
  %v5212 = vld [vmem:[%s5204 + $0x38] sm:$0xff]
  %v5213 = vld [vmem:[%s5204 + $0x40] sm:$0xff]
  %v5214 = vld [vmem:[%s5204 + $0x48] sm:$0xff]
  %v5215 = vld [vmem:[%s5204 + $0x50] sm:$0xff]
  %v5216 = vld [vmem:[%s5204 + $0x58] sm:$0xff]
  %v5217 = vld [vmem:[%s5204 + $0x60] sm:$0xff]
  %v5218 = vld [vmem:[%s5204 + $0x68] sm:$0xff]
  %v5219 = vld [vmem:[%s5204 + $0x70] sm:$0xff]
  %v5220 = vld [vmem:[%s5204 + $0x78] sm:$0xff]
  %s5221 = scalar_lea.vmem %s10, 3
  %v5222 = vld [vmem:[%s5221] sm:$0x1]
  %v5224 = vlaneseq
  %v5225 = vshrl.u32 %v5224, 7
  %v5226 = vsub.s32 0, %v5225
  %v5227 = vrot.slane %v5222, %v5226
  %5229 = vmatprep.subr.mxu0 0.0
  %5230 = vmatpush1.msra.mxu0 %v5205
  %5231 = vmatprep.subr.mxu0 0.0
  %5232 = vmatpush1.msra.mxu0 %v5206
  %5233 = vmatprep.subr.mxu0 0.0
  %5234 = vmatpush1.msra.mxu0 %v5207
  %5235 = vmatprep.subr.mxu0 0.0
  %5236 = vmatpush1.msra.mxu0 %v5208
  %5237 = vmatprep.subr.mxu0 0.0
  %5238 = vmatpush1.msra.mxu0 %v5209
  %5239 = vmatprep.subr.mxu0 0.0
  %5240 = vmatpush1.msra.mxu0 %v5210
  %5241 = vmatprep.subr.mxu0 0.0
  %5242 = vmatpush1.msra.mxu0 %v5211
  %5243 = vmatprep.subr.mxu0 0.0
  %5244 = vmatpush1.msra.mxu0 %v5212
  %5245 = vmatprep.subr.mxu0 0.0
  %5246 = vmatpush1.msra.mxu0 %v5213
  %5247 = vmatprep.subr.mxu0 0.0
  %5248 = vmatpush1.msra.mxu0 %v5214
  %5249 = vmatprep.subr.mxu0 0.0
  %5250 = vmatpush1.msra.mxu0 %v5215
  %5251 = vmatprep.subr.mxu0 0.0
  %5252 = vmatpush1.msra.mxu0 %v5216
  %5253 = vmatprep.subr.mxu0 0.0
  %5254 = vmatpush1.msra.mxu0 %v5217
  %5255 = vmatprep.subr.mxu0 0.0
  %5256 = vmatpush1.msra.mxu0 %v5218
  %5257 = vmatprep.subr.mxu0 0.0
  %5258 = vmatpush1.msra.mxu0 %v5219
  %5259 = vmatprep.subr.mxu0 0.0
  %5260 = vmatpush1.msra.mxu0 %v5220
  %5261 = vmatprep.subr.mxu0 0.0
  %5262 = vmatpush1.msra.mxu0 0.0
  %5263 = vmatprep.subr.mxu0 0.0
  %5264 = vmatpush1.msra.mxu0 0.0
  %5265 = vmatprep.subr.mxu0 0.0
  %5266 = vmatpush1.msra.mxu0 0.0
  %5267 = vmatprep.subr.mxu0 0.0
  %5268 = vmatpush1.msra.mxu0 0.0
  %5269 = vmatprep.subr.mxu0 0.0
  %5270 = vmatpush1.msra.mxu0 0.0
  %5271 = vmatprep.subr.mxu0 0.0
  %5272 = vmatpush1.msra.mxu0 0.0
  %5273 = vmatprep.subr.mxu0 0.0
  %5274 = vmatpush1.msra.mxu0 0.0
  %5275 = vmatprep.subr.mxu0 0.0
  %5276 = vmatpush1.msra.mxu0 0.0
  %5277 = vmatprep.subr.mxu0 0.0
  %5278 = vmatpush1.msra.mxu0 0.0
  %5279 = vmatprep.subr.mxu0 0.0
  %5280 = vmatpush1.msra.mxu0 0.0
  %5281 = vmatprep.subr.mxu0 0.0
  %5282 = vmatpush1.msra.mxu0 0.0
  %5283 = vmatprep.subr.mxu0 0.0
  %5284 = vmatpush1.msra.mxu0 0.0
  %5285 = vmatprep.subr.mxu0 0.0
  %5286 = vmatpush1.msra.mxu0 0.0
  %5287 = vmatprep.subr.mxu0 0.0
  %5288 = vmatpush1.msra.mxu0 0.0
  %5289 = vmatprep.subr.mxu0 0.0
  %5290 = vmatpush1.msra.mxu0 0.0
  %5291 = vmatprep.subr.mxu0 0.0
  %5292 = vmatpush1.msra.mxu0 0.0
  %5293 = vmatprep.mubr.f32.mxu0 0.0
  %5294 = vmatmul.mubr.f32.gmra.mrb[0].mxu0 %v5202
  %v5295 = vpop.f32.mrb[0].mxu0
  %v5296 = vadd.f32 %v5227, %v5295
  %v5297 = vpop.f32.mrb[0].mxu0
  %5298 = vmatprep.mubr.f32.mxu0 0.0
  %5299 = vmatmul.mubr.f32.gmra.mrb[0].mxu0 %v5203
  %v5300 = vpop.f32.mrb[0].mxu0
  %v5301 = vadd.f32 %v5227, %v5300
  %v5302 = vpop.f32.mrb[0].mxu0
  %5303 = vdwg.mxu0
  %v5304 = vadd.f32 %v4251, %v5296
  %v5305 = vadd.f32 %v4252, %v5301
  %s5306 = scalar_lea.vmem %s11, 3
  %v5307 = vld [vmem:[%s5306] sm:$0x1]
  %s5308 = scalar_lea.vmem %s12, 3
  %v5309 = vld [vmem:[%s5308] sm:$0x1]
  %5310 = vadd.xlane.f32.xlu0 %v5304
  %v5311 = vpop.xlane.xlu0 %5310
  %5312 = vadd.xlane.f32.xlu0 %v5305
  %v5313 = vpop.xlane.xlu0 %5312
  %v5314 = vmul.f32 %v5311, %v1296
  %v5315 = vmul.f32 %v5313, %v1296
  %v5316 = vsub.f32 %v5304, %v5314
  %v5317 = vsub.f32 %v5305, %v5315
  %v5318 = vmul.f32 %v5316, %v5316
  %v5319 = vmul.f32 %v5317, %v5317
  %5320 = vadd.xlane.f32.xlu0 %v5318
  %v5321 = vpop.xlane.xlu0 %5320
  %5322 = vadd.xlane.f32.xlu0 %v5319
  %v5323 = vpop.xlane.xlu0 %5322
  %v5324 = vmul.f32 %v5321, %v1296
  %v5325 = vmul.f32 %v5323, %v1296
  %v5326 = vadd.f32 %v5324, 1e-05
  %v5327 = vadd.f32 %v5325, 1e-05
  %v5328 = vrsqrt.pop %v5326
  %v5329 = vrsqrt.pop %v5327
  %v5330 = vmul.f32 %v5316, %v5328
  %v5331 = vmul.f32 %v5317, %v5329
  %v5333 = vlaneseq
  %v5334 = vshrl.u32 %v5333, 7
  %v5335 = vsub.s32 0, %v5334
  %v5336 = vrot.slane %v5307, %v5335
  %v5338 = vmul.f32 %v5330, %v5336
  %v5339 = vmul.f32 %v5331, %v5336
  %v5341 = vlaneseq
  %v5342 = vshrl.u32 %v5341, 7
  %v5343 = vsub.s32 0, %v5342
  %v5344 = vrot.slane %v5309, %v5343
  %v5346 = vadd.f32 %v5338, %v5344
  %v5347 = vadd.f32 %v5339, %v5344
  %s5348 = scalar_lea.vmem %s13, 384
  %v5349 = vld [vmem:[%s5348] sm:$0xff]
  %v5350 = vld [vmem:[%s5348 + $0x8] sm:$0xff]
  %v5351 = vld [vmem:[%s5348 + $0x10] sm:$0xff]
  %v5352 = vld [vmem:[%s5348 + $0x18] sm:$0xff]
  %v5353 = vld [vmem:[%s5348 + $0x20] sm:$0xff]
  %v5354 = vld [vmem:[%s5348 + $0x28] sm:$0xff]
  %v5355 = vld [vmem:[%s5348 + $0x30] sm:$0xff]
  %v5356 = vld [vmem:[%s5348 + $0x38] sm:$0xff]
  %v5357 = vld [vmem:[%s5348 + $0x40] sm:$0xff]
  %v5358 = vld [vmem:[%s5348 + $0x48] sm:$0xff]
  %v5359 = vld [vmem:[%s5348 + $0x50] sm:$0xff]
  %v5360 = vld [vmem:[%s5348 + $0x58] sm:$0xff]
  %v5361 = vld [vmem:[%s5348 + $0x60] sm:$0xff]
  %v5362 = vld [vmem:[%s5348 + $0x68] sm:$0xff]
  %v5363 = vld [vmem:[%s5348 + $0x70] sm:$0xff]
  %v5364 = vld [vmem:[%s5348 + $0x78] sm:$0xff]
  %s5365 = scalar_lea.vmem %s14, 3
  %v5366 = vld [vmem:[%s5365] sm:$0x1]
  %v5368 = vlaneseq
  %v5369 = vshrl.u32 %v5368, 7
  %v5370 = vsub.s32 0, %v5369
  %v5371 = vrot.slane %v5366, %v5370
  %5373 = vmatprep.subr.mxu0 0.0
  %5374 = vmatpush1.msra.mxu0 %v5349
  %5375 = vmatprep.subr.mxu0 0.0
  %5376 = vmatpush1.msra.mxu0 %v5350
  %5377 = vmatprep.subr.mxu0 0.0
  %5378 = vmatpush1.msra.mxu0 %v5351
  %5379 = vmatprep.subr.mxu0 0.0
  %5380 = vmatpush1.msra.mxu0 %v5352
  %5381 = vmatprep.subr.mxu0 0.0
  %5382 = vmatpush1.msra.mxu0 %v5353
  %5383 = vmatprep.subr.mxu0 0.0
  %5384 = vmatpush1.msra.mxu0 %v5354
  %5385 = vmatprep.subr.mxu0 0.0
  %5386 = vmatpush1.msra.mxu0 %v5355
  %5387 = vmatprep.subr.mxu0 0.0
  %5388 = vmatpush1.msra.mxu0 %v5356
  %5389 = vmatprep.subr.mxu0 0.0
  %5390 = vmatpush1.msra.mxu0 %v5357
  %5391 = vmatprep.subr.mxu0 0.0
  %5392 = vmatpush1.msra.mxu0 %v5358
  %5393 = vmatprep.subr.mxu0 0.0
  %5394 = vmatpush1.msra.mxu0 %v5359
  %5395 = vmatprep.subr.mxu0 0.0
  %5396 = vmatpush1.msra.mxu0 %v5360
  %5397 = vmatprep.subr.mxu0 0.0
  %5398 = vmatpush1.msra.mxu0 %v5361
  %5399 = vmatprep.subr.mxu0 0.0
  %5400 = vmatpush1.msra.mxu0 %v5362
  %5401 = vmatprep.subr.mxu0 0.0
  %5402 = vmatpush1.msra.mxu0 %v5363
  %5403 = vmatprep.subr.mxu0 0.0
  %5404 = vmatpush1.msra.mxu0 %v5364
  %5405 = vmatprep.subr.mxu0 0.0
  %5406 = vmatpush1.msra.mxu0 0.0
  %5407 = vmatprep.subr.mxu0 0.0
  %5408 = vmatpush1.msra.mxu0 0.0
  %5409 = vmatprep.subr.mxu0 0.0
  %5410 = vmatpush1.msra.mxu0 0.0
  %5411 = vmatprep.subr.mxu0 0.0
  %5412 = vmatpush1.msra.mxu0 0.0
  %5413 = vmatprep.subr.mxu0 0.0
  %5414 = vmatpush1.msra.mxu0 0.0
  %5415 = vmatprep.subr.mxu0 0.0
  %5416 = vmatpush1.msra.mxu0 0.0
  %5417 = vmatprep.subr.mxu0 0.0
  %5418 = vmatpush1.msra.mxu0 0.0
  %5419 = vmatprep.subr.mxu0 0.0
  %5420 = vmatpush1.msra.mxu0 0.0
  %5421 = vmatprep.subr.mxu0 0.0
  %5422 = vmatpush1.msra.mxu0 0.0
  %5423 = vmatprep.subr.mxu0 0.0
  %5424 = vmatpush1.msra.mxu0 0.0
  %5425 = vmatprep.subr.mxu0 0.0
  %5426 = vmatpush1.msra.mxu0 0.0
  %5427 = vmatprep.subr.mxu0 0.0
  %5428 = vmatpush1.msra.mxu0 0.0
  %5429 = vmatprep.subr.mxu0 0.0
  %5430 = vmatpush1.msra.mxu0 0.0
  %5431 = vmatprep.subr.mxu0 0.0
  %5432 = vmatpush1.msra.mxu0 0.0
  %5433 = vmatprep.subr.mxu0 0.0
  %5434 = vmatpush1.msra.mxu0 0.0
  %5435 = vmatprep.subr.mxu0 0.0
  %5436 = vmatpush1.msra.mxu0 0.0
  %5437 = vmatprep.mubr.f32.mxu0 0.0
  %5438 = vmatmul.mubr.f32.gmra.mrb[0].mxu0 %v5346
  %v5439 = vpop.f32.mrb[0].mxu0
  %v5440 = vadd.f32 %v5371, %v5439
  %v5441 = vpop.f32.mrb[0].mxu0
  %5442 = vmatprep.mubr.f32.mxu0 0.0
  %5443 = vmatmul.mubr.f32.gmra.mrb[0].mxu0 %v5347
  %v5444 = vpop.f32.mrb[0].mxu0
  %v5445 = vadd.f32 %v5371, %v5444
  %v5446 = vpop.f32.mrb[0].mxu0
  %5447 = vdwg.mxu0
  %v5448 = vmax.f32 %v5440, 0.0
  %v5449 = vmax.f32 %v5445, 0.0
  %s5450 = scalar_lea.vmem %s15, 384
  %v5451 = vld [vmem:[%s5450] sm:$0xff]
  %v5452 = vld [vmem:[%s5450 + $0x8] sm:$0xff]
  %v5453 = vld [vmem:[%s5450 + $0x10] sm:$0xff]
  %v5454 = vld [vmem:[%s5450 + $0x18] sm:$0xff]
  %v5455 = vld [vmem:[%s5450 + $0x20] sm:$0xff]
  %v5456 = vld [vmem:[%s5450 + $0x28] sm:$0xff]
  %v5457 = vld [vmem:[%s5450 + $0x30] sm:$0xff]
  %v5458 = vld [vmem:[%s5450 + $0x38] sm:$0xff]
  %v5459 = vld [vmem:[%s5450 + $0x40] sm:$0xff]
  %v5460 = vld [vmem:[%s5450 + $0x48] sm:$0xff]
  %v5461 = vld [vmem:[%s5450 + $0x50] sm:$0xff]
  %v5462 = vld [vmem:[%s5450 + $0x58] sm:$0xff]
  %v5463 = vld [vmem:[%s5450 + $0x60] sm:$0xff]
  %v5464 = vld [vmem:[%s5450 + $0x68] sm:$0xff]
  %v5465 = vld [vmem:[%s5450 + $0x70] sm:$0xff]
  %v5466 = vld [vmem:[%s5450 + $0x78] sm:$0xff]
  %s5467 = scalar_lea.vmem %s16, 3
  %v5468 = vld [vmem:[%s5467] sm:$0x1]
  %v5470 = vlaneseq
  %v5471 = vshrl.u32 %v5470, 7
  %v5472 = vsub.s32 0, %v5471
  %v5473 = vrot.slane %v5468, %v5472
  %5475 = vmatprep.subr.mxu0 0.0
  %5476 = vmatpush1.msra.mxu0 %v5451
  %5477 = vmatprep.subr.mxu0 0.0
  %5478 = vmatpush1.msra.mxu0 %v5452
  %5479 = vmatprep.subr.mxu0 0.0
  %5480 = vmatpush1.msra.mxu0 %v5453
  %5481 = vmatprep.subr.mxu0 0.0
  %5482 = vmatpush1.msra.mxu0 %v5454
  %5483 = vmatprep.subr.mxu0 0.0
  %5484 = vmatpush1.msra.mxu0 %v5455
  %5485 = vmatprep.subr.mxu0 0.0
  %5486 = vmatpush1.msra.mxu0 %v5456
  %5487 = vmatprep.subr.mxu0 0.0
  %5488 = vmatpush1.msra.mxu0 %v5457
  %5489 = vmatprep.subr.mxu0 0.0
  %5490 = vmatpush1.msra.mxu0 %v5458
  %5491 = vmatprep.subr.mxu0 0.0
  %5492 = vmatpush1.msra.mxu0 %v5459
  %5493 = vmatprep.subr.mxu0 0.0
  %5494 = vmatpush1.msra.mxu0 %v5460
  %5495 = vmatprep.subr.mxu0 0.0
  %5496 = vmatpush1.msra.mxu0 %v5461
  %5497 = vmatprep.subr.mxu0 0.0
  %5498 = vmatpush1.msra.mxu0 %v5462
  %5499 = vmatprep.subr.mxu0 0.0
  %5500 = vmatpush1.msra.mxu0 %v5463
  %5501 = vmatprep.subr.mxu0 0.0
  %5502 = vmatpush1.msra.mxu0 %v5464
  %5503 = vmatprep.subr.mxu0 0.0
  %5504 = vmatpush1.msra.mxu0 %v5465
  %5505 = vmatprep.subr.mxu0 0.0
  %5506 = vmatpush1.msra.mxu0 %v5466
  %5507 = vmatprep.subr.mxu0 0.0
  %5508 = vmatpush1.msra.mxu0 0.0
  %5509 = vmatprep.subr.mxu0 0.0
  %5510 = vmatpush1.msra.mxu0 0.0
  %5511 = vmatprep.subr.mxu0 0.0
  %5512 = vmatpush1.msra.mxu0 0.0
  %5513 = vmatprep.subr.mxu0 0.0
  %5514 = vmatpush1.msra.mxu0 0.0
  %5515 = vmatprep.subr.mxu0 0.0
  %5516 = vmatpush1.msra.mxu0 0.0
  %5517 = vmatprep.subr.mxu0 0.0
  %5518 = vmatpush1.msra.mxu0 0.0
  %5519 = vmatprep.subr.mxu0 0.0
  %5520 = vmatpush1.msra.mxu0 0.0
  %5521 = vmatprep.subr.mxu0 0.0
  %5522 = vmatpush1.msra.mxu0 0.0
  %5523 = vmatprep.subr.mxu0 0.0
  %5524 = vmatpush1.msra.mxu0 0.0
  %5525 = vmatprep.subr.mxu0 0.0
  %5526 = vmatpush1.msra.mxu0 0.0
  %5527 = vmatprep.subr.mxu0 0.0
  %5528 = vmatpush1.msra.mxu0 0.0
  %5529 = vmatprep.subr.mxu0 0.0
  %5530 = vmatpush1.msra.mxu0 0.0
  %5531 = vmatprep.subr.mxu0 0.0
  %5532 = vmatpush1.msra.mxu0 0.0
  %5533 = vmatprep.subr.mxu0 0.0
  %5534 = vmatpush1.msra.mxu0 0.0
  %5535 = vmatprep.subr.mxu0 0.0
  %5536 = vmatpush1.msra.mxu0 0.0
  %5537 = vmatprep.subr.mxu0 0.0
  %5538 = vmatpush1.msra.mxu0 0.0
  %5539 = vmatprep.mubr.f32.mxu0 0.0
  %5540 = vmatmul.mubr.f32.gmra.mrb[0].mxu0 %v5448
  %v5541 = vpop.f32.mrb[0].mxu0
  %v5542 = vadd.f32 %v5473, %v5541
  %v5543 = vpop.f32.mrb[0].mxu0
  %5544 = vmatprep.mubr.f32.mxu0 0.0
  %5545 = vmatmul.mubr.f32.gmra.mrb[0].mxu0 %v5449
  %v5546 = vpop.f32.mrb[0].mxu0
  %v5547 = vadd.f32 %v5473, %v5546
  %v5548 = vpop.f32.mrb[0].mxu0
  %5549 = vdwg.mxu0
  %v5550 = vadd.f32 %v5346, %v5542
  %v5551 = vadd.f32 %v5347, %v5547
  %s5552 = scalar_lea.vmem %s17, 3
  %v5553 = vld [vmem:[%s5552] sm:$0x1]
  %s5554 = scalar_lea.vmem %s18, 3
  %v5555 = vld [vmem:[%s5554] sm:$0x1]
  %5556 = vadd.xlane.f32.xlu0 %v5550
  %v5557 = vpop.xlane.xlu0 %5556
  %5558 = vadd.xlane.f32.xlu0 %v5551
  %v5559 = vpop.xlane.xlu0 %5558
  %v5560 = vmul.f32 %v5557, %v1296
  %v5561 = vmul.f32 %v5559, %v1296
  %v5562 = vsub.f32 %v5550, %v5560
  %v5563 = vsub.f32 %v5551, %v5561
  %v5564 = vmul.f32 %v5562, %v5562
  %v5565 = vmul.f32 %v5563, %v5563
  %5566 = vadd.xlane.f32.xlu0 %v5564
  %v5567 = vpop.xlane.xlu0 %5566
  %5568 = vadd.xlane.f32.xlu0 %v5565
  %v5569 = vpop.xlane.xlu0 %5568
  %v5570 = vmul.f32 %v5567, %v1296
  %v5571 = vmul.f32 %v5569, %v1296
  %v5572 = vadd.f32 %v5570, 1e-05
  %v5573 = vadd.f32 %v5571, 1e-05
  %v5574 = vrsqrt.pop %v5572
  %v5575 = vrsqrt.pop %v5573
  %v5576 = vmul.f32 %v5562, %v5574
  %v5577 = vmul.f32 %v5563, %v5575
  %v5579 = vlaneseq
  %v5580 = vshrl.u32 %v5579, 7
  %v5581 = vsub.s32 0, %v5580
  %v5582 = vrot.slane %v5553, %v5581
  %v5584 = vmul.f32 %v5576, %v5582
  %v5585 = vmul.f32 %v5577, %v5582
  %v5587 = vlaneseq
  %v5588 = vshrl.u32 %v5587, 7
  %v5589 = vsub.s32 0, %v5588
  %v5590 = vrot.slane %v5555, %v5589
  %v5592 = vadd.f32 %v5584, %v5590
  %v5593 = vadd.f32 %v5585, %v5590
  %v5594 = vld [vmem:[%s3] sm:$0x3]
  %v5596 = vsel %vm88, %v5594, 0
  %5598 = vmatprep.subr.mxu0 0.0
  %5599 = vmatpush1.msra.mxu0 %v5592
  %5600 = vmatprep.subr.mxu0 0.0
  %5601 = vmatpush1.msra.mxu0 %v5593
  %5602 = vmatprep.subr.mxu0 0.0
  %5603 = vmatpush1.msra.mxu0 0.0
  %5604 = vmatprep.subr.mxu0 0.0
  %5605 = vmatpush1.msra.mxu0 0.0
  %5606 = vmatprep.subr.mxu0 0.0
  %5607 = vmatpush1.msra.mxu0 0.0
  %5608 = vmatprep.subr.mxu0 0.0
  %5609 = vmatpush1.msra.mxu0 0.0
  %5610 = vmatprep.subr.mxu0 0.0
  %5611 = vmatpush1.msra.mxu0 0.0
  %5612 = vmatprep.subr.mxu0 0.0
  %5613 = vmatpush1.msra.mxu0 0.0
  %5614 = vmatprep.subr.mxu0 0.0
  %5615 = vmatpush1.msra.mxu0 0.0
  %5616 = vmatprep.subr.mxu0 0.0
  %5617 = vmatpush1.msra.mxu0 0.0
  %5618 = vmatprep.subr.mxu0 0.0
  %5619 = vmatpush1.msra.mxu0 0.0
  %5620 = vmatprep.subr.mxu0 0.0
  %5621 = vmatpush1.msra.mxu0 0.0
  %5622 = vmatprep.subr.mxu0 0.0
  %5623 = vmatpush1.msra.mxu0 0.0
  %5624 = vmatprep.subr.mxu0 0.0
  %5625 = vmatpush1.msra.mxu0 0.0
  %5626 = vmatprep.subr.mxu0 0.0
  %5627 = vmatpush1.msra.mxu0 0.0
  %5628 = vmatprep.subr.mxu0 0.0
  %5629 = vmatpush1.msra.mxu0 0.0
  %5630 = vmatprep.subr.mxu0 0.0
  %5631 = vmatpush1.msra.mxu0 0.0
  %5632 = vmatprep.subr.mxu0 0.0
  %5633 = vmatpush1.msra.mxu0 0.0
  %5634 = vmatprep.subr.mxu0 0.0
  %5635 = vmatpush1.msra.mxu0 0.0
  %5636 = vmatprep.subr.mxu0 0.0
  %5637 = vmatpush1.msra.mxu0 0.0
  %5638 = vmatprep.subr.mxu0 0.0
  %5639 = vmatpush1.msra.mxu0 0.0
  %5640 = vmatprep.subr.mxu0 0.0
  %5641 = vmatpush1.msra.mxu0 0.0
  %5642 = vmatprep.subr.mxu0 0.0
  %5643 = vmatpush1.msra.mxu0 0.0
  %5644 = vmatprep.subr.mxu0 0.0
  %5645 = vmatpush1.msra.mxu0 0.0
  %5646 = vmatprep.subr.mxu0 0.0
  %5647 = vmatpush1.msra.mxu0 0.0
  %5648 = vmatprep.subr.mxu0 0.0
  %5649 = vmatpush1.msra.mxu0 0.0
  %5650 = vmatprep.subr.mxu0 0.0
  %5651 = vmatpush1.msra.mxu0 0.0
  %5652 = vmatprep.subr.mxu0 0.0
  %5653 = vmatpush1.msra.mxu0 0.0
  %5654 = vmatprep.subr.mxu0 0.0
  %5655 = vmatpush1.msra.mxu0 0.0
  %5656 = vmatprep.subr.mxu0 0.0
  %5657 = vmatpush1.msra.mxu0 0.0
  %5658 = vmatprep.subr.mxu0 0.0
  %5659 = vmatpush1.msra.mxu0 0.0
  %5660 = vmatprep.subr.mxu0 0.0
  %5661 = vmatpush1.msra.mxu0 0.0
  %5662 = vmatprep.mubr.f32.mxu0 0.0
  %5663 = vmatmul.mubr.f32.gmra.mrb[0].mxu0 %v5596
  %v5664 = vpop.f32.mrb[0].mxu0
  %v5665 = vadd.f32 0.0, %v5664
  %v5666 = vpop.f32.mrb[0].mxu0
  %5667 = vdwg.mxu0
  %v5668 = vld [vmem:[%s19] sm:$0xff]
  %v5669 = vld [vmem:[%s19 + $0x8] sm:$0xff]
  %v5670 = vld [vmem:[%s19 + $0x10] sm:$0xff]
  %v5671 = vld [vmem:[%s19 + $0x18] sm:$0xff]
  %v5672 = vld [vmem:[%s19 + $0x20] sm:$0xff]
  %v5673 = vld [vmem:[%s19 + $0x28] sm:$0xff]
  %v5674 = vld [vmem:[%s19 + $0x30] sm:$0xff]
  %v5675 = vld [vmem:[%s19 + $0x38] sm:$0xff]
  %v5676 = vld [vmem:[%s19 + $0x40] sm:$0xff]
  %v5677 = vld [vmem:[%s19 + $0x48] sm:$0xff]
  %v5678 = vld [vmem:[%s19 + $0x50] sm:$0xff]
  %v5679 = vld [vmem:[%s19 + $0x58] sm:$0xff]
  %v5680 = vld [vmem:[%s19 + $0x60] sm:$0xff]
  %v5681 = vld [vmem:[%s19 + $0x68] sm:$0xff]
  %v5682 = vld [vmem:[%s19 + $0x70] sm:$0xff]
  %v5683 = vld [vmem:[%s19 + $0x78] sm:$0xff]
  %v5684 = vld [vmem:[%s20] sm:$0x1]
  %v5686 = vlaneseq
  %v5687 = vshrl.u32 %v5686, 7
  %v5688 = vsub.s32 0, %v5687
  %v5689 = vrot.slane %v5684, %v5688
  %5691 = vmatprep.subr.mxu0 0.0
  %5692 = vmatpush1.msra.mxu0 %v5668
  %5693 = vmatprep.subr.mxu0 0.0
  %5694 = vmatpush1.msra.mxu0 %v5669
  %5695 = vmatprep.subr.mxu0 0.0
  %5696 = vmatpush1.msra.mxu0 %v5670
  %5697 = vmatprep.subr.mxu0 0.0
  %5698 = vmatpush1.msra.mxu0 %v5671
  %5699 = vmatprep.subr.mxu0 0.0
  %5700 = vmatpush1.msra.mxu0 %v5672
  %5701 = vmatprep.subr.mxu0 0.0
  %5702 = vmatpush1.msra.mxu0 %v5673
  %5703 = vmatprep.subr.mxu0 0.0
  %5704 = vmatpush1.msra.mxu0 %v5674
  %5705 = vmatprep.subr.mxu0 0.0
  %5706 = vmatpush1.msra.mxu0 %v5675
  %5707 = vmatprep.subr.mxu0 0.0
  %5708 = vmatpush1.msra.mxu0 %v5676
  %5709 = vmatprep.subr.mxu0 0.0
  %5710 = vmatpush1.msra.mxu0 %v5677
  %5711 = vmatprep.subr.mxu0 0.0
  %5712 = vmatpush1.msra.mxu0 %v5678
  %5713 = vmatprep.subr.mxu0 0.0
  %5714 = vmatpush1.msra.mxu0 %v5679
  %5715 = vmatprep.subr.mxu0 0.0
  %5716 = vmatpush1.msra.mxu0 %v5680
  %5717 = vmatprep.subr.mxu0 0.0
  %5718 = vmatpush1.msra.mxu0 %v5681
  %5719 = vmatprep.subr.mxu0 0.0
  %5720 = vmatpush1.msra.mxu0 %v5682
  %5721 = vmatprep.subr.mxu0 0.0
  %5722 = vmatpush1.msra.mxu0 %v5683
  %5723 = vmatprep.subr.mxu0 0.0
  %5724 = vmatpush1.msra.mxu0 0.0
  %5725 = vmatprep.subr.mxu0 0.0
  %5726 = vmatpush1.msra.mxu0 0.0
  %5727 = vmatprep.subr.mxu0 0.0
  %5728 = vmatpush1.msra.mxu0 0.0
  %5729 = vmatprep.subr.mxu0 0.0
  %5730 = vmatpush1.msra.mxu0 0.0
  %5731 = vmatprep.subr.mxu0 0.0
  %5732 = vmatpush1.msra.mxu0 0.0
  %5733 = vmatprep.subr.mxu0 0.0
  %5734 = vmatpush1.msra.mxu0 0.0
  %5735 = vmatprep.subr.mxu0 0.0
  %5736 = vmatpush1.msra.mxu0 0.0
  %5737 = vmatprep.subr.mxu0 0.0
  %5738 = vmatpush1.msra.mxu0 0.0
  %5739 = vmatprep.subr.mxu0 0.0
  %5740 = vmatpush1.msra.mxu0 0.0
  %5741 = vmatprep.subr.mxu0 0.0
  %5742 = vmatpush1.msra.mxu0 0.0
  %5743 = vmatprep.subr.mxu0 0.0
  %5744 = vmatpush1.msra.mxu0 0.0
  %5745 = vmatprep.subr.mxu0 0.0
  %5746 = vmatpush1.msra.mxu0 0.0
  %5747 = vmatprep.subr.mxu0 0.0
  %5748 = vmatpush1.msra.mxu0 0.0
  %5749 = vmatprep.subr.mxu0 0.0
  %5750 = vmatpush1.msra.mxu0 0.0
  %5751 = vmatprep.subr.mxu0 0.0
  %5752 = vmatpush1.msra.mxu0 0.0
  %5753 = vmatprep.subr.mxu0 0.0
  %5754 = vmatpush1.msra.mxu0 0.0
  %5755 = vmatprep.mubr.f32.mxu0 0.0
  %5756 = vmatmul.mubr.f32.gmra.mrb[0].mxu0 %v5665
  %v5757 = vpop.f32.mrb[0].mxu0
  %v5758 = vadd.f32 %v5689, %v5757
  %v5759 = vpop.f32.mrb[0].mxu0
  %5760 = vdwg.mxu0
  %vm5761 = vcmp.gt.f32.partialorder %v5758, 0.0
  %v5762 = vmul.f32 %v5758, 0.01
  %v5763 = vsel %vm5761, %v5758, %v5762
  %v5764 = vld [vmem:[%s21] sm:$0xff]
  %v5765 = vld [vmem:[%s21 + $0x8] sm:$0xff]
  %v5766 = vld [vmem:[%s21 + $0x10] sm:$0xff]
  %v5767 = vld [vmem:[%s21 + $0x18] sm:$0xff]
  %v5768 = vld [vmem:[%s21 + $0x20] sm:$0xff]
  %v5769 = vld [vmem:[%s21 + $0x28] sm:$0xff]
  %v5770 = vld [vmem:[%s21 + $0x30] sm:$0xff]
  %v5771 = vld [vmem:[%s21 + $0x38] sm:$0xff]
  %v5772 = vld [vmem:[%s21 + $0x40] sm:$0xff]
  %v5773 = vld [vmem:[%s21 + $0x48] sm:$0xff]
  %v5774 = vld [vmem:[%s21 + $0x50] sm:$0xff]
  %v5775 = vld [vmem:[%s21 + $0x58] sm:$0xff]
  %v5776 = vld [vmem:[%s21 + $0x60] sm:$0xff]
  %v5777 = vld [vmem:[%s21 + $0x68] sm:$0xff]
  %v5778 = vld [vmem:[%s21 + $0x70] sm:$0xff]
  %v5779 = vld [vmem:[%s21 + $0x78] sm:$0xff]
  %v5780 = vld [vmem:[%s22] sm:$0x1]
  %v5782 = vlaneseq
  %v5783 = vshrl.u32 %v5782, 7
  %v5784 = vsub.s32 0, %v5783
  %v5785 = vrot.slane %v5780, %v5784
  %5787 = vmatprep.subr.mxu0 0.0
  %5788 = vmatpush1.msra.mxu0 %v5764
  %5789 = vmatprep.subr.mxu0 0.0
  %5790 = vmatpush1.msra.mxu0 %v5765
  %5791 = vmatprep.subr.mxu0 0.0
  %5792 = vmatpush1.msra.mxu0 %v5766
  %5793 = vmatprep.subr.mxu0 0.0
  %5794 = vmatpush1.msra.mxu0 %v5767
  %5795 = vmatprep.subr.mxu0 0.0
  %5796 = vmatpush1.msra.mxu0 %v5768
  %5797 = vmatprep.subr.mxu0 0.0
  %5798 = vmatpush1.msra.mxu0 %v5769
  %5799 = vmatprep.subr.mxu0 0.0
  %5800 = vmatpush1.msra.mxu0 %v5770
  %5801 = vmatprep.subr.mxu0 0.0
  %5802 = vmatpush1.msra.mxu0 %v5771
  %5803 = vmatprep.subr.mxu0 0.0
  %5804 = vmatpush1.msra.mxu0 %v5772
  %5805 = vmatprep.subr.mxu0 0.0
  %5806 = vmatpush1.msra.mxu0 %v5773
  %5807 = vmatprep.subr.mxu0 0.0
  %5808 = vmatpush1.msra.mxu0 %v5774
  %5809 = vmatprep.subr.mxu0 0.0
  %5810 = vmatpush1.msra.mxu0 %v5775
  %5811 = vmatprep.subr.mxu0 0.0
  %5812 = vmatpush1.msra.mxu0 %v5776
  %5813 = vmatprep.subr.mxu0 0.0
  %5814 = vmatpush1.msra.mxu0 %v5777
  %5815 = vmatprep.subr.mxu0 0.0
  %5816 = vmatpush1.msra.mxu0 %v5778
  %5817 = vmatprep.subr.mxu0 0.0
  %5818 = vmatpush1.msra.mxu0 %v5779
  %5819 = vmatprep.subr.mxu0 0.0
  %5820 = vmatpush1.msra.mxu0 0.0
  %5821 = vmatprep.subr.mxu0 0.0
  %5822 = vmatpush1.msra.mxu0 0.0
  %5823 = vmatprep.subr.mxu0 0.0
  %5824 = vmatpush1.msra.mxu0 0.0
  %5825 = vmatprep.subr.mxu0 0.0
  %5826 = vmatpush1.msra.mxu0 0.0
  %5827 = vmatprep.subr.mxu0 0.0
  %5828 = vmatpush1.msra.mxu0 0.0
  %5829 = vmatprep.subr.mxu0 0.0
  %5830 = vmatpush1.msra.mxu0 0.0
  %5831 = vmatprep.subr.mxu0 0.0
  %5832 = vmatpush1.msra.mxu0 0.0
  %5833 = vmatprep.subr.mxu0 0.0
  %5834 = vmatpush1.msra.mxu0 0.0
  %5835 = vmatprep.subr.mxu0 0.0
  %5836 = vmatpush1.msra.mxu0 0.0
  %5837 = vmatprep.subr.mxu0 0.0
  %5838 = vmatpush1.msra.mxu0 0.0
  %5839 = vmatprep.subr.mxu0 0.0
  %5840 = vmatpush1.msra.mxu0 0.0
  %5841 = vmatprep.subr.mxu0 0.0
  %5842 = vmatpush1.msra.mxu0 0.0
  %5843 = vmatprep.subr.mxu0 0.0
  %5844 = vmatpush1.msra.mxu0 0.0
  %5845 = vmatprep.subr.mxu0 0.0
  %5846 = vmatpush1.msra.mxu0 0.0
  %5847 = vmatprep.subr.mxu0 0.0
  %5848 = vmatpush1.msra.mxu0 0.0
  %5849 = vmatprep.subr.mxu0 0.0
  %5850 = vmatpush1.msra.mxu0 0.0
  %5851 = vmatprep.mubr.f32.mxu0 0.0
  %5852 = vmatmul.mubr.f32.gmra.mrb[0].mxu0 %v5763
  %v5853 = vpop.f32.mrb[0].mxu0
  %v5854 = vadd.f32 %v5785, %v5853
  %v5855 = vpop.f32.mrb[0].mxu0
  %5856 = vdwg.mxu0
  %vm5857 = vcmp.gt.f32.partialorder %v5854, 0.0
  %v5858 = vmul.f32 %v5854, 0.01
  %v5859 = vsel %vm5857, %v5854, %v5858
  %v5860 = vld [vmem:[%s23] sm:$0xff]
  %v5861 = vld [vmem:[%s23 + $0x8] sm:$0xff]
  %v5862 = vld [vmem:[%s23 + $0x10] sm:$0xff]
  %v5863 = vld [vmem:[%s23 + $0x18] sm:$0xff]
  %v5864 = vld [vmem:[%s23 + $0x20] sm:$0xff]
  %v5865 = vld [vmem:[%s23 + $0x28] sm:$0xff]
  %v5866 = vld [vmem:[%s23 + $0x30] sm:$0xff]
  %v5867 = vld [vmem:[%s23 + $0x38] sm:$0xff]
  %v5868 = vld [vmem:[%s23 + $0x40] sm:$0xff]
  %v5869 = vld [vmem:[%s23 + $0x48] sm:$0xff]
  %v5870 = vld [vmem:[%s23 + $0x50] sm:$0xff]
  %v5871 = vld [vmem:[%s23 + $0x58] sm:$0xff]
  %v5872 = vld [vmem:[%s23 + $0x60] sm:$0xff]
  %v5873 = vld [vmem:[%s23 + $0x68] sm:$0xff]
  %v5874 = vld [vmem:[%s23 + $0x70] sm:$0xff]
  %v5875 = vld [vmem:[%s23 + $0x78] sm:$0xff]
  %v5876 = vld [vmem:[#allocation2] sm:$0x1]
  %v5878 = vlaneseq
  %v5879 = vshrl.u32 %v5878, 7
  %v5880 = vsub.s32 0, %v5879
  %v5881 = vrot.slane %v5876, %v5880
  %5883 = vmatprep.subr.mxu0 0.0
  %5884 = vmatpush1.msra.mxu0 %v5860
  %5885 = vmatprep.subr.mxu0 0.0
  %5886 = vmatpush1.msra.mxu0 %v5861
  %5887 = vmatprep.subr.mxu0 0.0
  %5888 = vmatpush1.msra.mxu0 %v5862
  %5889 = vmatprep.subr.mxu0 0.0
  %5890 = vmatpush1.msra.mxu0 %v5863
  %5891 = vmatprep.subr.mxu0 0.0
  %5892 = vmatpush1.msra.mxu0 %v5864
  %5893 = vmatprep.subr.mxu0 0.0
  %5894 = vmatpush1.msra.mxu0 %v5865
  %5895 = vmatprep.subr.mxu0 0.0
  %5896 = vmatpush1.msra.mxu0 %v5866
  %5897 = vmatprep.subr.mxu0 0.0
  %5898 = vmatpush1.msra.mxu0 %v5867
  %5899 = vmatprep.subr.mxu0 0.0
  %5900 = vmatpush1.msra.mxu0 %v5868
  %5901 = vmatprep.subr.mxu0 0.0
  %5902 = vmatpush1.msra.mxu0 %v5869
  %5903 = vmatprep.subr.mxu0 0.0
  %5904 = vmatpush1.msra.mxu0 %v5870
  %5905 = vmatprep.subr.mxu0 0.0
  %5906 = vmatpush1.msra.mxu0 %v5871
  %5907 = vmatprep.subr.mxu0 0.0
  %5908 = vmatpush1.msra.mxu0 %v5872
  %5909 = vmatprep.subr.mxu0 0.0
  %5910 = vmatpush1.msra.mxu0 %v5873
  %5911 = vmatprep.subr.mxu0 0.0
  %5912 = vmatpush1.msra.mxu0 %v5874
  %5913 = vmatprep.subr.mxu0 0.0
  %5914 = vmatpush1.msra.mxu0 %v5875
  %5915 = vmatprep.subr.mxu0 0.0
  %5916 = vmatpush1.msra.mxu0 0.0
  %5917 = vmatprep.subr.mxu0 0.0
  %5918 = vmatpush1.msra.mxu0 0.0
  %5919 = vmatprep.subr.mxu0 0.0
  %5920 = vmatpush1.msra.mxu0 0.0
  %5921 = vmatprep.subr.mxu0 0.0
  %5922 = vmatpush1.msra.mxu0 0.0
  %5923 = vmatprep.subr.mxu0 0.0
  %5924 = vmatpush1.msra.mxu0 0.0
  %5925 = vmatprep.subr.mxu0 0.0
  %5926 = vmatpush1.msra.mxu0 0.0
  %5927 = vmatprep.subr.mxu0 0.0
  %5928 = vmatpush1.msra.mxu0 0.0
  %5929 = vmatprep.subr.mxu0 0.0
  %5930 = vmatpush1.msra.mxu0 0.0
  %5931 = vmatprep.subr.mxu0 0.0
  %5932 = vmatpush1.msra.mxu0 0.0
  %5933 = vmatprep.subr.mxu0 0.0
  %5934 = vmatpush1.msra.mxu0 0.0
  %5935 = vmatprep.subr.mxu0 0.0
  %5936 = vmatpush1.msra.mxu0 0.0
  %5937 = vmatprep.subr.mxu0 0.0
  %5938 = vmatpush1.msra.mxu0 0.0
  %5939 = vmatprep.subr.mxu0 0.0
  %5940 = vmatpush1.msra.mxu0 0.0
  %5941 = vmatprep.subr.mxu0 0.0
  %5942 = vmatpush1.msra.mxu0 0.0
  %5943 = vmatprep.subr.mxu0 0.0
  %5944 = vmatpush1.msra.mxu0 0.0
  %5945 = vmatprep.subr.mxu0 0.0
  %5946 = vmatpush1.msra.mxu0 0.0
  %5947 = vmatprep.mubr.f32.mxu0 0.0
  %5948 = vmatmul.mubr.f32.gmra.mrb[0].mxu0 %v5859
  %v5949 = vpop.f32.mrb[0].mxu0
  %v5950 = vadd.f32 %v5881, %v5949
  %v5951 = vpop.f32.mrb[0].mxu0
  %5952 = vdwg.mxu0
  %vm5953 = vcmask 1024
  %5954 = vst.msk [vmem:[%s25] sm:$0x3] %vm5953, %v5950
  // Predicated region
  $region102: #{shape_ebm_forward.1} parent=0 // pred_check
    _
  $region103: #{shape_ebm_forward.1} parent=0 // pred_check_branch
    %5956 = sbr.rel (0) target = $region105
  $region104: #{shape_ebm_forward.1} parent=0 // pred_region
    _
  $region105: #{shape_ebm_forward.1} parent=0 // pred_fallthru
    _
  // Predicated region
  $region106: #{shape_ebm_forward.1} parent=0 // pred_check
    _
  $region107: #{shape_ebm_forward.1} parent=0 // pred_check_branch
    %5958 = sbr.rel (0) target = $region109
  $region108: #{shape_ebm_forward.1} parent=0 // pred_region
    _
  $region109: #{shape_ebm_forward.1} parent=0 // pred_fallthru
    _

</llo_original>
